<compile_context>
chip_gen: v7x
topology: tpu7x:2x2x1
jax: 0.10.0
libtpu: 0.0.40
codegen_flags: <defaults>
</compile_context>

<pallas_src>
from functools import partial

import jax
import jax.numpy as jnp
import numpy as np
from jax.experimental import pallas as pl
from jax.experimental.pallas import tpu as pltpu

EPS = 1e-5  # nn.GroupNorm default eps


def _gelu(x):
    # tanh-approximate GELU (see TODO above); used for the conv GELU inside the kernel.
    c = 0.7978845608028654  # sqrt(2/pi)
    return 0.5 * x * (1.0 + jnp.tanh(c * (x + 0.044715 * x * x * x)))


def _gn1(h, gamma, beta):
    """GroupNorm(num_groups=1) on a channels-major (C, HW) tile.

    Centered two-pass statistics in f32 (avoids E[x^2]-E[x]^2 cancellation).
    gamma/beta are (C, 1) and broadcast over the lane (HW) axis.
    """
    n = float(h.shape[0] * h.shape[1])
    mean = jnp.sum(jnp.sum(h, axis=1, keepdims=True), axis=0, keepdims=True) / n
    c = h - mean
    var = jnp.sum(jnp.sum(c * c, axis=1, keepdims=True), axis=0, keepdims=True) / n
    inv = jax.lax.rsqrt(var + EPS)
    return c * (inv * gamma) + beta


def _convnext_kernel(H, W, GUARD,
                     x_ref, cond_ref, wds_ref, bds_ref, cmask_ref,
                     g1_ref, be1_ref, w1_ref, b1_ref, g2_ref, be2_ref,
                     w2_ref, b2_ref, wres_ref, bres_ref,
                     out_ref, xpad_ref, hpad_ref, ypad_ref):
    HW = H * W
    Cin = x_ref.shape[1]
    f32 = jnp.float32
    bf16 = jnp.bfloat16

    x = x_ref[0]                                              # (Cin, HW) f32, channels-major

    # ---- depthwise 7x7 conv, pad=3: row-padded flat scratch + column-mask bank ----
    TOT3 = xpad_ref.shape[1]
    OFF3 = GUARD + 3 * W
    xpad_ref[:, 0:OFF3] = jnp.zeros((Cin, OFF3), f32)                       # zero borders (cheap)
    xpad_ref[:, OFF3 + HW:TOT3] = jnp.zeros((Cin, TOT3 - OFF3 - HW), f32)
    xpad_ref[:, OFF3:OFF3 + HW] = x                                         # interior

    acc = jnp.zeros((Cin, HW), f32)
    for di in range(7):
        for dj in range(7):
            t = di * 7 + dj
            start = OFF3 + (di - 3) * W + (dj - 3)
            slab = xpad_ref[:, start:start + HW]              # lane-dense contiguous slice
            acc = acc + slab * wds_ref[:, t:t + 1] * cmask_ref[dj:dj + 1, :]
    h = acc + bds_ref[...] + cond_ref[0]                      # + bias + time condition (Cin,1)

    # ---- GroupNorm(1, dim) ----
    h = _gn1(h, g1_ref[...], be1_ref[...])

    # ---- conv1 3x3 (dim -> dim_out*mult): ONE wide-K bf16 MXU matmul ----
    TOT1 = hpad_ref.shape[1]
    OFF1 = GUARD + W
    h16 = h.astype(bf16)                                      # cast BEFORE padding / im2col
    hpad_ref[:, 0:OFF1] = jnp.zeros((Cin, OFF1), bf16)
    hpad_ref[:, OFF1 + HW:TOT1] = jnp.zeros((Cin, TOT1 - OFF1 - HW), bf16)
    hpad_ref[:, OFF1:OFF1 + HW] = h16

    def im2col3(src_ref):
        # row-padded flat bf16 scratch -> (9*C, HW) bf16 im2col slab (column mask zeros wraps)
        slabs = []
        for di in range(3):
            for dj in range(3):
                start = OFF1 + (di - 1) * W + (dj - 1)
                slabs.append(src_ref[:, start:start + HW] * cmask_ref[dj + 2:dj + 3, :])
        return jnp.concatenate(slabs, axis=0)

    y = jnp.dot(w1_ref[...], im2col3(hpad_ref),
                preferred_element_type=f32) + b1_ref[...]     # (Cmid, HW) f32

    # ---- GELU + GroupNorm(1, dim_out*mult), f32 ----
    y = _gelu(y)
    y = _gn1(y, g2_ref[...], be2_ref[...])

    # ---- conv2 3x3 (-> dim_out): wide-K bf16 MXU matmul, channels-major output ----
    Cmid = ypad_ref.shape[0]
    y16 = y.astype(bf16)
    ypad_ref[:, 0:OFF1] = jnp.zeros((Cmid, OFF1), bf16)
    ypad_ref[:, OFF1 + HW:TOT1] = jnp.zeros((Cmid, TOT1 - OFF1 - HW), bf16)
    ypad_ref[:, OFF1:OFF1 + HW] = y16
    out = jnp.dot(w2_ref[...], im2col3(ypad_ref),
                  preferred_element_type=f32) + b2_ref[...]   # (Cout, HW)

    # ---- 1x1 residual conv + add ----
    out = out + jnp.dot(wres_ref[...], x.astype(bf16),
                        preferred_element_type=f32) + bres_ref[...]
    out_ref[0] = out                                          # lane-dense (Cout, HW) store


def convnext_block_forward(x_nchw, time_emb, params):
    """ConvNextBlock forward. x_nchw: (B, Cin, H, W), time_emb: (B, Tdim). Returns NCHW."""
    x_nchw = x_nchw.astype(jnp.float32)
    B, Cin, H, W = x_nchw.shape
    Cout, Cmid = params["w2"].shape[0], params["w2"].shape[1]
    HW = H * W
    GUARD = 8
    TOT3 = 2 * GUARD + (H + 6) * W          # row-padded flat width for the 7x7 conv (pad=3)
    TOT1 = 2 * GUARD + (H + 2) * W          # row-padded flat width for the 3x3 convs (pad=1)

    # channels-major activations: pure reshape of NCHW, no HBM-side transpose.
    x = x_nchw.reshape(B, Cin, HW)

    # time-MLP (GELU -> Linear) hoisted out of the kernel (erf-exact, matches nn.GELU default).
    cond = (jax.nn.gelu(time_emb.astype(jnp.float32), approximate=False)
            @ params["w_mlp"].T + params["b_mlp"]).reshape(B, Cin, 1)

    # column-validity mask bank: row k <-> column offset rdj = k - 3 (shared by 7x7 and 3x3).
    jj = np.arange(HW) % W
    cmask_np = np.stack([((jj + (k - 3) >= 0) & (jj + (k - 3) < W)).astype(np.float32)
                         for k in range(7)], axis=0)
    cmask = jnp.asarray(cmask_np).astype(jnp.bfloat16)        # (7, HW); 0/1 exact in bf16

    # weight re-layouts (channels-major / wide-K), done once outside the kernel.
    wds = params["w_ds"].reshape(Cin, 49)
    bds = params["b_ds"].reshape(Cin, 1)
    g1 = params["g1"].reshape(Cin, 1)
    be1 = params["be1"].reshape(Cin, 1)
    w1 = jnp.transpose(params["w1"], (0, 2, 3, 1)).reshape(Cmid, 9 * Cin).astype(jnp.bfloat16)
    b1 = params["b1"].reshape(Cmid, 1)
    g2 = params["g2"].reshape(Cmid, 1)
    be2 = params["be2"].reshape(Cmid, 1)
    w2 = jnp.transpose(params["w2"], (0, 2, 3, 1)).reshape(Cout, 9 * Cmid).astype(jnp.bfloat16)
    b2 = params["b2"].reshape(Cout, 1)
    wres = params["w_res"].reshape(Cout, Cin).astype(jnp.bfloat16)
    bres = params["b_res"].reshape(Cout, 1)
    # TODO(synk): dim == dim_out uses nn.Identity for res_conv; only the 1x1-conv path
    # is implemented/exercised here.

    consts = (wds, bds, cmask, g1, be1, w1, b1, g2, be2, w2, b2, wres, bres)
    const_bytes = sum(int(a.size) * a.dtype.itemsize for a in consts)

    # derived VMEM budget: double-buffered x/cond/out windows + consts + scratch + live values.
    window_bytes = 2 * 4 * (Cin * HW + Cin + Cout * HW)
    scratch_bytes = 4 * Cin * TOT3 + 2 * (Cin + Cmid) * TOT1
    live_bytes = 2 * 9 * (Cin + Cmid) * HW + 4 * (4 * Cin + 4 * Cmid + 2 * Cout) * HW
    vmem_limit = int(min(100 << 20, max(16 << 20,
                     2 * (window_bytes + 2 * const_bytes + scratch_bytes + live_bytes))))

    flops = int(B * HW * 2 * (49 * Cin + 9 * Cin * Cmid + 9 * Cmid * Cout + Cin * Cout))
    transcendentals = int(B * HW * Cmid)
    bytes_accessed = int(4 * (x.size + cond.size + B * Cout * HW) + const_bytes)

    kernel = partial(_convnext_kernel, H, W, GUARD)
    scratch = [pltpu.VMEM((Cin, TOT3), jnp.float32),      # x, row-padded flat (f32, VPU dw-conv)
               pltpu.VMEM((Cin, TOT1), jnp.bfloat16),     # h, row-padded flat (bf16, conv1 im2col)
               pltpu.VMEM((Cmid, TOT1), jnp.bfloat16)]    # y, row-padded flat (bf16, conv2 im2col)

    def _call(single_buffer_weights):
        if single_buffer_weights:
            # grid-invariant weights: single-buffered -> halves their VMEM residency.
            cspecs = [pl.BlockSpec(tuple(a.shape), lambda b, nd=a.ndim: (0,) * nd,
                                   pipeline_mode=pl.Buffered(1)) for a in consts]
        else:
            cspecs = [pl.BlockSpec(tuple(a.shape), lambda b, nd=a.ndim: (0,) * nd)
                      for a in consts]
        return pl.pallas_call(
            kernel,
            out_shape=jax.ShapeDtypeStruct((B, Cout, HW), jnp.float32),
            grid=(B,),
            in_specs=[pl.BlockSpec((1, Cin, HW), lambda b: (b, 0, 0)),
                      pl.BlockSpec((1, Cin, 1), lambda b: (b, 0, 0))] + cspecs,
            out_specs=pl.BlockSpec((1, Cout, HW), lambda b: (b, 0, 0)),
            scratch_shapes=scratch,
            compiler_params=pltpu.CompilerParams(
                dimension_semantics=("parallel",),
                vmem_limit_bytes=vmem_limit),
            cost_estimate=pl.CostEstimate(flops=flops,
                                          transcendentals=transcendentals,
                                          bytes_accessed=bytes_accessed),
        )(x, cond, *consts)

    try:
        out = _call(True)
    except Exception:
        # TODO(synk): fallback for jax versions without pipeline_mode=pl.Buffered(1) support.
        out = _call(False)

    return out.reshape(B, Cout, H, W)          # NCHW via reshape only — no transpose


# ---------------------------------------------------------------------------
# pure-JAX reference (correctness check only; conv GELU uses the same tanh form)
# ---------------------------------------------------------------------------
def _reference(x, t, p):
    x = x.astype(jnp.float32)
    Cin = x.shape[1]
    hi = jax.lax.Precision.HIGHEST

    def gn(u, g, b):
        mean = u.mean(axis=(1, 2, 3), keepdims=True)
        var = ((u - mean) ** 2).mean(axis=(1, 2, 3), keepdims=True)
        un = (u - mean) * jax.lax.rsqrt(var + EPS)
        return un * g.reshape(1, -1, 1, 1) + b.reshape(1, -1, 1, 1)

    h = jax.lax.conv_general_dilated(
        x, p["w_ds"], (1, 1), [(3, 3), (3, 3)],
        dimension_numbers=("NCHW", "OIHW", "NCHW"),
        feature_group_count=Cin, precision=hi) + p["b_ds"].reshape(1, -1, 1, 1)
    cond = (jax.nn.gelu(t.astype(jnp.float32), approximate=False)
            @ p["w_mlp"].T + p["b_mlp"])
    h = h + cond[:, :, None, None]
    h = gn(h, p["g1"], p["be1"])
    h = jax.lax.conv_general_dilated(
        h, p["w1"], (1, 1), [(1, 1), (1, 1)],
        dimension_numbers=("NCHW", "OIHW", "NCHW"),
        precision=hi) + p["b1"].reshape(1, -1, 1, 1)
    h = _gelu(h)
    h = gn(h, p["g2"], p["be2"])
    h = jax.lax.conv_general_dilated(
        h, p["w2"], (1, 1), [(1, 1), (1, 1)],
        dimension_numbers=("NCHW", "OIHW", "NCHW"),
        precision=hi) + p["b2"].reshape(1, -1, 1, 1)
    res = jax.lax.conv_general_dilated(
        x, p["w_res"], (1, 1), [(0, 0), (0, 0)],
        dimension_numbers=("NCHW", "OIHW", "NCHW"),
        precision=hi) + p["b_res"].reshape(1, -1, 1, 1)
    return h + res


if __name__ == "__main__":
    B, Cin, Cout, mult, H, W, Tdim = 2, 8, 16, 2, 16, 16, 32
    Cmid = Cout * mult

    key = jax.random.PRNGKey(0)
    ks = jax.random.split(key, 16)
    params = {
        "w_ds":  0.2 * jax.random.normal(ks[0], (Cin, 1, 7, 7), jnp.float32),
        "b_ds":  0.1 * jax.random.normal(ks[1], (Cin,), jnp.float32),
        "w_mlp": 0.1 * jax.random.normal(ks[2], (Cin, Tdim), jnp.float32),
        "b_mlp": 0.1 * jax.random.normal(ks[3], (Cin,), jnp.float32),
        "g1":    1.0 + 0.1 * jax.random.normal(ks[4], (Cin,), jnp.float32),
        "be1":   0.1 * jax.random.normal(ks[5], (Cin,), jnp.float32),
        "w1":    0.1 * jax.random.normal(ks[6], (Cmid, Cin, 3, 3), jnp.float32),
        "b1":    0.1 * jax.random.normal(ks[7], (Cmid,), jnp.float32),
        "g2":    1.0 + 0.1 * jax.random.normal(ks[8], (Cmid,), jnp.float32),
        "be2":   0.1 * jax.random.normal(ks[9], (Cmid,), jnp.float32),
        "w2":    0.1 * jax.random.normal(ks[10], (Cout, Cmid, 3, 3), jnp.float32),
        "b2":    0.1 * jax.random.normal(ks[11], (Cout,), jnp.float32),
        "w_res": 0.2 * jax.random.normal(ks[12], (Cout, Cin, 1, 1), jnp.float32),
        "b_res": 0.1 * jax.random.normal(ks[13], (Cout,), jnp.float32),
    }

    x = jax.random.normal(ks[14], (B, Cin, H, W), jnp.float32)
    t = jax.random.normal(ks[15], (B, Tdim), jnp.float32)

    out = jax.block_until_ready(convnext_block_forward(x, t, params))
    ref = jax.block_until_ready(_reference(x, t, params))
    np.testing.assert_allclose(np.asarray(out), np.asarray(ref), rtol=3e-2, atol=3e-2)
    print("KERNEL_OK")
</pallas_src>

<mosaic_0001>
module attributes {stable_mosaic.version = 11 : i64} {
  func.func @_convnext_kernel(%arg0: i32, %arg1: memref<1x8x256xf32, #tpu.memory_space<vmem>>, %arg2: memref<1x8x1xf32, #tpu.memory_space<vmem>>, %arg3: memref<8x49xf32, #tpu.memory_space<vmem>>, %arg4: memref<8x1xf32, #tpu.memory_space<vmem>>, %arg5: memref<7x256xbf16, #tpu.memory_space<vmem>>, %arg6: memref<8x1xf32, #tpu.memory_space<vmem>>, %arg7: memref<8x1xf32, #tpu.memory_space<vmem>>, %arg8: memref<32x72xbf16, #tpu.memory_space<vmem>>, %arg9: memref<32x1xf32, #tpu.memory_space<vmem>>, %arg10: memref<32x1xf32, #tpu.memory_space<vmem>>, %arg11: memref<32x1xf32, #tpu.memory_space<vmem>>, %arg12: memref<16x288xbf16, #tpu.memory_space<vmem>>, %arg13: memref<16x1xf32, #tpu.memory_space<vmem>>, %arg14: memref<16x8xbf16, #tpu.memory_space<vmem>>, %arg15: memref<16x1xf32, #tpu.memory_space<vmem>>, %arg16: memref<1x16x256xf32, #tpu.memory_space<vmem>>, %arg17: memref<8x368xf32, #tpu.memory_space<vmem>>, %arg18: memref<8x304xbf16, #tpu.memory_space<vmem>>, %arg19: memref<32x304xbf16, #tpu.memory_space<vmem>>) attributes {dimension_semantics = [#tpu.dimension_semantics<parallel>], iteration_bounds = array<i64: 2>, scalar_prefetch = 0 : i64, scratch_operands = 3 : i64, tpu.core_type = #tpu.core_type<tc>, window_params = [{transform_indices = @transform_0, window_bounds = array<i64: 1, 8, 256>}, {transform_indices = @transform_1, window_bounds = array<i64: 1, 8, 1>}, {pipeline_mode = #tpu.pipeline_mode<synchronous>, transform_indices = @transform_2, window_bounds = array<i64: 8, 49>}, {pipeline_mode = #tpu.pipeline_mode<synchronous>, transform_indices = @transform_3, window_bounds = array<i64: 8, 1>}, {pipeline_mode = #tpu.pipeline_mode<synchronous>, transform_indices = @transform_4, window_bounds = array<i64: 7, 256>}, {pipeline_mode = #tpu.pipeline_mode<synchronous>, transform_indices = @transform_5, window_bounds = array<i64: 8, 1>}, {pipeline_mode = #tpu.pipeline_mode<synchronous>, transform_indices = @transform_6, window_bounds = array<i64: 8, 1>}, {pipeline_mode = #tpu.pipeline_mode<synchronous>, transform_indices = @transform_7, window_bounds = array<i64: 32, 72>}, {pipeline_mode = #tpu.pipeline_mode<synchronous>, transform_indices = @transform_8, window_bounds = array<i64: 32, 1>}, {pipeline_mode = #tpu.pipeline_mode<synchronous>, transform_indices = @transform_9, window_bounds = array<i64: 32, 1>}, {pipeline_mode = #tpu.pipeline_mode<synchronous>, transform_indices = @transform_10, window_bounds = array<i64: 32, 1>}, {pipeline_mode = #tpu.pipeline_mode<synchronous>, transform_indices = @transform_11, window_bounds = array<i64: 16, 288>}, {pipeline_mode = #tpu.pipeline_mode<synchronous>, transform_indices = @transform_12, window_bounds = array<i64: 16, 1>}, {pipeline_mode = #tpu.pipeline_mode<synchronous>, transform_indices = @transform_13, window_bounds = array<i64: 16, 8>}, {pipeline_mode = #tpu.pipeline_mode<synchronous>, transform_indices = @transform_14, window_bounds = array<i64: 16, 1>}, {transform_indices = @transform_15, window_bounds = array<i64: 1, 16, 256>}]} {
    %c0 = arith.constant 0 : index
    %c0_0 = arith.constant 0 : index
    %c0_1 = arith.constant 0 : index
    %0 = vector.load %arg1[%c0, %c0_0, %c0_1] : memref<1x8x256xf32, #tpu.memory_space<vmem>>, vector<1x8x256xf32>
    %1 = vector.shape_cast %0 : vector<1x8x256xf32> to vector<8x256xf32>
    %cst = arith.constant 0.000000e+00 : f32
    %2 = vector.broadcast %cst : f32 to vector<8x56xf32>
    %c0_2 = arith.constant 0 : index
    %c0_3 = arith.constant 0 : index
    %3 = vector.load %arg17[%c0_2, %c0_3] : memref<8x368xf32, #tpu.memory_space<vmem>>, vector<8x56xf32>
    tpu.vector_store %arg17[%c0_2, %c0_3], %2 {strides = array<i32>} : memref<8x368xf32, #tpu.memory_space<vmem>>, vector<8x56xf32>,
    %cst_4 = arith.constant 0.000000e+00 : f32
    %4 = vector.broadcast %cst_4 : f32 to vector<8x56xf32>
    %c0_5 = arith.constant 0 : index
    %c312 = arith.constant 312 : index
    %5 = vector.load %arg17[%c0_5, %c312] : memref<8x368xf32, #tpu.memory_space<vmem>>, vector<8x56xf32>
    tpu.vector_store %arg17[%c0_5, %c312], %4 {strides = array<i32>} : memref<8x368xf32, #tpu.memory_space<vmem>>, vector<8x56xf32>,
    %c0_6 = arith.constant 0 : index
    %c56 = arith.constant 56 : index
    %6 = vector.load %arg17[%c0_6, %c56] : memref<8x368xf32, #tpu.memory_space<vmem>>, vector<8x256xf32>
    tpu.vector_store %arg17[%c0_6, %c56], %1 {strides = array<i32>} : memref<8x368xf32, #tpu.memory_space<vmem>>, vector<8x256xf32>,
    %cst_7 = arith.constant 0.000000e+00 : f32
    %7 = vector.broadcast %cst_7 : f32 to vector<8x256xf32>
    %c0_8 = arith.constant 0 : index
    %c5 = arith.constant 5 : index
    %8 = vector.load %arg17[%c0_8, %c5] : memref<8x368xf32, #tpu.memory_space<vmem>>, vector<8x256xf32>
    %c0_9 = arith.constant 0 : index
    %c0_10 = arith.constant 0 : index
    %9 = vector.load %arg3[%c0_9, %c0_10] : memref<8x49xf32, #tpu.memory_space<vmem>>, vector<8x1xf32>
    %10 = vector.broadcast %9 : vector<8x1xf32> to vector<8x256xf32>
    %11 = arith.mulf %8, %10 : vector<8x256xf32>
    %c0_11 = arith.constant 0 : index
    %c0_12 = arith.constant 0 : index
    %12 = vector.load %arg5[%c0_11, %c0_12] : memref<7x256xbf16, #tpu.memory_space<vmem>>, vector<1x256xbf16>
    %13 = arith.extf %12 : vector<1x256xbf16> to vector<1x256xf32>
    %14 = vector.broadcast %13 : vector<1x256xf32> to vector<8x256xf32>
    %15 = arith.mulf %11, %14 : vector<8x256xf32>
    %16 = arith.addf %7, %15 : vector<8x256xf32>
    %c0_13 = arith.constant 0 : index
    %c6 = arith.constant 6 : index
    %17 = vector.load %arg17[%c0_13, %c6] : memref<8x368xf32, #tpu.memory_space<vmem>>, vector<8x256xf32>
    %c0_14 = arith.constant 0 : index
    %c1 = arith.constant 1 : index
    %18 = vector.load %arg3[%c0_14, %c1] : memref<8x49xf32, #tpu.memory_space<vmem>>, vector<8x1xf32>
    %19 = vector.broadcast %18 : vector<8x1xf32> to vector<8x256xf32>
    %20 = arith.mulf %17, %19 : vector<8x256xf32>
    %c1_15 = arith.constant 1 : index
    %c0_16 = arith.constant 0 : index
    %21 = vector.load %arg5[%c1_15, %c0_16] : memref<7x256xbf16, #tpu.memory_space<vmem>>, vector<1x256xbf16>
    %22 = arith.extf %21 : vector<1x256xbf16> to vector<1x256xf32>
    %23 = vector.broadcast %22 : vector<1x256xf32> to vector<8x256xf32>
    %24 = arith.mulf %20, %23 : vector<8x256xf32>
    %25 = arith.addf %16, %24 : vector<8x256xf32>
    %c0_17 = arith.constant 0 : index
    %c7 = arith.constant 7 : index
    %26 = vector.load %arg17[%c0_17, %c7] : memref<8x368xf32, #tpu.memory_space<vmem>>, vector<8x256xf32>
    %c0_18 = arith.constant 0 : index
    %c2 = arith.constant 2 : index
    %27 = vector.load %arg3[%c0_18, %c2] : memref<8x49xf32, #tpu.memory_space<vmem>>, vector<8x1xf32>
    %28 = vector.broadcast %27 : vector<8x1xf32> to vector<8x256xf32>
    %29 = arith.mulf %26, %28 : vector<8x256xf32>
    %c2_19 = arith.constant 2 : index
    %c0_20 = arith.constant 0 : index
    %30 = vector.load %arg5[%c2_19, %c0_20] : memref<7x256xbf16, #tpu.memory_space<vmem>>, vector<1x256xbf16>
    %31 = arith.extf %30 : vector<1x256xbf16> to vector<1x256xf32>
    %32 = vector.broadcast %31 : vector<1x256xf32> to vector<8x256xf32>
    %33 = arith.mulf %29, %32 : vector<8x256xf32>
    %34 = arith.addf %25, %33 : vector<8x256xf32>
    %c0_21 = arith.constant 0 : index
    %c8 = arith.constant 8 : index
    %35 = vector.load %arg17[%c0_21, %c8] : memref<8x368xf32, #tpu.memory_space<vmem>>, vector<8x256xf32>
    %c0_22 = arith.constant 0 : index
    %c3 = arith.constant 3 : index
    %36 = vector.load %arg3[%c0_22, %c3] : memref<8x49xf32, #tpu.memory_space<vmem>>, vector<8x1xf32>
    %37 = vector.broadcast %36 : vector<8x1xf32> to vector<8x256xf32>
    %38 = arith.mulf %35, %37 : vector<8x256xf32>
    %c3_23 = arith.constant 3 : index
    %c0_24 = arith.constant 0 : index
    %39 = vector.load %arg5[%c3_23, %c0_24] : memref<7x256xbf16, #tpu.memory_space<vmem>>, vector<1x256xbf16>
    %40 = arith.extf %39 : vector<1x256xbf16> to vector<1x256xf32>
    %41 = vector.broadcast %40 : vector<1x256xf32> to vector<8x256xf32>
    %42 = arith.mulf %38, %41 : vector<8x256xf32>
    %43 = arith.addf %34, %42 : vector<8x256xf32>
    %c0_25 = arith.constant 0 : index
    %c9 = arith.constant 9 : index
    %44 = vector.load %arg17[%c0_25, %c9] : memref<8x368xf32, #tpu.memory_space<vmem>>, vector<8x256xf32>
    %c0_26 = arith.constant 0 : index
    %c4 = arith.constant 4 : index
    %45 = vector.load %arg3[%c0_26, %c4] : memref<8x49xf32, #tpu.memory_space<vmem>>, vector<8x1xf32>
    %46 = vector.broadcast %45 : vector<8x1xf32> to vector<8x256xf32>
    %47 = arith.mulf %44, %46 : vector<8x256xf32>
    %c4_27 = arith.constant 4 : index
    %c0_28 = arith.constant 0 : index
    %48 = vector.load %arg5[%c4_27, %c0_28] : memref<7x256xbf16, #tpu.memory_space<vmem>>, vector<1x256xbf16>
    %49 = arith.extf %48 : vector<1x256xbf16> to vector<1x256xf32>
    %50 = vector.broadcast %49 : vector<1x256xf32> to vector<8x256xf32>
    %51 = arith.mulf %47, %50 : vector<8x256xf32>
    %52 = arith.addf %43, %51 : vector<8x256xf32>
    %c0_29 = arith.constant 0 : index
    %c10 = arith.constant 10 : index
    %53 = vector.load %arg17[%c0_29, %c10] : memref<8x368xf32, #tpu.memory_space<vmem>>, vector<8x256xf32>
    %c0_30 = arith.constant 0 : index
    %c5_31 = arith.constant 5 : index
    %54 = vector.load %arg3[%c0_30, %c5_31] : memref<8x49xf32, #tpu.memory_space<vmem>>, vector<8x1xf32>
    %55 = vector.broadcast %54 : vector<8x1xf32> to vector<8x256xf32>
    %56 = arith.mulf %53, %55 : vector<8x256xf32>
    %c5_32 = arith.constant 5 : index
    %c0_33 = arith.constant 0 : index
    %57 = vector.load %arg5[%c5_32, %c0_33] : memref<7x256xbf16, #tpu.memory_space<vmem>>, vector<1x256xbf16>
    %58 = arith.extf %57 : vector<1x256xbf16> to vector<1x256xf32>
    %59 = vector.broadcast %58 : vector<1x256xf32> to vector<8x256xf32>
    %60 = arith.mulf %56, %59 : vector<8x256xf32>
    %61 = arith.addf %52, %60 : vector<8x256xf32>
    %c0_34 = arith.constant 0 : index
    %c11 = arith.constant 11 : index
    %62 = vector.load %arg17[%c0_34, %c11] : memref<8x368xf32, #tpu.memory_space<vmem>>, vector<8x256xf32>
    %c0_35 = arith.constant 0 : index
    %c6_36 = arith.constant 6 : index
    %63 = vector.load %arg3[%c0_35, %c6_36] : memref<8x49xf32, #tpu.memory_space<vmem>>, vector<8x1xf32>
    %64 = vector.broadcast %63 : vector<8x1xf32> to vector<8x256xf32>
    %65 = arith.mulf %62, %64 : vector<8x256xf32>
    %c6_37 = arith.constant 6 : index
    %c0_38 = arith.constant 0 : index
    %66 = vector.load %arg5[%c6_37, %c0_38] : memref<7x256xbf16, #tpu.memory_space<vmem>>, vector<1x256xbf16>
    %67 = arith.extf %66 : vector<1x256xbf16> to vector<1x256xf32>
    %68 = vector.broadcast %67 : vector<1x256xf32> to vector<8x256xf32>
    %69 = arith.mulf %65, %68 : vector<8x256xf32>
    %70 = arith.addf %61, %69 : vector<8x256xf32>
    %c0_39 = arith.constant 0 : index
    %c21 = arith.constant 21 : index
    %71 = vector.load %arg17[%c0_39, %c21] : memref<8x368xf32, #tpu.memory_space<vmem>>, vector<8x256xf32>
    %c0_40 = arith.constant 0 : index
    %c7_41 = arith.constant 7 : index
    %72 = vector.load %arg3[%c0_40, %c7_41] : memref<8x49xf32, #tpu.memory_space<vmem>>, vector<8x1xf32>
    %73 = vector.broadcast %72 : vector<8x1xf32> to vector<8x256xf32>
    %74 = arith.mulf %71, %73 : vector<8x256xf32>
    %c0_42 = arith.constant 0 : index
    %c0_43 = arith.constant 0 : index
    %75 = vector.load %arg5[%c0_42, %c0_43] : memref<7x256xbf16, #tpu.memory_space<vmem>>, vector<1x256xbf16>
    %76 = arith.extf %75 : vector<1x256xbf16> to vector<1x256xf32>
    %77 = vector.broadcast %76 : vector<1x256xf32> to vector<8x256xf32>
    %78 = arith.mulf %74, %77 : vector<8x256xf32>
    %79 = arith.addf %70, %78 : vector<8x256xf32>
    %c0_44 = arith.constant 0 : index
    %c22 = arith.constant 22 : index
    %80 = vector.load %arg17[%c0_44, %c22] : memref<8x368xf32, #tpu.memory_space<vmem>>, vector<8x256xf32>
    %c0_45 = arith.constant 0 : index
    %c8_46 = arith.constant 8 : index
    %81 = vector.load %arg3[%c0_45, %c8_46] : memref<8x49xf32, #tpu.memory_space<vmem>>, vector<8x1xf32>
    %82 = vector.broadcast %81 : vector<8x1xf32> to vector<8x256xf32>
    %83 = arith.mulf %80, %82 : vector<8x256xf32>
    %c1_47 = arith.constant 1 : index
    %c0_48 = arith.constant 0 : index
    %84 = vector.load %arg5[%c1_47, %c0_48] : memref<7x256xbf16, #tpu.memory_space<vmem>>, vector<1x256xbf16>
    %85 = arith.extf %84 : vector<1x256xbf16> to vector<1x256xf32>
    %86 = vector.broadcast %85 : vector<1x256xf32> to vector<8x256xf32>
    %87 = arith.mulf %83, %86 : vector<8x256xf32>
    %88 = arith.addf %79, %87 : vector<8x256xf32>
    %c0_49 = arith.constant 0 : index
    %c23 = arith.constant 23 : index
    %89 = vector.load %arg17[%c0_49, %c23] : memref<8x368xf32, #tpu.memory_space<vmem>>, vector<8x256xf32>
    %c0_50 = arith.constant 0 : index
    %c9_51 = arith.constant 9 : index
    %90 = vector.load %arg3[%c0_50, %c9_51] : memref<8x49xf32, #tpu.memory_space<vmem>>, vector<8x1xf32>
    %91 = vector.broadcast %90 : vector<8x1xf32> to vector<8x256xf32>
    %92 = arith.mulf %89, %91 : vector<8x256xf32>
    %c2_52 = arith.constant 2 : index
    %c0_53 = arith.constant 0 : index
    %93 = vector.load %arg5[%c2_52, %c0_53] : memref<7x256xbf16, #tpu.memory_space<vmem>>, vector<1x256xbf16>
    %94 = arith.extf %93 : vector<1x256xbf16> to vector<1x256xf32>
    %95 = vector.broadcast %94 : vector<1x256xf32> to vector<8x256xf32>
    %96 = arith.mulf %92, %95 : vector<8x256xf32>
    %97 = arith.addf %88, %96 : vector<8x256xf32>
    %c0_54 = arith.constant 0 : index
    %c24 = arith.constant 24 : index
    %98 = vector.load %arg17[%c0_54, %c24] : memref<8x368xf32, #tpu.memory_space<vmem>>, vector<8x256xf32>
    %c0_55 = arith.constant 0 : index
    %c10_56 = arith.constant 10 : index
    %99 = vector.load %arg3[%c0_55, %c10_56] : memref<8x49xf32, #tpu.memory_space<vmem>>, vector<8x1xf32>
    %100 = vector.broadcast %99 : vector<8x1xf32> to vector<8x256xf32>
    %101 = arith.mulf %98, %100 : vector<8x256xf32>
    %c3_57 = arith.constant 3 : index
    %c0_58 = arith.constant 0 : index
    %102 = vector.load %arg5[%c3_57, %c0_58] : memref<7x256xbf16, #tpu.memory_space<vmem>>, vector<1x256xbf16>
    %103 = arith.extf %102 : vector<1x256xbf16> to vector<1x256xf32>
    %104 = vector.broadcast %103 : vector<1x256xf32> to vector<8x256xf32>
    %105 = arith.mulf %101, %104 : vector<8x256xf32>
    %106 = arith.addf %97, %105 : vector<8x256xf32>
    %c0_59 = arith.constant 0 : index
    %c25 = arith.constant 25 : index
    %107 = vector.load %arg17[%c0_59, %c25] : memref<8x368xf32, #tpu.memory_space<vmem>>, vector<8x256xf32>
    %c0_60 = arith.constant 0 : index
    %c11_61 = arith.constant 11 : index
    %108 = vector.load %arg3[%c0_60, %c11_61] : memref<8x49xf32, #tpu.memory_space<vmem>>, vector<8x1xf32>
    %109 = vector.broadcast %108 : vector<8x1xf32> to vector<8x256xf32>
    %110 = arith.mulf %107, %109 : vector<8x256xf32>
    %c4_62 = arith.constant 4 : index
    %c0_63 = arith.constant 0 : index
    %111 = vector.load %arg5[%c4_62, %c0_63] : memref<7x256xbf16, #tpu.memory_space<vmem>>, vector<1x256xbf16>
    %112 = arith.extf %111 : vector<1x256xbf16> to vector<1x256xf32>
    %113 = vector.broadcast %112 : vector<1x256xf32> to vector<8x256xf32>
    %114 = arith.mulf %110, %113 : vector<8x256xf32>
    %115 = arith.addf %106, %114 : vector<8x256xf32>
    %c0_64 = arith.constant 0 : index
    %c26 = arith.constant 26 : index
    %116 = vector.load %arg17[%c0_64, %c26] : memref<8x368xf32, #tpu.memory_space<vmem>>, vector<8x256xf32>
    %c0_65 = arith.constant 0 : index
    %c12 = arith.constant 12 : index
    %117 = vector.load %arg3[%c0_65, %c12] : memref<8x49xf32, #tpu.memory_space<vmem>>, vector<8x1xf32>
    %118 = vector.broadcast %117 : vector<8x1xf32> to vector<8x256xf32>
    %119 = arith.mulf %116, %118 : vector<8x256xf32>
    %c5_66 = arith.constant 5 : index
    %c0_67 = arith.constant 0 : index
    %120 = vector.load %arg5[%c5_66, %c0_67] : memref<7x256xbf16, #tpu.memory_space<vmem>>, vector<1x256xbf16>
    %121 = arith.extf %120 : vector<1x256xbf16> to vector<1x256xf32>
    %122 = vector.broadcast %121 : vector<1x256xf32> to vector<8x256xf32>
    %123 = arith.mulf %119, %122 : vector<8x256xf32>
    %124 = arith.addf %115, %123 : vector<8x256xf32>
    %c0_68 = arith.constant 0 : index
    %c27 = arith.constant 27 : index
    %125 = vector.load %arg17[%c0_68, %c27] : memref<8x368xf32, #tpu.memory_space<vmem>>, vector<8x256xf32>
    %c0_69 = arith.constant 0 : index
    %c13 = arith.constant 13 : index
    %126 = vector.load %arg3[%c0_69, %c13] : memref<8x49xf32, #tpu.memory_space<vmem>>, vector<8x1xf32>
    %127 = vector.broadcast %126 : vector<8x1xf32> to vector<8x256xf32>
    %128 = arith.mulf %125, %127 : vector<8x256xf32>
    %c6_70 = arith.constant 6 : index
    %c0_71 = arith.constant 0 : index
    %129 = vector.load %arg5[%c6_70, %c0_71] : memref<7x256xbf16, #tpu.memory_space<vmem>>, vector<1x256xbf16>
    %130 = arith.extf %129 : vector<1x256xbf16> to vector<1x256xf32>
    %131 = vector.broadcast %130 : vector<1x256xf32> to vector<8x256xf32>
    %132 = arith.mulf %128, %131 : vector<8x256xf32>
    %133 = arith.addf %124, %132 : vector<8x256xf32>
    %c0_72 = arith.constant 0 : index
    %c37 = arith.constant 37 : index
    %134 = vector.load %arg17[%c0_72, %c37] : memref<8x368xf32, #tpu.memory_space<vmem>>, vector<8x256xf32>
    %c0_73 = arith.constant 0 : index
    %c14 = arith.constant 14 : index
    %135 = vector.load %arg3[%c0_73, %c14] : memref<8x49xf32, #tpu.memory_space<vmem>>, vector<8x1xf32>
    %136 = vector.broadcast %135 : vector<8x1xf32> to vector<8x256xf32>
    %137 = arith.mulf %134, %136 : vector<8x256xf32>
    %c0_74 = arith.constant 0 : index
    %c0_75 = arith.constant 0 : index
    %138 = vector.load %arg5[%c0_74, %c0_75] : memref<7x256xbf16, #tpu.memory_space<vmem>>, vector<1x256xbf16>
    %139 = arith.extf %138 : vector<1x256xbf16> to vector<1x256xf32>
    %140 = vector.broadcast %139 : vector<1x256xf32> to vector<8x256xf32>
    %141 = arith.mulf %137, %140 : vector<8x256xf32>
    %142 = arith.addf %133, %141 : vector<8x256xf32>
    %c0_76 = arith.constant 0 : index
    %c38 = arith.constant 38 : index
    %143 = vector.load %arg17[%c0_76, %c38] : memref<8x368xf32, #tpu.memory_space<vmem>>, vector<8x256xf32>
    %c0_77 = arith.constant 0 : index
    %c15 = arith.constant 15 : index
    %144 = vector.load %arg3[%c0_77, %c15] : memref<8x49xf32, #tpu.memory_space<vmem>>, vector<8x1xf32>
    %145 = vector.broadcast %144 : vector<8x1xf32> to vector<8x256xf32>
    %146 = arith.mulf %143, %145 : vector<8x256xf32>
    %c1_78 = arith.constant 1 : index
    %c0_79 = arith.constant 0 : index
    %147 = vector.load %arg5[%c1_78, %c0_79] : memref<7x256xbf16, #tpu.memory_space<vmem>>, vector<1x256xbf16>
    %148 = arith.extf %147 : vector<1x256xbf16> to vector<1x256xf32>
    %149 = vector.broadcast %148 : vector<1x256xf32> to vector<8x256xf32>
    %150 = arith.mulf %146, %149 : vector<8x256xf32>
    %151 = arith.addf %142, %150 : vector<8x256xf32>
    %c0_80 = arith.constant 0 : index
    %c39 = arith.constant 39 : index
    %152 = vector.load %arg17[%c0_80, %c39] : memref<8x368xf32, #tpu.memory_space<vmem>>, vector<8x256xf32>
    %c0_81 = arith.constant 0 : index
    %c16 = arith.constant 16 : index
    %153 = vector.load %arg3[%c0_81, %c16] : memref<8x49xf32, #tpu.memory_space<vmem>>, vector<8x1xf32>
    %154 = vector.broadcast %153 : vector<8x1xf32> to vector<8x256xf32>
    %155 = arith.mulf %152, %154 : vector<8x256xf32>
    %c2_82 = arith.constant 2 : index
    %c0_83 = arith.constant 0 : index
    %156 = vector.load %arg5[%c2_82, %c0_83] : memref<7x256xbf16, #tpu.memory_space<vmem>>, vector<1x256xbf16>
    %157 = arith.extf %156 : vector<1x256xbf16> to vector<1x256xf32>
    %158 = vector.broadcast %157 : vector<1x256xf32> to vector<8x256xf32>
    %159 = arith.mulf %155, %158 : vector<8x256xf32>
    %160 = arith.addf %151, %159 : vector<8x256xf32>
    %c0_84 = arith.constant 0 : index
    %c40 = arith.constant 40 : index
    %161 = vector.load %arg17[%c0_84, %c40] : memref<8x368xf32, #tpu.memory_space<vmem>>, vector<8x256xf32>
    %c0_85 = arith.constant 0 : index
    %c17 = arith.constant 17 : index
    %162 = vector.load %arg3[%c0_85, %c17] : memref<8x49xf32, #tpu.memory_space<vmem>>, vector<8x1xf32>
    %163 = vector.broadcast %162 : vector<8x1xf32> to vector<8x256xf32>
    %164 = arith.mulf %161, %163 : vector<8x256xf32>
    %c3_86 = arith.constant 3 : index
    %c0_87 = arith.constant 0 : index
    %165 = vector.load %arg5[%c3_86, %c0_87] : memref<7x256xbf16, #tpu.memory_space<vmem>>, vector<1x256xbf16>
    %166 = arith.extf %165 : vector<1x256xbf16> to vector<1x256xf32>
    %167 = vector.broadcast %166 : vector<1x256xf32> to vector<8x256xf32>
    %168 = arith.mulf %164, %167 : vector<8x256xf32>
    %169 = arith.addf %160, %168 : vector<8x256xf32>
    %c0_88 = arith.constant 0 : index
    %c41 = arith.constant 41 : index
    %170 = vector.load %arg17[%c0_88, %c41] : memref<8x368xf32, #tpu.memory_space<vmem>>, vector<8x256xf32>
    %c0_89 = arith.constant 0 : index
    %c18 = arith.constant 18 : index
    %171 = vector.load %arg3[%c0_89, %c18] : memref<8x49xf32, #tpu.memory_space<vmem>>, vector<8x1xf32>
    %172 = vector.broadcast %171 : vector<8x1xf32> to vector<8x256xf32>
    %173 = arith.mulf %170, %172 : vector<8x256xf32>
    %c4_90 = arith.constant 4 : index
    %c0_91 = arith.constant 0 : index
    %174 = vector.load %arg5[%c4_90, %c0_91] : memref<7x256xbf16, #tpu.memory_space<vmem>>, vector<1x256xbf16>
    %175 = arith.extf %174 : vector<1x256xbf16> to vector<1x256xf32>
    %176 = vector.broadcast %175 : vector<1x256xf32> to vector<8x256xf32>
    %177 = arith.mulf %173, %176 : vector<8x256xf32>
    %178 = arith.addf %169, %177 : vector<8x256xf32>
    %c0_92 = arith.constant 0 : index
    %c42 = arith.constant 42 : index
    %179 = vector.load %arg17[%c0_92, %c42] : memref<8x368xf32, #tpu.memory_space<vmem>>, vector<8x256xf32>
    %c0_93 = arith.constant 0 : index
    %c19 = arith.constant 19 : index
    %180 = vector.load %arg3[%c0_93, %c19] : memref<8x49xf32, #tpu.memory_space<vmem>>, vector<8x1xf32>
    %181 = vector.broadcast %180 : vector<8x1xf32> to vector<8x256xf32>
    %182 = arith.mulf %179, %181 : vector<8x256xf32>
    %c5_94 = arith.constant 5 : index
    %c0_95 = arith.constant 0 : index
    %183 = vector.load %arg5[%c5_94, %c0_95] : memref<7x256xbf16, #tpu.memory_space<vmem>>, vector<1x256xbf16>
    %184 = arith.extf %183 : vector<1x256xbf16> to vector<1x256xf32>
    %185 = vector.broadcast %184 : vector<1x256xf32> to vector<8x256xf32>
    %186 = arith.mulf %182, %185 : vector<8x256xf32>
    %187 = arith.addf %178, %186 : vector<8x256xf32>
    %c0_96 = arith.constant 0 : index
    %c43 = arith.constant 43 : index
    %188 = vector.load %arg17[%c0_96, %c43] : memref<8x368xf32, #tpu.memory_space<vmem>>, vector<8x256xf32>
    %c0_97 = arith.constant 0 : index
    %c20 = arith.constant 20 : index
    %189 = vector.load %arg3[%c0_97, %c20] : memref<8x49xf32, #tpu.memory_space<vmem>>, vector<8x1xf32>
    %190 = vector.broadcast %189 : vector<8x1xf32> to vector<8x256xf32>
    %191 = arith.mulf %188, %190 : vector<8x256xf32>
    %c6_98 = arith.constant 6 : index
    %c0_99 = arith.constant 0 : index
    %192 = vector.load %arg5[%c6_98, %c0_99] : memref<7x256xbf16, #tpu.memory_space<vmem>>, vector<1x256xbf16>
    %193 = arith.extf %192 : vector<1x256xbf16> to vector<1x256xf32>
    %194 = vector.broadcast %193 : vector<1x256xf32> to vector<8x256xf32>
    %195 = arith.mulf %191, %194 : vector<8x256xf32>
    %196 = arith.addf %187, %195 : vector<8x256xf32>
    %c0_100 = arith.constant 0 : index
    %c53 = arith.constant 53 : index
    %197 = vector.load %arg17[%c0_100, %c53] : memref<8x368xf32, #tpu.memory_space<vmem>>, vector<8x256xf32>
    %c0_101 = arith.constant 0 : index
    %c21_102 = arith.constant 21 : index
    %198 = vector.load %arg3[%c0_101, %c21_102] : memref<8x49xf32, #tpu.memory_space<vmem>>, vector<8x1xf32>
    %199 = vector.broadcast %198 : vector<8x1xf32> to vector<8x256xf32>
    %200 = arith.mulf %197, %199 : vector<8x256xf32>
    %c0_103 = arith.constant 0 : index
    %c0_104 = arith.constant 0 : index
    %201 = vector.load %arg5[%c0_103, %c0_104] : memref<7x256xbf16, #tpu.memory_space<vmem>>, vector<1x256xbf16>
    %202 = arith.extf %201 : vector<1x256xbf16> to vector<1x256xf32>
    %203 = vector.broadcast %202 : vector<1x256xf32> to vector<8x256xf32>
    %204 = arith.mulf %200, %203 : vector<8x256xf32>
    %205 = arith.addf %196, %204 : vector<8x256xf32>
    %c0_105 = arith.constant 0 : index
    %c54 = arith.constant 54 : index
    %206 = vector.load %arg17[%c0_105, %c54] : memref<8x368xf32, #tpu.memory_space<vmem>>, vector<8x256xf32>
    %c0_106 = arith.constant 0 : index
    %c22_107 = arith.constant 22 : index
    %207 = vector.load %arg3[%c0_106, %c22_107] : memref<8x49xf32, #tpu.memory_space<vmem>>, vector<8x1xf32>
    %208 = vector.broadcast %207 : vector<8x1xf32> to vector<8x256xf32>
    %209 = arith.mulf %206, %208 : vector<8x256xf32>
    %c1_108 = arith.constant 1 : index
    %c0_109 = arith.constant 0 : index
    %210 = vector.load %arg5[%c1_108, %c0_109] : memref<7x256xbf16, #tpu.memory_space<vmem>>, vector<1x256xbf16>
    %211 = arith.extf %210 : vector<1x256xbf16> to vector<1x256xf32>
    %212 = vector.broadcast %211 : vector<1x256xf32> to vector<8x256xf32>
    %213 = arith.mulf %209, %212 : vector<8x256xf32>
    %214 = arith.addf %205, %213 : vector<8x256xf32>
    %c0_110 = arith.constant 0 : index
    %c55 = arith.constant 55 : index
    %215 = vector.load %arg17[%c0_110, %c55] : memref<8x368xf32, #tpu.memory_space<vmem>>, vector<8x256xf32>
    %c0_111 = arith.constant 0 : index
    %c23_112 = arith.constant 23 : index
    %216 = vector.load %arg3[%c0_111, %c23_112] : memref<8x49xf32, #tpu.memory_space<vmem>>, vector<8x1xf32>
    %217 = vector.broadcast %216 : vector<8x1xf32> to vector<8x256xf32>
    %218 = arith.mulf %215, %217 : vector<8x256xf32>
    %c2_113 = arith.constant 2 : index
    %c0_114 = arith.constant 0 : index
    %219 = vector.load %arg5[%c2_113, %c0_114] : memref<7x256xbf16, #tpu.memory_space<vmem>>, vector<1x256xbf16>
    %220 = arith.extf %219 : vector<1x256xbf16> to vector<1x256xf32>
    %221 = vector.broadcast %220 : vector<1x256xf32> to vector<8x256xf32>
    %222 = arith.mulf %218, %221 : vector<8x256xf32>
    %223 = arith.addf %214, %222 : vector<8x256xf32>
    %c0_115 = arith.constant 0 : index
    %c56_116 = arith.constant 56 : index
    %224 = vector.load %arg17[%c0_115, %c56_116] : memref<8x368xf32, #tpu.memory_space<vmem>>, vector<8x256xf32>
    %c0_117 = arith.constant 0 : index
    %c24_118 = arith.constant 24 : index
    %225 = vector.load %arg3[%c0_117, %c24_118] : memref<8x49xf32, #tpu.memory_space<vmem>>, vector<8x1xf32>
    %226 = vector.broadcast %225 : vector<8x1xf32> to vector<8x256xf32>
    %227 = arith.mulf %224, %226 : vector<8x256xf32>
    %c3_119 = arith.constant 3 : index
    %c0_120 = arith.constant 0 : index
    %228 = vector.load %arg5[%c3_119, %c0_120] : memref<7x256xbf16, #tpu.memory_space<vmem>>, vector<1x256xbf16>
    %229 = arith.extf %228 : vector<1x256xbf16> to vector<1x256xf32>
    %230 = vector.broadcast %229 : vector<1x256xf32> to vector<8x256xf32>
    %231 = arith.mulf %227, %230 : vector<8x256xf32>
    %232 = arith.addf %223, %231 : vector<8x256xf32>
    %c0_121 = arith.constant 0 : index
    %c57 = arith.constant 57 : index
    %233 = vector.load %arg17[%c0_121, %c57] : memref<8x368xf32, #tpu.memory_space<vmem>>, vector<8x256xf32>
    %c0_122 = arith.constant 0 : index
    %c25_123 = arith.constant 25 : index
    %234 = vector.load %arg3[%c0_122, %c25_123] : memref<8x49xf32, #tpu.memory_space<vmem>>, vector<8x1xf32>
    %235 = vector.broadcast %234 : vector<8x1xf32> to vector<8x256xf32>
    %236 = arith.mulf %233, %235 : vector<8x256xf32>
    %c4_124 = arith.constant 4 : index
    %c0_125 = arith.constant 0 : index
    %237 = vector.load %arg5[%c4_124, %c0_125] : memref<7x256xbf16, #tpu.memory_space<vmem>>, vector<1x256xbf16>
    %238 = arith.extf %237 : vector<1x256xbf16> to vector<1x256xf32>
    %239 = vector.broadcast %238 : vector<1x256xf32> to vector<8x256xf32>
    %240 = arith.mulf %236, %239 : vector<8x256xf32>
    %241 = arith.addf %232, %240 : vector<8x256xf32>
    %c0_126 = arith.constant 0 : index
    %c58 = arith.constant 58 : index
    %242 = vector.load %arg17[%c0_126, %c58] : memref<8x368xf32, #tpu.memory_space<vmem>>, vector<8x256xf32>
    %c0_127 = arith.constant 0 : index
    %c26_128 = arith.constant 26 : index
    %243 = vector.load %arg3[%c0_127, %c26_128] : memref<8x49xf32, #tpu.memory_space<vmem>>, vector<8x1xf32>
    %244 = vector.broadcast %243 : vector<8x1xf32> to vector<8x256xf32>
    %245 = arith.mulf %242, %244 : vector<8x256xf32>
    %c5_129 = arith.constant 5 : index
    %c0_130 = arith.constant 0 : index
    %246 = vector.load %arg5[%c5_129, %c0_130] : memref<7x256xbf16, #tpu.memory_space<vmem>>, vector<1x256xbf16>
    %247 = arith.extf %246 : vector<1x256xbf16> to vector<1x256xf32>
    %248 = vector.broadcast %247 : vector<1x256xf32> to vector<8x256xf32>
    %249 = arith.mulf %245, %248 : vector<8x256xf32>
    %250 = arith.addf %241, %249 : vector<8x256xf32>
    %c0_131 = arith.constant 0 : index
    %c59 = arith.constant 59 : index
    %251 = vector.load %arg17[%c0_131, %c59] : memref<8x368xf32, #tpu.memory_space<vmem>>, vector<8x256xf32>
    %c0_132 = arith.constant 0 : index
    %c27_133 = arith.constant 27 : index
    %252 = vector.load %arg3[%c0_132, %c27_133] : memref<8x49xf32, #tpu.memory_space<vmem>>, vector<8x1xf32>
    %253 = vector.broadcast %252 : vector<8x1xf32> to vector<8x256xf32>
    %254 = arith.mulf %251, %253 : vector<8x256xf32>
    %c6_134 = arith.constant 6 : index
    %c0_135 = arith.constant 0 : index
    %255 = vector.load %arg5[%c6_134, %c0_135] : memref<7x256xbf16, #tpu.memory_space<vmem>>, vector<1x256xbf16>
    %256 = arith.extf %255 : vector<1x256xbf16> to vector<1x256xf32>
    %257 = vector.broadcast %256 : vector<1x256xf32> to vector<8x256xf32>
    %258 = arith.mulf %254, %257 : vector<8x256xf32>
    %259 = arith.addf %250, %258 : vector<8x256xf32>
    %c0_136 = arith.constant 0 : index
    %c69 = arith.constant 69 : index
    %260 = vector.load %arg17[%c0_136, %c69] : memref<8x368xf32, #tpu.memory_space<vmem>>, vector<8x256xf32>
    %c0_137 = arith.constant 0 : index
    %c28 = arith.constant 28 : index
    %261 = vector.load %arg3[%c0_137, %c28] : memref<8x49xf32, #tpu.memory_space<vmem>>, vector<8x1xf32>
    %262 = vector.broadcast %261 : vector<8x1xf32> to vector<8x256xf32>
    %263 = arith.mulf %260, %262 : vector<8x256xf32>
    %c0_138 = arith.constant 0 : index
    %c0_139 = arith.constant 0 : index
    %264 = vector.load %arg5[%c0_138, %c0_139] : memref<7x256xbf16, #tpu.memory_space<vmem>>, vector<1x256xbf16>
    %265 = arith.extf %264 : vector<1x256xbf16> to vector<1x256xf32>
    %266 = vector.broadcast %265 : vector<1x256xf32> to vector<8x256xf32>
    %267 = arith.mulf %263, %266 : vector<8x256xf32>
    %268 = arith.addf %259, %267 : vector<8x256xf32>
    %c0_140 = arith.constant 0 : index
    %c70 = arith.constant 70 : index
    %269 = vector.load %arg17[%c0_140, %c70] : memref<8x368xf32, #tpu.memory_space<vmem>>, vector<8x256xf32>
    %c0_141 = arith.constant 0 : index
    %c29 = arith.constant 29 : index
    %270 = vector.load %arg3[%c0_141, %c29] : memref<8x49xf32, #tpu.memory_space<vmem>>, vector<8x1xf32>
    %271 = vector.broadcast %270 : vector<8x1xf32> to vector<8x256xf32>
    %272 = arith.mulf %269, %271 : vector<8x256xf32>
    %c1_142 = arith.constant 1 : index
    %c0_143 = arith.constant 0 : index
    %273 = vector.load %arg5[%c1_142, %c0_143] : memref<7x256xbf16, #tpu.memory_space<vmem>>, vector<1x256xbf16>
    %274 = arith.extf %273 : vector<1x256xbf16> to vector<1x256xf32>
    %275 = vector.broadcast %274 : vector<1x256xf32> to vector<8x256xf32>
    %276 = arith.mulf %272, %275 : vector<8x256xf32>
    %277 = arith.addf %268, %276 : vector<8x256xf32>
    %c0_144 = arith.constant 0 : index
    %c71 = arith.constant 71 : index
    %278 = vector.load %arg17[%c0_144, %c71] : memref<8x368xf32, #tpu.memory_space<vmem>>, vector<8x256xf32>
    %c0_145 = arith.constant 0 : index
    %c30 = arith.constant 30 : index
    %279 = vector.load %arg3[%c0_145, %c30] : memref<8x49xf32, #tpu.memory_space<vmem>>, vector<8x1xf32>
    %280 = vector.broadcast %279 : vector<8x1xf32> to vector<8x256xf32>
    %281 = arith.mulf %278, %280 : vector<8x256xf32>
    %c2_146 = arith.constant 2 : index
    %c0_147 = arith.constant 0 : index
    %282 = vector.load %arg5[%c2_146, %c0_147] : memref<7x256xbf16, #tpu.memory_space<vmem>>, vector<1x256xbf16>
    %283 = arith.extf %282 : vector<1x256xbf16> to vector<1x256xf32>
    %284 = vector.broadcast %283 : vector<1x256xf32> to vector<8x256xf32>
    %285 = arith.mulf %281, %284 : vector<8x256xf32>
    %286 = arith.addf %277, %285 : vector<8x256xf32>
    %c0_148 = arith.constant 0 : index
    %c72 = arith.constant 72 : index
    %287 = vector.load %arg17[%c0_148, %c72] : memref<8x368xf32, #tpu.memory_space<vmem>>, vector<8x256xf32>
    %c0_149 = arith.constant 0 : index
    %c31 = arith.constant 31 : index
    %288 = vector.load %arg3[%c0_149, %c31] : memref<8x49xf32, #tpu.memory_space<vmem>>, vector<8x1xf32>
    %289 = vector.broadcast %288 : vector<8x1xf32> to vector<8x256xf32>
    %290 = arith.mulf %287, %289 : vector<8x256xf32>
    %c3_150 = arith.constant 3 : index
    %c0_151 = arith.constant 0 : index
    %291 = vector.load %arg5[%c3_150, %c0_151] : memref<7x256xbf16, #tpu.memory_space<vmem>>, vector<1x256xbf16>
    %292 = arith.extf %291 : vector<1x256xbf16> to vector<1x256xf32>
    %293 = vector.broadcast %292 : vector<1x256xf32> to vector<8x256xf32>
    %294 = arith.mulf %290, %293 : vector<8x256xf32>
    %295 = arith.addf %286, %294 : vector<8x256xf32>
    %c0_152 = arith.constant 0 : index
    %c73 = arith.constant 73 : index
    %296 = vector.load %arg17[%c0_152, %c73] : memref<8x368xf32, #tpu.memory_space<vmem>>, vector<8x256xf32>
    %c0_153 = arith.constant 0 : index
    %c32 = arith.constant 32 : index
    %297 = vector.load %arg3[%c0_153, %c32] : memref<8x49xf32, #tpu.memory_space<vmem>>, vector<8x1xf32>
    %298 = vector.broadcast %297 : vector<8x1xf32> to vector<8x256xf32>
    %299 = arith.mulf %296, %298 : vector<8x256xf32>
    %c4_154 = arith.constant 4 : index
    %c0_155 = arith.constant 0 : index
    %300 = vector.load %arg5[%c4_154, %c0_155] : memref<7x256xbf16, #tpu.memory_space<vmem>>, vector<1x256xbf16>
    %301 = arith.extf %300 : vector<1x256xbf16> to vector<1x256xf32>
    %302 = vector.broadcast %301 : vector<1x256xf32> to vector<8x256xf32>
    %303 = arith.mulf %299, %302 : vector<8x256xf32>
    %304 = arith.addf %295, %303 : vector<8x256xf32>
    %c0_156 = arith.constant 0 : index
    %c74 = arith.constant 74 : index
    %305 = vector.load %arg17[%c0_156, %c74] : memref<8x368xf32, #tpu.memory_space<vmem>>, vector<8x256xf32>
    %c0_157 = arith.constant 0 : index
    %c33 = arith.constant 33 : index
    %306 = vector.load %arg3[%c0_157, %c33] : memref<8x49xf32, #tpu.memory_space<vmem>>, vector<8x1xf32>
    %307 = vector.broadcast %306 : vector<8x1xf32> to vector<8x256xf32>
    %308 = arith.mulf %305, %307 : vector<8x256xf32>
    %c5_158 = arith.constant 5 : index
    %c0_159 = arith.constant 0 : index
    %309 = vector.load %arg5[%c5_158, %c0_159] : memref<7x256xbf16, #tpu.memory_space<vmem>>, vector<1x256xbf16>
    %310 = arith.extf %309 : vector<1x256xbf16> to vector<1x256xf32>
    %311 = vector.broadcast %310 : vector<1x256xf32> to vector<8x256xf32>
    %312 = arith.mulf %308, %311 : vector<8x256xf32>
    %313 = arith.addf %304, %312 : vector<8x256xf32>
    %c0_160 = arith.constant 0 : index
    %c75 = arith.constant 75 : index
    %314 = vector.load %arg17[%c0_160, %c75] : memref<8x368xf32, #tpu.memory_space<vmem>>, vector<8x256xf32>
    %c0_161 = arith.constant 0 : index
    %c34 = arith.constant 34 : index
    %315 = vector.load %arg3[%c0_161, %c34] : memref<8x49xf32, #tpu.memory_space<vmem>>, vector<8x1xf32>
    %316 = vector.broadcast %315 : vector<8x1xf32> to vector<8x256xf32>
    %317 = arith.mulf %314, %316 : vector<8x256xf32>
    %c6_162 = arith.constant 6 : index
    %c0_163 = arith.constant 0 : index
    %318 = vector.load %arg5[%c6_162, %c0_163] : memref<7x256xbf16, #tpu.memory_space<vmem>>, vector<1x256xbf16>
    %319 = arith.extf %318 : vector<1x256xbf16> to vector<1x256xf32>
    %320 = vector.broadcast %319 : vector<1x256xf32> to vector<8x256xf32>
    %321 = arith.mulf %317, %320 : vector<8x256xf32>
    %322 = arith.addf %313, %321 : vector<8x256xf32>
    %c0_164 = arith.constant 0 : index
    %c85 = arith.constant 85 : index
    %323 = vector.load %arg17[%c0_164, %c85] : memref<8x368xf32, #tpu.memory_space<vmem>>, vector<8x256xf32>
    %c0_165 = arith.constant 0 : index
    %c35 = arith.constant 35 : index
    %324 = vector.load %arg3[%c0_165, %c35] : memref<8x49xf32, #tpu.memory_space<vmem>>, vector<8x1xf32>
    %325 = vector.broadcast %324 : vector<8x1xf32> to vector<8x256xf32>
    %326 = arith.mulf %323, %325 : vector<8x256xf32>
    %c0_166 = arith.constant 0 : index
    %c0_167 = arith.constant 0 : index
    %327 = vector.load %arg5[%c0_166, %c0_167] : memref<7x256xbf16, #tpu.memory_space<vmem>>, vector<1x256xbf16>
    %328 = arith.extf %327 : vector<1x256xbf16> to vector<1x256xf32>
    %329 = vector.broadcast %328 : vector<1x256xf32> to vector<8x256xf32>
    %330 = arith.mulf %326, %329 : vector<8x256xf32>
    %331 = arith.addf %322, %330 : vector<8x256xf32>
    %c0_168 = arith.constant 0 : index
    %c86 = arith.constant 86 : index
    %332 = vector.load %arg17[%c0_168, %c86] : memref<8x368xf32, #tpu.memory_space<vmem>>, vector<8x256xf32>
    %c0_169 = arith.constant 0 : index
    %c36 = arith.constant 36 : index
    %333 = vector.load %arg3[%c0_169, %c36] : memref<8x49xf32, #tpu.memory_space<vmem>>, vector<8x1xf32>
    %334 = vector.broadcast %333 : vector<8x1xf32> to vector<8x256xf32>
    %335 = arith.mulf %332, %334 : vector<8x256xf32>
    %c1_170 = arith.constant 1 : index
    %c0_171 = arith.constant 0 : index
    %336 = vector.load %arg5[%c1_170, %c0_171] : memref<7x256xbf16, #tpu.memory_space<vmem>>, vector<1x256xbf16>
    %337 = arith.extf %336 : vector<1x256xbf16> to vector<1x256xf32>
    %338 = vector.broadcast %337 : vector<1x256xf32> to vector<8x256xf32>
    %339 = arith.mulf %335, %338 : vector<8x256xf32>
    %340 = arith.addf %331, %339 : vector<8x256xf32>
    %c0_172 = arith.constant 0 : index
    %c87 = arith.constant 87 : index
    %341 = vector.load %arg17[%c0_172, %c87] : memref<8x368xf32, #tpu.memory_space<vmem>>, vector<8x256xf32>
    %c0_173 = arith.constant 0 : index
    %c37_174 = arith.constant 37 : index
    %342 = vector.load %arg3[%c0_173, %c37_174] : memref<8x49xf32, #tpu.memory_space<vmem>>, vector<8x1xf32>
    %343 = vector.broadcast %342 : vector<8x1xf32> to vector<8x256xf32>
    %344 = arith.mulf %341, %343 : vector<8x256xf32>
    %c2_175 = arith.constant 2 : index
    %c0_176 = arith.constant 0 : index
    %345 = vector.load %arg5[%c2_175, %c0_176] : memref<7x256xbf16, #tpu.memory_space<vmem>>, vector<1x256xbf16>
    %346 = arith.extf %345 : vector<1x256xbf16> to vector<1x256xf32>
    %347 = vector.broadcast %346 : vector<1x256xf32> to vector<8x256xf32>
    %348 = arith.mulf %344, %347 : vector<8x256xf32>
    %349 = arith.addf %340, %348 : vector<8x256xf32>
    %c0_177 = arith.constant 0 : index
    %c88 = arith.constant 88 : index
    %350 = vector.load %arg17[%c0_177, %c88] : memref<8x368xf32, #tpu.memory_space<vmem>>, vector<8x256xf32>
    %c0_178 = arith.constant 0 : index
    %c38_179 = arith.constant 38 : index
    %351 = vector.load %arg3[%c0_178, %c38_179] : memref<8x49xf32, #tpu.memory_space<vmem>>, vector<8x1xf32>
    %352 = vector.broadcast %351 : vector<8x1xf32> to vector<8x256xf32>
    %353 = arith.mulf %350, %352 : vector<8x256xf32>
    %c3_180 = arith.constant 3 : index
    %c0_181 = arith.constant 0 : index
    %354 = vector.load %arg5[%c3_180, %c0_181] : memref<7x256xbf16, #tpu.memory_space<vmem>>, vector<1x256xbf16>
    %355 = arith.extf %354 : vector<1x256xbf16> to vector<1x256xf32>
    %356 = vector.broadcast %355 : vector<1x256xf32> to vector<8x256xf32>
    %357 = arith.mulf %353, %356 : vector<8x256xf32>
    %358 = arith.addf %349, %357 : vector<8x256xf32>
    %c0_182 = arith.constant 0 : index
    %c89 = arith.constant 89 : index
    %359 = vector.load %arg17[%c0_182, %c89] : memref<8x368xf32, #tpu.memory_space<vmem>>, vector<8x256xf32>
    %c0_183 = arith.constant 0 : index
    %c39_184 = arith.constant 39 : index
    %360 = vector.load %arg3[%c0_183, %c39_184] : memref<8x49xf32, #tpu.memory_space<vmem>>, vector<8x1xf32>
    %361 = vector.broadcast %360 : vector<8x1xf32> to vector<8x256xf32>
    %362 = arith.mulf %359, %361 : vector<8x256xf32>
    %c4_185 = arith.constant 4 : index
    %c0_186 = arith.constant 0 : index
    %363 = vector.load %arg5[%c4_185, %c0_186] : memref<7x256xbf16, #tpu.memory_space<vmem>>, vector<1x256xbf16>
    %364 = arith.extf %363 : vector<1x256xbf16> to vector<1x256xf32>
    %365 = vector.broadcast %364 : vector<1x256xf32> to vector<8x256xf32>
    %366 = arith.mulf %362, %365 : vector<8x256xf32>
    %367 = arith.addf %358, %366 : vector<8x256xf32>
    %c0_187 = arith.constant 0 : index
    %c90 = arith.constant 90 : index
    %368 = vector.load %arg17[%c0_187, %c90] : memref<8x368xf32, #tpu.memory_space<vmem>>, vector<8x256xf32>
    %c0_188 = arith.constant 0 : index
    %c40_189 = arith.constant 40 : index
    %369 = vector.load %arg3[%c0_188, %c40_189] : memref<8x49xf32, #tpu.memory_space<vmem>>, vector<8x1xf32>
    %370 = vector.broadcast %369 : vector<8x1xf32> to vector<8x256xf32>
    %371 = arith.mulf %368, %370 : vector<8x256xf32>
    %c5_190 = arith.constant 5 : index
    %c0_191 = arith.constant 0 : index
    %372 = vector.load %arg5[%c5_190, %c0_191] : memref<7x256xbf16, #tpu.memory_space<vmem>>, vector<1x256xbf16>
    %373 = arith.extf %372 : vector<1x256xbf16> to vector<1x256xf32>
    %374 = vector.broadcast %373 : vector<1x256xf32> to vector<8x256xf32>
    %375 = arith.mulf %371, %374 : vector<8x256xf32>
    %376 = arith.addf %367, %375 : vector<8x256xf32>
    %c0_192 = arith.constant 0 : index
    %c91 = arith.constant 91 : index
    %377 = vector.load %arg17[%c0_192, %c91] : memref<8x368xf32, #tpu.memory_space<vmem>>, vector<8x256xf32>
    %c0_193 = arith.constant 0 : index
    %c41_194 = arith.constant 41 : index
    %378 = vector.load %arg3[%c0_193, %c41_194] : memref<8x49xf32, #tpu.memory_space<vmem>>, vector<8x1xf32>
    %379 = vector.broadcast %378 : vector<8x1xf32> to vector<8x256xf32>
    %380 = arith.mulf %377, %379 : vector<8x256xf32>
    %c6_195 = arith.constant 6 : index
    %c0_196 = arith.constant 0 : index
    %381 = vector.load %arg5[%c6_195, %c0_196] : memref<7x256xbf16, #tpu.memory_space<vmem>>, vector<1x256xbf16>
    %382 = arith.extf %381 : vector<1x256xbf16> to vector<1x256xf32>
    %383 = vector.broadcast %382 : vector<1x256xf32> to vector<8x256xf32>
    %384 = arith.mulf %380, %383 : vector<8x256xf32>
    %385 = arith.addf %376, %384 : vector<8x256xf32>
    %c0_197 = arith.constant 0 : index
    %c101 = arith.constant 101 : index
    %386 = vector.load %arg17[%c0_197, %c101] : memref<8x368xf32, #tpu.memory_space<vmem>>, vector<8x256xf32>
    %c0_198 = arith.constant 0 : index
    %c42_199 = arith.constant 42 : index
    %387 = vector.load %arg3[%c0_198, %c42_199] : memref<8x49xf32, #tpu.memory_space<vmem>>, vector<8x1xf32>
    %388 = vector.broadcast %387 : vector<8x1xf32> to vector<8x256xf32>
    %389 = arith.mulf %386, %388 : vector<8x256xf32>
    %c0_200 = arith.constant 0 : index
    %c0_201 = arith.constant 0 : index
    %390 = vector.load %arg5[%c0_200, %c0_201] : memref<7x256xbf16, #tpu.memory_space<vmem>>, vector<1x256xbf16>
    %391 = arith.extf %390 : vector<1x256xbf16> to vector<1x256xf32>
    %392 = vector.broadcast %391 : vector<1x256xf32> to vector<8x256xf32>
    %393 = arith.mulf %389, %392 : vector<8x256xf32>
    %394 = arith.addf %385, %393 : vector<8x256xf32>
    %c0_202 = arith.constant 0 : index
    %c102 = arith.constant 102 : index
    %395 = vector.load %arg17[%c0_202, %c102] : memref<8x368xf32, #tpu.memory_space<vmem>>, vector<8x256xf32>
    %c0_203 = arith.constant 0 : index
    %c43_204 = arith.constant 43 : index
    %396 = vector.load %arg3[%c0_203, %c43_204] : memref<8x49xf32, #tpu.memory_space<vmem>>, vector<8x1xf32>
    %397 = vector.broadcast %396 : vector<8x1xf32> to vector<8x256xf32>
    %398 = arith.mulf %395, %397 : vector<8x256xf32>
    %c1_205 = arith.constant 1 : index
    %c0_206 = arith.constant 0 : index
    %399 = vector.load %arg5[%c1_205, %c0_206] : memref<7x256xbf16, #tpu.memory_space<vmem>>, vector<1x256xbf16>
    %400 = arith.extf %399 : vector<1x256xbf16> to vector<1x256xf32>
    %401 = vector.broadcast %400 : vector<1x256xf32> to vector<8x256xf32>
    %402 = arith.mulf %398, %401 : vector<8x256xf32>
    %403 = arith.addf %394, %402 : vector<8x256xf32>
    %c0_207 = arith.constant 0 : index
    %c103 = arith.constant 103 : index
    %404 = vector.load %arg17[%c0_207, %c103] : memref<8x368xf32, #tpu.memory_space<vmem>>, vector<8x256xf32>
    %c0_208 = arith.constant 0 : index
    %c44 = arith.constant 44 : index
    %405 = vector.load %arg3[%c0_208, %c44] : memref<8x49xf32, #tpu.memory_space<vmem>>, vector<8x1xf32>
    %406 = vector.broadcast %405 : vector<8x1xf32> to vector<8x256xf32>
    %407 = arith.mulf %404, %406 : vector<8x256xf32>
    %c2_209 = arith.constant 2 : index
    %c0_210 = arith.constant 0 : index
    %408 = vector.load %arg5[%c2_209, %c0_210] : memref<7x256xbf16, #tpu.memory_space<vmem>>, vector<1x256xbf16>
    %409 = arith.extf %408 : vector<1x256xbf16> to vector<1x256xf32>
    %410 = vector.broadcast %409 : vector<1x256xf32> to vector<8x256xf32>
    %411 = arith.mulf %407, %410 : vector<8x256xf32>
    %412 = arith.addf %403, %411 : vector<8x256xf32>
    %c0_211 = arith.constant 0 : index
    %c104 = arith.constant 104 : index
    %413 = vector.load %arg17[%c0_211, %c104] : memref<8x368xf32, #tpu.memory_space<vmem>>, vector<8x256xf32>
    %c0_212 = arith.constant 0 : index
    %c45 = arith.constant 45 : index
    %414 = vector.load %arg3[%c0_212, %c45] : memref<8x49xf32, #tpu.memory_space<vmem>>, vector<8x1xf32>
    %415 = vector.broadcast %414 : vector<8x1xf32> to vector<8x256xf32>
    %416 = arith.mulf %413, %415 : vector<8x256xf32>
    %c3_213 = arith.constant 3 : index
    %c0_214 = arith.constant 0 : index
    %417 = vector.load %arg5[%c3_213, %c0_214] : memref<7x256xbf16, #tpu.memory_space<vmem>>, vector<1x256xbf16>
    %418 = arith.extf %417 : vector<1x256xbf16> to vector<1x256xf32>
    %419 = vector.broadcast %418 : vector<1x256xf32> to vector<8x256xf32>
    %420 = arith.mulf %416, %419 : vector<8x256xf32>
    %421 = arith.addf %412, %420 : vector<8x256xf32>
    %c0_215 = arith.constant 0 : index
    %c105 = arith.constant 105 : index
    %422 = vector.load %arg17[%c0_215, %c105] : memref<8x368xf32, #tpu.memory_space<vmem>>, vector<8x256xf32>
    %c0_216 = arith.constant 0 : index
    %c46 = arith.constant 46 : index
    %423 = vector.load %arg3[%c0_216, %c46] : memref<8x49xf32, #tpu.memory_space<vmem>>, vector<8x1xf32>
    %424 = vector.broadcast %423 : vector<8x1xf32> to vector<8x256xf32>
    %425 = arith.mulf %422, %424 : vector<8x256xf32>
    %c4_217 = arith.constant 4 : index
    %c0_218 = arith.constant 0 : index
    %426 = vector.load %arg5[%c4_217, %c0_218] : memref<7x256xbf16, #tpu.memory_space<vmem>>, vector<1x256xbf16>
    %427 = arith.extf %426 : vector<1x256xbf16> to vector<1x256xf32>
    %428 = vector.broadcast %427 : vector<1x256xf32> to vector<8x256xf32>
    %429 = arith.mulf %425, %428 : vector<8x256xf32>
    %430 = arith.addf %421, %429 : vector<8x256xf32>
    %c0_219 = arith.constant 0 : index
    %c106 = arith.constant 106 : index
    %431 = vector.load %arg17[%c0_219, %c106] : memref<8x368xf32, #tpu.memory_space<vmem>>, vector<8x256xf32>
    %c0_220 = arith.constant 0 : index
    %c47 = arith.constant 47 : index
    %432 = vector.load %arg3[%c0_220, %c47] : memref<8x49xf32, #tpu.memory_space<vmem>>, vector<8x1xf32>
    %433 = vector.broadcast %432 : vector<8x1xf32> to vector<8x256xf32>
    %434 = arith.mulf %431, %433 : vector<8x256xf32>
    %c5_221 = arith.constant 5 : index
    %c0_222 = arith.constant 0 : index
    %435 = vector.load %arg5[%c5_221, %c0_222] : memref<7x256xbf16, #tpu.memory_space<vmem>>, vector<1x256xbf16>
    %436 = arith.extf %435 : vector<1x256xbf16> to vector<1x256xf32>
    %437 = vector.broadcast %436 : vector<1x256xf32> to vector<8x256xf32>
    %438 = arith.mulf %434, %437 : vector<8x256xf32>
    %439 = arith.addf %430, %438 : vector<8x256xf32>
    %c0_223 = arith.constant 0 : index
    %c107 = arith.constant 107 : index
    %440 = vector.load %arg17[%c0_223, %c107] : memref<8x368xf32, #tpu.memory_space<vmem>>, vector<8x256xf32>
    %c0_224 = arith.constant 0 : index
    %c48 = arith.constant 48 : index
    %441 = vector.load %arg3[%c0_224, %c48] : memref<8x49xf32, #tpu.memory_space<vmem>>, vector<8x1xf32>
    %442 = vector.broadcast %441 : vector<8x1xf32> to vector<8x256xf32>
    %443 = arith.mulf %440, %442 : vector<8x256xf32>
    %c6_225 = arith.constant 6 : index
    %c0_226 = arith.constant 0 : index
    %444 = vector.load %arg5[%c6_225, %c0_226] : memref<7x256xbf16, #tpu.memory_space<vmem>>, vector<1x256xbf16>
    %445 = arith.extf %444 : vector<1x256xbf16> to vector<1x256xf32>
    %446 = vector.broadcast %445 : vector<1x256xf32> to vector<8x256xf32>
    %447 = arith.mulf %443, %446 : vector<8x256xf32>
    %448 = arith.addf %439, %447 : vector<8x256xf32>
    %c0_227 = arith.constant 0 : index
    %c0_228 = arith.constant 0 : index
    %449 = vector.load %arg4[%c0_227, %c0_228] : memref<8x1xf32, #tpu.memory_space<vmem>>, vector<8x1xf32>
    %450 = vector.broadcast %449 : vector<8x1xf32> to vector<8x256xf32>
    %451 = arith.addf %448, %450 : vector<8x256xf32>
    %c0_229 = arith.constant 0 : index
    %c0_230 = arith.constant 0 : index
    %c0_231 = arith.constant 0 : index
    %452 = vector.load %arg2[%c0_229, %c0_230, %c0_231] : memref<1x8x1xf32, #tpu.memory_space<vmem>>, vector<1x8x1xf32>
    %453 = vector.shape_cast %452 : vector<1x8x1xf32> to vector<8x1xf32>
    %454 = vector.broadcast %453 : vector<8x1xf32> to vector<8x256xf32>
    %455 = arith.addf %451, %454 : vector<8x256xf32>
    %c0_232 = arith.constant 0 : index
    %c0_233 = arith.constant 0 : index
    %456 = vector.load %arg6[%c0_232, %c0_233] : memref<8x1xf32, #tpu.memory_space<vmem>>, vector<8x1xf32>
    %c0_234 = arith.constant 0 : index
    %c0_235 = arith.constant 0 : index
    %457 = vector.load %arg7[%c0_234, %c0_235] : memref<8x1xf32, #tpu.memory_space<vmem>>, vector<8x1xf32>
    %cst_236 = arith.constant dense<0.000000e+00> : vector<8xf32>
    %458 = vector.multi_reduction <add>, %455, %cst_236 [1] : vector<8x256xf32> to vector<8xf32>
    %459 = vector.shape_cast %458 : vector<8xf32> to vector<8x1xf32>
    %cst_237 = arith.constant dense<0.000000e+00> : vector<1xf32>
    %460 = vector.multi_reduction <add>, %459, %cst_237 [0] : vector<8x1xf32> to vector<1xf32>
    %461 = vector.shape_cast %460 : vector<1xf32> to vector<1x1xf32>
    %cst_238 = arith.constant 2.048000e+03 : f32
    %462 = vector.broadcast %cst_238 : f32 to vector<1x1xf32>
    %463 = arith.divf %461, %462 : vector<1x1xf32>
    %464 = vector.broadcast %463 : vector<1x1xf32> to vector<8x256xf32>
    %465 = arith.subf %455, %464 : vector<8x256xf32>
    %466 = arith.mulf %465, %465 : vector<8x256xf32>
    %cst_239 = arith.constant dense<0.000000e+00> : vector<8xf32>
    %467 = vector.multi_reduction <add>, %466, %cst_239 [1] : vector<8x256xf32> to vector<8xf32>
    %468 = vector.shape_cast %467 : vector<8xf32> to vector<8x1xf32>
    %cst_240 = arith.constant dense<0.000000e+00> : vector<1xf32>
    %469 = vector.multi_reduction <add>, %468, %cst_240 [0] : vector<8x1xf32> to vector<1xf32>
    %470 = vector.shape_cast %469 : vector<1xf32> to vector<1x1xf32>
    %cst_241 = arith.constant 2.048000e+03 : f32
    %471 = vector.broadcast %cst_241 : f32 to vector<1x1xf32>
    %472 = arith.divf %470, %471 : vector<1x1xf32>
    %cst_242 = arith.constant 9.99999974E-6 : f32
    %473 = vector.broadcast %cst_242 : f32 to vector<1x1xf32>
    %474 = arith.addf %472, %473 : vector<1x1xf32>
    %475 = math.rsqrt %474 : vector<1x1xf32>
    %476 = vector.broadcast %475 : vector<1x1xf32> to vector<8x1xf32>
    %477 = arith.mulf %476, %456 : vector<8x1xf32>
    %478 = vector.broadcast %477 : vector<8x1xf32> to vector<8x256xf32>
    %479 = arith.mulf %465, %478 : vector<8x256xf32>
    %480 = vector.broadcast %457 : vector<8x1xf32> to vector<8x256xf32>
    %481 = arith.addf %479, %480 : vector<8x256xf32>
    %482 = arith.truncf %481 : vector<8x256xf32> to vector<8x256xbf16>
    %cst_243 = arith.constant 0.000000e+00 : bf16
    %483 = vector.broadcast %cst_243 : bf16 to vector<8x24xbf16>
    %c0_244 = arith.constant 0 : index
    %c0_245 = arith.constant 0 : index
    %484 = vector.load %arg18[%c0_244, %c0_245] : memref<8x304xbf16, #tpu.memory_space<vmem>>, vector<8x24xbf16>
    tpu.vector_store %arg18[%c0_244, %c0_245], %483 {strides = array<i32>} : memref<8x304xbf16, #tpu.memory_space<vmem>>, vector<8x24xbf16>,
    %cst_246 = arith.constant 0.000000e+00 : bf16
    %485 = vector.broadcast %cst_246 : bf16 to vector<8x24xbf16>
    %c0_247 = arith.constant 0 : index
    %c280 = arith.constant 280 : index
    %486 = vector.load %arg18[%c0_247, %c280] : memref<8x304xbf16, #tpu.memory_space<vmem>>, vector<8x24xbf16>
    tpu.vector_store %arg18[%c0_247, %c280], %485 {strides = array<i32>} : memref<8x304xbf16, #tpu.memory_space<vmem>>, vector<8x24xbf16>,
    %c0_248 = arith.constant 0 : index
    %c24_249 = arith.constant 24 : index
    %487 = vector.load %arg18[%c0_248, %c24_249] : memref<8x304xbf16, #tpu.memory_space<vmem>>, vector<8x256xbf16>
    tpu.vector_store %arg18[%c0_248, %c24_249], %482 {strides = array<i32>} : memref<8x304xbf16, #tpu.memory_space<vmem>>, vector<8x256xbf16>,
    %c0_250 = arith.constant 0 : index
    %c0_251 = arith.constant 0 : index
    %488 = vector.load %arg8[%c0_250, %c0_251] : memref<32x72xbf16, #tpu.memory_space<vmem>>, vector<32x72xbf16>
    %c0_252 = arith.constant 0 : index
    %c7_253 = arith.constant 7 : index
    %489 = vector.load %arg18[%c0_252, %c7_253] : memref<8x304xbf16, #tpu.memory_space<vmem>>, vector<8x256xbf16>
    %c2_254 = arith.constant 2 : index
    %c0_255 = arith.constant 0 : index
    %490 = vector.load %arg5[%c2_254, %c0_255] : memref<7x256xbf16, #tpu.memory_space<vmem>>, vector<1x256xbf16>
    %491 = vector.broadcast %490 : vector<1x256xbf16> to vector<8x256xbf16>
    %492 = arith.mulf %489, %491 : vector<8x256xbf16>
    %c0_256 = arith.constant 0 : index
    %c8_257 = arith.constant 8 : index
    %493 = vector.load %arg18[%c0_256, %c8_257] : memref<8x304xbf16, #tpu.memory_space<vmem>>, vector<8x256xbf16>
    %c3_258 = arith.constant 3 : index
    %c0_259 = arith.constant 0 : index
    %494 = vector.load %arg5[%c3_258, %c0_259] : memref<7x256xbf16, #tpu.memory_space<vmem>>, vector<1x256xbf16>
    %495 = vector.broadcast %494 : vector<1x256xbf16> to vector<8x256xbf16>
    %496 = arith.mulf %493, %495 : vector<8x256xbf16>
    %c0_260 = arith.constant 0 : index
    %c9_261 = arith.constant 9 : index
    %497 = vector.load %arg18[%c0_260, %c9_261] : memref<8x304xbf16, #tpu.memory_space<vmem>>, vector<8x256xbf16>
    %c4_262 = arith.constant 4 : index
    %c0_263 = arith.constant 0 : index
    %498 = vector.load %arg5[%c4_262, %c0_263] : memref<7x256xbf16, #tpu.memory_space<vmem>>, vector<1x256xbf16>
    %499 = vector.broadcast %498 : vector<1x256xbf16> to vector<8x256xbf16>
    %500 = arith.mulf %497, %499 : vector<8x256xbf16>
    %c0_264 = arith.constant 0 : index
    %c23_265 = arith.constant 23 : index
    %501 = vector.load %arg18[%c0_264, %c23_265] : memref<8x304xbf16, #tpu.memory_space<vmem>>, vector<8x256xbf16>
    %c2_266 = arith.constant 2 : index
    %c0_267 = arith.constant 0 : index
    %502 = vector.load %arg5[%c2_266, %c0_267] : memref<7x256xbf16, #tpu.memory_space<vmem>>, vector<1x256xbf16>
    %503 = vector.broadcast %502 : vector<1x256xbf16> to vector<8x256xbf16>
    %504 = arith.mulf %501, %503 : vector<8x256xbf16>
    %c0_268 = arith.constant 0 : index
    %c24_269 = arith.constant 24 : index
    %505 = vector.load %arg18[%c0_268, %c24_269] : memref<8x304xbf16, #tpu.memory_space<vmem>>, vector<8x256xbf16>
    %c3_270 = arith.constant 3 : index
    %c0_271 = arith.constant 0 : index
    %506 = vector.load %arg5[%c3_270, %c0_271] : memref<7x256xbf16, #tpu.memory_space<vmem>>, vector<1x256xbf16>
    %507 = vector.broadcast %506 : vector<1x256xbf16> to vector<8x256xbf16>
    %508 = arith.mulf %505, %507 : vector<8x256xbf16>
    %c0_272 = arith.constant 0 : index
    %c25_273 = arith.constant 25 : index
    %509 = vector.load %arg18[%c0_272, %c25_273] : memref<8x304xbf16, #tpu.memory_space<vmem>>, vector<8x256xbf16>
    %c4_274 = arith.constant 4 : index
    %c0_275 = arith.constant 0 : index
    %510 = vector.load %arg5[%c4_274, %c0_275] : memref<7x256xbf16, #tpu.memory_space<vmem>>, vector<1x256xbf16>
    %511 = vector.broadcast %510 : vector<1x256xbf16> to vector<8x256xbf16>
    %512 = arith.mulf %509, %511 : vector<8x256xbf16>
    %c0_276 = arith.constant 0 : index
    %c39_277 = arith.constant 39 : index
    %513 = vector.load %arg18[%c0_276, %c39_277] : memref<8x304xbf16, #tpu.memory_space<vmem>>, vector<8x256xbf16>
    %c2_278 = arith.constant 2 : index
    %c0_279 = arith.constant 0 : index
    %514 = vector.load %arg5[%c2_278, %c0_279] : memref<7x256xbf16, #tpu.memory_space<vmem>>, vector<1x256xbf16>
    %515 = vector.broadcast %514 : vector<1x256xbf16> to vector<8x256xbf16>
    %516 = arith.mulf %513, %515 : vector<8x256xbf16>
    %c0_280 = arith.constant 0 : index
    %c40_281 = arith.constant 40 : index
    %517 = vector.load %arg18[%c0_280, %c40_281] : memref<8x304xbf16, #tpu.memory_space<vmem>>, vector<8x256xbf16>
    %c3_282 = arith.constant 3 : index
    %c0_283 = arith.constant 0 : index
    %518 = vector.load %arg5[%c3_282, %c0_283] : memref<7x256xbf16, #tpu.memory_space<vmem>>, vector<1x256xbf16>
    %519 = vector.broadcast %518 : vector<1x256xbf16> to vector<8x256xbf16>
    %520 = arith.mulf %517, %519 : vector<8x256xbf16>
    %c0_284 = arith.constant 0 : index
    %c41_285 = arith.constant 41 : index
    %521 = vector.load %arg18[%c0_284, %c41_285] : memref<8x304xbf16, #tpu.memory_space<vmem>>, vector<8x256xbf16>
    %c4_286 = arith.constant 4 : index
    %c0_287 = arith.constant 0 : index
    %522 = vector.load %arg5[%c4_286, %c0_287] : memref<7x256xbf16, #tpu.memory_space<vmem>>, vector<1x256xbf16>
    %523 = vector.broadcast %522 : vector<1x256xbf16> to vector<8x256xbf16>
    %524 = arith.mulf %521, %523 : vector<8x256xbf16>
    %525 = tpu.concatenate %492, %496, %500, %504, %508, %512, %516, %520, %524 in 0 : vector<8x256xbf16>, vector<8x256xbf16>, vector<8x256xbf16>, vector<8x256xbf16>, vector<8x256xbf16>, vector<8x256xbf16>, vector<8x256xbf16>, vector<8x256xbf16>, vector<8x256xbf16> -> vector<72x256xbf16>
    %cst_288 = arith.constant dense<0.000000e+00> : vector<32x256xf32>
    %526 = tpu.matmul %488, %525, %cst_288 {dimension_numbers = #tpu.dot_dimension_numbers<[1], [0], [0], [1], [0, 0, 1, 1], [], []>} : vector<32x72xbf16>, vector<72x256xbf16>, vector<32x256xf32> -> vector<32x256xf32>
    %c0_289 = arith.constant 0 : index
    %c0_290 = arith.constant 0 : index
    %527 = vector.load %arg9[%c0_289, %c0_290] : memref<32x1xf32, #tpu.memory_space<vmem>>, vector<32x1xf32>
    %528 = vector.broadcast %527 : vector<32x1xf32> to vector<32x256xf32>
    %529 = arith.addf %526, %528 : vector<32x256xf32>
    %cst_291 = arith.constant 5.000000e-01 : f32
    %530 = vector.broadcast %cst_291 : f32 to vector<32x256xf32>
    %531 = arith.mulf %530, %529 : vector<32x256xf32>
    %cst_292 = arith.constant 4.471500e-02 : f32
    %532 = vector.broadcast %cst_292 : f32 to vector<32x256xf32>
    %533 = arith.mulf %532, %529 : vector<32x256xf32>
    %534 = arith.mulf %533, %529 : vector<32x256xf32>
    %535 = arith.mulf %534, %529 : vector<32x256xf32>
    %536 = arith.addf %529, %535 : vector<32x256xf32>
    %cst_293 = arith.constant 0.797884583 : f32
    %537 = vector.broadcast %cst_293 : f32 to vector<32x256xf32>
    %538 = arith.mulf %537, %536 : vector<32x256xf32>
    %539 = math.tanh %538 : vector<32x256xf32>
    %cst_294 = arith.constant 1.000000e+00 : f32
    %540 = vector.broadcast %cst_294 : f32 to vector<32x256xf32>
    %541 = arith.addf %540, %539 : vector<32x256xf32>
    %542 = arith.mulf %531, %541 : vector<32x256xf32>
    %c0_295 = arith.constant 0 : index
    %c0_296 = arith.constant 0 : index
    %543 = vector.load %arg10[%c0_295, %c0_296] : memref<32x1xf32, #tpu.memory_space<vmem>>, vector<32x1xf32>
    %c0_297 = arith.constant 0 : index
    %c0_298 = arith.constant 0 : index
    %544 = vector.load %arg11[%c0_297, %c0_298] : memref<32x1xf32, #tpu.memory_space<vmem>>, vector<32x1xf32>
    %cst_299 = arith.constant dense<0.000000e+00> : vector<32xf32>
    %545 = vector.multi_reduction <add>, %542, %cst_299 [1] : vector<32x256xf32> to vector<32xf32>
    %546 = vector.shape_cast %545 : vector<32xf32> to vector<32x1xf32>
    %cst_300 = arith.constant dense<0.000000e+00> : vector<1xf32>
    %547 = vector.multi_reduction <add>, %546, %cst_300 [0] : vector<32x1xf32> to vector<1xf32>
    %548 = vector.shape_cast %547 : vector<1xf32> to vector<1x1xf32>
    %cst_301 = arith.constant 8.192000e+03 : f32
    %549 = vector.broadcast %cst_301 : f32 to vector<1x1xf32>
    %550 = arith.divf %548, %549 : vector<1x1xf32>
    %551 = vector.broadcast %550 : vector<1x1xf32> to vector<32x256xf32>
    %552 = arith.subf %542, %551 : vector<32x256xf32>
    %553 = arith.mulf %552, %552 : vector<32x256xf32>
    %cst_302 = arith.constant dense<0.000000e+00> : vector<32xf32>
    %554 = vector.multi_reduction <add>, %553, %cst_302 [1] : vector<32x256xf32> to vector<32xf32>
    %555 = vector.shape_cast %554 : vector<32xf32> to vector<32x1xf32>
    %cst_303 = arith.constant dense<0.000000e+00> : vector<1xf32>
    %556 = vector.multi_reduction <add>, %555, %cst_303 [0] : vector<32x1xf32> to vector<1xf32>
    %557 = vector.shape_cast %556 : vector<1xf32> to vector<1x1xf32>
    %cst_304 = arith.constant 8.192000e+03 : f32
    %558 = vector.broadcast %cst_304 : f32 to vector<1x1xf32>
    %559 = arith.divf %557, %558 : vector<1x1xf32>
    %cst_305 = arith.constant 9.99999974E-6 : f32
    %560 = vector.broadcast %cst_305 : f32 to vector<1x1xf32>
    %561 = arith.addf %559, %560 : vector<1x1xf32>
    %562 = math.rsqrt %561 : vector<1x1xf32>
    %563 = vector.broadcast %562 : vector<1x1xf32> to vector<32x1xf32>
    %564 = arith.mulf %563, %543 : vector<32x1xf32>
    %565 = vector.broadcast %564 : vector<32x1xf32> to vector<32x256xf32>
    %566 = arith.mulf %552, %565 : vector<32x256xf32>
    %567 = vector.broadcast %544 : vector<32x1xf32> to vector<32x256xf32>
    %568 = arith.addf %566, %567 : vector<32x256xf32>
    %569 = arith.truncf %568 : vector<32x256xf32> to vector<32x256xbf16>
    %cst_306 = arith.constant 0.000000e+00 : bf16
    %570 = vector.broadcast %cst_306 : bf16 to vector<32x24xbf16>
    %c0_307 = arith.constant 0 : index
    %c0_308 = arith.constant 0 : index
    %571 = vector.load %arg19[%c0_307, %c0_308] : memref<32x304xbf16, #tpu.memory_space<vmem>>, vector<32x24xbf16>
    tpu.vector_store %arg19[%c0_307, %c0_308], %570 {strides = array<i32>} : memref<32x304xbf16, #tpu.memory_space<vmem>>, vector<32x24xbf16>,
    %cst_309 = arith.constant 0.000000e+00 : bf16
    %572 = vector.broadcast %cst_309 : bf16 to vector<32x24xbf16>
    %c0_310 = arith.constant 0 : index
    %c280_311 = arith.constant 280 : index
    %573 = vector.load %arg19[%c0_310, %c280_311] : memref<32x304xbf16, #tpu.memory_space<vmem>>, vector<32x24xbf16>
    tpu.vector_store %arg19[%c0_310, %c280_311], %572 {strides = array<i32>} : memref<32x304xbf16, #tpu.memory_space<vmem>>, vector<32x24xbf16>,
    %c0_312 = arith.constant 0 : index
    %c24_313 = arith.constant 24 : index
    %574 = vector.load %arg19[%c0_312, %c24_313] : memref<32x304xbf16, #tpu.memory_space<vmem>>, vector<32x256xbf16>
    tpu.vector_store %arg19[%c0_312, %c24_313], %569 {strides = array<i32>} : memref<32x304xbf16, #tpu.memory_space<vmem>>, vector<32x256xbf16>,
    %c0_314 = arith.constant 0 : index
    %c0_315 = arith.constant 0 : index
    %575 = vector.load %arg12[%c0_314, %c0_315] : memref<16x288xbf16, #tpu.memory_space<vmem>>, vector<16x288xbf16>
    %c0_316 = arith.constant 0 : index
    %c7_317 = arith.constant 7 : index
    %576 = vector.load %arg19[%c0_316, %c7_317] : memref<32x304xbf16, #tpu.memory_space<vmem>>, vector<32x256xbf16>
    %c2_318 = arith.constant 2 : index
    %c0_319 = arith.constant 0 : index
    %577 = vector.load %arg5[%c2_318, %c0_319] : memref<7x256xbf16, #tpu.memory_space<vmem>>, vector<1x256xbf16>
    %578 = vector.broadcast %577 : vector<1x256xbf16> to vector<32x256xbf16>
    %579 = arith.mulf %576, %578 : vector<32x256xbf16>
    %c0_320 = arith.constant 0 : index
    %c8_321 = arith.constant 8 : index
    %580 = vector.load %arg19[%c0_320, %c8_321] : memref<32x304xbf16, #tpu.memory_space<vmem>>, vector<32x256xbf16>
    %c3_322 = arith.constant 3 : index
    %c0_323 = arith.constant 0 : index
    %581 = vector.load %arg5[%c3_322, %c0_323] : memref<7x256xbf16, #tpu.memory_space<vmem>>, vector<1x256xbf16>
    %582 = vector.broadcast %581 : vector<1x256xbf16> to vector<32x256xbf16>
    %583 = arith.mulf %580, %582 : vector<32x256xbf16>
    %c0_324 = arith.constant 0 : index
    %c9_325 = arith.constant 9 : index
    %584 = vector.load %arg19[%c0_324, %c9_325] : memref<32x304xbf16, #tpu.memory_space<vmem>>, vector<32x256xbf16>
    %c4_326 = arith.constant 4 : index
    %c0_327 = arith.constant 0 : index
    %585 = vector.load %arg5[%c4_326, %c0_327] : memref<7x256xbf16, #tpu.memory_space<vmem>>, vector<1x256xbf16>
    %586 = vector.broadcast %585 : vector<1x256xbf16> to vector<32x256xbf16>
    %587 = arith.mulf %584, %586 : vector<32x256xbf16>
    %c0_328 = arith.constant 0 : index
    %c23_329 = arith.constant 23 : index
    %588 = vector.load %arg19[%c0_328, %c23_329] : memref<32x304xbf16, #tpu.memory_space<vmem>>, vector<32x256xbf16>
    %c2_330 = arith.constant 2 : index
    %c0_331 = arith.constant 0 : index
    %589 = vector.load %arg5[%c2_330, %c0_331] : memref<7x256xbf16, #tpu.memory_space<vmem>>, vector<1x256xbf16>
    %590 = vector.broadcast %589 : vector<1x256xbf16> to vector<32x256xbf16>
    %591 = arith.mulf %588, %590 : vector<32x256xbf16>
    %c0_332 = arith.constant 0 : index
    %c24_333 = arith.constant 24 : index
    %592 = vector.load %arg19[%c0_332, %c24_333] : memref<32x304xbf16, #tpu.memory_space<vmem>>, vector<32x256xbf16>
    %c3_334 = arith.constant 3 : index
    %c0_335 = arith.constant 0 : index
    %593 = vector.load %arg5[%c3_334, %c0_335] : memref<7x256xbf16, #tpu.memory_space<vmem>>, vector<1x256xbf16>
    %594 = vector.broadcast %593 : vector<1x256xbf16> to vector<32x256xbf16>
    %595 = arith.mulf %592, %594 : vector<32x256xbf16>
    %c0_336 = arith.constant 0 : index
    %c25_337 = arith.constant 25 : index
    %596 = vector.load %arg19[%c0_336, %c25_337] : memref<32x304xbf16, #tpu.memory_space<vmem>>, vector<32x256xbf16>
    %c4_338 = arith.constant 4 : index
    %c0_339 = arith.constant 0 : index
    %597 = vector.load %arg5[%c4_338, %c0_339] : memref<7x256xbf16, #tpu.memory_space<vmem>>, vector<1x256xbf16>
    %598 = vector.broadcast %597 : vector<1x256xbf16> to vector<32x256xbf16>
    %599 = arith.mulf %596, %598 : vector<32x256xbf16>
    %c0_340 = arith.constant 0 : index
    %c39_341 = arith.constant 39 : index
    %600 = vector.load %arg19[%c0_340, %c39_341] : memref<32x304xbf16, #tpu.memory_space<vmem>>, vector<32x256xbf16>
    %c2_342 = arith.constant 2 : index
    %c0_343 = arith.constant 0 : index
    %601 = vector.load %arg5[%c2_342, %c0_343] : memref<7x256xbf16, #tpu.memory_space<vmem>>, vector<1x256xbf16>
    %602 = vector.broadcast %601 : vector<1x256xbf16> to vector<32x256xbf16>
    %603 = arith.mulf %600, %602 : vector<32x256xbf16>
    %c0_344 = arith.constant 0 : index
    %c40_345 = arith.constant 40 : index
    %604 = vector.load %arg19[%c0_344, %c40_345] : memref<32x304xbf16, #tpu.memory_space<vmem>>, vector<32x256xbf16>
    %c3_346 = arith.constant 3 : index
    %c0_347 = arith.constant 0 : index
    %605 = vector.load %arg5[%c3_346, %c0_347] : memref<7x256xbf16, #tpu.memory_space<vmem>>, vector<1x256xbf16>
    %606 = vector.broadcast %605 : vector<1x256xbf16> to vector<32x256xbf16>
    %607 = arith.mulf %604, %606 : vector<32x256xbf16>
    %c0_348 = arith.constant 0 : index
    %c41_349 = arith.constant 41 : index
    %608 = vector.load %arg19[%c0_348, %c41_349] : memref<32x304xbf16, #tpu.memory_space<vmem>>, vector<32x256xbf16>
    %c4_350 = arith.constant 4 : index
    %c0_351 = arith.constant 0 : index
    %609 = vector.load %arg5[%c4_350, %c0_351] : memref<7x256xbf16, #tpu.memory_space<vmem>>, vector<1x256xbf16>
    %610 = vector.broadcast %609 : vector<1x256xbf16> to vector<32x256xbf16>
    %611 = arith.mulf %608, %610 : vector<32x256xbf16>
    %612 = tpu.concatenate %579, %583, %587, %591, %595, %599, %603, %607, %611 in 0 : vector<32x256xbf16>, vector<32x256xbf16>, vector<32x256xbf16>, vector<32x256xbf16>, vector<32x256xbf16>, vector<32x256xbf16>, vector<32x256xbf16>, vector<32x256xbf16>, vector<32x256xbf16> -> vector<288x256xbf16>
    %cst_352 = arith.constant dense<0.000000e+00> : vector<16x256xf32>
    %613 = tpu.matmul %575, %612, %cst_352 {dimension_numbers = #tpu.dot_dimension_numbers<[1], [0], [0], [1], [0, 0, 1, 1], [], []>} : vector<16x288xbf16>, vector<288x256xbf16>, vector<16x256xf32> -> vector<16x256xf32>
    %c0_353 = arith.constant 0 : index
    %c0_354 = arith.constant 0 : index
    %614 = vector.load %arg13[%c0_353, %c0_354] : memref<16x1xf32, #tpu.memory_space<vmem>>, vector<16x1xf32>
    %615 = vector.broadcast %614 : vector<16x1xf32> to vector<16x256xf32>
    %616 = arith.addf %613, %615 : vector<16x256xf32>
    %c0_355 = arith.constant 0 : index
    %c0_356 = arith.constant 0 : index
    %617 = vector.load %arg14[%c0_355, %c0_356] : memref<16x8xbf16, #tpu.memory_space<vmem>>, vector<16x8xbf16>
    %618 = arith.truncf %1 : vector<8x256xf32> to vector<8x256xbf16>
    %cst_357 = arith.constant dense<0.000000e+00> : vector<16x256xf32>
    %619 = tpu.matmul %617, %618, %cst_357 {dimension_numbers = #tpu.dot_dimension_numbers<[1], [0], [0], [1], [0, 0, 1, 1], [], []>} : vector<16x8xbf16>, vector<8x256xbf16>, vector<16x256xf32> -> vector<16x256xf32>
    %620 = arith.addf %616, %619 : vector<16x256xf32>
    %c0_358 = arith.constant 0 : index
    %c0_359 = arith.constant 0 : index
    %621 = vector.load %arg15[%c0_358, %c0_359] : memref<16x1xf32, #tpu.memory_space<vmem>>, vector<16x1xf32>
    %622 = vector.broadcast %621 : vector<16x1xf32> to vector<16x256xf32>
    %623 = arith.addf %620, %622 : vector<16x256xf32>
    %c0_360 = arith.constant 0 : index
    %c0_361 = arith.constant 0 : index
    %c0_362 = arith.constant 0 : index
    %624 = vector.load %arg16[%c0_360, %c0_361, %c0_362] : memref<1x16x256xf32, #tpu.memory_space<vmem>>, vector<1x16x256xf32>
    %625 = vector.shape_cast %624 : vector<1x16x256xf32> to vector<16x256xf32>
    %626 = vector.shape_cast %623 : vector<16x256xf32> to vector<1x16x256xf32>
    tpu.vector_store %arg16[%c0_360, %c0_361, %c0_362], %626 {strides = array<i32>} : memref<1x16x256xf32, #tpu.memory_space<vmem>>, vector<1x16x256xf32>,
    return
  }
  func.func @transform_0(%arg0: i32) -> (i32, i32, i32) {
    %c0_i32 = arith.constant 0 : i32
    %c0_i32_0 = arith.constant 0 : i32
    %c0_i32_1 = arith.constant 0 : i32
    return %arg0, %c0_i32, %c0_i32_0 : i32, i32, i32
  }
  func.func @transform_1(%arg0: i32) -> (i32, i32, i32) {
    %c0_i32 = arith.constant 0 : i32
    %c0_i32_0 = arith.constant 0 : i32
    %c0_i32_1 = arith.constant 0 : i32
    return %arg0, %c0_i32, %c0_i32_0 : i32, i32, i32
  }
  func.func @transform_2(%arg0: i32) -> (i32, i32) {
    %c0_i32 = arith.constant 0 : i32
    %c0_i32_0 = arith.constant 0 : i32
    %c0_i32_1 = arith.constant 0 : i32
    return %c0_i32, %c0_i32_0 : i32, i32
  }
  func.func @transform_3(%arg0: i32) -> (i32, i32) {
    %c0_i32 = arith.constant 0 : i32
    %c0_i32_0 = arith.constant 0 : i32
    %c0_i32_1 = arith.constant 0 : i32
    return %c0_i32, %c0_i32_0 : i32, i32
  }
  func.func @transform_4(%arg0: i32) -> (i32, i32) {
    %c0_i32 = arith.constant 0 : i32
    %c0_i32_0 = arith.constant 0 : i32
    %c0_i32_1 = arith.constant 0 : i32
    return %c0_i32, %c0_i32_0 : i32, i32
  }
  func.func @transform_5(%arg0: i32) -> (i32, i32) {
    %c0_i32 = arith.constant 0 : i32
    %c0_i32_0 = arith.constant 0 : i32
    %c0_i32_1 = arith.constant 0 : i32
    return %c0_i32, %c0_i32_0 : i32, i32
  }
  func.func @transform_6(%arg0: i32) -> (i32, i32) {
    %c0_i32 = arith.constant 0 : i32
    %c0_i32_0 = arith.constant 0 : i32
    %c0_i32_1 = arith.constant 0 : i32
    return %c0_i32, %c0_i32_0 : i32, i32
  }
  func.func @transform_7(%arg0: i32) -> (i32, i32) {
    %c0_i32 = arith.constant 0 : i32
    %c0_i32_0 = arith.constant 0 : i32
    %c0_i32_1 = arith.constant 0 : i32
    return %c0_i32, %c0_i32_0 : i32, i32
  }
  func.func @transform_8(%arg0: i32) -> (i32, i32) {
    %c0_i32 = arith.constant 0 : i32
    %c0_i32_0 = arith.constant 0 : i32
    %c0_i32_1 = arith.constant 0 : i32
    return %c0_i32, %c0_i32_0 : i32, i32
  }
  func.func @transform_9(%arg0: i32) -> (i32, i32) {
    %c0_i32 = arith.constant 0 : i32
    %c0_i32_0 = arith.constant 0 : i32
    %c0_i32_1 = arith.constant 0 : i32
    return %c0_i32, %c0_i32_0 : i32, i32
  }
  func.func @transform_10(%arg0: i32) -> (i32, i32) {
    %c0_i32 = arith.constant 0 : i32
    %c0_i32_0 = arith.constant 0 : i32
    %c0_i32_1 = arith.constant 0 : i32
    return %c0_i32, %c0_i32_0 : i32, i32
  }
  func.func @transform_11(%arg0: i32) -> (i32, i32) {
    %c0_i32 = arith.constant 0 : i32
    %c0_i32_0 = arith.constant 0 : i32
    %c0_i32_1 = arith.constant 0 : i32
    return %c0_i32, %c0_i32_0 : i32, i32
  }
  func.func @transform_12(%arg0: i32) -> (i32, i32) {
    %c0_i32 = arith.constant 0 : i32
    %c0_i32_0 = arith.constant 0 : i32
    %c0_i32_1 = arith.constant 0 : i32
    return %c0_i32, %c0_i32_0 : i32, i32
  }
  func.func @transform_13(%arg0: i32) -> (i32, i32) {
    %c0_i32 = arith.constant 0 : i32
    %c0_i32_0 = arith.constant 0 : i32
    %c0_i32_1 = arith.constant 0 : i32
    return %c0_i32, %c0_i32_0 : i32, i32
  }
  func.func @transform_14(%arg0: i32) -> (i32, i32) {
    %c0_i32 = arith.constant 0 : i32
    %c0_i32_0 = arith.constant 0 : i32
    %c0_i32_1 = arith.constant 0 : i32
    return %c0_i32, %c0_i32_0 : i32, i32
  }
  func.func @transform_15(%arg0: i32) -> (i32, i32, i32) {
    %c0_i32 = arith.constant 0 : i32
    %c0_i32_0 = arith.constant 0 : i32
    %c0_i32_1 = arith.constant 0 : i32
    return %arg0, %c0_i32, %c0_i32_0 : i32, i32, i32
  }
}

module attributes {stable_mosaic.version = 11 : i64} {
  func.func @_convnext_kernel(%arg0: i32, %arg1: memref<1x8x256xf32, #tpu.memory_space<vmem>>, %arg2: memref<1x8x1xf32, #tpu.memory_space<vmem>>, %arg3: memref<8x49xf32, #tpu.memory_space<vmem>>, %arg4: memref<8x1xf32, #tpu.memory_space<vmem>>, %arg5: memref<7x256xbf16, #tpu.memory_space<vmem>>, %arg6: memref<8x1xf32, #tpu.memory_space<vmem>>, %arg7: memref<8x1xf32, #tpu.memory_space<vmem>>, %arg8: memref<32x72xbf16, #tpu.memory_space<vmem>>, %arg9: memref<32x1xf32, #tpu.memory_space<vmem>>, %arg10: memref<32x1xf32, #tpu.memory_space<vmem>>, %arg11: memref<32x1xf32, #tpu.memory_space<vmem>>, %arg12: memref<16x288xbf16, #tpu.memory_space<vmem>>, %arg13: memref<16x1xf32, #tpu.memory_space<vmem>>, %arg14: memref<16x8xbf16, #tpu.memory_space<vmem>>, %arg15: memref<16x1xf32, #tpu.memory_space<vmem>>, %arg16: memref<1x16x256xf32, #tpu.memory_space<vmem>>, %arg17: memref<8x368xf32, #tpu.memory_space<vmem>>, %arg18: memref<8x304xbf16, #tpu.memory_space<vmem>>, %arg19: memref<32x304xbf16, #tpu.memory_space<vmem>>) attributes {dimension_semantics = [#tpu.dimension_semantics<parallel>], iteration_bounds = array<i64: 2>, scalar_prefetch = 0 : i64, scratch_operands = 3 : i64, tpu.core_type = #tpu.core_type<tc>, window_params = [{transform_indices = @transform_0, window_bounds = array<i64: 1, 8, 256>}, {transform_indices = @transform_1, window_bounds = array<i64: 1, 8, 1>}, {pipeline_mode = #tpu.pipeline_mode<synchronous>, transform_indices = @transform_2, window_bounds = array<i64: 8, 49>}, {pipeline_mode = #tpu.pipeline_mode<synchronous>, transform_indices = @transform_3, window_bounds = array<i64: 8, 1>}, {pipeline_mode = #tpu.pipeline_mode<synchronous>, transform_indices = @transform_4, window_bounds = array<i64: 7, 256>}, {pipeline_mode = #tpu.pipeline_mode<synchronous>, transform_indices = @transform_5, window_bounds = array<i64: 8, 1>}, {pipeline_mode = #tpu.pipeline_mode<synchronous>, transform_indices = @transform_6, window_bounds = array<i64: 8, 1>}, {pipeline_mode = #tpu.pipeline_mode<synchronous>, transform_indices = @transform_7, window_bounds = array<i64: 32, 72>}, {pipeline_mode = #tpu.pipeline_mode<synchronous>, transform_indices = @transform_8, window_bounds = array<i64: 32, 1>}, {pipeline_mode = #tpu.pipeline_mode<synchronous>, transform_indices = @transform_9, window_bounds = array<i64: 32, 1>}, {pipeline_mode = #tpu.pipeline_mode<synchronous>, transform_indices = @transform_10, window_bounds = array<i64: 32, 1>}, {pipeline_mode = #tpu.pipeline_mode<synchronous>, transform_indices = @transform_11, window_bounds = array<i64: 16, 288>}, {pipeline_mode = #tpu.pipeline_mode<synchronous>, transform_indices = @transform_12, window_bounds = array<i64: 16, 1>}, {pipeline_mode = #tpu.pipeline_mode<synchronous>, transform_indices = @transform_13, window_bounds = array<i64: 16, 8>}, {pipeline_mode = #tpu.pipeline_mode<synchronous>, transform_indices = @transform_14, window_bounds = array<i64: 16, 1>}, {transform_indices = @transform_15, window_bounds = array<i64: 1, 16, 256>}]} {
    %c0 = arith.constant 0 : index
    %c0_0 = arith.constant 0 : index
    %c0_1 = arith.constant 0 : index
    %0 = vector.load %arg1[%c0, %c0_0, %c0_1] : memref<1x8x256xf32, #tpu.memory_space<vmem>>, vector<1x8x256xf32>
    %1 = vector.shape_cast %0 : vector<1x8x256xf32> to vector<8x256xf32>
    %cst = arith.constant 0.000000e+00 : f32
    %2 = vector.broadcast %cst : f32 to vector<8x56xf32>
    %c0_2 = arith.constant 0 : index
    %c0_3 = arith.constant 0 : index
    %3 = vector.load %arg17[%c0_2, %c0_3] : memref<8x368xf32, #tpu.memory_space<vmem>>, vector<8x56xf32>
    tpu.vector_store %arg17[%c0_2, %c0_3], %2 {strides = array<i32>} : memref<8x368xf32, #tpu.memory_space<vmem>>, vector<8x56xf32>,
    %cst_4 = arith.constant 0.000000e+00 : f32
    %4 = vector.broadcast %cst_4 : f32 to vector<8x56xf32>
    %c0_5 = arith.constant 0 : index
    %c312 = arith.constant 312 : index
    %5 = vector.load %arg17[%c0_5, %c312] : memref<8x368xf32, #tpu.memory_space<vmem>>, vector<8x56xf32>
    tpu.vector_store %arg17[%c0_5, %c312], %4 {strides = array<i32>} : memref<8x368xf32, #tpu.memory_space<vmem>>, vector<8x56xf32>,
    %c0_6 = arith.constant 0 : index
    %c56 = arith.constant 56 : index
    %6 = vector.load %arg17[%c0_6, %c56] : memref<8x368xf32, #tpu.memory_space<vmem>>, vector<8x256xf32>
    tpu.vector_store %arg17[%c0_6, %c56], %1 {strides = array<i32>} : memref<8x368xf32, #tpu.memory_space<vmem>>, vector<8x256xf32>,
    %cst_7 = arith.constant 0.000000e+00 : f32
    %7 = vector.broadcast %cst_7 : f32 to vector<8x256xf32>
    %c0_8 = arith.constant 0 : index
    %c5 = arith.constant 5 : index
    %8 = vector.load %arg17[%c0_8, %c5] : memref<8x368xf32, #tpu.memory_space<vmem>>, vector<8x256xf32>
    %c0_9 = arith.constant 0 : index
    %c0_10 = arith.constant 0 : index
    %9 = vector.load %arg3[%c0_9, %c0_10] : memref<8x49xf32, #tpu.memory_space<vmem>>, vector<8x1xf32>
    %10 = vector.broadcast %9 : vector<8x1xf32> to vector<8x256xf32>
    %11 = arith.mulf %8, %10 : vector<8x256xf32>
    %c0_11 = arith.constant 0 : index
    %c0_12 = arith.constant 0 : index
    %12 = vector.load %arg5[%c0_11, %c0_12] : memref<7x256xbf16, #tpu.memory_space<vmem>>, vector<1x256xbf16>
    %13 = arith.extf %12 : vector<1x256xbf16> to vector<1x256xf32>
    %14 = vector.broadcast %13 : vector<1x256xf32> to vector<8x256xf32>
    %15 = arith.mulf %11, %14 : vector<8x256xf32>
    %16 = arith.addf %7, %15 : vector<8x256xf32>
    %c0_13 = arith.constant 0 : index
    %c6 = arith.constant 6 : index
    %17 = vector.load %arg17[%c0_13, %c6] : memref<8x368xf32, #tpu.memory_space<vmem>>, vector<8x256xf32>
    %c0_14 = arith.constant 0 : index
    %c1 = arith.constant 1 : index
    %18 = vector.load %arg3[%c0_14, %c1] : memref<8x49xf32, #tpu.memory_space<vmem>>, vector<8x1xf32>
    %19 = vector.broadcast %18 : vector<8x1xf32> to vector<8x256xf32>
    %20 = arith.mulf %17, %19 : vector<8x256xf32>
    %c1_15 = arith.constant 1 : index
    %c0_16 = arith.constant 0 : index
    %21 = vector.load %arg5[%c1_15, %c0_16] : memref<7x256xbf16, #tpu.memory_space<vmem>>, vector<1x256xbf16>
    %22 = arith.extf %21 : vector<1x256xbf16> to vector<1x256xf32>
    %23 = vector.broadcast %22 : vector<1x256xf32> to vector<8x256xf32>
    %24 = arith.mulf %20, %23 : vector<8x256xf32>
    %25 = arith.addf %16, %24 : vector<8x256xf32>
    %c0_17 = arith.constant 0 : index
    %c7 = arith.constant 7 : index
    %26 = vector.load %arg17[%c0_17, %c7] : memref<8x368xf32, #tpu.memory_space<vmem>>, vector<8x256xf32>
    %c0_18 = arith.constant 0 : index
    %c2 = arith.constant 2 : index
    %27 = vector.load %arg3[%c0_18, %c2] : memref<8x49xf32, #tpu.memory_space<vmem>>, vector<8x1xf32>
    %28 = vector.broadcast %27 : vector<8x1xf32> to vector<8x256xf32>
    %29 = arith.mulf %26, %28 : vector<8x256xf32>
    %c2_19 = arith.constant 2 : index
    %c0_20 = arith.constant 0 : index
    %30 = vector.load %arg5[%c2_19, %c0_20] : memref<7x256xbf16, #tpu.memory_space<vmem>>, vector<1x256xbf16>
    %31 = arith.extf %30 : vector<1x256xbf16> to vector<1x256xf32>
    %32 = vector.broadcast %31 : vector<1x256xf32> to vector<8x256xf32>
    %33 = arith.mulf %29, %32 : vector<8x256xf32>
    %34 = arith.addf %25, %33 : vector<8x256xf32>
    %c0_21 = arith.constant 0 : index
    %c8 = arith.constant 8 : index
    %35 = vector.load %arg17[%c0_21, %c8] : memref<8x368xf32, #tpu.memory_space<vmem>>, vector<8x256xf32>
    %c0_22 = arith.constant 0 : index
    %c3 = arith.constant 3 : index
    %36 = vector.load %arg3[%c0_22, %c3] : memref<8x49xf32, #tpu.memory_space<vmem>>, vector<8x1xf32>
    %37 = vector.broadcast %36 : vector<8x1xf32> to vector<8x256xf32>
    %38 = arith.mulf %35, %37 : vector<8x256xf32>
    %c3_23 = arith.constant 3 : index
    %c0_24 = arith.constant 0 : index
    %39 = vector.load %arg5[%c3_23, %c0_24] : memref<7x256xbf16, #tpu.memory_space<vmem>>, vector<1x256xbf16>
    %40 = arith.extf %39 : vector<1x256xbf16> to vector<1x256xf32>
    %41 = vector.broadcast %40 : vector<1x256xf32> to vector<8x256xf32>
    %42 = arith.mulf %38, %41 : vector<8x256xf32>
    %43 = arith.addf %34, %42 : vector<8x256xf32>
    %c0_25 = arith.constant 0 : index
    %c9 = arith.constant 9 : index
    %44 = vector.load %arg17[%c0_25, %c9] : memref<8x368xf32, #tpu.memory_space<vmem>>, vector<8x256xf32>
    %c0_26 = arith.constant 0 : index
    %c4 = arith.constant 4 : index
    %45 = vector.load %arg3[%c0_26, %c4] : memref<8x49xf32, #tpu.memory_space<vmem>>, vector<8x1xf32>
    %46 = vector.broadcast %45 : vector<8x1xf32> to vector<8x256xf32>
    %47 = arith.mulf %44, %46 : vector<8x256xf32>
    %c4_27 = arith.constant 4 : index
    %c0_28 = arith.constant 0 : index
    %48 = vector.load %arg5[%c4_27, %c0_28] : memref<7x256xbf16, #tpu.memory_space<vmem>>, vector<1x256xbf16>
    %49 = arith.extf %48 : vector<1x256xbf16> to vector<1x256xf32>
    %50 = vector.broadcast %49 : vector<1x256xf32> to vector<8x256xf32>
    %51 = arith.mulf %47, %50 : vector<8x256xf32>
    %52 = arith.addf %43, %51 : vector<8x256xf32>
    %c0_29 = arith.constant 0 : index
    %c10 = arith.constant 10 : index
    %53 = vector.load %arg17[%c0_29, %c10] : memref<8x368xf32, #tpu.memory_space<vmem>>, vector<8x256xf32>
    %c0_30 = arith.constant 0 : index
    %c5_31 = arith.constant 5 : index
    %54 = vector.load %arg3[%c0_30, %c5_31] : memref<8x49xf32, #tpu.memory_space<vmem>>, vector<8x1xf32>
    %55 = vector.broadcast %54 : vector<8x1xf32> to vector<8x256xf32>
    %56 = arith.mulf %53, %55 : vector<8x256xf32>
    %c5_32 = arith.constant 5 : index
    %c0_33 = arith.constant 0 : index
    %57 = vector.load %arg5[%c5_32, %c0_33] : memref<7x256xbf16, #tpu.memory_space<vmem>>, vector<1x256xbf16>
    %58 = arith.extf %57 : vector<1x256xbf16> to vector<1x256xf32>
    %59 = vector.broadcast %58 : vector<1x256xf32> to vector<8x256xf32>
    %60 = arith.mulf %56, %59 : vector<8x256xf32>
    %61 = arith.addf %52, %60 : vector<8x256xf32>
    %c0_34 = arith.constant 0 : index
    %c11 = arith.constant 11 : index
    %62 = vector.load %arg17[%c0_34, %c11] : memref<8x368xf32, #tpu.memory_space<vmem>>, vector<8x256xf32>
    %c0_35 = arith.constant 0 : index
    %c6_36 = arith.constant 6 : index
    %63 = vector.load %arg3[%c0_35, %c6_36] : memref<8x49xf32, #tpu.memory_space<vmem>>, vector<8x1xf32>
    %64 = vector.broadcast %63 : vector<8x1xf32> to vector<8x256xf32>
    %65 = arith.mulf %62, %64 : vector<8x256xf32>
    %c6_37 = arith.constant 6 : index
    %c0_38 = arith.constant 0 : index
    %66 = vector.load %arg5[%c6_37, %c0_38] : memref<7x256xbf16, #tpu.memory_space<vmem>>, vector<1x256xbf16>
    %67 = arith.extf %66 : vector<1x256xbf16> to vector<1x256xf32>
    %68 = vector.broadcast %67 : vector<1x256xf32> to vector<8x256xf32>
    %69 = arith.mulf %65, %68 : vector<8x256xf32>
    %70 = arith.addf %61, %69 : vector<8x256xf32>
    %c0_39 = arith.constant 0 : index
    %c21 = arith.constant 21 : index
    %71 = vector.load %arg17[%c0_39, %c21] : memref<8x368xf32, #tpu.memory_space<vmem>>, vector<8x256xf32>
    %c0_40 = arith.constant 0 : index
    %c7_41 = arith.constant 7 : index
    %72 = vector.load %arg3[%c0_40, %c7_41] : memref<8x49xf32, #tpu.memory_space<vmem>>, vector<8x1xf32>
    %73 = vector.broadcast %72 : vector<8x1xf32> to vector<8x256xf32>
    %74 = arith.mulf %71, %73 : vector<8x256xf32>
    %c0_42 = arith.constant 0 : index
    %c0_43 = arith.constant 0 : index
    %75 = vector.load %arg5[%c0_42, %c0_43] : memref<7x256xbf16, #tpu.memory_space<vmem>>, vector<1x256xbf16>
    %76 = arith.extf %75 : vector<1x256xbf16> to vector<1x256xf32>
    %77 = vector.broadcast %76 : vector<1x256xf32> to vector<8x256xf32>
    %78 = arith.mulf %74, %77 : vector<8x256xf32>
    %79 = arith.addf %70, %78 : vector<8x256xf32>
    %c0_44 = arith.constant 0 : index
    %c22 = arith.constant 22 : index
    %80 = vector.load %arg17[%c0_44, %c22] : memref<8x368xf32, #tpu.memory_space<vmem>>, vector<8x256xf32>
    %c0_45 = arith.constant 0 : index
    %c8_46 = arith.constant 8 : index
    %81 = vector.load %arg3[%c0_45, %c8_46] : memref<8x49xf32, #tpu.memory_space<vmem>>, vector<8x1xf32>
    %82 = vector.broadcast %81 : vector<8x1xf32> to vector<8x256xf32>
    %83 = arith.mulf %80, %82 : vector<8x256xf32>
    %c1_47 = arith.constant 1 : index
    %c0_48 = arith.constant 0 : index
    %84 = vector.load %arg5[%c1_47, %c0_48] : memref<7x256xbf16, #tpu.memory_space<vmem>>, vector<1x256xbf16>
    %85 = arith.extf %84 : vector<1x256xbf16> to vector<1x256xf32>
    %86 = vector.broadcast %85 : vector<1x256xf32> to vector<8x256xf32>
    %87 = arith.mulf %83, %86 : vector<8x256xf32>
    %88 = arith.addf %79, %87 : vector<8x256xf32>
    %c0_49 = arith.constant 0 : index
    %c23 = arith.constant 23 : index
    %89 = vector.load %arg17[%c0_49, %c23] : memref<8x368xf32, #tpu.memory_space<vmem>>, vector<8x256xf32>
    %c0_50 = arith.constant 0 : index
    %c9_51 = arith.constant 9 : index
    %90 = vector.load %arg3[%c0_50, %c9_51] : memref<8x49xf32, #tpu.memory_space<vmem>>, vector<8x1xf32>
    %91 = vector.broadcast %90 : vector<8x1xf32> to vector<8x256xf32>
    %92 = arith.mulf %89, %91 : vector<8x256xf32>
    %c2_52 = arith.constant 2 : index
    %c0_53 = arith.constant 0 : index
    %93 = vector.load %arg5[%c2_52, %c0_53] : memref<7x256xbf16, #tpu.memory_space<vmem>>, vector<1x256xbf16>
    %94 = arith.extf %93 : vector<1x256xbf16> to vector<1x256xf32>
    %95 = vector.broadcast %94 : vector<1x256xf32> to vector<8x256xf32>
    %96 = arith.mulf %92, %95 : vector<8x256xf32>
    %97 = arith.addf %88, %96 : vector<8x256xf32>
    %c0_54 = arith.constant 0 : index
    %c24 = arith.constant 24 : index
    %98 = vector.load %arg17[%c0_54, %c24] : memref<8x368xf32, #tpu.memory_space<vmem>>, vector<8x256xf32>
    %c0_55 = arith.constant 0 : index
    %c10_56 = arith.constant 10 : index
    %99 = vector.load %arg3[%c0_55, %c10_56] : memref<8x49xf32, #tpu.memory_space<vmem>>, vector<8x1xf32>
    %100 = vector.broadcast %99 : vector<8x1xf32> to vector<8x256xf32>
    %101 = arith.mulf %98, %100 : vector<8x256xf32>
    %c3_57 = arith.constant 3 : index
    %c0_58 = arith.constant 0 : index
    %102 = vector.load %arg5[%c3_57, %c0_58] : memref<7x256xbf16, #tpu.memory_space<vmem>>, vector<1x256xbf16>
    %103 = arith.extf %102 : vector<1x256xbf16> to vector<1x256xf32>
    %104 = vector.broadcast %103 : vector<1x256xf32> to vector<8x256xf32>
    %105 = arith.mulf %101, %104 : vector<8x256xf32>
    %106 = arith.addf %97, %105 : vector<8x256xf32>
    %c0_59 = arith.constant 0 : index
    %c25 = arith.constant 25 : index
    %107 = vector.load %arg17[%c0_59, %c25] : memref<8x368xf32, #tpu.memory_space<vmem>>, vector<8x256xf32>
    %c0_60 = arith.constant 0 : index
    %c11_61 = arith.constant 11 : index
    %108 = vector.load %arg3[%c0_60, %c11_61] : memref<8x49xf32, #tpu.memory_space<vmem>>, vector<8x1xf32>
    %109 = vector.broadcast %108 : vector<8x1xf32> to vector<8x256xf32>
    %110 = arith.mulf %107, %109 : vector<8x256xf32>
    %c4_62 = arith.constant 4 : index
    %c0_63 = arith.constant 0 : index
    %111 = vector.load %arg5[%c4_62, %c0_63] : memref<7x256xbf16, #tpu.memory_space<vmem>>, vector<1x256xbf16>
    %112 = arith.extf %111 : vector<1x256xbf16> to vector<1x256xf32>
    %113 = vector.broadcast %112 : vector<1x256xf32> to vector<8x256xf32>
    %114 = arith.mulf %110, %113 : vector<8x256xf32>
    %115 = arith.addf %106, %114 : vector<8x256xf32>
    %c0_64 = arith.constant 0 : index
    %c26 = arith.constant 26 : index
    %116 = vector.load %arg17[%c0_64, %c26] : memref<8x368xf32, #tpu.memory_space<vmem>>, vector<8x256xf32>
    %c0_65 = arith.constant 0 : index
    %c12 = arith.constant 12 : index
    %117 = vector.load %arg3[%c0_65, %c12] : memref<8x49xf32, #tpu.memory_space<vmem>>, vector<8x1xf32>
    %118 = vector.broadcast %117 : vector<8x1xf32> to vector<8x256xf32>
    %119 = arith.mulf %116, %118 : vector<8x256xf32>
    %c5_66 = arith.constant 5 : index
    %c0_67 = arith.constant 0 : index
    %120 = vector.load %arg5[%c5_66, %c0_67] : memref<7x256xbf16, #tpu.memory_space<vmem>>, vector<1x256xbf16>
    %121 = arith.extf %120 : vector<1x256xbf16> to vector<1x256xf32>
    %122 = vector.broadcast %121 : vector<1x256xf32> to vector<8x256xf32>
    %123 = arith.mulf %119, %122 : vector<8x256xf32>
    %124 = arith.addf %115, %123 : vector<8x256xf32>
    %c0_68 = arith.constant 0 : index
    %c27 = arith.constant 27 : index
    %125 = vector.load %arg17[%c0_68, %c27] : memref<8x368xf32, #tpu.memory_space<vmem>>, vector<8x256xf32>
    %c0_69 = arith.constant 0 : index
    %c13 = arith.constant 13 : index
    %126 = vector.load %arg3[%c0_69, %c13] : memref<8x49xf32, #tpu.memory_space<vmem>>, vector<8x1xf32>
    %127 = vector.broadcast %126 : vector<8x1xf32> to vector<8x256xf32>
    %128 = arith.mulf %125, %127 : vector<8x256xf32>
    %c6_70 = arith.constant 6 : index
    %c0_71 = arith.constant 0 : index
    %129 = vector.load %arg5[%c6_70, %c0_71] : memref<7x256xbf16, #tpu.memory_space<vmem>>, vector<1x256xbf16>
    %130 = arith.extf %129 : vector<1x256xbf16> to vector<1x256xf32>
    %131 = vector.broadcast %130 : vector<1x256xf32> to vector<8x256xf32>
    %132 = arith.mulf %128, %131 : vector<8x256xf32>
    %133 = arith.addf %124, %132 : vector<8x256xf32>
    %c0_72 = arith.constant 0 : index
    %c37 = arith.constant 37 : index
    %134 = vector.load %arg17[%c0_72, %c37] : memref<8x368xf32, #tpu.memory_space<vmem>>, vector<8x256xf32>
    %c0_73 = arith.constant 0 : index
    %c14 = arith.constant 14 : index
    %135 = vector.load %arg3[%c0_73, %c14] : memref<8x49xf32, #tpu.memory_space<vmem>>, vector<8x1xf32>
    %136 = vector.broadcast %135 : vector<8x1xf32> to vector<8x256xf32>
    %137 = arith.mulf %134, %136 : vector<8x256xf32>
    %c0_74 = arith.constant 0 : index
    %c0_75 = arith.constant 0 : index
    %138 = vector.load %arg5[%c0_74, %c0_75] : memref<7x256xbf16, #tpu.memory_space<vmem>>, vector<1x256xbf16>
    %139 = arith.extf %138 : vector<1x256xbf16> to vector<1x256xf32>
    %140 = vector.broadcast %139 : vector<1x256xf32> to vector<8x256xf32>
    %141 = arith.mulf %137, %140 : vector<8x256xf32>
    %142 = arith.addf %133, %141 : vector<8x256xf32>
    %c0_76 = arith.constant 0 : index
    %c38 = arith.constant 38 : index
    %143 = vector.load %arg17[%c0_76, %c38] : memref<8x368xf32, #tpu.memory_space<vmem>>, vector<8x256xf32>
    %c0_77 = arith.constant 0 : index
    %c15 = arith.constant 15 : index
    %144 = vector.load %arg3[%c0_77, %c15] : memref<8x49xf32, #tpu.memory_space<vmem>>, vector<8x1xf32>
    %145 = vector.broadcast %144 : vector<8x1xf32> to vector<8x256xf32>
    %146 = arith.mulf %143, %145 : vector<8x256xf32>
    %c1_78 = arith.constant 1 : index
    %c0_79 = arith.constant 0 : index
    %147 = vector.load %arg5[%c1_78, %c0_79] : memref<7x256xbf16, #tpu.memory_space<vmem>>, vector<1x256xbf16>
    %148 = arith.extf %147 : vector<1x256xbf16> to vector<1x256xf32>
    %149 = vector.broadcast %148 : vector<1x256xf32> to vector<8x256xf32>
    %150 = arith.mulf %146, %149 : vector<8x256xf32>
    %151 = arith.addf %142, %150 : vector<8x256xf32>
    %c0_80 = arith.constant 0 : index
    %c39 = arith.constant 39 : index
    %152 = vector.load %arg17[%c0_80, %c39] : memref<8x368xf32, #tpu.memory_space<vmem>>, vector<8x256xf32>
    %c0_81 = arith.constant 0 : index
    %c16 = arith.constant 16 : index
    %153 = vector.load %arg3[%c0_81, %c16] : memref<8x49xf32, #tpu.memory_space<vmem>>, vector<8x1xf32>
    %154 = vector.broadcast %153 : vector<8x1xf32> to vector<8x256xf32>
    %155 = arith.mulf %152, %154 : vector<8x256xf32>
    %c2_82 = arith.constant 2 : index
    %c0_83 = arith.constant 0 : index
    %156 = vector.load %arg5[%c2_82, %c0_83] : memref<7x256xbf16, #tpu.memory_space<vmem>>, vector<1x256xbf16>
    %157 = arith.extf %156 : vector<1x256xbf16> to vector<1x256xf32>
    %158 = vector.broadcast %157 : vector<1x256xf32> to vector<8x256xf32>
    %159 = arith.mulf %155, %158 : vector<8x256xf32>
    %160 = arith.addf %151, %159 : vector<8x256xf32>
    %c0_84 = arith.constant 0 : index
    %c40 = arith.constant 40 : index
    %161 = vector.load %arg17[%c0_84, %c40] : memref<8x368xf32, #tpu.memory_space<vmem>>, vector<8x256xf32>
    %c0_85 = arith.constant 0 : index
    %c17 = arith.constant 17 : index
    %162 = vector.load %arg3[%c0_85, %c17] : memref<8x49xf32, #tpu.memory_space<vmem>>, vector<8x1xf32>
    %163 = vector.broadcast %162 : vector<8x1xf32> to vector<8x256xf32>
    %164 = arith.mulf %161, %163 : vector<8x256xf32>
    %c3_86 = arith.constant 3 : index
    %c0_87 = arith.constant 0 : index
    %165 = vector.load %arg5[%c3_86, %c0_87] : memref<7x256xbf16, #tpu.memory_space<vmem>>, vector<1x256xbf16>
    %166 = arith.extf %165 : vector<1x256xbf16> to vector<1x256xf32>
    %167 = vector.broadcast %166 : vector<1x256xf32> to vector<8x256xf32>
    %168 = arith.mulf %164, %167 : vector<8x256xf32>
    %169 = arith.addf %160, %168 : vector<8x256xf32>
    %c0_88 = arith.constant 0 : index
    %c41 = arith.constant 41 : index
    %170 = vector.load %arg17[%c0_88, %c41] : memref<8x368xf32, #tpu.memory_space<vmem>>, vector<8x256xf32>
    %c0_89 = arith.constant 0 : index
    %c18 = arith.constant 18 : index
    %171 = vector.load %arg3[%c0_89, %c18] : memref<8x49xf32, #tpu.memory_space<vmem>>, vector<8x1xf32>
    %172 = vector.broadcast %171 : vector<8x1xf32> to vector<8x256xf32>
    %173 = arith.mulf %170, %172 : vector<8x256xf32>
    %c4_90 = arith.constant 4 : index
    %c0_91 = arith.constant 0 : index
    %174 = vector.load %arg5[%c4_90, %c0_91] : memref<7x256xbf16, #tpu.memory_space<vmem>>, vector<1x256xbf16>
    %175 = arith.extf %174 : vector<1x256xbf16> to vector<1x256xf32>
    %176 = vector.broadcast %175 : vector<1x256xf32> to vector<8x256xf32>
    %177 = arith.mulf %173, %176 : vector<8x256xf32>
    %178 = arith.addf %169, %177 : vector<8x256xf32>
    %c0_92 = arith.constant 0 : index
    %c42 = arith.constant 42 : index
    %179 = vector.load %arg17[%c0_92, %c42] : memref<8x368xf32, #tpu.memory_space<vmem>>, vector<8x256xf32>
    %c0_93 = arith.constant 0 : index
    %c19 = arith.constant 19 : index
    %180 = vector.load %arg3[%c0_93, %c19] : memref<8x49xf32, #tpu.memory_space<vmem>>, vector<8x1xf32>
    %181 = vector.broadcast %180 : vector<8x1xf32> to vector<8x256xf32>
    %182 = arith.mulf %179, %181 : vector<8x256xf32>
    %c5_94 = arith.constant 5 : index
    %c0_95 = arith.constant 0 : index
    %183 = vector.load %arg5[%c5_94, %c0_95] : memref<7x256xbf16, #tpu.memory_space<vmem>>, vector<1x256xbf16>
    %184 = arith.extf %183 : vector<1x256xbf16> to vector<1x256xf32>
    %185 = vector.broadcast %184 : vector<1x256xf32> to vector<8x256xf32>
    %186 = arith.mulf %182, %185 : vector<8x256xf32>
    %187 = arith.addf %178, %186 : vector<8x256xf32>
    %c0_96 = arith.constant 0 : index
    %c43 = arith.constant 43 : index
    %188 = vector.load %arg17[%c0_96, %c43] : memref<8x368xf32, #tpu.memory_space<vmem>>, vector<8x256xf32>
    %c0_97 = arith.constant 0 : index
    %c20 = arith.constant 20 : index
    %189 = vector.load %arg3[%c0_97, %c20] : memref<8x49xf32, #tpu.memory_space<vmem>>, vector<8x1xf32>
    %190 = vector.broadcast %189 : vector<8x1xf32> to vector<8x256xf32>
    %191 = arith.mulf %188, %190 : vector<8x256xf32>
    %c6_98 = arith.constant 6 : index
    %c0_99 = arith.constant 0 : index
    %192 = vector.load %arg5[%c6_98, %c0_99] : memref<7x256xbf16, #tpu.memory_space<vmem>>, vector<1x256xbf16>
    %193 = arith.extf %192 : vector<1x256xbf16> to vector<1x256xf32>
    %194 = vector.broadcast %193 : vector<1x256xf32> to vector<8x256xf32>
    %195 = arith.mulf %191, %194 : vector<8x256xf32>
    %196 = arith.addf %187, %195 : vector<8x256xf32>
    %c0_100 = arith.constant 0 : index
    %c53 = arith.constant 53 : index
    %197 = vector.load %arg17[%c0_100, %c53] : memref<8x368xf32, #tpu.memory_space<vmem>>, vector<8x256xf32>
    %c0_101 = arith.constant 0 : index
    %c21_102 = arith.constant 21 : index
    %198 = vector.load %arg3[%c0_101, %c21_102] : memref<8x49xf32, #tpu.memory_space<vmem>>, vector<8x1xf32>
    %199 = vector.broadcast %198 : vector<8x1xf32> to vector<8x256xf32>
    %200 = arith.mulf %197, %199 : vector<8x256xf32>
    %c0_103 = arith.constant 0 : index
    %c0_104 = arith.constant 0 : index
    %201 = vector.load %arg5[%c0_103, %c0_104] : memref<7x256xbf16, #tpu.memory_space<vmem>>, vector<1x256xbf16>
    %202 = arith.extf %201 : vector<1x256xbf16> to vector<1x256xf32>
    %203 = vector.broadcast %202 : vector<1x256xf32> to vector<8x256xf32>
    %204 = arith.mulf %200, %203 : vector<8x256xf32>
    %205 = arith.addf %196, %204 : vector<8x256xf32>
    %c0_105 = arith.constant 0 : index
    %c54 = arith.constant 54 : index
    %206 = vector.load %arg17[%c0_105, %c54] : memref<8x368xf32, #tpu.memory_space<vmem>>, vector<8x256xf32>
    %c0_106 = arith.constant 0 : index
    %c22_107 = arith.constant 22 : index
    %207 = vector.load %arg3[%c0_106, %c22_107] : memref<8x49xf32, #tpu.memory_space<vmem>>, vector<8x1xf32>
    %208 = vector.broadcast %207 : vector<8x1xf32> to vector<8x256xf32>
    %209 = arith.mulf %206, %208 : vector<8x256xf32>
    %c1_108 = arith.constant 1 : index
    %c0_109 = arith.constant 0 : index
    %210 = vector.load %arg5[%c1_108, %c0_109] : memref<7x256xbf16, #tpu.memory_space<vmem>>, vector<1x256xbf16>
    %211 = arith.extf %210 : vector<1x256xbf16> to vector<1x256xf32>
    %212 = vector.broadcast %211 : vector<1x256xf32> to vector<8x256xf32>
    %213 = arith.mulf %209, %212 : vector<8x256xf32>
    %214 = arith.addf %205, %213 : vector<8x256xf32>
    %c0_110 = arith.constant 0 : index
    %c55 = arith.constant 55 : index
    %215 = vector.load %arg17[%c0_110, %c55] : memref<8x368xf32, #tpu.memory_space<vmem>>, vector<8x256xf32>
    %c0_111 = arith.constant 0 : index
    %c23_112 = arith.constant 23 : index
    %216 = vector.load %arg3[%c0_111, %c23_112] : memref<8x49xf32, #tpu.memory_space<vmem>>, vector<8x1xf32>
    %217 = vector.broadcast %216 : vector<8x1xf32> to vector<8x256xf32>
    %218 = arith.mulf %215, %217 : vector<8x256xf32>
    %c2_113 = arith.constant 2 : index
    %c0_114 = arith.constant 0 : index
    %219 = vector.load %arg5[%c2_113, %c0_114] : memref<7x256xbf16, #tpu.memory_space<vmem>>, vector<1x256xbf16>
    %220 = arith.extf %219 : vector<1x256xbf16> to vector<1x256xf32>
    %221 = vector.broadcast %220 : vector<1x256xf32> to vector<8x256xf32>
    %222 = arith.mulf %218, %221 : vector<8x256xf32>
    %223 = arith.addf %214, %222 : vector<8x256xf32>
    %c0_115 = arith.constant 0 : index
    %c56_116 = arith.constant 56 : index
    %224 = vector.load %arg17[%c0_115, %c56_116] : memref<8x368xf32, #tpu.memory_space<vmem>>, vector<8x256xf32>
    %c0_117 = arith.constant 0 : index
    %c24_118 = arith.constant 24 : index
    %225 = vector.load %arg3[%c0_117, %c24_118] : memref<8x49xf32, #tpu.memory_space<vmem>>, vector<8x1xf32>
    %226 = vector.broadcast %225 : vector<8x1xf32> to vector<8x256xf32>
    %227 = arith.mulf %224, %226 : vector<8x256xf32>
    %c3_119 = arith.constant 3 : index
    %c0_120 = arith.constant 0 : index
    %228 = vector.load %arg5[%c3_119, %c0_120] : memref<7x256xbf16, #tpu.memory_space<vmem>>, vector<1x256xbf16>
    %229 = arith.extf %228 : vector<1x256xbf16> to vector<1x256xf32>
    %230 = vector.broadcast %229 : vector<1x256xf32> to vector<8x256xf32>
    %231 = arith.mulf %227, %230 : vector<8x256xf32>
    %232 = arith.addf %223, %231 : vector<8x256xf32>
    %c0_121 = arith.constant 0 : index
    %c57 = arith.constant 57 : index
    %233 = vector.load %arg17[%c0_121, %c57] : memref<8x368xf32, #tpu.memory_space<vmem>>, vector<8x256xf32>
    %c0_122 = arith.constant 0 : index
    %c25_123 = arith.constant 25 : index
    %234 = vector.load %arg3[%c0_122, %c25_123] : memref<8x49xf32, #tpu.memory_space<vmem>>, vector<8x1xf32>
    %235 = vector.broadcast %234 : vector<8x1xf32> to vector<8x256xf32>
    %236 = arith.mulf %233, %235 : vector<8x256xf32>
    %c4_124 = arith.constant 4 : index
    %c0_125 = arith.constant 0 : index
    %237 = vector.load %arg5[%c4_124, %c0_125] : memref<7x256xbf16, #tpu.memory_space<vmem>>, vector<1x256xbf16>
    %238 = arith.extf %237 : vector<1x256xbf16> to vector<1x256xf32>
    %239 = vector.broadcast %238 : vector<1x256xf32> to vector<8x256xf32>
    %240 = arith.mulf %236, %239 : vector<8x256xf32>
    %241 = arith.addf %232, %240 : vector<8x256xf32>
    %c0_126 = arith.constant 0 : index
    %c58 = arith.constant 58 : index
    %242 = vector.load %arg17[%c0_126, %c58] : memref<8x368xf32, #tpu.memory_space<vmem>>, vector<8x256xf32>
    %c0_127 = arith.constant 0 : index
    %c26_128 = arith.constant 26 : index
    %243 = vector.load %arg3[%c0_127, %c26_128] : memref<8x49xf32, #tpu.memory_space<vmem>>, vector<8x1xf32>
    %244 = vector.broadcast %243 : vector<8x1xf32> to vector<8x256xf32>
    %245 = arith.mulf %242, %244 : vector<8x256xf32>
    %c5_129 = arith.constant 5 : index
    %c0_130 = arith.constant 0 : index
    %246 = vector.load %arg5[%c5_129, %c0_130] : memref<7x256xbf16, #tpu.memory_space<vmem>>, vector<1x256xbf16>
    %247 = arith.extf %246 : vector<1x256xbf16> to vector<1x256xf32>
    %248 = vector.broadcast %247 : vector<1x256xf32> to vector<8x256xf32>
    %249 = arith.mulf %245, %248 : vector<8x256xf32>
    %250 = arith.addf %241, %249 : vector<8x256xf32>
    %c0_131 = arith.constant 0 : index
    %c59 = arith.constant 59 : index
    %251 = vector.load %arg17[%c0_131, %c59] : memref<8x368xf32, #tpu.memory_space<vmem>>, vector<8x256xf32>
    %c0_132 = arith.constant 0 : index
    %c27_133 = arith.constant 27 : index
    %252 = vector.load %arg3[%c0_132, %c27_133] : memref<8x49xf32, #tpu.memory_space<vmem>>, vector<8x1xf32>
    %253 = vector.broadcast %252 : vector<8x1xf32> to vector<8x256xf32>
    %254 = arith.mulf %251, %253 : vector<8x256xf32>
    %c6_134 = arith.constant 6 : index
    %c0_135 = arith.constant 0 : index
    %255 = vector.load %arg5[%c6_134, %c0_135] : memref<7x256xbf16, #tpu.memory_space<vmem>>, vector<1x256xbf16>
    %256 = arith.extf %255 : vector<1x256xbf16> to vector<1x256xf32>
    %257 = vector.broadcast %256 : vector<1x256xf32> to vector<8x256xf32>
    %258 = arith.mulf %254, %257 : vector<8x256xf32>
    %259 = arith.addf %250, %258 : vector<8x256xf32>
    %c0_136 = arith.constant 0 : index
    %c69 = arith.constant 69 : index
    %260 = vector.load %arg17[%c0_136, %c69] : memref<8x368xf32, #tpu.memory_space<vmem>>, vector<8x256xf32>
    %c0_137 = arith.constant 0 : index
    %c28 = arith.constant 28 : index
    %261 = vector.load %arg3[%c0_137, %c28] : memref<8x49xf32, #tpu.memory_space<vmem>>, vector<8x1xf32>
    %262 = vector.broadcast %261 : vector<8x1xf32> to vector<8x256xf32>
    %263 = arith.mulf %260, %262 : vector<8x256xf32>
    %c0_138 = arith.constant 0 : index
    %c0_139 = arith.constant 0 : index
    %264 = vector.load %arg5[%c0_138, %c0_139] : memref<7x256xbf16, #tpu.memory_space<vmem>>, vector<1x256xbf16>
    %265 = arith.extf %264 : vector<1x256xbf16> to vector<1x256xf32>
    %266 = vector.broadcast %265 : vector<1x256xf32> to vector<8x256xf32>
    %267 = arith.mulf %263, %266 : vector<8x256xf32>
    %268 = arith.addf %259, %267 : vector<8x256xf32>
    %c0_140 = arith.constant 0 : index
    %c70 = arith.constant 70 : index
    %269 = vector.load %arg17[%c0_140, %c70] : memref<8x368xf32, #tpu.memory_space<vmem>>, vector<8x256xf32>
    %c0_141 = arith.constant 0 : index
    %c29 = arith.constant 29 : index
    %270 = vector.load %arg3[%c0_141, %c29] : memref<8x49xf32, #tpu.memory_space<vmem>>, vector<8x1xf32>
    %271 = vector.broadcast %270 : vector<8x1xf32> to vector<8x256xf32>
    %272 = arith.mulf %269, %271 : vector<8x256xf32>
    %c1_142 = arith.constant 1 : index
    %c0_143 = arith.constant 0 : index
    %273 = vector.load %arg5[%c1_142, %c0_143] : memref<7x256xbf16, #tpu.memory_space<vmem>>, vector<1x256xbf16>
    %274 = arith.extf %273 : vector<1x256xbf16> to vector<1x256xf32>
    %275 = vector.broadcast %274 : vector<1x256xf32> to vector<8x256xf32>
    %276 = arith.mulf %272, %275 : vector<8x256xf32>
    %277 = arith.addf %268, %276 : vector<8x256xf32>
    %c0_144 = arith.constant 0 : index
    %c71 = arith.constant 71 : index
    %278 = vector.load %arg17[%c0_144, %c71] : memref<8x368xf32, #tpu.memory_space<vmem>>, vector<8x256xf32>
    %c0_145 = arith.constant 0 : index
    %c30 = arith.constant 30 : index
    %279 = vector.load %arg3[%c0_145, %c30] : memref<8x49xf32, #tpu.memory_space<vmem>>, vector<8x1xf32>
    %280 = vector.broadcast %279 : vector<8x1xf32> to vector<8x256xf32>
    %281 = arith.mulf %278, %280 : vector<8x256xf32>
    %c2_146 = arith.constant 2 : index
    %c0_147 = arith.constant 0 : index
    %282 = vector.load %arg5[%c2_146, %c0_147] : memref<7x256xbf16, #tpu.memory_space<vmem>>, vector<1x256xbf16>
    %283 = arith.extf %282 : vector<1x256xbf16> to vector<1x256xf32>
    %284 = vector.broadcast %283 : vector<1x256xf32> to vector<8x256xf32>
    %285 = arith.mulf %281, %284 : vector<8x256xf32>
    %286 = arith.addf %277, %285 : vector<8x256xf32>
    %c0_148 = arith.constant 0 : index
    %c72 = arith.constant 72 : index
    %287 = vector.load %arg17[%c0_148, %c72] : memref<8x368xf32, #tpu.memory_space<vmem>>, vector<8x256xf32>
    %c0_149 = arith.constant 0 : index
    %c31 = arith.constant 31 : index
    %288 = vector.load %arg3[%c0_149, %c31] : memref<8x49xf32, #tpu.memory_space<vmem>>, vector<8x1xf32>
    %289 = vector.broadcast %288 : vector<8x1xf32> to vector<8x256xf32>
    %290 = arith.mulf %287, %289 : vector<8x256xf32>
    %c3_150 = arith.constant 3 : index
    %c0_151 = arith.constant 0 : index
    %291 = vector.load %arg5[%c3_150, %c0_151] : memref<7x256xbf16, #tpu.memory_space<vmem>>, vector<1x256xbf16>
    %292 = arith.extf %291 : vector<1x256xbf16> to vector<1x256xf32>
    %293 = vector.broadcast %292 : vector<1x256xf32> to vector<8x256xf32>
    %294 = arith.mulf %290, %293 : vector<8x256xf32>
    %295 = arith.addf %286, %294 : vector<8x256xf32>
    %c0_152 = arith.constant 0 : index
    %c73 = arith.constant 73 : index
    %296 = vector.load %arg17[%c0_152, %c73] : memref<8x368xf32, #tpu.memory_space<vmem>>, vector<8x256xf32>
    %c0_153 = arith.constant 0 : index
    %c32 = arith.constant 32 : index
    %297 = vector.load %arg3[%c0_153, %c32] : memref<8x49xf32, #tpu.memory_space<vmem>>, vector<8x1xf32>
    %298 = vector.broadcast %297 : vector<8x1xf32> to vector<8x256xf32>
    %299 = arith.mulf %296, %298 : vector<8x256xf32>
    %c4_154 = arith.constant 4 : index
    %c0_155 = arith.constant 0 : index
    %300 = vector.load %arg5[%c4_154, %c0_155] : memref<7x256xbf16, #tpu.memory_space<vmem>>, vector<1x256xbf16>
    %301 = arith.extf %300 : vector<1x256xbf16> to vector<1x256xf32>
    %302 = vector.broadcast %301 : vector<1x256xf32> to vector<8x256xf32>
    %303 = arith.mulf %299, %302 : vector<8x256xf32>
    %304 = arith.addf %295, %303 : vector<8x256xf32>
    %c0_156 = arith.constant 0 : index
    %c74 = arith.constant 74 : index
    %305 = vector.load %arg17[%c0_156, %c74] : memref<8x368xf32, #tpu.memory_space<vmem>>, vector<8x256xf32>
    %c0_157 = arith.constant 0 : index
    %c33 = arith.constant 33 : index
    %306 = vector.load %arg3[%c0_157, %c33] : memref<8x49xf32, #tpu.memory_space<vmem>>, vector<8x1xf32>
    %307 = vector.broadcast %306 : vector<8x1xf32> to vector<8x256xf32>
    %308 = arith.mulf %305, %307 : vector<8x256xf32>
    %c5_158 = arith.constant 5 : index
    %c0_159 = arith.constant 0 : index
    %309 = vector.load %arg5[%c5_158, %c0_159] : memref<7x256xbf16, #tpu.memory_space<vmem>>, vector<1x256xbf16>
    %310 = arith.extf %309 : vector<1x256xbf16> to vector<1x256xf32>
    %311 = vector.broadcast %310 : vector<1x256xf32> to vector<8x256xf32>
    %312 = arith.mulf %308, %311 : vector<8x256xf32>
    %313 = arith.addf %304, %312 : vector<8x256xf32>
    %c0_160 = arith.constant 0 : index
    %c75 = arith.constant 75 : index
    %314 = vector.load %arg17[%c0_160, %c75] : memref<8x368xf32, #tpu.memory_space<vmem>>, vector<8x256xf32>
    %c0_161 = arith.constant 0 : index
    %c34 = arith.constant 34 : index
    %315 = vector.load %arg3[%c0_161, %c34] : memref<8x49xf32, #tpu.memory_space<vmem>>, vector<8x1xf32>
    %316 = vector.broadcast %315 : vector<8x1xf32> to vector<8x256xf32>
    %317 = arith.mulf %314, %316 : vector<8x256xf32>
    %c6_162 = arith.constant 6 : index
    %c0_163 = arith.constant 0 : index
    %318 = vector.load %arg5[%c6_162, %c0_163] : memref<7x256xbf16, #tpu.memory_space<vmem>>, vector<1x256xbf16>
    %319 = arith.extf %318 : vector<1x256xbf16> to vector<1x256xf32>
    %320 = vector.broadcast %319 : vector<1x256xf32> to vector<8x256xf32>
    %321 = arith.mulf %317, %320 : vector<8x256xf32>
    %322 = arith.addf %313, %321 : vector<8x256xf32>
    %c0_164 = arith.constant 0 : index
    %c85 = arith.constant 85 : index
    %323 = vector.load %arg17[%c0_164, %c85] : memref<8x368xf32, #tpu.memory_space<vmem>>, vector<8x256xf32>
    %c0_165 = arith.constant 0 : index
    %c35 = arith.constant 35 : index
    %324 = vector.load %arg3[%c0_165, %c35] : memref<8x49xf32, #tpu.memory_space<vmem>>, vector<8x1xf32>
    %325 = vector.broadcast %324 : vector<8x1xf32> to vector<8x256xf32>
    %326 = arith.mulf %323, %325 : vector<8x256xf32>
    %c0_166 = arith.constant 0 : index
    %c0_167 = arith.constant 0 : index
    %327 = vector.load %arg5[%c0_166, %c0_167] : memref<7x256xbf16, #tpu.memory_space<vmem>>, vector<1x256xbf16>
    %328 = arith.extf %327 : vector<1x256xbf16> to vector<1x256xf32>
    %329 = vector.broadcast %328 : vector<1x256xf32> to vector<8x256xf32>
    %330 = arith.mulf %326, %329 : vector<8x256xf32>
    %331 = arith.addf %322, %330 : vector<8x256xf32>
    %c0_168 = arith.constant 0 : index
    %c86 = arith.constant 86 : index
    %332 = vector.load %arg17[%c0_168, %c86] : memref<8x368xf32, #tpu.memory_space<vmem>>, vector<8x256xf32>
    %c0_169 = arith.constant 0 : index
    %c36 = arith.constant 36 : index
    %333 = vector.load %arg3[%c0_169, %c36] : memref<8x49xf32, #tpu.memory_space<vmem>>, vector<8x1xf32>
    %334 = vector.broadcast %333 : vector<8x1xf32> to vector<8x256xf32>
    %335 = arith.mulf %332, %334 : vector<8x256xf32>
    %c1_170 = arith.constant 1 : index
    %c0_171 = arith.constant 0 : index
    %336 = vector.load %arg5[%c1_170, %c0_171] : memref<7x256xbf16, #tpu.memory_space<vmem>>, vector<1x256xbf16>
    %337 = arith.extf %336 : vector<1x256xbf16> to vector<1x256xf32>
    %338 = vector.broadcast %337 : vector<1x256xf32> to vector<8x256xf32>
    %339 = arith.mulf %335, %338 : vector<8x256xf32>
    %340 = arith.addf %331, %339 : vector<8x256xf32>
    %c0_172 = arith.constant 0 : index
    %c87 = arith.constant 87 : index
    %341 = vector.load %arg17[%c0_172, %c87] : memref<8x368xf32, #tpu.memory_space<vmem>>, vector<8x256xf32>
    %c0_173 = arith.constant 0 : index
    %c37_174 = arith.constant 37 : index
    %342 = vector.load %arg3[%c0_173, %c37_174] : memref<8x49xf32, #tpu.memory_space<vmem>>, vector<8x1xf32>
    %343 = vector.broadcast %342 : vector<8x1xf32> to vector<8x256xf32>
    %344 = arith.mulf %341, %343 : vector<8x256xf32>
    %c2_175 = arith.constant 2 : index
    %c0_176 = arith.constant 0 : index
    %345 = vector.load %arg5[%c2_175, %c0_176] : memref<7x256xbf16, #tpu.memory_space<vmem>>, vector<1x256xbf16>
    %346 = arith.extf %345 : vector<1x256xbf16> to vector<1x256xf32>
    %347 = vector.broadcast %346 : vector<1x256xf32> to vector<8x256xf32>
    %348 = arith.mulf %344, %347 : vector<8x256xf32>
    %349 = arith.addf %340, %348 : vector<8x256xf32>
    %c0_177 = arith.constant 0 : index
    %c88 = arith.constant 88 : index
    %350 = vector.load %arg17[%c0_177, %c88] : memref<8x368xf32, #tpu.memory_space<vmem>>, vector<8x256xf32>
    %c0_178 = arith.constant 0 : index
    %c38_179 = arith.constant 38 : index
    %351 = vector.load %arg3[%c0_178, %c38_179] : memref<8x49xf32, #tpu.memory_space<vmem>>, vector<8x1xf32>
    %352 = vector.broadcast %351 : vector<8x1xf32> to vector<8x256xf32>
    %353 = arith.mulf %350, %352 : vector<8x256xf32>
    %c3_180 = arith.constant 3 : index
    %c0_181 = arith.constant 0 : index
    %354 = vector.load %arg5[%c3_180, %c0_181] : memref<7x256xbf16, #tpu.memory_space<vmem>>, vector<1x256xbf16>
    %355 = arith.extf %354 : vector<1x256xbf16> to vector<1x256xf32>
    %356 = vector.broadcast %355 : vector<1x256xf32> to vector<8x256xf32>
    %357 = arith.mulf %353, %356 : vector<8x256xf32>
    %358 = arith.addf %349, %357 : vector<8x256xf32>
    %c0_182 = arith.constant 0 : index
    %c89 = arith.constant 89 : index
    %359 = vector.load %arg17[%c0_182, %c89] : memref<8x368xf32, #tpu.memory_space<vmem>>, vector<8x256xf32>
    %c0_183 = arith.constant 0 : index
    %c39_184 = arith.constant 39 : index
    %360 = vector.load %arg3[%c0_183, %c39_184] : memref<8x49xf32, #tpu.memory_space<vmem>>, vector<8x1xf32>
    %361 = vector.broadcast %360 : vector<8x1xf32> to vector<8x256xf32>
    %362 = arith.mulf %359, %361 : vector<8x256xf32>
    %c4_185 = arith.constant 4 : index
    %c0_186 = arith.constant 0 : index
    %363 = vector.load %arg5[%c4_185, %c0_186] : memref<7x256xbf16, #tpu.memory_space<vmem>>, vector<1x256xbf16>
    %364 = arith.extf %363 : vector<1x256xbf16> to vector<1x256xf32>
    %365 = vector.broadcast %364 : vector<1x256xf32> to vector<8x256xf32>
    %366 = arith.mulf %362, %365 : vector<8x256xf32>
    %367 = arith.addf %358, %366 : vector<8x256xf32>
    %c0_187 = arith.constant 0 : index
    %c90 = arith.constant 90 : index
    %368 = vector.load %arg17[%c0_187, %c90] : memref<8x368xf32, #tpu.memory_space<vmem>>, vector<8x256xf32>
    %c0_188 = arith.constant 0 : index
    %c40_189 = arith.constant 40 : index
    %369 = vector.load %arg3[%c0_188, %c40_189] : memref<8x49xf32, #tpu.memory_space<vmem>>, vector<8x1xf32>
    %370 = vector.broadcast %369 : vector<8x1xf32> to vector<8x256xf32>
    %371 = arith.mulf %368, %370 : vector<8x256xf32>
    %c5_190 = arith.constant 5 : index
    %c0_191 = arith.constant 0 : index
    %372 = vector.load %arg5[%c5_190, %c0_191] : memref<7x256xbf16, #tpu.memory_space<vmem>>, vector<1x256xbf16>
    %373 = arith.extf %372 : vector<1x256xbf16> to vector<1x256xf32>
    %374 = vector.broadcast %373 : vector<1x256xf32> to vector<8x256xf32>
    %375 = arith.mulf %371, %374 : vector<8x256xf32>
    %376 = arith.addf %367, %375 : vector<8x256xf32>
    %c0_192 = arith.constant 0 : index
    %c91 = arith.constant 91 : index
    %377 = vector.load %arg17[%c0_192, %c91] : memref<8x368xf32, #tpu.memory_space<vmem>>, vector<8x256xf32>
    %c0_193 = arith.constant 0 : index
    %c41_194 = arith.constant 41 : index
    %378 = vector.load %arg3[%c0_193, %c41_194] : memref<8x49xf32, #tpu.memory_space<vmem>>, vector<8x1xf32>
    %379 = vector.broadcast %378 : vector<8x1xf32> to vector<8x256xf32>
    %380 = arith.mulf %377, %379 : vector<8x256xf32>
    %c6_195 = arith.constant 6 : index
    %c0_196 = arith.constant 0 : index
    %381 = vector.load %arg5[%c6_195, %c0_196] : memref<7x256xbf16, #tpu.memory_space<vmem>>, vector<1x256xbf16>
    %382 = arith.extf %381 : vector<1x256xbf16> to vector<1x256xf32>
    %383 = vector.broadcast %382 : vector<1x256xf32> to vector<8x256xf32>
    %384 = arith.mulf %380, %383 : vector<8x256xf32>
    %385 = arith.addf %376, %384 : vector<8x256xf32>
    %c0_197 = arith.constant 0 : index
    %c101 = arith.constant 101 : index
    %386 = vector.load %arg17[%c0_197, %c101] : memref<8x368xf32, #tpu.memory_space<vmem>>, vector<8x256xf32>
    %c0_198 = arith.constant 0 : index
    %c42_199 = arith.constant 42 : index
    %387 = vector.load %arg3[%c0_198, %c42_199] : memref<8x49xf32, #tpu.memory_space<vmem>>, vector<8x1xf32>
    %388 = vector.broadcast %387 : vector<8x1xf32> to vector<8x256xf32>
    %389 = arith.mulf %386, %388 : vector<8x256xf32>
    %c0_200 = arith.constant 0 : index
    %c0_201 = arith.constant 0 : index
    %390 = vector.load %arg5[%c0_200, %c0_201] : memref<7x256xbf16, #tpu.memory_space<vmem>>, vector<1x256xbf16>
    %391 = arith.extf %390 : vector<1x256xbf16> to vector<1x256xf32>
    %392 = vector.broadcast %391 : vector<1x256xf32> to vector<8x256xf32>
    %393 = arith.mulf %389, %392 : vector<8x256xf32>
    %394 = arith.addf %385, %393 : vector<8x256xf32>
    %c0_202 = arith.constant 0 : index
    %c102 = arith.constant 102 : index
    %395 = vector.load %arg17[%c0_202, %c102] : memref<8x368xf32, #tpu.memory_space<vmem>>, vector<8x256xf32>
    %c0_203 = arith.constant 0 : index
    %c43_204 = arith.constant 43 : index
    %396 = vector.load %arg3[%c0_203, %c43_204] : memref<8x49xf32, #tpu.memory_space<vmem>>, vector<8x1xf32>
    %397 = vector.broadcast %396 : vector<8x1xf32> to vector<8x256xf32>
    %398 = arith.mulf %395, %397 : vector<8x256xf32>
    %c1_205 = arith.constant 1 : index
    %c0_206 = arith.constant 0 : index
    %399 = vector.load %arg5[%c1_205, %c0_206] : memref<7x256xbf16, #tpu.memory_space<vmem>>, vector<1x256xbf16>
    %400 = arith.extf %399 : vector<1x256xbf16> to vector<1x256xf32>
    %401 = vector.broadcast %400 : vector<1x256xf32> to vector<8x256xf32>
    %402 = arith.mulf %398, %401 : vector<8x256xf32>
    %403 = arith.addf %394, %402 : vector<8x256xf32>
    %c0_207 = arith.constant 0 : index
    %c103 = arith.constant 103 : index
    %404 = vector.load %arg17[%c0_207, %c103] : memref<8x368xf32, #tpu.memory_space<vmem>>, vector<8x256xf32>
    %c0_208 = arith.constant 0 : index
    %c44 = arith.constant 44 : index
    %405 = vector.load %arg3[%c0_208, %c44] : memref<8x49xf32, #tpu.memory_space<vmem>>, vector<8x1xf32>
    %406 = vector.broadcast %405 : vector<8x1xf32> to vector<8x256xf32>
    %407 = arith.mulf %404, %406 : vector<8x256xf32>
    %c2_209 = arith.constant 2 : index
    %c0_210 = arith.constant 0 : index
    %408 = vector.load %arg5[%c2_209, %c0_210] : memref<7x256xbf16, #tpu.memory_space<vmem>>, vector<1x256xbf16>
    %409 = arith.extf %408 : vector<1x256xbf16> to vector<1x256xf32>
    %410 = vector.broadcast %409 : vector<1x256xf32> to vector<8x256xf32>
    %411 = arith.mulf %407, %410 : vector<8x256xf32>
    %412 = arith.addf %403, %411 : vector<8x256xf32>
    %c0_211 = arith.constant 0 : index
    %c104 = arith.constant 104 : index
    %413 = vector.load %arg17[%c0_211, %c104] : memref<8x368xf32, #tpu.memory_space<vmem>>, vector<8x256xf32>
    %c0_212 = arith.constant 0 : index
    %c45 = arith.constant 45 : index
    %414 = vector.load %arg3[%c0_212, %c45] : memref<8x49xf32, #tpu.memory_space<vmem>>, vector<8x1xf32>
    %415 = vector.broadcast %414 : vector<8x1xf32> to vector<8x256xf32>
    %416 = arith.mulf %413, %415 : vector<8x256xf32>
    %c3_213 = arith.constant 3 : index
    %c0_214 = arith.constant 0 : index
    %417 = vector.load %arg5[%c3_213, %c0_214] : memref<7x256xbf16, #tpu.memory_space<vmem>>, vector<1x256xbf16>
    %418 = arith.extf %417 : vector<1x256xbf16> to vector<1x256xf32>
    %419 = vector.broadcast %418 : vector<1x256xf32> to vector<8x256xf32>
    %420 = arith.mulf %416, %419 : vector<8x256xf32>
    %421 = arith.addf %412, %420 : vector<8x256xf32>
    %c0_215 = arith.constant 0 : index
    %c105 = arith.constant 105 : index
    %422 = vector.load %arg17[%c0_215, %c105] : memref<8x368xf32, #tpu.memory_space<vmem>>, vector<8x256xf32>
    %c0_216 = arith.constant 0 : index
    %c46 = arith.constant 46 : index
    %423 = vector.load %arg3[%c0_216, %c46] : memref<8x49xf32, #tpu.memory_space<vmem>>, vector<8x1xf32>
    %424 = vector.broadcast %423 : vector<8x1xf32> to vector<8x256xf32>
    %425 = arith.mulf %422, %424 : vector<8x256xf32>
    %c4_217 = arith.constant 4 : index
    %c0_218 = arith.constant 0 : index
    %426 = vector.load %arg5[%c4_217, %c0_218] : memref<7x256xbf16, #tpu.memory_space<vmem>>, vector<1x256xbf16>
    %427 = arith.extf %426 : vector<1x256xbf16> to vector<1x256xf32>
    %428 = vector.broadcast %427 : vector<1x256xf32> to vector<8x256xf32>
    %429 = arith.mulf %425, %428 : vector<8x256xf32>
    %430 = arith.addf %421, %429 : vector<8x256xf32>
    %c0_219 = arith.constant 0 : index
    %c106 = arith.constant 106 : index
    %431 = vector.load %arg17[%c0_219, %c106] : memref<8x368xf32, #tpu.memory_space<vmem>>, vector<8x256xf32>
    %c0_220 = arith.constant 0 : index
    %c47 = arith.constant 47 : index
    %432 = vector.load %arg3[%c0_220, %c47] : memref<8x49xf32, #tpu.memory_space<vmem>>, vector<8x1xf32>
    %433 = vector.broadcast %432 : vector<8x1xf32> to vector<8x256xf32>
    %434 = arith.mulf %431, %433 : vector<8x256xf32>
    %c5_221 = arith.constant 5 : index
    %c0_222 = arith.constant 0 : index
    %435 = vector.load %arg5[%c5_221, %c0_222] : memref<7x256xbf16, #tpu.memory_space<vmem>>, vector<1x256xbf16>
    %436 = arith.extf %435 : vector<1x256xbf16> to vector<1x256xf32>
    %437 = vector.broadcast %436 : vector<1x256xf32> to vector<8x256xf32>
    %438 = arith.mulf %434, %437 : vector<8x256xf32>
    %439 = arith.addf %430, %438 : vector<8x256xf32>
    %c0_223 = arith.constant 0 : index
    %c107 = arith.constant 107 : index
    %440 = vector.load %arg17[%c0_223, %c107] : memref<8x368xf32, #tpu.memory_space<vmem>>, vector<8x256xf32>
    %c0_224 = arith.constant 0 : index
    %c48 = arith.constant 48 : index
    %441 = vector.load %arg3[%c0_224, %c48] : memref<8x49xf32, #tpu.memory_space<vmem>>, vector<8x1xf32>
    %442 = vector.broadcast %441 : vector<8x1xf32> to vector<8x256xf32>
    %443 = arith.mulf %440, %442 : vector<8x256xf32>
    %c6_225 = arith.constant 6 : index
    %c0_226 = arith.constant 0 : index
    %444 = vector.load %arg5[%c6_225, %c0_226] : memref<7x256xbf16, #tpu.memory_space<vmem>>, vector<1x256xbf16>
    %445 = arith.extf %444 : vector<1x256xbf16> to vector<1x256xf32>
    %446 = vector.broadcast %445 : vector<1x256xf32> to vector<8x256xf32>
    %447 = arith.mulf %443, %446 : vector<8x256xf32>
    %448 = arith.addf %439, %447 : vector<8x256xf32>
    %c0_227 = arith.constant 0 : index
    %c0_228 = arith.constant 0 : index
    %449 = vector.load %arg4[%c0_227, %c0_228] : memref<8x1xf32, #tpu.memory_space<vmem>>, vector<8x1xf32>
    %450 = vector.broadcast %449 : vector<8x1xf32> to vector<8x256xf32>
    %451 = arith.addf %448, %450 : vector<8x256xf32>
    %c0_229 = arith.constant 0 : index
    %c0_230 = arith.constant 0 : index
    %c0_231 = arith.constant 0 : index
    %452 = vector.load %arg2[%c0_229, %c0_230, %c0_231] : memref<1x8x1xf32, #tpu.memory_space<vmem>>, vector<1x8x1xf32>
    %453 = vector.shape_cast %452 : vector<1x8x1xf32> to vector<8x1xf32>
    %454 = vector.broadcast %453 : vector<8x1xf32> to vector<8x256xf32>
    %455 = arith.addf %451, %454 : vector<8x256xf32>
    %c0_232 = arith.constant 0 : index
    %c0_233 = arith.constant 0 : index
    %456 = vector.load %arg6[%c0_232, %c0_233] : memref<8x1xf32, #tpu.memory_space<vmem>>, vector<8x1xf32>
    %c0_234 = arith.constant 0 : index
    %c0_235 = arith.constant 0 : index
    %457 = vector.load %arg7[%c0_234, %c0_235] : memref<8x1xf32, #tpu.memory_space<vmem>>, vector<8x1xf32>
    %cst_236 = arith.constant dense<0.000000e+00> : vector<8xf32>
    %458 = vector.multi_reduction <add>, %455, %cst_236 [1] : vector<8x256xf32> to vector<8xf32>
    %459 = vector.shape_cast %458 : vector<8xf32> to vector<8x1xf32>
    %cst_237 = arith.constant dense<0.000000e+00> : vector<1xf32>
    %460 = vector.multi_reduction <add>, %459, %cst_237 [0] : vector<8x1xf32> to vector<1xf32>
    %461 = vector.shape_cast %460 : vector<1xf32> to vector<1x1xf32>
    %cst_238 = arith.constant 2.048000e+03 : f32
    %462 = vector.broadcast %cst_238 : f32 to vector<1x1xf32>
    %463 = arith.divf %461, %462 : vector<1x1xf32>
    %464 = vector.broadcast %463 : vector<1x1xf32> to vector<8x256xf32>
    %465 = arith.subf %455, %464 : vector<8x256xf32>
    %466 = arith.mulf %465, %465 : vector<8x256xf32>
    %cst_239 = arith.constant dense<0.000000e+00> : vector<8xf32>
    %467 = vector.multi_reduction <add>, %466, %cst_239 [1] : vector<8x256xf32> to vector<8xf32>
    %468 = vector.shape_cast %467 : vector<8xf32> to vector<8x1xf32>
    %cst_240 = arith.constant dense<0.000000e+00> : vector<1xf32>
    %469 = vector.multi_reduction <add>, %468, %cst_240 [0] : vector<8x1xf32> to vector<1xf32>
    %470 = vector.shape_cast %469 : vector<1xf32> to vector<1x1xf32>
    %cst_241 = arith.constant 2.048000e+03 : f32
    %471 = vector.broadcast %cst_241 : f32 to vector<1x1xf32>
    %472 = arith.divf %470, %471 : vector<1x1xf32>
    %cst_242 = arith.constant 9.99999974E-6 : f32
    %473 = vector.broadcast %cst_242 : f32 to vector<1x1xf32>
    %474 = arith.addf %472, %473 : vector<1x1xf32>
    %475 = math.rsqrt %474 : vector<1x1xf32>
    %476 = vector.broadcast %475 : vector<1x1xf32> to vector<8x1xf32>
    %477 = arith.mulf %476, %456 : vector<8x1xf32>
    %478 = vector.broadcast %477 : vector<8x1xf32> to vector<8x256xf32>
    %479 = arith.mulf %465, %478 : vector<8x256xf32>
    %480 = vector.broadcast %457 : vector<8x1xf32> to vector<8x256xf32>
    %481 = arith.addf %479, %480 : vector<8x256xf32>
    %482 = arith.truncf %481 : vector<8x256xf32> to vector<8x256xbf16>
    %cst_243 = arith.constant 0.000000e+00 : bf16
    %483 = vector.broadcast %cst_243 : bf16 to vector<8x24xbf16>
    %c0_244 = arith.constant 0 : index
    %c0_245 = arith.constant 0 : index
    %484 = vector.load %arg18[%c0_244, %c0_245] : memref<8x304xbf16, #tpu.memory_space<vmem>>, vector<8x24xbf16>
    tpu.vector_store %arg18[%c0_244, %c0_245], %483 {strides = array<i32>} : memref<8x304xbf16, #tpu.memory_space<vmem>>, vector<8x24xbf16>,
    %cst_246 = arith.constant 0.000000e+00 : bf16
    %485 = vector.broadcast %cst_246 : bf16 to vector<8x24xbf16>
    %c0_247 = arith.constant 0 : index
    %c280 = arith.constant 280 : index
    %486 = vector.load %arg18[%c0_247, %c280] : memref<8x304xbf16, #tpu.memory_space<vmem>>, vector<8x24xbf16>
    tpu.vector_store %arg18[%c0_247, %c280], %485 {strides = array<i32>} : memref<8x304xbf16, #tpu.memory_space<vmem>>, vector<8x24xbf16>,
    %c0_248 = arith.constant 0 : index
    %c24_249 = arith.constant 24 : index
    %487 = vector.load %arg18[%c0_248, %c24_249] : memref<8x304xbf16, #tpu.memory_space<vmem>>, vector<8x256xbf16>
    tpu.vector_store %arg18[%c0_248, %c24_249], %482 {strides = array<i32>} : memref<8x304xbf16, #tpu.memory_space<vmem>>, vector<8x256xbf16>,
    %c0_250 = arith.constant 0 : index
    %c0_251 = arith.constant 0 : index
    %488 = vector.load %arg8[%c0_250, %c0_251] : memref<32x72xbf16, #tpu.memory_space<vmem>>, vector<32x72xbf16>
    %c0_252 = arith.constant 0 : index
    %c7_253 = arith.constant 7 : index
    %489 = vector.load %arg18[%c0_252, %c7_253] : memref<8x304xbf16, #tpu.memory_space<vmem>>, vector<8x256xbf16>
    %c2_254 = arith.constant 2 : index
    %c0_255 = arith.constant 0 : index
    %490 = vector.load %arg5[%c2_254, %c0_255] : memref<7x256xbf16, #tpu.memory_space<vmem>>, vector<1x256xbf16>
    %491 = vector.broadcast %490 : vector<1x256xbf16> to vector<8x256xbf16>
    %492 = arith.mulf %489, %491 : vector<8x256xbf16>
    %c0_256 = arith.constant 0 : index
    %c8_257 = arith.constant 8 : index
    %493 = vector.load %arg18[%c0_256, %c8_257] : memref<8x304xbf16, #tpu.memory_space<vmem>>, vector<8x256xbf16>
    %c3_258 = arith.constant 3 : index
    %c0_259 = arith.constant 0 : index
    %494 = vector.load %arg5[%c3_258, %c0_259] : memref<7x256xbf16, #tpu.memory_space<vmem>>, vector<1x256xbf16>
    %495 = vector.broadcast %494 : vector<1x256xbf16> to vector<8x256xbf16>
    %496 = arith.mulf %493, %495 : vector<8x256xbf16>
    %c0_260 = arith.constant 0 : index
    %c9_261 = arith.constant 9 : index
    %497 = vector.load %arg18[%c0_260, %c9_261] : memref<8x304xbf16, #tpu.memory_space<vmem>>, vector<8x256xbf16>
    %c4_262 = arith.constant 4 : index
    %c0_263 = arith.constant 0 : index
    %498 = vector.load %arg5[%c4_262, %c0_263] : memref<7x256xbf16, #tpu.memory_space<vmem>>, vector<1x256xbf16>
    %499 = vector.broadcast %498 : vector<1x256xbf16> to vector<8x256xbf16>
    %500 = arith.mulf %497, %499 : vector<8x256xbf16>
    %c0_264 = arith.constant 0 : index
    %c23_265 = arith.constant 23 : index
    %501 = vector.load %arg18[%c0_264, %c23_265] : memref<8x304xbf16, #tpu.memory_space<vmem>>, vector<8x256xbf16>
    %c2_266 = arith.constant 2 : index
    %c0_267 = arith.constant 0 : index
    %502 = vector.load %arg5[%c2_266, %c0_267] : memref<7x256xbf16, #tpu.memory_space<vmem>>, vector<1x256xbf16>
    %503 = vector.broadcast %502 : vector<1x256xbf16> to vector<8x256xbf16>
    %504 = arith.mulf %501, %503 : vector<8x256xbf16>
    %c0_268 = arith.constant 0 : index
    %c24_269 = arith.constant 24 : index
    %505 = vector.load %arg18[%c0_268, %c24_269] : memref<8x304xbf16, #tpu.memory_space<vmem>>, vector<8x256xbf16>
    %c3_270 = arith.constant 3 : index
    %c0_271 = arith.constant 0 : index
    %506 = vector.load %arg5[%c3_270, %c0_271] : memref<7x256xbf16, #tpu.memory_space<vmem>>, vector<1x256xbf16>
    %507 = vector.broadcast %506 : vector<1x256xbf16> to vector<8x256xbf16>
    %508 = arith.mulf %505, %507 : vector<8x256xbf16>
    %c0_272 = arith.constant 0 : index
    %c25_273 = arith.constant 25 : index
    %509 = vector.load %arg18[%c0_272, %c25_273] : memref<8x304xbf16, #tpu.memory_space<vmem>>, vector<8x256xbf16>
    %c4_274 = arith.constant 4 : index
    %c0_275 = arith.constant 0 : index
    %510 = vector.load %arg5[%c4_274, %c0_275] : memref<7x256xbf16, #tpu.memory_space<vmem>>, vector<1x256xbf16>
    %511 = vector.broadcast %510 : vector<1x256xbf16> to vector<8x256xbf16>
    %512 = arith.mulf %509, %511 : vector<8x256xbf16>
    %c0_276 = arith.constant 0 : index
    %c39_277 = arith.constant 39 : index
    %513 = vector.load %arg18[%c0_276, %c39_277] : memref<8x304xbf16, #tpu.memory_space<vmem>>, vector<8x256xbf16>
    %c2_278 = arith.constant 2 : index
    %c0_279 = arith.constant 0 : index
    %514 = vector.load %arg5[%c2_278, %c0_279] : memref<7x256xbf16, #tpu.memory_space<vmem>>, vector<1x256xbf16>
    %515 = vector.broadcast %514 : vector<1x256xbf16> to vector<8x256xbf16>
    %516 = arith.mulf %513, %515 : vector<8x256xbf16>
    %c0_280 = arith.constant 0 : index
    %c40_281 = arith.constant 40 : index
    %517 = vector.load %arg18[%c0_280, %c40_281] : memref<8x304xbf16, #tpu.memory_space<vmem>>, vector<8x256xbf16>
    %c3_282 = arith.constant 3 : index
    %c0_283 = arith.constant 0 : index
    %518 = vector.load %arg5[%c3_282, %c0_283] : memref<7x256xbf16, #tpu.memory_space<vmem>>, vector<1x256xbf16>
    %519 = vector.broadcast %518 : vector<1x256xbf16> to vector<8x256xbf16>
    %520 = arith.mulf %517, %519 : vector<8x256xbf16>
    %c0_284 = arith.constant 0 : index
    %c41_285 = arith.constant 41 : index
    %521 = vector.load %arg18[%c0_284, %c41_285] : memref<8x304xbf16, #tpu.memory_space<vmem>>, vector<8x256xbf16>
    %c4_286 = arith.constant 4 : index
    %c0_287 = arith.constant 0 : index
    %522 = vector.load %arg5[%c4_286, %c0_287] : memref<7x256xbf16, #tpu.memory_space<vmem>>, vector<1x256xbf16>
    %523 = vector.broadcast %522 : vector<1x256xbf16> to vector<8x256xbf16>
    %524 = arith.mulf %521, %523 : vector<8x256xbf16>
    %525 = tpu.concatenate %492, %496, %500, %504, %508, %512, %516, %520, %524 in 0 : vector<8x256xbf16>, vector<8x256xbf16>, vector<8x256xbf16>, vector<8x256xbf16>, vector<8x256xbf16>, vector<8x256xbf16>, vector<8x256xbf16>, vector<8x256xbf16>, vector<8x256xbf16> -> vector<72x256xbf16>
    %cst_288 = arith.constant dense<0.000000e+00> : vector<32x256xf32>
    %526 = tpu.matmul %488, %525, %cst_288 {dimension_numbers = #tpu.dot_dimension_numbers<[1], [0], [0], [1], [0, 0, 1, 1], [], []>} : vector<32x72xbf16>, vector<72x256xbf16>, vector<32x256xf32> -> vector<32x256xf32>
    %c0_289 = arith.constant 0 : index
    %c0_290 = arith.constant 0 : index
    %527 = vector.load %arg9[%c0_289, %c0_290] : memref<32x1xf32, #tpu.memory_space<vmem>>, vector<32x1xf32>
    %528 = vector.broadcast %527 : vector<32x1xf32> to vector<32x256xf32>
    %529 = arith.addf %526, %528 : vector<32x256xf32>
    %cst_291 = arith.constant 5.000000e-01 : f32
    %530 = vector.broadcast %cst_291 : f32 to vector<32x256xf32>
    %531 = arith.mulf %530, %529 : vector<32x256xf32>
    %cst_292 = arith.constant 4.471500e-02 : f32
    %532 = vector.broadcast %cst_292 : f32 to vector<32x256xf32>
    %533 = arith.mulf %532, %529 : vector<32x256xf32>
    %534 = arith.mulf %533, %529 : vector<32x256xf32>
    %535 = arith.mulf %534, %529 : vector<32x256xf32>
    %536 = arith.addf %529, %535 : vector<32x256xf32>
    %cst_293 = arith.constant 0.797884583 : f32
    %537 = vector.broadcast %cst_293 : f32 to vector<32x256xf32>
    %538 = arith.mulf %537, %536 : vector<32x256xf32>
    %539 = math.tanh %538 : vector<32x256xf32>
    %cst_294 = arith.constant 1.000000e+00 : f32
    %540 = vector.broadcast %cst_294 : f32 to vector<32x256xf32>
    %541 = arith.addf %540, %539 : vector<32x256xf32>
    %542 = arith.mulf %531, %541 : vector<32x256xf32>
    %c0_295 = arith.constant 0 : index
    %c0_296 = arith.constant 0 : index
    %543 = vector.load %arg10[%c0_295, %c0_296] : memref<32x1xf32, #tpu.memory_space<vmem>>, vector<32x1xf32>
    %c0_297 = arith.constant 0 : index
    %c0_298 = arith.constant 0 : index
    %544 = vector.load %arg11[%c0_297, %c0_298] : memref<32x1xf32, #tpu.memory_space<vmem>>, vector<32x1xf32>
    %cst_299 = arith.constant dense<0.000000e+00> : vector<32xf32>
    %545 = vector.multi_reduction <add>, %542, %cst_299 [1] : vector<32x256xf32> to vector<32xf32>
    %546 = vector.shape_cast %545 : vector<32xf32> to vector<32x1xf32>
    %cst_300 = arith.constant dense<0.000000e+00> : vector<1xf32>
    %547 = vector.multi_reduction <add>, %546, %cst_300 [0] : vector<32x1xf32> to vector<1xf32>
    %548 = vector.shape_cast %547 : vector<1xf32> to vector<1x1xf32>
    %cst_301 = arith.constant 8.192000e+03 : f32
    %549 = vector.broadcast %cst_301 : f32 to vector<1x1xf32>
    %550 = arith.divf %548, %549 : vector<1x1xf32>
    %551 = vector.broadcast %550 : vector<1x1xf32> to vector<32x256xf32>
    %552 = arith.subf %542, %551 : vector<32x256xf32>
    %553 = arith.mulf %552, %552 : vector<32x256xf32>
    %cst_302 = arith.constant dense<0.000000e+00> : vector<32xf32>
    %554 = vector.multi_reduction <add>, %553, %cst_302 [1] : vector<32x256xf32> to vector<32xf32>
    %555 = vector.shape_cast %554 : vector<32xf32> to vector<32x1xf32>
    %cst_303 = arith.constant dense<0.000000e+00> : vector<1xf32>
    %556 = vector.multi_reduction <add>, %555, %cst_303 [0] : vector<32x1xf32> to vector<1xf32>
    %557 = vector.shape_cast %556 : vector<1xf32> to vector<1x1xf32>
    %cst_304 = arith.constant 8.192000e+03 : f32
    %558 = vector.broadcast %cst_304 : f32 to vector<1x1xf32>
    %559 = arith.divf %557, %558 : vector<1x1xf32>
    %cst_305 = arith.constant 9.99999974E-6 : f32
    %560 = vector.broadcast %cst_305 : f32 to vector<1x1xf32>
    %561 = arith.addf %559, %560 : vector<1x1xf32>
    %562 = math.rsqrt %561 : vector<1x1xf32>
    %563 = vector.broadcast %562 : vector<1x1xf32> to vector<32x1xf32>
    %564 = arith.mulf %563, %543 : vector<32x1xf32>
    %565 = vector.broadcast %564 : vector<32x1xf32> to vector<32x256xf32>
    %566 = arith.mulf %552, %565 : vector<32x256xf32>
    %567 = vector.broadcast %544 : vector<32x1xf32> to vector<32x256xf32>
    %568 = arith.addf %566, %567 : vector<32x256xf32>
    %569 = arith.truncf %568 : vector<32x256xf32> to vector<32x256xbf16>
    %cst_306 = arith.constant 0.000000e+00 : bf16
    %570 = vector.broadcast %cst_306 : bf16 to vector<32x24xbf16>
    %c0_307 = arith.constant 0 : index
    %c0_308 = arith.constant 0 : index
    %571 = vector.load %arg19[%c0_307, %c0_308] : memref<32x304xbf16, #tpu.memory_space<vmem>>, vector<32x24xbf16>
    tpu.vector_store %arg19[%c0_307, %c0_308], %570 {strides = array<i32>} : memref<32x304xbf16, #tpu.memory_space<vmem>>, vector<32x24xbf16>,
    %cst_309 = arith.constant 0.000000e+00 : bf16
    %572 = vector.broadcast %cst_309 : bf16 to vector<32x24xbf16>
    %c0_310 = arith.constant 0 : index
    %c280_311 = arith.constant 280 : index
    %573 = vector.load %arg19[%c0_310, %c280_311] : memref<32x304xbf16, #tpu.memory_space<vmem>>, vector<32x24xbf16>
    tpu.vector_store %arg19[%c0_310, %c280_311], %572 {strides = array<i32>} : memref<32x304xbf16, #tpu.memory_space<vmem>>, vector<32x24xbf16>,
    %c0_312 = arith.constant 0 : index
    %c24_313 = arith.constant 24 : index
    %574 = vector.load %arg19[%c0_312, %c24_313] : memref<32x304xbf16, #tpu.memory_space<vmem>>, vector<32x256xbf16>
    tpu.vector_store %arg19[%c0_312, %c24_313], %569 {strides = array<i32>} : memref<32x304xbf16, #tpu.memory_space<vmem>>, vector<32x256xbf16>,
    %c0_314 = arith.constant 0 : index
    %c0_315 = arith.constant 0 : index
    %575 = vector.load %arg12[%c0_314, %c0_315] : memref<16x288xbf16, #tpu.memory_space<vmem>>, vector<16x288xbf16>
    %c0_316 = arith.constant 0 : index
    %c7_317 = arith.constant 7 : index
    %576 = vector.load %arg19[%c0_316, %c7_317] : memref<32x304xbf16, #tpu.memory_space<vmem>>, vector<32x256xbf16>
    %c2_318 = arith.constant 2 : index
    %c0_319 = arith.constant 0 : index
    %577 = vector.load %arg5[%c2_318, %c0_319] : memref<7x256xbf16, #tpu.memory_space<vmem>>, vector<1x256xbf16>
    %578 = vector.broadcast %577 : vector<1x256xbf16> to vector<32x256xbf16>
    %579 = arith.mulf %576, %578 : vector<32x256xbf16>
    %c0_320 = arith.constant 0 : index
    %c8_321 = arith.constant 8 : index
    %580 = vector.load %arg19[%c0_320, %c8_321] : memref<32x304xbf16, #tpu.memory_space<vmem>>, vector<32x256xbf16>
    %c3_322 = arith.constant 3 : index
    %c0_323 = arith.constant 0 : index
    %581 = vector.load %arg5[%c3_322, %c0_323] : memref<7x256xbf16, #tpu.memory_space<vmem>>, vector<1x256xbf16>
    %582 = vector.broadcast %581 : vector<1x256xbf16> to vector<32x256xbf16>
    %583 = arith.mulf %580, %582 : vector<32x256xbf16>
    %c0_324 = arith.constant 0 : index
    %c9_325 = arith.constant 9 : index
    %584 = vector.load %arg19[%c0_324, %c9_325] : memref<32x304xbf16, #tpu.memory_space<vmem>>, vector<32x256xbf16>
    %c4_326 = arith.constant 4 : index
    %c0_327 = arith.constant 0 : index
    %585 = vector.load %arg5[%c4_326, %c0_327] : memref<7x256xbf16, #tpu.memory_space<vmem>>, vector<1x256xbf16>
    %586 = vector.broadcast %585 : vector<1x256xbf16> to vector<32x256xbf16>
    %587 = arith.mulf %584, %586 : vector<32x256xbf16>
    %c0_328 = arith.constant 0 : index
    %c23_329 = arith.constant 23 : index
    %588 = vector.load %arg19[%c0_328, %c23_329] : memref<32x304xbf16, #tpu.memory_space<vmem>>, vector<32x256xbf16>
    %c2_330 = arith.constant 2 : index
    %c0_331 = arith.constant 0 : index
    %589 = vector.load %arg5[%c2_330, %c0_331] : memref<7x256xbf16, #tpu.memory_space<vmem>>, vector<1x256xbf16>
    %590 = vector.broadcast %589 : vector<1x256xbf16> to vector<32x256xbf16>
    %591 = arith.mulf %588, %590 : vector<32x256xbf16>
    %c0_332 = arith.constant 0 : index
    %c24_333 = arith.constant 24 : index
    %592 = vector.load %arg19[%c0_332, %c24_333] : memref<32x304xbf16, #tpu.memory_space<vmem>>, vector<32x256xbf16>
    %c3_334 = arith.constant 3 : index
    %c0_335 = arith.constant 0 : index
    %593 = vector.load %arg5[%c3_334, %c0_335] : memref<7x256xbf16, #tpu.memory_space<vmem>>, vector<1x256xbf16>
    %594 = vector.broadcast %593 : vector<1x256xbf16> to vector<32x256xbf16>
    %595 = arith.mulf %592, %594 : vector<32x256xbf16>
    %c0_336 = arith.constant 0 : index
    %c25_337 = arith.constant 25 : index
    %596 = vector.load %arg19[%c0_336, %c25_337] : memref<32x304xbf16, #tpu.memory_space<vmem>>, vector<32x256xbf16>
    %c4_338 = arith.constant 4 : index
    %c0_339 = arith.constant 0 : index
    %597 = vector.load %arg5[%c4_338, %c0_339] : memref<7x256xbf16, #tpu.memory_space<vmem>>, vector<1x256xbf16>
    %598 = vector.broadcast %597 : vector<1x256xbf16> to vector<32x256xbf16>
    %599 = arith.mulf %596, %598 : vector<32x256xbf16>
    %c0_340 = arith.constant 0 : index
    %c39_341 = arith.constant 39 : index
    %600 = vector.load %arg19[%c0_340, %c39_341] : memref<32x304xbf16, #tpu.memory_space<vmem>>, vector<32x256xbf16>
    %c2_342 = arith.constant 2 : index
    %c0_343 = arith.constant 0 : index
    %601 = vector.load %arg5[%c2_342, %c0_343] : memref<7x256xbf16, #tpu.memory_space<vmem>>, vector<1x256xbf16>
    %602 = vector.broadcast %601 : vector<1x256xbf16> to vector<32x256xbf16>
    %603 = arith.mulf %600, %602 : vector<32x256xbf16>
    %c0_344 = arith.constant 0 : index
    %c40_345 = arith.constant 40 : index
    %604 = vector.load %arg19[%c0_344, %c40_345] : memref<32x304xbf16, #tpu.memory_space<vmem>>, vector<32x256xbf16>
    %c3_346 = arith.constant 3 : index
    %c0_347 = arith.constant 0 : index
    %605 = vector.load %arg5[%c3_346, %c0_347] : memref<7x256xbf16, #tpu.memory_space<vmem>>, vector<1x256xbf16>
    %606 = vector.broadcast %605 : vector<1x256xbf16> to vector<32x256xbf16>
    %607 = arith.mulf %604, %606 : vector<32x256xbf16>
    %c0_348 = arith.constant 0 : index
    %c41_349 = arith.constant 41 : index
    %608 = vector.load %arg19[%c0_348, %c41_349] : memref<32x304xbf16, #tpu.memory_space<vmem>>, vector<32x256xbf16>
    %c4_350 = arith.constant 4 : index
    %c0_351 = arith.constant 0 : index
    %609 = vector.load %arg5[%c4_350, %c0_351] : memref<7x256xbf16, #tpu.memory_space<vmem>>, vector<1x256xbf16>
    %610 = vector.broadcast %609 : vector<1x256xbf16> to vector<32x256xbf16>
    %611 = arith.mulf %608, %610 : vector<32x256xbf16>
    %612 = tpu.concatenate %579, %583, %587, %591, %595, %599, %603, %607, %611 in 0 : vector<32x256xbf16>, vector<32x256xbf16>, vector<32x256xbf16>, vector<32x256xbf16>, vector<32x256xbf16>, vector<32x256xbf16>, vector<32x256xbf16>, vector<32x256xbf16>, vector<32x256xbf16> -> vector<288x256xbf16>
    %cst_352 = arith.constant dense<0.000000e+00> : vector<16x256xf32>
    %613 = tpu.matmul %575, %612, %cst_352 {dimension_numbers = #tpu.dot_dimension_numbers<[1], [0], [0], [1], [0, 0, 1, 1], [], []>} : vector<16x288xbf16>, vector<288x256xbf16>, vector<16x256xf32> -> vector<16x256xf32>
    %c0_353 = arith.constant 0 : index
    %c0_354 = arith.constant 0 : index
    %614 = vector.load %arg13[%c0_353, %c0_354] : memref<16x1xf32, #tpu.memory_space<vmem>>, vector<16x1xf32>
    %615 = vector.broadcast %614 : vector<16x1xf32> to vector<16x256xf32>
    %616 = arith.addf %613, %615 : vector<16x256xf32>
    %c0_355 = arith.constant 0 : index
    %c0_356 = arith.constant 0 : index
    %617 = vector.load %arg14[%c0_355, %c0_356] : memref<16x8xbf16, #tpu.memory_space<vmem>>, vector<16x8xbf16>
    %618 = arith.truncf %1 : vector<8x256xf32> to vector<8x256xbf16>
    %cst_357 = arith.constant dense<0.000000e+00> : vector<16x256xf32>
    %619 = tpu.matmul %617, %618, %cst_357 {dimension_numbers = #tpu.dot_dimension_numbers<[1], [0], [0], [1], [0, 0, 1, 1], [], []>} : vector<16x8xbf16>, vector<8x256xbf16>, vector<16x256xf32> -> vector<16x256xf32>
    %620 = arith.addf %616, %619 : vector<16x256xf32>
    %c0_358 = arith.constant 0 : index
    %c0_359 = arith.constant 0 : index
    %621 = vector.load %arg15[%c0_358, %c0_359] : memref<16x1xf32, #tpu.memory_space<vmem>>, vector<16x1xf32>
    %622 = vector.broadcast %621 : vector<16x1xf32> to vector<16x256xf32>
    %623 = arith.addf %620, %622 : vector<16x256xf32>
    %c0_360 = arith.constant 0 : index
    %c0_361 = arith.constant 0 : index
    %c0_362 = arith.constant 0 : index
    %624 = vector.load %arg16[%c0_360, %c0_361, %c0_362] : memref<1x16x256xf32, #tpu.memory_space<vmem>>, vector<1x16x256xf32>
    %625 = vector.shape_cast %624 : vector<1x16x256xf32> to vector<16x256xf32>
    %626 = vector.shape_cast %623 : vector<16x256xf32> to vector<1x16x256xf32>
    tpu.vector_store %arg16[%c0_360, %c0_361, %c0_362], %626 {strides = array<i32>} : memref<1x16x256xf32, #tpu.memory_space<vmem>>, vector<1x16x256xf32>,
    return
  }
  func.func @transform_0(%arg0: i32) -> (i32, i32, i32) {
    %c0_i32 = arith.constant 0 : i32
    %c0_i32_0 = arith.constant 0 : i32
    %c0_i32_1 = arith.constant 0 : i32
    return %arg0, %c0_i32, %c0_i32_0 : i32, i32, i32
  }
  func.func @transform_1(%arg0: i32) -> (i32, i32, i32) {
    %c0_i32 = arith.constant 0 : i32
    %c0_i32_0 = arith.constant 0 : i32
    %c0_i32_1 = arith.constant 0 : i32
    return %arg0, %c0_i32, %c0_i32_0 : i32, i32, i32
  }
  func.func @transform_2(%arg0: i32) -> (i32, i32) {
    %c0_i32 = arith.constant 0 : i32
    %c0_i32_0 = arith.constant 0 : i32
    %c0_i32_1 = arith.constant 0 : i32
    return %c0_i32, %c0_i32_0 : i32, i32
  }
  func.func @transform_3(%arg0: i32) -> (i32, i32) {
    %c0_i32 = arith.constant 0 : i32
    %c0_i32_0 = arith.constant 0 : i32
    %c0_i32_1 = arith.constant 0 : i32
    return %c0_i32, %c0_i32_0 : i32, i32
  }
  func.func @transform_4(%arg0: i32) -> (i32, i32) {
    %c0_i32 = arith.constant 0 : i32
    %c0_i32_0 = arith.constant 0 : i32
    %c0_i32_1 = arith.constant 0 : i32
    return %c0_i32, %c0_i32_0 : i32, i32
  }
  func.func @transform_5(%arg0: i32) -> (i32, i32) {
    %c0_i32 = arith.constant 0 : i32
    %c0_i32_0 = arith.constant 0 : i32
    %c0_i32_1 = arith.constant 0 : i32
    return %c0_i32, %c0_i32_0 : i32, i32
  }
  func.func @transform_6(%arg0: i32) -> (i32, i32) {
    %c0_i32 = arith.constant 0 : i32
    %c0_i32_0 = arith.constant 0 : i32
    %c0_i32_1 = arith.constant 0 : i32
    return %c0_i32, %c0_i32_0 : i32, i32
  }
  func.func @transform_7(%arg0: i32) -> (i32, i32) {
    %c0_i32 = arith.constant 0 : i32
    %c0_i32_0 = arith.constant 0 : i32
    %c0_i32_1 = arith.constant 0 : i32
    return %c0_i32, %c0_i32_0 : i32, i32
  }
  func.func @transform_8(%arg0: i32) -> (i32, i32) {
    %c0_i32 = arith.constant 0 : i32
    %c0_i32_0 = arith.constant 0 : i32
    %c0_i32_1 = arith.constant 0 : i32
    return %c0_i32, %c0_i32_0 : i32, i32
  }
  func.func @transform_9(%arg0: i32) -> (i32, i32) {
    %c0_i32 = arith.constant 0 : i32
    %c0_i32_0 = arith.constant 0 : i32
    %c0_i32_1 = arith.constant 0 : i32
    return %c0_i32, %c0_i32_0 : i32, i32
  }
  func.func @transform_10(%arg0: i32) -> (i32, i32) {
    %c0_i32 = arith.constant 0 : i32
    %c0_i32_0 = arith.constant 0 : i32
    %c0_i32_1 = arith.constant 0 : i32
    return %c0_i32, %c0_i32_0 : i32, i32
  }
  func.func @transform_11(%arg0: i32) -> (i32, i32) {
    %c0_i32 = arith.constant 0 : i32
    %c0_i32_0 = arith.constant 0 : i32
    %c0_i32_1 = arith.constant 0 : i32
    return %c0_i32, %c0_i32_0 : i32, i32
  }
  func.func @transform_12(%arg0: i32) -> (i32, i32) {
    %c0_i32 = arith.constant 0 : i32
    %c0_i32_0 = arith.constant 0 : i32
    %c0_i32_1 = arith.constant 0 : i32
    return %c0_i32, %c0_i32_0 : i32, i32
  }
  func.func @transform_13(%arg0: i32) -> (i32, i32) {
    %c0_i32 = arith.constant 0 : i32
    %c0_i32_0 = arith.constant 0 : i32
    %c0_i32_1 = arith.constant 0 : i32
    return %c0_i32, %c0_i32_0 : i32, i32
  }
  func.func @transform_14(%arg0: i32) -> (i32, i32) {
    %c0_i32 = arith.constant 0 : i32
    %c0_i32_0 = arith.constant 0 : i32
    %c0_i32_1 = arith.constant 0 : i32
    return %c0_i32, %c0_i32_0 : i32, i32
  }
  func.func @transform_15(%arg0: i32) -> (i32, i32, i32) {
    %c0_i32 = arith.constant 0 : i32
    %c0_i32_0 = arith.constant 0 : i32
    %c0_i32_1 = arith.constant 0 : i32
    return %arg0, %c0_i32, %c0_i32_0 : i32, i32, i32
  }
}

</mosaic_0001>

<llo_original>
// kernel: tpu_custom_call.1
$region0: #{tpu_custom_call.1}
  #allocation0 [shape = 'u32[]', space=smem, size = 0x4, offset = 0x4, fixed_abs, tag = 'smem constant byte address 0x4 - core index']
  #allocation1 [shape = 'u32[144,128]{1,0:T(1,128)}', space=vmem, size = 0x12000, scoped, tag = 'internal scratch']
  #allocation2 [shape = 'f32[8,368]{1,0:T(8,128)}', space=vmem, size = 0x3000, scoped, tag = 'scratch operand']
  #allocation3 [shape = 'bf16[8,304]{1,0:T(8,128)(2,1)}', space=vmem, size = 0x1800, scoped, tag = 'scratch operand']
  #allocation4 [shape = 'bf16[32,304]{1,0:T(16,128)(2,1)}', space=vmem, size = 0x6000, scoped, tag = 'scratch operand']
  %s0 = inlined_call_operand.vmem [shape: f32[2,8,256], index: 0, kind: input, shape index: {}]
  %s1 = inlined_call_operand.vmem [shape: f32[2,8,1], index: 1, kind: input, shape index: {}]
  %s2 = inlined_call_operand.vmem [shape: f32[8,49], index: 2, kind: input, shape index: {}]
  %s3 = inlined_call_operand.vmem [shape: f32[8,1], index: 3, kind: input, shape index: {}]
  %s4 = inlined_call_operand.vmem [shape: bf16[7,256], index: 4, kind: input, shape index: {}]
  %s5 = inlined_call_operand.vmem [shape: f32[8,1], index: 5, kind: input, shape index: {}]
  %s6 = inlined_call_operand.vmem [shape: f32[8,1], index: 6, kind: input, shape index: {}]
  %s7 = inlined_call_operand.vmem [shape: bf16[32,72], index: 7, kind: input, shape index: {}]
  %s8 = inlined_call_operand.vmem [shape: f32[32,1], index: 8, kind: input, shape index: {}]
  %s9 = inlined_call_operand.vmem [shape: f32[32,1], index: 9, kind: input, shape index: {}]
  %s10 = inlined_call_operand.vmem [shape: f32[32,1], index: 10, kind: input, shape index: {}]
  %s11 = inlined_call_operand.vmem [shape: bf16[16,288], index: 11, kind: input, shape index: {}]
  %s12 = inlined_call_operand.vmem [shape: f32[16,1], index: 12, kind: input, shape index: {}]
  %s13 = inlined_call_operand.vmem [shape: bf16[16,8], index: 13, kind: input, shape index: {}]
  %s14 = inlined_call_operand.vmem [shape: f32[16,1], index: 14, kind: input, shape index: {}]
  %s15 = inlined_call_operand.hbm [shape: f32[2,16,256], index: 15, kind: output, shape index: {}]
  %s16 = sld [smem:[#allocation0]]
  $region93: #{tpu_custom_call.1} parent=0
    _
  %s18 = ssub.s32 1, %s16
  %s19 = scalar_select 0, %s18, %s16
  $region1: #{tpu_custom_call.1} parent=0
    #allocation5 [shape = 'u8[32768]{0}', space=vmem, size = 0x8000, scoped, tag = 'output window, operand 0']
    #allocation6 [shape = 's32[2]{0}', space=sflag, size = 0x8, scoped, tag = 'scoped memory for tpu_custom_call.1']
    %20 = vsyncpa [#allocation6], 0
    %s21 = scalar_lea.sflag [#allocation6], 1
    %22 = vsyncpa %s21, 0
    loop: start=0, step=1, limit=4
    $region2: #{tpu_custom_call.1} parent=1 // loop_pre_header
      _
    $region3: #{tpu_custom_call.1} parent=1 // loop_header
      %s24 = sphi 0, %s28
      %p25 = scmp.ge.s32.totalorder %s24, 4
      %s34 = sphi 0, %s36
      %s37 = sphi 0, %s34
      %s38 = sphi 0, %s37
      %s54 = sphi 0, %s38
      %s60 = sphi 0, %s62
      %s63 = sphi 0, %s60
      %s64 = sphi 0, %s63
      %s80 = sphi 0, %s64
      %s84 = sphi 0, %s84
      %s86 = sphi 0, %s84
      %s87 = sphi 0, %s86
      %s101 = sphi 0, %s87
      %s105 = sphi 0, %s105
      %s107 = sphi 0, %s105
      %s108 = sphi 0, %s107
      %s122 = sphi 0, %s108
      %s126 = sphi 0, %s126
      %s128 = sphi 0, %s126
      %s129 = sphi 0, %s128
      %s143 = sphi 0, %s129
      %s147 = sphi 0, %s147
      %s149 = sphi 0, %s147
      %s150 = sphi 0, %s149
      %s164 = sphi 0, %s150
      %s168 = sphi 0, %s168
      %s170 = sphi 0, %s168
      %s171 = sphi 0, %s170
      %s185 = sphi 0, %s171
      %s189 = sphi 0, %s189
      %s191 = sphi 0, %s189
      %s192 = sphi 0, %s191
      %s206 = sphi 0, %s192
      %s210 = sphi 0, %s210
      %s212 = sphi 0, %s210
      %s213 = sphi 0, %s212
      %s227 = sphi 0, %s213
      %s231 = sphi 0, %s231
      %s233 = sphi 0, %s231
      %s234 = sphi 0, %s233
      %s248 = sphi 0, %s234
      %s252 = sphi 0, %s252
      %s254 = sphi 0, %s252
      %s255 = sphi 0, %s254
      %s269 = sphi 0, %s255
      %s273 = sphi 0, %s273
      %s275 = sphi 0, %s273
      %s276 = sphi 0, %s275
      %s290 = sphi 0, %s276
      %s294 = sphi 0, %s294
      %s296 = sphi 0, %s294
      %s297 = sphi 0, %s296
      %s311 = sphi 0, %s297
      %s315 = sphi 0, %s315
      %s317 = sphi 0, %s315
      %s318 = sphi 0, %s317
      %s332 = sphi 0, %s318
      %s336 = sphi 0, %s336
      %s338 = sphi 0, %s336
      %s339 = sphi 0, %s338
      %s353 = sphi 0, %s339
      %s359 = sphi 0, %s361
      %s362 = sphi 0, %s359
      %s363 = sphi 0, %s362
      %s379 = sphi 0, %s363
    $region4: #{tpu_custom_call.1} parent=1 // loop_header_branch
      %27 = sbr.rel (%p25) target = $region8
    $region5: #{tpu_custom_call.1} parent=1 // loop_body
      %s29 = ssub.s32 %s24, 1
      %s30 = ssub.s32 %s24, 2
      %s31 = sadd.s32 %s24, 1
      %s32 = ssub.s32 %s24, %s31
      %p33 = scmp.eq.s32.totalorder %s32, 0
      %s35 = sadd.s32 %s34, 1
      %s36 = scalar_select %p33, %s34, %s35
      %p39 = pneg %p33
      %p40 = scmp.eq.s32.totalorder %s24, 1
      %p41 = por %p39, %p40
      %p42 = scmp.ne.s32.totalorder %s34, %s37
      %p43 = scmp.eq.s32.totalorder %s24, 0
      %p44 = por %p42, %p43
      %p45 = scmp.ne.s32.totalorder %s34, %s37
      %p46 = scmp.eq.s32.totalorder %s29, 1
      %p47 = por %p45, %p46
      %p48 = scmp.ne.s32.totalorder %s37, %s38
      %p49 = scmp.eq.s32.totalorder %s29, 0
      %p50 = por %p48, %p49
      %p51 = scmp.ne.s32.totalorder %s37, %s38
      %p52 = scmp.eq.s32.totalorder %s30, 1
      %p53 = por %p51, %p52
      %p55 = scmp.ne.s32.totalorder %s38, %s54
      %p56 = scmp.eq.s32.totalorder %s30, 0
      %p57 = por %p55, %p56
      %s58 = ssub.s32 %s24, %s31
      %p59 = scmp.eq.s32.totalorder %s58, 0
      %s61 = sadd.s32 %s60, 1
      %s62 = scalar_select %p59, %s60, %s61
      %p65 = pneg %p59
      %p66 = scmp.eq.s32.totalorder %s24, 1
      %p67 = por %p65, %p66
      %p68 = scmp.ne.s32.totalorder %s60, %s63
      %p69 = scmp.eq.s32.totalorder %s24, 0
      %p70 = por %p68, %p69
      %p71 = scmp.ne.s32.totalorder %s60, %s63
      %p72 = scmp.eq.s32.totalorder %s29, 1
      %p73 = por %p71, %p72
      %p74 = scmp.ne.s32.totalorder %s63, %s64
      %p75 = scmp.eq.s32.totalorder %s29, 0
      %p76 = por %p74, %p75
      %p77 = scmp.ne.s32.totalorder %s63, %s64
      %p78 = scmp.eq.s32.totalorder %s30, 1
      %p79 = por %p77, %p78
      %p81 = scmp.ne.s32.totalorder %s64, %s80
      %p82 = scmp.eq.s32.totalorder %s30, 0
      %p83 = por %p81, %p82
      %s85 = sadd.s32 %s84, 1
      %p88 = scmp.eq.s32.totalorder %s24, 1
      %p89 = scmp.ne.s32.totalorder %s84, %s86
      %p90 = scmp.eq.s32.totalorder %s24, 0
      %p91 = por %p89, %p90
      %p92 = scmp.ne.s32.totalorder %s84, %s86
      %p93 = scmp.eq.s32.totalorder %s29, 1
      %p94 = por %p92, %p93
      %p95 = scmp.ne.s32.totalorder %s86, %s87
      %p96 = scmp.eq.s32.totalorder %s29, 0
      %p97 = por %p95, %p96
      %p98 = scmp.ne.s32.totalorder %s86, %s87
      %p99 = scmp.eq.s32.totalorder %s30, 1
      %p100 = por %p98, %p99
      %p102 = scmp.ne.s32.totalorder %s87, %s101
      %p103 = scmp.eq.s32.totalorder %s30, 0
      %p104 = por %p102, %p103
      %s106 = sadd.s32 %s105, 1
      %p109 = scmp.eq.s32.totalorder %s24, 1
      %p110 = scmp.ne.s32.totalorder %s105, %s107
      %p111 = scmp.eq.s32.totalorder %s24, 0
      %p112 = por %p110, %p111
      %p113 = scmp.ne.s32.totalorder %s105, %s107
      %p114 = scmp.eq.s32.totalorder %s29, 1
      %p115 = por %p113, %p114
      %p116 = scmp.ne.s32.totalorder %s107, %s108
      %p117 = scmp.eq.s32.totalorder %s29, 0
      %p118 = por %p116, %p117
      %p119 = scmp.ne.s32.totalorder %s107, %s108
      %p120 = scmp.eq.s32.totalorder %s30, 1
      %p121 = por %p119, %p120
      %p123 = scmp.ne.s32.totalorder %s108, %s122
      %p124 = scmp.eq.s32.totalorder %s30, 0
      %p125 = por %p123, %p124
      %s127 = sadd.s32 %s126, 1
      %p130 = scmp.eq.s32.totalorder %s24, 1
      %p131 = scmp.ne.s32.totalorder %s126, %s128
      %p132 = scmp.eq.s32.totalorder %s24, 0
      %p133 = por %p131, %p132
      %p134 = scmp.ne.s32.totalorder %s126, %s128
      %p135 = scmp.eq.s32.totalorder %s29, 1
      %p136 = por %p134, %p135
      %p137 = scmp.ne.s32.totalorder %s128, %s129
      %p138 = scmp.eq.s32.totalorder %s29, 0
      %p139 = por %p137, %p138
      %p140 = scmp.ne.s32.totalorder %s128, %s129
      %p141 = scmp.eq.s32.totalorder %s30, 1
      %p142 = por %p140, %p141
      %p144 = scmp.ne.s32.totalorder %s129, %s143
      %p145 = scmp.eq.s32.totalorder %s30, 0
      %p146 = por %p144, %p145
      %s148 = sadd.s32 %s147, 1
      %p151 = scmp.eq.s32.totalorder %s24, 1
      %p152 = scmp.ne.s32.totalorder %s147, %s149
      %p153 = scmp.eq.s32.totalorder %s24, 0
      %p154 = por %p152, %p153
      %p155 = scmp.ne.s32.totalorder %s147, %s149
      %p156 = scmp.eq.s32.totalorder %s29, 1
      %p157 = por %p155, %p156
      %p158 = scmp.ne.s32.totalorder %s149, %s150
      %p159 = scmp.eq.s32.totalorder %s29, 0
      %p160 = por %p158, %p159
      %p161 = scmp.ne.s32.totalorder %s149, %s150
      %p162 = scmp.eq.s32.totalorder %s30, 1
      %p163 = por %p161, %p162
      %p165 = scmp.ne.s32.totalorder %s150, %s164
      %p166 = scmp.eq.s32.totalorder %s30, 0
      %p167 = por %p165, %p166
      %s169 = sadd.s32 %s168, 1
      %p172 = scmp.eq.s32.totalorder %s24, 1
      %p173 = scmp.ne.s32.totalorder %s168, %s170
      %p174 = scmp.eq.s32.totalorder %s24, 0
      %p175 = por %p173, %p174
      %p176 = scmp.ne.s32.totalorder %s168, %s170
      %p177 = scmp.eq.s32.totalorder %s29, 1
      %p178 = por %p176, %p177
      %p179 = scmp.ne.s32.totalorder %s170, %s171
      %p180 = scmp.eq.s32.totalorder %s29, 0
      %p181 = por %p179, %p180
      %p182 = scmp.ne.s32.totalorder %s170, %s171
      %p183 = scmp.eq.s32.totalorder %s30, 1
      %p184 = por %p182, %p183
      %p186 = scmp.ne.s32.totalorder %s171, %s185
      %p187 = scmp.eq.s32.totalorder %s30, 0
      %p188 = por %p186, %p187
      %s190 = sadd.s32 %s189, 1
      %p193 = scmp.eq.s32.totalorder %s24, 1
      %p194 = scmp.ne.s32.totalorder %s189, %s191
      %p195 = scmp.eq.s32.totalorder %s24, 0
      %p196 = por %p194, %p195
      %p197 = scmp.ne.s32.totalorder %s189, %s191
      %p198 = scmp.eq.s32.totalorder %s29, 1
      %p199 = por %p197, %p198
      %p200 = scmp.ne.s32.totalorder %s191, %s192
      %p201 = scmp.eq.s32.totalorder %s29, 0
      %p202 = por %p200, %p201
      %p203 = scmp.ne.s32.totalorder %s191, %s192
      %p204 = scmp.eq.s32.totalorder %s30, 1
      %p205 = por %p203, %p204
      %p207 = scmp.ne.s32.totalorder %s192, %s206
      %p208 = scmp.eq.s32.totalorder %s30, 0
      %p209 = por %p207, %p208
      %s211 = sadd.s32 %s210, 1
      %p214 = scmp.eq.s32.totalorder %s24, 1
      %p215 = scmp.ne.s32.totalorder %s210, %s212
      %p216 = scmp.eq.s32.totalorder %s24, 0
      %p217 = por %p215, %p216
      %p218 = scmp.ne.s32.totalorder %s210, %s212
      %p219 = scmp.eq.s32.totalorder %s29, 1
      %p220 = por %p218, %p219
      %p221 = scmp.ne.s32.totalorder %s212, %s213
      %p222 = scmp.eq.s32.totalorder %s29, 0
      %p223 = por %p221, %p222
      %p224 = scmp.ne.s32.totalorder %s212, %s213
      %p225 = scmp.eq.s32.totalorder %s30, 1
      %p226 = por %p224, %p225
      %p228 = scmp.ne.s32.totalorder %s213, %s227
      %p229 = scmp.eq.s32.totalorder %s30, 0
      %p230 = por %p228, %p229
      %s232 = sadd.s32 %s231, 1
      %p235 = scmp.eq.s32.totalorder %s24, 1
      %p236 = scmp.ne.s32.totalorder %s231, %s233
      %p237 = scmp.eq.s32.totalorder %s24, 0
      %p238 = por %p236, %p237
      %p239 = scmp.ne.s32.totalorder %s231, %s233
      %p240 = scmp.eq.s32.totalorder %s29, 1
      %p241 = por %p239, %p240
      %p242 = scmp.ne.s32.totalorder %s233, %s234
      %p243 = scmp.eq.s32.totalorder %s29, 0
      %p244 = por %p242, %p243
      %p245 = scmp.ne.s32.totalorder %s233, %s234
      %p246 = scmp.eq.s32.totalorder %s30, 1
      %p247 = por %p245, %p246
      %p249 = scmp.ne.s32.totalorder %s234, %s248
      %p250 = scmp.eq.s32.totalorder %s30, 0
      %p251 = por %p249, %p250
      %s253 = sadd.s32 %s252, 1
      %p256 = scmp.eq.s32.totalorder %s24, 1
      %p257 = scmp.ne.s32.totalorder %s252, %s254
      %p258 = scmp.eq.s32.totalorder %s24, 0
      %p259 = por %p257, %p258
      %p260 = scmp.ne.s32.totalorder %s252, %s254
      %p261 = scmp.eq.s32.totalorder %s29, 1
      %p262 = por %p260, %p261
      %p263 = scmp.ne.s32.totalorder %s254, %s255
      %p264 = scmp.eq.s32.totalorder %s29, 0
      %p265 = por %p263, %p264
      %p266 = scmp.ne.s32.totalorder %s254, %s255
      %p267 = scmp.eq.s32.totalorder %s30, 1
      %p268 = por %p266, %p267
      %p270 = scmp.ne.s32.totalorder %s255, %s269
      %p271 = scmp.eq.s32.totalorder %s30, 0
      %p272 = por %p270, %p271
      %s274 = sadd.s32 %s273, 1
      %p277 = scmp.eq.s32.totalorder %s24, 1
      %p278 = scmp.ne.s32.totalorder %s273, %s275
      %p279 = scmp.eq.s32.totalorder %s24, 0
      %p280 = por %p278, %p279
      %p281 = scmp.ne.s32.totalorder %s273, %s275
      %p282 = scmp.eq.s32.totalorder %s29, 1
      %p283 = por %p281, %p282
      %p284 = scmp.ne.s32.totalorder %s275, %s276
      %p285 = scmp.eq.s32.totalorder %s29, 0
      %p286 = por %p284, %p285
      %p287 = scmp.ne.s32.totalorder %s275, %s276
      %p288 = scmp.eq.s32.totalorder %s30, 1
      %p289 = por %p287, %p288
      %p291 = scmp.ne.s32.totalorder %s276, %s290
      %p292 = scmp.eq.s32.totalorder %s30, 0
      %p293 = por %p291, %p292
      %s295 = sadd.s32 %s294, 1
      %p298 = scmp.eq.s32.totalorder %s24, 1
      %p299 = scmp.ne.s32.totalorder %s294, %s296
      %p300 = scmp.eq.s32.totalorder %s24, 0
      %p301 = por %p299, %p300
      %p302 = scmp.ne.s32.totalorder %s294, %s296
      %p303 = scmp.eq.s32.totalorder %s29, 1
      %p304 = por %p302, %p303
      %p305 = scmp.ne.s32.totalorder %s296, %s297
      %p306 = scmp.eq.s32.totalorder %s29, 0
      %p307 = por %p305, %p306
      %p308 = scmp.ne.s32.totalorder %s296, %s297
      %p309 = scmp.eq.s32.totalorder %s30, 1
      %p310 = por %p308, %p309
      %p312 = scmp.ne.s32.totalorder %s297, %s311
      %p313 = scmp.eq.s32.totalorder %s30, 0
      %p314 = por %p312, %p313
      %s316 = sadd.s32 %s315, 1
      %p319 = scmp.eq.s32.totalorder %s24, 1
      %p320 = scmp.ne.s32.totalorder %s315, %s317
      %p321 = scmp.eq.s32.totalorder %s24, 0
      %p322 = por %p320, %p321
      %p323 = scmp.ne.s32.totalorder %s315, %s317
      %p324 = scmp.eq.s32.totalorder %s29, 1
      %p325 = por %p323, %p324
      %p326 = scmp.ne.s32.totalorder %s317, %s318
      %p327 = scmp.eq.s32.totalorder %s29, 0
      %p328 = por %p326, %p327
      %p329 = scmp.ne.s32.totalorder %s317, %s318
      %p330 = scmp.eq.s32.totalorder %s30, 1
      %p331 = por %p329, %p330
      %p333 = scmp.ne.s32.totalorder %s318, %s332
      %p334 = scmp.eq.s32.totalorder %s30, 0
      %p335 = por %p333, %p334
      %s337 = sadd.s32 %s336, 1
      %p340 = scmp.eq.s32.totalorder %s24, 1
      %p341 = scmp.ne.s32.totalorder %s336, %s338
      %p342 = scmp.eq.s32.totalorder %s24, 0
      %p343 = por %p341, %p342
      %p344 = scmp.ne.s32.totalorder %s336, %s338
      %p345 = scmp.eq.s32.totalorder %s29, 1
      %p346 = por %p344, %p345
      %p347 = scmp.ne.s32.totalorder %s338, %s339
      %p348 = scmp.eq.s32.totalorder %s29, 0
      %p349 = por %p347, %p348
      %p350 = scmp.ne.s32.totalorder %s338, %s339
      %p351 = scmp.eq.s32.totalorder %s30, 1
      %p352 = por %p350, %p351
      %p354 = scmp.ne.s32.totalorder %s339, %s353
      %p355 = scmp.eq.s32.totalorder %s30, 0
      %p356 = por %p354, %p355
      %s357 = ssub.s32 %s24, %s31
      %p358 = scmp.eq.s32.totalorder %s357, 0
      %s360 = sadd.s32 %s359, 1
      %s361 = scalar_select %p358, %s359, %s360
      %p364 = pneg %p358
      %p365 = scmp.eq.s32.totalorder %s24, 1
      %p366 = por %p364, %p365
      %p367 = scmp.ne.s32.totalorder %s359, %s362
      %p368 = scmp.eq.s32.totalorder %s24, 0
      %p369 = por %p367, %p368
      %p370 = scmp.ne.s32.totalorder %s359, %s362
      %p371 = scmp.eq.s32.totalorder %s29, 1
      %p372 = por %p370, %p371
      %p373 = scmp.ne.s32.totalorder %s362, %s363
      %p374 = scmp.eq.s32.totalorder %s29, 0
      %p375 = por %p373, %p374
      %p376 = scmp.ne.s32.totalorder %s362, %s363
      %p377 = scmp.eq.s32.totalorder %s30, 1
      %p378 = por %p376, %p377
      %p380 = scmp.ne.s32.totalorder %s363, %s379
      %p381 = scmp.eq.s32.totalorder %s30, 0
      %p382 = por %p380, %p381
      %p383 = scmp.le.s32.totalorder 1, %s24
      %p384 = scmp.lt.s32.totalorder %s24, 3
      %p385 = pnand %p383, %p384
      %p386 = pneg %p385
      // Predicated region
      $region9: #{tpu_custom_call.1} parent=5 // pred_check
        _
      $region10: #{tpu_custom_call.1} parent=5 // pred_check_branch
        %388 = sbr.rel (%p385) target = $region12
      $region11: #{tpu_custom_call.1} parent=5 // pred_region
        %s389 = ssub.s32 %s24, 1
        // Predicated region
        $region13: #{tpu_custom_call.1} parent=11 // pred_check
          %p390 = pneg %p97
        $region14: #{tpu_custom_call.1} parent=11 // pred_check_branch
          %392 = sbr.rel (%p390) target = $region16
        $region15: #{tpu_custom_call.1} parent=11 // pred_region
          _
        $region16: #{tpu_custom_call.1} parent=11 // pred_fallthru
          _
        // Predicated region
        $region17: #{tpu_custom_call.1} parent=11 // pred_check
          %p393 = pneg %p118
        $region18: #{tpu_custom_call.1} parent=11 // pred_check_branch
          %395 = sbr.rel (%p393) target = $region20
        $region19: #{tpu_custom_call.1} parent=11 // pred_region
          _
        $region20: #{tpu_custom_call.1} parent=11 // pred_fallthru
          _
        // Predicated region
        $region21: #{tpu_custom_call.1} parent=11 // pred_check
          %p396 = pneg %p139
        $region22: #{tpu_custom_call.1} parent=11 // pred_check_branch
          %398 = sbr.rel (%p396) target = $region24
        $region23: #{tpu_custom_call.1} parent=11 // pred_region
          _
        $region24: #{tpu_custom_call.1} parent=11 // pred_fallthru
          _
        // Predicated region
        $region25: #{tpu_custom_call.1} parent=11 // pred_check
          %p399 = pneg %p160
        $region26: #{tpu_custom_call.1} parent=11 // pred_check_branch
          %401 = sbr.rel (%p399) target = $region28
        $region27: #{tpu_custom_call.1} parent=11 // pred_region
          _
        $region28: #{tpu_custom_call.1} parent=11 // pred_fallthru
          _
        // Predicated region
        $region29: #{tpu_custom_call.1} parent=11 // pred_check
          %p402 = pneg %p181
        $region30: #{tpu_custom_call.1} parent=11 // pred_check_branch
          %404 = sbr.rel (%p402) target = $region32
        $region31: #{tpu_custom_call.1} parent=11 // pred_region
          _
        $region32: #{tpu_custom_call.1} parent=11 // pred_fallthru
          _
        // Predicated region
        $region33: #{tpu_custom_call.1} parent=11 // pred_check
          %p405 = pneg %p202
        $region34: #{tpu_custom_call.1} parent=11 // pred_check_branch
          %407 = sbr.rel (%p405) target = $region36
        $region35: #{tpu_custom_call.1} parent=11 // pred_region
          _
        $region36: #{tpu_custom_call.1} parent=11 // pred_fallthru
          _
        // Predicated region
        $region37: #{tpu_custom_call.1} parent=11 // pred_check
          %p408 = pneg %p223
        $region38: #{tpu_custom_call.1} parent=11 // pred_check_branch
          %410 = sbr.rel (%p408) target = $region40
        $region39: #{tpu_custom_call.1} parent=11 // pred_region
          _
        $region40: #{tpu_custom_call.1} parent=11 // pred_fallthru
          _
        // Predicated region
        $region41: #{tpu_custom_call.1} parent=11 // pred_check
          %p411 = pneg %p244
        $region42: #{tpu_custom_call.1} parent=11 // pred_check_branch
          %413 = sbr.rel (%p411) target = $region44
        $region43: #{tpu_custom_call.1} parent=11 // pred_region
          _
        $region44: #{tpu_custom_call.1} parent=11 // pred_fallthru
          _
        // Predicated region
        $region45: #{tpu_custom_call.1} parent=11 // pred_check
          %p414 = pneg %p265
        $region46: #{tpu_custom_call.1} parent=11 // pred_check_branch
          %416 = sbr.rel (%p414) target = $region48
        $region47: #{tpu_custom_call.1} parent=11 // pred_region
          _
        $region48: #{tpu_custom_call.1} parent=11 // pred_fallthru
          _
        // Predicated region
        $region49: #{tpu_custom_call.1} parent=11 // pred_check
          %p417 = pneg %p286
        $region50: #{tpu_custom_call.1} parent=11 // pred_check_branch
          %419 = sbr.rel (%p417) target = $region52
        $region51: #{tpu_custom_call.1} parent=11 // pred_region
          _
        $region52: #{tpu_custom_call.1} parent=11 // pred_fallthru
          _
        // Predicated region
        $region53: #{tpu_custom_call.1} parent=11 // pred_check
          %p420 = pneg %p307
        $region54: #{tpu_custom_call.1} parent=11 // pred_check_branch
          %422 = sbr.rel (%p420) target = $region56
        $region55: #{tpu_custom_call.1} parent=11 // pred_region
          _
        $region56: #{tpu_custom_call.1} parent=11 // pred_fallthru
          _
        // Predicated region
        $region57: #{tpu_custom_call.1} parent=11 // pred_check
          %p423 = pneg %p328
        $region58: #{tpu_custom_call.1} parent=11 // pred_check_branch
          %425 = sbr.rel (%p423) target = $region60
        $region59: #{tpu_custom_call.1} parent=11 // pred_region
          _
        $region60: #{tpu_custom_call.1} parent=11 // pred_fallthru
          _
        // Predicated region
        $region61: #{tpu_custom_call.1} parent=11 // pred_check
          %p426 = pneg %p349
        $region62: #{tpu_custom_call.1} parent=11 // pred_check_branch
          %428 = sbr.rel (%p426) target = $region64
        $region63: #{tpu_custom_call.1} parent=11 // pred_region
          _
        $region64: #{tpu_custom_call.1} parent=11 // pred_fallthru
          _
      $region12: #{tpu_custom_call.1} parent=5 // pred_fallthru
        _
      %p429 = scmp.lt.s32.totalorder %s24, 2
      // Predicated region
      $region65: #{tpu_custom_call.1} parent=5 // pred_check
        %p430 = pneg %p429
      $region66: #{tpu_custom_call.1} parent=5 // pred_check_branch
        %432 = sbr.rel (%p430) target = $region68
      $region67: #{tpu_custom_call.1} parent=5 // pred_region
        // Predicated region
        $region69: #{tpu_custom_call.1} parent=67 // pred_check
          %p433 = pneg %p44
        $region70: #{tpu_custom_call.1} parent=67 // pred_check_branch
          %435 = sbr.rel (%p433) target = $region72
        $region71: #{tpu_custom_call.1} parent=67 // pred_region
          %p436 = scmp.lt.s32.totalorder %s24, 1
          %s437 = scalar_select %p436, %s24, 1
          %s438 = smul.addr %s437, 2
          %s439 = smul.addr %s438, 8
          %s440 = scalar_lea.vmem %s0, %s439
        $region72: #{tpu_custom_call.1} parent=67 // pred_fallthru
          _
        // Predicated region
        $region73: #{tpu_custom_call.1} parent=67 // pred_check
          %p441 = pneg %p70
        $region74: #{tpu_custom_call.1} parent=67 // pred_check_branch
          %443 = sbr.rel (%p441) target = $region76
        $region75: #{tpu_custom_call.1} parent=67 // pred_region
          %p444 = scmp.lt.s32.totalorder %s24, 1
          %s445 = scalar_select %p444, %s24, 1
          %s446 = smul.addr %s445, 8
          %s447 = scalar_lea.vmem %s1, %s446
        $region76: #{tpu_custom_call.1} parent=67 // pred_fallthru
          _
      $region68: #{tpu_custom_call.1} parent=5 // pred_fallthru
        _
      %p448 = scmp.le.s32.totalorder 1, %s24
      %p449 = scmp.lt.s32.totalorder %s24, 3
      %p450 = pnand %p448, %p449
      %p451 = pneg %p450
      // Predicated region
      $region77: #{tpu_custom_call.1} parent=5 // pred_check
        _
      $region78: #{tpu_custom_call.1} parent=5 // pred_check_branch
        %453 = sbr.rel (%p450) target = $region80
      $region79: #{tpu_custom_call.1} parent=5 // pred_region
        %s454 = ssub.s32 %s24, 1
        %p455 = scmp.lt.s32.totalorder %s29, 1
        %s456 = scalar_select %p455, %s29, 1
        %s457 = smul.addr %s456, 2
        %s458 = smul.addr %s457, 8
        %s459 = scalar_lea.vmem %s0, %s458
        %p460 = pneg %p50
        %p461 = pneg %p47
        %p462 = scmp.lt.s32.totalorder %s29, 1
        %s463 = scalar_select %p462, %s29, 1
        %s464 = smul.addr %s463, 8
        %s465 = scalar_lea.vmem %s1, %s464
        %p466 = pneg %p76
        %p467 = pneg %p73
        %p468 = pneg %p97
        %p469 = pneg %p94
        %p470 = pneg %p118
        %p471 = pneg %p115
        %p472 = pneg %p139
        %p473 = pneg %p136
        %p474 = pneg %p160
        %p475 = pneg %p157
        %p476 = pneg %p181
        %p477 = pneg %p178
        %p478 = pneg %p202
        %p479 = pneg %p199
        %p480 = pneg %p223
        %p481 = pneg %p220
        %p482 = pneg %p244
        %p483 = pneg %p241
        %p484 = pneg %p265
        %p485 = pneg %p262
        %p486 = pneg %p286
        %p487 = pneg %p283
        %p488 = pneg %p307
        %p489 = pneg %p304
        %p490 = pneg %p328
        %p491 = pneg %p325
        %p492 = pneg %p349
        %p493 = pneg %p346
        %p494 = pneg %p375
        %p495 = pneg %p372
        %s496 = sand.u32 %s362, 1
        %s497 = scalar_lea.sflag [#allocation6], %s496
        %s498 = sand.u32 %s362, 1
        %s499 = smul.addr %s498, 32
        %s500 = scalar_lea.vmem [#allocation5], %s499
        %p501 = scmp.lt.s32.totalorder %s29, 1
        %s502 = scalar_select %p501, %s29, 1
        %s503 = smul.addr %s502, 2
        %s504 = smul.addr %s503, 8
        %s505 = scalar_lea.vmem %s0, %s504
        %p506 = scmp.lt.s32.totalorder %s29, 1
        %s507 = scalar_select %p506, %s29, 1
        %s508 = smul.addr %s507, 8
        %s509 = scalar_lea.vmem %s1, %s508
        %v511 = vld [vmem:[%s505] sm:$0xff]
        %v512 = vld [vmem:[%s505 + $0x8] sm:$0xff]
        %vm513 = vcmask 457728
        %514 = vst.msk [vmem:[#allocation2] sm:$0xff] %vm513, 0.0
        %vm515 = vcmask 916928
        %516 = vst.msk [vmem:[#allocation2 + $0x10] sm:$0xff] %vm515, 0.0
        %519 = vrot.lane.b32.xlu0 %v511, 56
        %v520 = vpop.permute.xlu0 %519
        %521 = vrot.lane.b32.xlu0 %v512, 56
        %v522 = vpop.permute.xlu0 %521
        %v523 = vsel %vm513, %v520, %v522
        %vm527 = vcmask 1048000
        %528 = vst.msk [vmem:[#allocation2] sm:$0xff] %vm527, %v520
        %529 = vst [vmem:[#allocation2 + $0x8] sm:$0xff] %v523
        %530 = vst.msk [vmem:[#allocation2 + $0x10] sm:$0xff] %vm513, %v522
        %v531 = vld [vmem:[#allocation2] sm:$0xff]
        %v532 = vld [vmem:[#allocation2 + $0x8] sm:$0xff]
        %v533 = vld [vmem:[#allocation2 + $0x10] sm:$0xff]
        %v534 = vld [vmem:[%s2] sm:$0xff]
        %536 = vset.pattern.permute.xlu0 0
        %537 = vperm.xlu0 %536, %v534
        %v538 = vpop.permute.xlu0 %537
        %v540 = vmul.f32 %v531, %v538
        %v541 = vmul.f32 %v532, %v538
        %v542 = vmul.f32 %v533, %v538
        %v543 = vld [vmem:[%s4] sm:$0x11]
        %v544 = vunpack.c.l.bf16 %v543
        %v545 = vunpack.c.h.bf16 %v543
        %v546 = vlaneseq
        %v547 = vshrl.u32 %v546, 7
        %v548 = vsub.s32 0, %v547
        %v549 = vrot.slane %v544, %v548
        %v550 = vlaneseq
        %v551 = vshrl.u32 %v550, 7
        %v552 = vsub.s32 0, %v551
        %v553 = vrot.slane %v545, %v552
        %556 = vrot.lane.b32.xlu0 %v549, 5
        %v557 = vpop.permute.xlu0 %556
        %558 = vrot.lane.b32.xlu0 %v553, 5
        %v559 = vpop.permute.xlu0 %558
        %vm560 = vcmask 39936
        %v561 = vsel %vm560, %v557, %v559
        %v565 = vmul.f32 %v540, %v557
        %v566 = vmul.f32 %v541, %v561
        %v567 = vmul.f32 %v542, %v559
        %v568 = vadd.f32 %v565, 0.0
        %v569 = vadd.f32 %v566, 0.0
        %v570 = vadd.f32 %v567, 0.0
        %571 = vset.pattern.permute.xlu0 1
        %572 = vperm.xlu0 %571, %v534
        %v573 = vpop.permute.xlu0 %572
        %v575 = vmul.f32 %v531, %v573
        %v576 = vmul.f32 %v532, %v573
        %v577 = vmul.f32 %v533, %v573
        %v578 = vlaneseq
        %v579 = vshrl.u32 %v578, 7
        %v580 = vsub.s32 1, %v579
        %v581 = vrot.slane %v544, %v580
        %v582 = vlaneseq
        %v583 = vshrl.u32 %v582, 7
        %v584 = vsub.s32 1, %v583
        %v585 = vrot.slane %v545, %v584
        %588 = vrot.lane.b32.xlu0 %v581, 6
        %v589 = vpop.permute.xlu0 %588
        %590 = vrot.lane.b32.xlu0 %v585, 6
        %v591 = vpop.permute.xlu0 %590
        %vm592 = vcmask 48128
        %v593 = vsel %vm592, %v589, %v591
        %v597 = vmul.f32 %v575, %v589
        %v598 = vmul.f32 %v576, %v593
        %v599 = vmul.f32 %v577, %v591
        %603 = vrot.lane.b32.xlu0 %v597, 127
        %v604 = vpop.permute.xlu0 %603
        %605 = vrot.lane.b32.xlu0 %v598, 127
        %v606 = vpop.permute.xlu0 %605
        %607 = vrot.lane.b32.xlu0 %v599, 127
        %v608 = vpop.permute.xlu0 %607
        %vm609 = vcmask 1039360
        %v610 = vsel %vm609, %v604, %v606
        %v611 = vsel %vm609, %v606, %v608
        %v615 = vadd.f32 %v568, %v610
        %v616 = vadd.f32 %v569, %v611
        %v617 = vadd.f32 %v570, %v608
        %618 = vset.pattern.permute.xlu0 2
        %619 = vperm.xlu0 %618, %v534
        %v620 = vpop.permute.xlu0 %619
        %v622 = vmul.f32 %v531, %v620
        %v623 = vmul.f32 %v532, %v620
        %v624 = vmul.f32 %v533, %v620
        %v625 = vld [vmem:[%s4] sm:$0x22]
        %v626 = vunpack.c.l.bf16 %v625
        %v627 = vunpack.c.h.bf16 %v625
        %v628 = vlaneseq
        %v629 = vshrl.u32 %v628, 7
        %v630 = vsub.s32 2, %v629
        %v631 = vrot.slane %v626, %v630
        %v632 = vlaneseq
        %v633 = vshrl.u32 %v632, 7
        %v634 = vsub.s32 2, %v633
        %v635 = vrot.slane %v627, %v634
        %638 = vrot.lane.b32.xlu0 %v631, 7
        %v639 = vpop.permute.xlu0 %638
        %640 = vrot.lane.b32.xlu0 %v635, 7
        %v641 = vpop.permute.xlu0 %640
        %vm642 = vcmask 56320
        %v643 = vsel %vm642, %v639, %v641
        %v647 = vmul.f32 %v622, %v639
        %v648 = vmul.f32 %v623, %v643
        %v649 = vmul.f32 %v624, %v641
        %653 = vrot.lane.b32.xlu0 %v647, 126
        %v654 = vpop.permute.xlu0 %653
        %655 = vrot.lane.b32.xlu0 %v648, 126
        %v656 = vpop.permute.xlu0 %655
        %657 = vrot.lane.b32.xlu0 %v649, 126
        %v658 = vpop.permute.xlu0 %657
        %vm659 = vcmask 1031168
        %v660 = vsel %vm659, %v654, %v656
        %v661 = vsel %vm659, %v656, %v658
        %v665 = vadd.f32 %v615, %v660
        %v666 = vadd.f32 %v616, %v661
        %v667 = vadd.f32 %v617, %v658
        %668 = vset.pattern.permute.xlu0 3
        %669 = vperm.xlu0 %668, %v534
        %v670 = vpop.permute.xlu0 %669
        %v672 = vmul.f32 %v531, %v670
        %v673 = vmul.f32 %v532, %v670
        %v674 = vmul.f32 %v533, %v670
        %v675 = vlaneseq
        %v676 = vshrl.u32 %v675, 7
        %v677 = vsub.s32 3, %v676
        %v678 = vrot.slane %v626, %v677
        %v679 = vlaneseq
        %v680 = vshrl.u32 %v679, 7
        %v681 = vsub.s32 3, %v680
        %v682 = vrot.slane %v627, %v681
        %685 = vrot.lane.b32.xlu0 %v678, 8
        %v686 = vpop.permute.xlu0 %685
        %687 = vrot.lane.b32.xlu0 %v682, 8
        %v688 = vpop.permute.xlu0 %687
        %vm689 = vcmask 64512
        %v690 = vsel %vm689, %v686, %v688
        %v694 = vmul.f32 %v672, %v686
        %v695 = vmul.f32 %v673, %v690
        %v696 = vmul.f32 %v674, %v688
        %700 = vrot.lane.b32.xlu0 %v694, 125
        %v701 = vpop.permute.xlu0 %700
        %702 = vrot.lane.b32.xlu0 %v695, 125
        %v703 = vpop.permute.xlu0 %702
        %704 = vrot.lane.b32.xlu0 %v696, 125
        %v705 = vpop.permute.xlu0 %704
        %vm706 = vcmask 1022976
        %v707 = vsel %vm706, %v701, %v703
        %v708 = vsel %vm706, %v703, %v705
        %v712 = vadd.f32 %v665, %v707
        %v713 = vadd.f32 %v666, %v708
        %v714 = vadd.f32 %v667, %v705
        %715 = vset.pattern.permute.xlu0 4
        %716 = vperm.xlu0 %715, %v534
        %v717 = vpop.permute.xlu0 %716
        %v719 = vmul.f32 %v531, %v717
        %v720 = vmul.f32 %v532, %v717
        %v721 = vmul.f32 %v533, %v717
        %v722 = vld [vmem:[%s4] sm:$0x44]
        %v723 = vunpack.c.l.bf16 %v722
        %v724 = vunpack.c.h.bf16 %v722
        %v725 = vlaneseq
        %v726 = vshrl.u32 %v725, 7
        %v727 = vsub.s32 4, %v726
        %v728 = vrot.slane %v723, %v727
        %v729 = vlaneseq
        %v730 = vshrl.u32 %v729, 7
        %v731 = vsub.s32 4, %v730
        %v732 = vrot.slane %v724, %v731
        %735 = vrot.lane.b32.xlu0 %v728, 9
        %v736 = vpop.permute.xlu0 %735
        %737 = vrot.lane.b32.xlu0 %v732, 9
        %v738 = vpop.permute.xlu0 %737
        %vm739 = vcmask 72704
        %v740 = vsel %vm739, %v736, %v738
        %v744 = vmul.f32 %v719, %v736
        %v745 = vmul.f32 %v720, %v740
        %v746 = vmul.f32 %v721, %v738
        %750 = vrot.lane.b32.xlu0 %v744, 124
        %v751 = vpop.permute.xlu0 %750
        %752 = vrot.lane.b32.xlu0 %v745, 124
        %v753 = vpop.permute.xlu0 %752
        %754 = vrot.lane.b32.xlu0 %v746, 124
        %v755 = vpop.permute.xlu0 %754
        %vm756 = vcmask 1014784
        %v757 = vsel %vm756, %v751, %v753
        %v758 = vsel %vm756, %v753, %v755
        %v762 = vadd.f32 %v712, %v757
        %v763 = vadd.f32 %v713, %v758
        %v764 = vadd.f32 %v714, %v755
        %765 = vset.pattern.permute.xlu0 5
        %766 = vperm.xlu0 %765, %v534
        %v767 = vpop.permute.xlu0 %766
        %v769 = vmul.f32 %v531, %v767
        %v770 = vmul.f32 %v532, %v767
        %v771 = vmul.f32 %v533, %v767
        %v772 = vlaneseq
        %v773 = vshrl.u32 %v772, 7
        %v774 = vsub.s32 5, %v773
        %v775 = vrot.slane %v723, %v774
        %v776 = vlaneseq
        %v777 = vshrl.u32 %v776, 7
        %v778 = vsub.s32 5, %v777
        %v779 = vrot.slane %v724, %v778
        %782 = vrot.lane.b32.xlu0 %v775, 10
        %v783 = vpop.permute.xlu0 %782
        %784 = vrot.lane.b32.xlu0 %v779, 10
        %v785 = vpop.permute.xlu0 %784
        %vm786 = vcmask 80896
        %v787 = vsel %vm786, %v783, %v785
        %v791 = vmul.f32 %v769, %v783
        %v792 = vmul.f32 %v770, %v787
        %v793 = vmul.f32 %v771, %v785
        %797 = vrot.lane.b32.xlu0 %v791, 123
        %v798 = vpop.permute.xlu0 %797
        %799 = vrot.lane.b32.xlu0 %v792, 123
        %v800 = vpop.permute.xlu0 %799
        %801 = vrot.lane.b32.xlu0 %v793, 123
        %v802 = vpop.permute.xlu0 %801
        %vm803 = vcmask 1006592
        %v804 = vsel %vm803, %v798, %v800
        %v805 = vsel %vm803, %v800, %v802
        %v809 = vadd.f32 %v762, %v804
        %v810 = vadd.f32 %v763, %v805
        %v811 = vadd.f32 %v764, %v802
        %812 = vset.pattern.permute.xlu0 6
        %813 = vperm.xlu0 %812, %v534
        %v814 = vpop.permute.xlu0 %813
        %v816 = vmul.f32 %v531, %v814
        %v817 = vmul.f32 %v532, %v814
        %v818 = vmul.f32 %v533, %v814
        %v819 = vld [vmem:[%s4] sm:$0x88]
        %v820 = vunpack.c.l.bf16 %v819
        %v821 = vunpack.c.h.bf16 %v819
        %v822 = vlaneseq
        %v823 = vshrl.u32 %v822, 7
        %v824 = vsub.s32 6, %v823
        %v825 = vrot.slane %v820, %v824
        %v826 = vlaneseq
        %v827 = vshrl.u32 %v826, 7
        %v828 = vsub.s32 6, %v827
        %v829 = vrot.slane %v821, %v828
        %832 = vrot.lane.b32.xlu0 %v825, 11
        %v833 = vpop.permute.xlu0 %832
        %834 = vrot.lane.b32.xlu0 %v829, 11
        %v835 = vpop.permute.xlu0 %834
        %vm836 = vcmask 89088
        %v837 = vsel %vm836, %v833, %v835
        %v841 = vmul.f32 %v816, %v833
        %v842 = vmul.f32 %v817, %v837
        %v843 = vmul.f32 %v818, %v835
        %847 = vrot.lane.b32.xlu0 %v841, 122
        %v848 = vpop.permute.xlu0 %847
        %849 = vrot.lane.b32.xlu0 %v842, 122
        %v850 = vpop.permute.xlu0 %849
        %851 = vrot.lane.b32.xlu0 %v843, 122
        %v852 = vpop.permute.xlu0 %851
        %vm853 = vcmask 998400
        %v854 = vsel %vm853, %v848, %v850
        %v855 = vsel %vm853, %v850, %v852
        %v859 = vadd.f32 %v809, %v854
        %v860 = vadd.f32 %v810, %v855
        %v861 = vadd.f32 %v811, %v852
        %862 = vset.pattern.permute.xlu0 7
        %863 = vperm.xlu0 %862, %v534
        %v864 = vpop.permute.xlu0 %863
        %v866 = vmul.f32 %v531, %v864
        %v867 = vmul.f32 %v532, %v864
        %v868 = vmul.f32 %v533, %v864
        %869 = vrot.lane.b32.xlu0 %v549, 21
        %v870 = vpop.permute.xlu0 %869
        %871 = vrot.lane.b32.xlu0 %v553, 21
        %v872 = vpop.permute.xlu0 %871
        %vm873 = vcmask 171008
        %v874 = vsel %vm873, %v870, %v872
        %v878 = vmul.f32 %v866, %v870
        %v879 = vmul.f32 %v867, %v874
        %v880 = vmul.f32 %v868, %v872
        %884 = vrot.lane.b32.xlu0 %v878, 112
        %v885 = vpop.permute.xlu0 %884
        %886 = vrot.lane.b32.xlu0 %v879, 112
        %v887 = vpop.permute.xlu0 %886
        %888 = vrot.lane.b32.xlu0 %v880, 112
        %v889 = vpop.permute.xlu0 %888
        %vm890 = vcmask 916480
        %v891 = vsel %vm890, %v885, %v887
        %v892 = vsel %vm890, %v887, %v889
        %v896 = vadd.f32 %v859, %v891
        %v897 = vadd.f32 %v860, %v892
        %v898 = vadd.f32 %v861, %v889
        %899 = vset.pattern.permute.xlu0 8
        %900 = vperm.xlu0 %899, %v534
        %v901 = vpop.permute.xlu0 %900
        %v903 = vmul.f32 %v531, %v901
        %v904 = vmul.f32 %v532, %v901
        %v905 = vmul.f32 %v533, %v901
        %906 = vrot.lane.b32.xlu0 %v581, 22
        %v907 = vpop.permute.xlu0 %906
        %908 = vrot.lane.b32.xlu0 %v585, 22
        %v909 = vpop.permute.xlu0 %908
        %vm910 = vcmask 179200
        %v911 = vsel %vm910, %v907, %v909
        %v915 = vmul.f32 %v903, %v907
        %v916 = vmul.f32 %v904, %v911
        %v917 = vmul.f32 %v905, %v909
        %921 = vrot.lane.b32.xlu0 %v915, 111
        %v922 = vpop.permute.xlu0 %921
        %923 = vrot.lane.b32.xlu0 %v916, 111
        %v924 = vpop.permute.xlu0 %923
        %925 = vrot.lane.b32.xlu0 %v917, 111
        %v926 = vpop.permute.xlu0 %925
        %vm927 = vcmask 908288
        %v928 = vsel %vm927, %v922, %v924
        %v929 = vsel %vm927, %v924, %v926
        %v933 = vadd.f32 %v896, %v928
        %v934 = vadd.f32 %v897, %v929
        %v935 = vadd.f32 %v898, %v926
        %936 = vset.pattern.permute.xlu0 9
        %937 = vperm.xlu0 %936, %v534
        %v938 = vpop.permute.xlu0 %937
        %v940 = vmul.f32 %v531, %v938
        %v941 = vmul.f32 %v532, %v938
        %v942 = vmul.f32 %v533, %v938
        %943 = vrot.lane.b32.xlu0 %v631, 23
        %v944 = vpop.permute.xlu0 %943
        %945 = vrot.lane.b32.xlu0 %v635, 23
        %v946 = vpop.permute.xlu0 %945
        %vm947 = vcmask 187392
        %v948 = vsel %vm947, %v944, %v946
        %v952 = vmul.f32 %v940, %v944
        %v953 = vmul.f32 %v941, %v948
        %v954 = vmul.f32 %v942, %v946
        %958 = vrot.lane.b32.xlu0 %v952, 110
        %v959 = vpop.permute.xlu0 %958
        %960 = vrot.lane.b32.xlu0 %v953, 110
        %v961 = vpop.permute.xlu0 %960
        %962 = vrot.lane.b32.xlu0 %v954, 110
        %v963 = vpop.permute.xlu0 %962
        %vm964 = vcmask 900096
        %v965 = vsel %vm964, %v959, %v961
        %v966 = vsel %vm964, %v961, %v963
        %v970 = vadd.f32 %v933, %v965
        %v971 = vadd.f32 %v934, %v966
        %v972 = vadd.f32 %v935, %v963
        %973 = vset.pattern.permute.xlu0 10
        %974 = vperm.xlu0 %973, %v534
        %v975 = vpop.permute.xlu0 %974
        %v977 = vmul.f32 %v531, %v975
        %v978 = vmul.f32 %v532, %v975
        %v979 = vmul.f32 %v533, %v975
        %980 = vrot.lane.b32.xlu0 %v678, 24
        %v981 = vpop.permute.xlu0 %980
        %982 = vrot.lane.b32.xlu0 %v682, 24
        %v983 = vpop.permute.xlu0 %982
        %vm984 = vcmask 195584
        %v985 = vsel %vm984, %v981, %v983
        %v989 = vmul.f32 %v977, %v981
        %v990 = vmul.f32 %v978, %v985
        %v991 = vmul.f32 %v979, %v983
        %995 = vrot.lane.b32.xlu0 %v989, 109
        %v996 = vpop.permute.xlu0 %995
        %997 = vrot.lane.b32.xlu0 %v990, 109
        %v998 = vpop.permute.xlu0 %997
        %999 = vrot.lane.b32.xlu0 %v991, 109
        %v1000 = vpop.permute.xlu0 %999
        %vm1001 = vcmask 891904
        %v1002 = vsel %vm1001, %v996, %v998
        %v1003 = vsel %vm1001, %v998, %v1000
        %v1007 = vadd.f32 %v970, %v1002
        %v1008 = vadd.f32 %v971, %v1003
        %v1009 = vadd.f32 %v972, %v1000
        %1010 = vset.pattern.permute.xlu0 11
        %1011 = vperm.xlu0 %1010, %v534
        %v1012 = vpop.permute.xlu0 %1011
        %v1014 = vmul.f32 %v531, %v1012
        %v1015 = vmul.f32 %v532, %v1012
        %v1016 = vmul.f32 %v533, %v1012
        %1017 = vrot.lane.b32.xlu0 %v728, 25
        %v1018 = vpop.permute.xlu0 %1017
        %1019 = vrot.lane.b32.xlu0 %v732, 25
        %v1020 = vpop.permute.xlu0 %1019
        %vm1021 = vcmask 203776
        %v1022 = vsel %vm1021, %v1018, %v1020
        %v1026 = vmul.f32 %v1014, %v1018
        %v1027 = vmul.f32 %v1015, %v1022
        %v1028 = vmul.f32 %v1016, %v1020
        %1032 = vrot.lane.b32.xlu0 %v1026, 108
        %v1033 = vpop.permute.xlu0 %1032
        %1034 = vrot.lane.b32.xlu0 %v1027, 108
        %v1035 = vpop.permute.xlu0 %1034
        %1036 = vrot.lane.b32.xlu0 %v1028, 108
        %v1037 = vpop.permute.xlu0 %1036
        %vm1038 = vcmask 883712
        %v1039 = vsel %vm1038, %v1033, %v1035
        %v1040 = vsel %vm1038, %v1035, %v1037
        %v1044 = vadd.f32 %v1007, %v1039
        %v1045 = vadd.f32 %v1008, %v1040
        %v1046 = vadd.f32 %v1009, %v1037
        %1047 = vset.pattern.permute.xlu0 12
        %1048 = vperm.xlu0 %1047, %v534
        %v1049 = vpop.permute.xlu0 %1048
        %v1051 = vmul.f32 %v531, %v1049
        %v1052 = vmul.f32 %v532, %v1049
        %v1053 = vmul.f32 %v533, %v1049
        %1054 = vrot.lane.b32.xlu0 %v775, 26
        %v1055 = vpop.permute.xlu0 %1054
        %1056 = vrot.lane.b32.xlu0 %v779, 26
        %v1057 = vpop.permute.xlu0 %1056
        %vm1058 = vcmask 211968
        %v1059 = vsel %vm1058, %v1055, %v1057
        %v1063 = vmul.f32 %v1051, %v1055
        %v1064 = vmul.f32 %v1052, %v1059
        %v1065 = vmul.f32 %v1053, %v1057
        %1069 = vrot.lane.b32.xlu0 %v1063, 107
        %v1070 = vpop.permute.xlu0 %1069
        %1071 = vrot.lane.b32.xlu0 %v1064, 107
        %v1072 = vpop.permute.xlu0 %1071
        %1073 = vrot.lane.b32.xlu0 %v1065, 107
        %v1074 = vpop.permute.xlu0 %1073
        %vm1075 = vcmask 875520
        %v1076 = vsel %vm1075, %v1070, %v1072
        %v1077 = vsel %vm1075, %v1072, %v1074
        %v1081 = vadd.f32 %v1044, %v1076
        %v1082 = vadd.f32 %v1045, %v1077
        %v1083 = vadd.f32 %v1046, %v1074
        %1084 = vset.pattern.permute.xlu0 13
        %1085 = vperm.xlu0 %1084, %v534
        %v1086 = vpop.permute.xlu0 %1085
        %v1088 = vmul.f32 %v531, %v1086
        %v1089 = vmul.f32 %v532, %v1086
        %v1090 = vmul.f32 %v533, %v1086
        %1091 = vrot.lane.b32.xlu0 %v825, 27
        %v1092 = vpop.permute.xlu0 %1091
        %1093 = vrot.lane.b32.xlu0 %v829, 27
        %v1094 = vpop.permute.xlu0 %1093
        %vm1095 = vcmask 220160
        %v1096 = vsel %vm1095, %v1092, %v1094
        %v1100 = vmul.f32 %v1088, %v1092
        %v1101 = vmul.f32 %v1089, %v1096
        %v1102 = vmul.f32 %v1090, %v1094
        %1106 = vrot.lane.b32.xlu0 %v1100, 106
        %v1107 = vpop.permute.xlu0 %1106
        %1108 = vrot.lane.b32.xlu0 %v1101, 106
        %v1109 = vpop.permute.xlu0 %1108
        %1110 = vrot.lane.b32.xlu0 %v1102, 106
        %v1111 = vpop.permute.xlu0 %1110
        %vm1112 = vcmask 867328
        %v1113 = vsel %vm1112, %v1107, %v1109
        %v1114 = vsel %vm1112, %v1109, %v1111
        %v1118 = vadd.f32 %v1081, %v1113
        %v1119 = vadd.f32 %v1082, %v1114
        %v1120 = vadd.f32 %v1083, %v1111
        %1121 = vset.pattern.permute.xlu0 14
        %1122 = vperm.xlu0 %1121, %v534
        %v1123 = vpop.permute.xlu0 %1122
        %v1125 = vmul.f32 %v531, %v1123
        %v1126 = vmul.f32 %v532, %v1123
        %v1127 = vmul.f32 %v533, %v1123
        %1128 = vrot.lane.b32.xlu0 %v549, 37
        %v1129 = vpop.permute.xlu0 %1128
        %1130 = vrot.lane.b32.xlu0 %v553, 37
        %v1131 = vpop.permute.xlu0 %1130
        %vm1132 = vcmask 302080
        %v1133 = vsel %vm1132, %v1129, %v1131
        %v1137 = vmul.f32 %v1125, %v1129
        %v1138 = vmul.f32 %v1126, %v1133
        %v1139 = vmul.f32 %v1127, %v1131
        %1143 = vrot.lane.b32.xlu0 %v1137, 96
        %v1144 = vpop.permute.xlu0 %1143
        %1145 = vrot.lane.b32.xlu0 %v1138, 96
        %v1146 = vpop.permute.xlu0 %1145
        %1147 = vrot.lane.b32.xlu0 %v1139, 96
        %v1148 = vpop.permute.xlu0 %1147
        %vm1149 = vcmask 785408
        %v1150 = vsel %vm1149, %v1144, %v1146
        %v1151 = vsel %vm1149, %v1146, %v1148
        %v1155 = vadd.f32 %v1118, %v1150
        %v1156 = vadd.f32 %v1119, %v1151
        %v1157 = vadd.f32 %v1120, %v1148
        %1158 = vset.pattern.permute.xlu0 15
        %1159 = vperm.xlu0 %1158, %v534
        %v1160 = vpop.permute.xlu0 %1159
        %v1162 = vmul.f32 %v531, %v1160
        %v1163 = vmul.f32 %v532, %v1160
        %v1164 = vmul.f32 %v533, %v1160
        %1165 = vrot.lane.b32.xlu0 %v581, 38
        %v1166 = vpop.permute.xlu0 %1165
        %1167 = vrot.lane.b32.xlu0 %v585, 38
        %v1168 = vpop.permute.xlu0 %1167
        %vm1169 = vcmask 310272
        %v1170 = vsel %vm1169, %v1166, %v1168
        %v1174 = vmul.f32 %v1162, %v1166
        %v1175 = vmul.f32 %v1163, %v1170
        %v1176 = vmul.f32 %v1164, %v1168
        %1180 = vrot.lane.b32.xlu0 %v1174, 95
        %v1181 = vpop.permute.xlu0 %1180
        %1182 = vrot.lane.b32.xlu0 %v1175, 95
        %v1183 = vpop.permute.xlu0 %1182
        %1184 = vrot.lane.b32.xlu0 %v1176, 95
        %v1185 = vpop.permute.xlu0 %1184
        %vm1186 = vcmask 777216
        %v1187 = vsel %vm1186, %v1181, %v1183
        %v1188 = vsel %vm1186, %v1183, %v1185
        %v1192 = vadd.f32 %v1155, %v1187
        %v1193 = vadd.f32 %v1156, %v1188
        %v1194 = vadd.f32 %v1157, %v1185
        %1195 = vset.pattern.permute.xlu0 16
        %1196 = vperm.xlu0 %1195, %v534
        %v1197 = vpop.permute.xlu0 %1196
        %v1199 = vmul.f32 %v531, %v1197
        %v1200 = vmul.f32 %v532, %v1197
        %v1201 = vmul.f32 %v533, %v1197
        %1202 = vrot.lane.b32.xlu0 %v631, 39
        %v1203 = vpop.permute.xlu0 %1202
        %1204 = vrot.lane.b32.xlu0 %v635, 39
        %v1205 = vpop.permute.xlu0 %1204
        %vm1206 = vcmask 318464
        %v1207 = vsel %vm1206, %v1203, %v1205
        %v1211 = vmul.f32 %v1199, %v1203
        %v1212 = vmul.f32 %v1200, %v1207
        %v1213 = vmul.f32 %v1201, %v1205
        %1217 = vrot.lane.b32.xlu0 %v1211, 94
        %v1218 = vpop.permute.xlu0 %1217
        %1219 = vrot.lane.b32.xlu0 %v1212, 94
        %v1220 = vpop.permute.xlu0 %1219
        %1221 = vrot.lane.b32.xlu0 %v1213, 94
        %v1222 = vpop.permute.xlu0 %1221
        %vm1223 = vcmask 769024
        %v1224 = vsel %vm1223, %v1218, %v1220
        %v1225 = vsel %vm1223, %v1220, %v1222
        %v1229 = vadd.f32 %v1192, %v1224
        %v1230 = vadd.f32 %v1193, %v1225
        %v1231 = vadd.f32 %v1194, %v1222
        %1232 = vset.pattern.permute.xlu0 17
        %1233 = vperm.xlu0 %1232, %v534
        %v1234 = vpop.permute.xlu0 %1233
        %v1236 = vmul.f32 %v531, %v1234
        %v1237 = vmul.f32 %v532, %v1234
        %v1238 = vmul.f32 %v533, %v1234
        %1239 = vrot.lane.b32.xlu0 %v678, 40
        %v1240 = vpop.permute.xlu0 %1239
        %1241 = vrot.lane.b32.xlu0 %v682, 40
        %v1242 = vpop.permute.xlu0 %1241
        %vm1243 = vcmask 326656
        %v1244 = vsel %vm1243, %v1240, %v1242
        %v1248 = vmul.f32 %v1236, %v1240
        %v1249 = vmul.f32 %v1237, %v1244
        %v1250 = vmul.f32 %v1238, %v1242
        %1254 = vrot.lane.b32.xlu0 %v1248, 93
        %v1255 = vpop.permute.xlu0 %1254
        %1256 = vrot.lane.b32.xlu0 %v1249, 93
        %v1257 = vpop.permute.xlu0 %1256
        %1258 = vrot.lane.b32.xlu0 %v1250, 93
        %v1259 = vpop.permute.xlu0 %1258
        %vm1260 = vcmask 760832
        %v1261 = vsel %vm1260, %v1255, %v1257
        %v1262 = vsel %vm1260, %v1257, %v1259
        %v1266 = vadd.f32 %v1229, %v1261
        %v1267 = vadd.f32 %v1230, %v1262
        %v1268 = vadd.f32 %v1231, %v1259
        %1269 = vset.pattern.permute.xlu0 18
        %1270 = vperm.xlu0 %1269, %v534
        %v1271 = vpop.permute.xlu0 %1270
        %v1273 = vmul.f32 %v531, %v1271
        %v1274 = vmul.f32 %v532, %v1271
        %v1275 = vmul.f32 %v533, %v1271
        %1276 = vrot.lane.b32.xlu0 %v728, 41
        %v1277 = vpop.permute.xlu0 %1276
        %1278 = vrot.lane.b32.xlu0 %v732, 41
        %v1279 = vpop.permute.xlu0 %1278
        %vm1280 = vcmask 334848
        %v1281 = vsel %vm1280, %v1277, %v1279
        %v1285 = vmul.f32 %v1273, %v1277
        %v1286 = vmul.f32 %v1274, %v1281
        %v1287 = vmul.f32 %v1275, %v1279
        %1291 = vrot.lane.b32.xlu0 %v1285, 92
        %v1292 = vpop.permute.xlu0 %1291
        %1293 = vrot.lane.b32.xlu0 %v1286, 92
        %v1294 = vpop.permute.xlu0 %1293
        %1295 = vrot.lane.b32.xlu0 %v1287, 92
        %v1296 = vpop.permute.xlu0 %1295
        %vm1297 = vcmask 752640
        %v1298 = vsel %vm1297, %v1292, %v1294
        %v1299 = vsel %vm1297, %v1294, %v1296
        %v1303 = vadd.f32 %v1266, %v1298
        %v1304 = vadd.f32 %v1267, %v1299
        %v1305 = vadd.f32 %v1268, %v1296
        %1306 = vset.pattern.permute.xlu0 19
        %1307 = vperm.xlu0 %1306, %v534
        %v1308 = vpop.permute.xlu0 %1307
        %v1310 = vmul.f32 %v531, %v1308
        %v1311 = vmul.f32 %v532, %v1308
        %v1312 = vmul.f32 %v533, %v1308
        %1313 = vrot.lane.b32.xlu0 %v775, 42
        %v1314 = vpop.permute.xlu0 %1313
        %1315 = vrot.lane.b32.xlu0 %v779, 42
        %v1316 = vpop.permute.xlu0 %1315
        %vm1317 = vcmask 343040
        %v1318 = vsel %vm1317, %v1314, %v1316
        %v1322 = vmul.f32 %v1310, %v1314
        %v1323 = vmul.f32 %v1311, %v1318
        %v1324 = vmul.f32 %v1312, %v1316
        %1328 = vrot.lane.b32.xlu0 %v1322, 91
        %v1329 = vpop.permute.xlu0 %1328
        %1330 = vrot.lane.b32.xlu0 %v1323, 91
        %v1331 = vpop.permute.xlu0 %1330
        %1332 = vrot.lane.b32.xlu0 %v1324, 91
        %v1333 = vpop.permute.xlu0 %1332
        %vm1334 = vcmask 744448
        %v1335 = vsel %vm1334, %v1329, %v1331
        %v1336 = vsel %vm1334, %v1331, %v1333
        %v1340 = vadd.f32 %v1303, %v1335
        %v1341 = vadd.f32 %v1304, %v1336
        %v1342 = vadd.f32 %v1305, %v1333
        %1343 = vset.pattern.permute.xlu0 20
        %1344 = vperm.xlu0 %1343, %v534
        %v1345 = vpop.permute.xlu0 %1344
        %v1347 = vmul.f32 %v531, %v1345
        %v1348 = vmul.f32 %v532, %v1345
        %v1349 = vmul.f32 %v533, %v1345
        %1350 = vrot.lane.b32.xlu0 %v825, 43
        %v1351 = vpop.permute.xlu0 %1350
        %1352 = vrot.lane.b32.xlu0 %v829, 43
        %v1353 = vpop.permute.xlu0 %1352
        %vm1354 = vcmask 351232
        %v1355 = vsel %vm1354, %v1351, %v1353
        %v1359 = vmul.f32 %v1347, %v1351
        %v1360 = vmul.f32 %v1348, %v1355
        %v1361 = vmul.f32 %v1349, %v1353
        %1365 = vrot.lane.b32.xlu0 %v1359, 90
        %v1366 = vpop.permute.xlu0 %1365
        %1367 = vrot.lane.b32.xlu0 %v1360, 90
        %v1368 = vpop.permute.xlu0 %1367
        %1369 = vrot.lane.b32.xlu0 %v1361, 90
        %v1370 = vpop.permute.xlu0 %1369
        %vm1371 = vcmask 736256
        %v1372 = vsel %vm1371, %v1366, %v1368
        %v1373 = vsel %vm1371, %v1368, %v1370
        %v1377 = vadd.f32 %v1340, %v1372
        %v1378 = vadd.f32 %v1341, %v1373
        %v1379 = vadd.f32 %v1342, %v1370
        %1380 = vset.pattern.permute.xlu0 21
        %1381 = vperm.xlu0 %1380, %v534
        %v1382 = vpop.permute.xlu0 %1381
        %v1384 = vmul.f32 %v531, %v1382
        %v1385 = vmul.f32 %v532, %v1382
        %v1386 = vmul.f32 %v533, %v1382
        %1387 = vrot.lane.b32.xlu0 %v549, 53
        %v1388 = vpop.permute.xlu0 %1387
        %1389 = vrot.lane.b32.xlu0 %v553, 53
        %v1390 = vpop.permute.xlu0 %1389
        %vm1391 = vcmask 433152
        %v1392 = vsel %vm1391, %v1388, %v1390
        %v1396 = vmul.f32 %v1384, %v1388
        %v1397 = vmul.f32 %v1385, %v1392
        %v1398 = vmul.f32 %v1386, %v1390
        %1402 = vrot.lane.b32.xlu0 %v1396, 80
        %v1403 = vpop.permute.xlu0 %1402
        %1404 = vrot.lane.b32.xlu0 %v1397, 80
        %v1405 = vpop.permute.xlu0 %1404
        %1406 = vrot.lane.b32.xlu0 %v1398, 80
        %v1407 = vpop.permute.xlu0 %1406
        %vm1408 = vcmask 654336
        %v1409 = vsel %vm1408, %v1403, %v1405
        %v1410 = vsel %vm1408, %v1405, %v1407
        %v1414 = vadd.f32 %v1377, %v1409
        %v1415 = vadd.f32 %v1378, %v1410
        %v1416 = vadd.f32 %v1379, %v1407
        %1417 = vset.pattern.permute.xlu0 22
        %1418 = vperm.xlu0 %1417, %v534
        %v1419 = vpop.permute.xlu0 %1418
        %v1421 = vmul.f32 %v531, %v1419
        %v1422 = vmul.f32 %v532, %v1419
        %v1423 = vmul.f32 %v533, %v1419
        %1424 = vrot.lane.b32.xlu0 %v581, 54
        %v1425 = vpop.permute.xlu0 %1424
        %1426 = vrot.lane.b32.xlu0 %v585, 54
        %v1427 = vpop.permute.xlu0 %1426
        %vm1428 = vcmask 441344
        %v1429 = vsel %vm1428, %v1425, %v1427
        %v1433 = vmul.f32 %v1421, %v1425
        %v1434 = vmul.f32 %v1422, %v1429
        %v1435 = vmul.f32 %v1423, %v1427
        %1439 = vrot.lane.b32.xlu0 %v1433, 79
        %v1440 = vpop.permute.xlu0 %1439
        %1441 = vrot.lane.b32.xlu0 %v1434, 79
        %v1442 = vpop.permute.xlu0 %1441
        %1443 = vrot.lane.b32.xlu0 %v1435, 79
        %v1444 = vpop.permute.xlu0 %1443
        %vm1445 = vcmask 646144
        %v1446 = vsel %vm1445, %v1440, %v1442
        %v1447 = vsel %vm1445, %v1442, %v1444
        %v1451 = vadd.f32 %v1414, %v1446
        %v1452 = vadd.f32 %v1415, %v1447
        %v1453 = vadd.f32 %v1416, %v1444
        %1454 = vset.pattern.permute.xlu0 23
        %1455 = vperm.xlu0 %1454, %v534
        %v1456 = vpop.permute.xlu0 %1455
        %v1458 = vmul.f32 %v531, %v1456
        %v1459 = vmul.f32 %v532, %v1456
        %v1460 = vmul.f32 %v533, %v1456
        %1461 = vrot.lane.b32.xlu0 %v631, 55
        %v1462 = vpop.permute.xlu0 %1461
        %1463 = vrot.lane.b32.xlu0 %v635, 55
        %v1464 = vpop.permute.xlu0 %1463
        %vm1465 = vcmask 449536
        %v1466 = vsel %vm1465, %v1462, %v1464
        %v1470 = vmul.f32 %v1458, %v1462
        %v1471 = vmul.f32 %v1459, %v1466
        %v1472 = vmul.f32 %v1460, %v1464
        %1476 = vrot.lane.b32.xlu0 %v1470, 78
        %v1477 = vpop.permute.xlu0 %1476
        %1478 = vrot.lane.b32.xlu0 %v1471, 78
        %v1479 = vpop.permute.xlu0 %1478
        %1480 = vrot.lane.b32.xlu0 %v1472, 78
        %v1481 = vpop.permute.xlu0 %1480
        %vm1482 = vcmask 637952
        %v1483 = vsel %vm1482, %v1477, %v1479
        %v1484 = vsel %vm1482, %v1479, %v1481
        %v1488 = vadd.f32 %v1451, %v1483
        %v1489 = vadd.f32 %v1452, %v1484
        %v1490 = vadd.f32 %v1453, %v1481
        %1491 = vset.pattern.permute.xlu0 24
        %1492 = vperm.xlu0 %1491, %v534
        %v1493 = vpop.permute.xlu0 %1492
        %v1495 = vmul.f32 %v531, %v1493
        %v1496 = vmul.f32 %v532, %v1493
        %v1497 = vmul.f32 %v533, %v1493
        %1498 = vrot.lane.b32.xlu0 %v678, 56
        %v1499 = vpop.permute.xlu0 %1498
        %1500 = vrot.lane.b32.xlu0 %v682, 56
        %v1501 = vpop.permute.xlu0 %1500
        %v1502 = vsel %vm513, %v1499, %v1501
        %v1506 = vmul.f32 %v1495, %v1499
        %v1507 = vmul.f32 %v1496, %v1502
        %v1508 = vmul.f32 %v1497, %v1501
        %1512 = vrot.lane.b32.xlu0 %v1506, 77
        %v1513 = vpop.permute.xlu0 %1512
        %1514 = vrot.lane.b32.xlu0 %v1507, 77
        %v1515 = vpop.permute.xlu0 %1514
        %1516 = vrot.lane.b32.xlu0 %v1508, 77
        %v1517 = vpop.permute.xlu0 %1516
        %vm1518 = vcmask 629760
        %v1519 = vsel %vm1518, %v1513, %v1515
        %v1520 = vsel %vm1518, %v1515, %v1517
        %v1524 = vadd.f32 %v1488, %v1519
        %v1525 = vadd.f32 %v1489, %v1520
        %v1526 = vadd.f32 %v1490, %v1517
        %1527 = vset.pattern.permute.xlu0 25
        %1528 = vperm.xlu0 %1527, %v534
        %v1529 = vpop.permute.xlu0 %1528
        %v1531 = vmul.f32 %v531, %v1529
        %v1532 = vmul.f32 %v532, %v1529
        %v1533 = vmul.f32 %v533, %v1529
        %1534 = vrot.lane.b32.xlu0 %v728, 57
        %v1535 = vpop.permute.xlu0 %1534
        %1536 = vrot.lane.b32.xlu0 %v732, 57
        %v1537 = vpop.permute.xlu0 %1536
        %vm1538 = vcmask 465920
        %v1539 = vsel %vm1538, %v1535, %v1537
        %v1543 = vmul.f32 %v1531, %v1535
        %v1544 = vmul.f32 %v1532, %v1539
        %v1545 = vmul.f32 %v1533, %v1537
        %1549 = vrot.lane.b32.xlu0 %v1543, 76
        %v1550 = vpop.permute.xlu0 %1549
        %1551 = vrot.lane.b32.xlu0 %v1544, 76
        %v1552 = vpop.permute.xlu0 %1551
        %1553 = vrot.lane.b32.xlu0 %v1545, 76
        %v1554 = vpop.permute.xlu0 %1553
        %vm1555 = vcmask 621568
        %v1556 = vsel %vm1555, %v1550, %v1552
        %v1557 = vsel %vm1555, %v1552, %v1554
        %v1561 = vadd.f32 %v1524, %v1556
        %v1562 = vadd.f32 %v1525, %v1557
        %v1563 = vadd.f32 %v1526, %v1554
        %1564 = vset.pattern.permute.xlu0 26
        %1565 = vperm.xlu0 %1564, %v534
        %v1566 = vpop.permute.xlu0 %1565
        %v1568 = vmul.f32 %v531, %v1566
        %v1569 = vmul.f32 %v532, %v1566
        %v1570 = vmul.f32 %v533, %v1566
        %1571 = vrot.lane.b32.xlu0 %v775, 58
        %v1572 = vpop.permute.xlu0 %1571
        %1573 = vrot.lane.b32.xlu0 %v779, 58
        %v1574 = vpop.permute.xlu0 %1573
        %vm1575 = vcmask 474112
        %v1576 = vsel %vm1575, %v1572, %v1574
        %v1580 = vmul.f32 %v1568, %v1572
        %v1581 = vmul.f32 %v1569, %v1576
        %v1582 = vmul.f32 %v1570, %v1574
        %1586 = vrot.lane.b32.xlu0 %v1580, 75
        %v1587 = vpop.permute.xlu0 %1586
        %1588 = vrot.lane.b32.xlu0 %v1581, 75
        %v1589 = vpop.permute.xlu0 %1588
        %1590 = vrot.lane.b32.xlu0 %v1582, 75
        %v1591 = vpop.permute.xlu0 %1590
        %vm1592 = vcmask 613376
        %v1593 = vsel %vm1592, %v1587, %v1589
        %v1594 = vsel %vm1592, %v1589, %v1591
        %v1598 = vadd.f32 %v1561, %v1593
        %v1599 = vadd.f32 %v1562, %v1594
        %v1600 = vadd.f32 %v1563, %v1591
        %1601 = vset.pattern.permute.xlu0 27
        %1602 = vperm.xlu0 %1601, %v534
        %v1603 = vpop.permute.xlu0 %1602
        %v1605 = vmul.f32 %v531, %v1603
        %v1606 = vmul.f32 %v532, %v1603
        %v1607 = vmul.f32 %v533, %v1603
        %1608 = vrot.lane.b32.xlu0 %v825, 59
        %v1609 = vpop.permute.xlu0 %1608
        %1610 = vrot.lane.b32.xlu0 %v829, 59
        %v1611 = vpop.permute.xlu0 %1610
        %vm1612 = vcmask 482304
        %v1613 = vsel %vm1612, %v1609, %v1611
        %v1617 = vmul.f32 %v1605, %v1609
        %v1618 = vmul.f32 %v1606, %v1613
        %v1619 = vmul.f32 %v1607, %v1611
        %1623 = vrot.lane.b32.xlu0 %v1617, 74
        %v1624 = vpop.permute.xlu0 %1623
        %1625 = vrot.lane.b32.xlu0 %v1618, 74
        %v1626 = vpop.permute.xlu0 %1625
        %1627 = vrot.lane.b32.xlu0 %v1619, 74
        %v1628 = vpop.permute.xlu0 %1627
        %vm1629 = vcmask 605184
        %v1630 = vsel %vm1629, %v1624, %v1626
        %v1631 = vsel %vm1629, %v1626, %v1628
        %v1635 = vadd.f32 %v1598, %v1630
        %v1636 = vadd.f32 %v1599, %v1631
        %v1637 = vadd.f32 %v1600, %v1628
        %1638 = vset.pattern.permute.xlu0 28
        %1639 = vperm.xlu0 %1638, %v534
        %v1640 = vpop.permute.xlu0 %1639
        %v1642 = vmul.f32 %v531, %v1640
        %v1643 = vmul.f32 %v532, %v1640
        %v1644 = vmul.f32 %v533, %v1640
        %1645 = vrot.lane.b32.xlu0 %v549, 69
        %v1646 = vpop.permute.xlu0 %1645
        %1647 = vrot.lane.b32.xlu0 %v553, 69
        %v1648 = vpop.permute.xlu0 %1647
        %vm1649 = vcmask 564224
        %v1650 = vsel %vm1649, %v1646, %v1648
        %v1654 = vmul.f32 %v1642, %v1646
        %v1655 = vmul.f32 %v1643, %v1650
        %v1656 = vmul.f32 %v1644, %v1648
        %1660 = vrot.lane.b32.xlu0 %v1654, 64
        %v1661 = vpop.permute.xlu0 %1660
        %1662 = vrot.lane.b32.xlu0 %v1655, 64
        %v1663 = vpop.permute.xlu0 %1662
        %1664 = vrot.lane.b32.xlu0 %v1656, 64
        %v1665 = vpop.permute.xlu0 %1664
        %vm1666 = vcmask 523264
        %v1667 = vsel %vm1666, %v1661, %v1663
        %v1668 = vsel %vm1666, %v1663, %v1665
        %v1672 = vadd.f32 %v1635, %v1667
        %v1673 = vadd.f32 %v1636, %v1668
        %v1674 = vadd.f32 %v1637, %v1665
        %1675 = vset.pattern.permute.xlu0 29
        %1676 = vperm.xlu0 %1675, %v534
        %v1677 = vpop.permute.xlu0 %1676
        %v1679 = vmul.f32 %v531, %v1677
        %v1680 = vmul.f32 %v532, %v1677
        %v1681 = vmul.f32 %v533, %v1677
        %1682 = vrot.lane.b32.xlu0 %v581, 70
        %v1683 = vpop.permute.xlu0 %1682
        %1684 = vrot.lane.b32.xlu0 %v585, 70
        %v1685 = vpop.permute.xlu0 %1684
        %vm1686 = vcmask 572416
        %v1687 = vsel %vm1686, %v1683, %v1685
        %v1691 = vmul.f32 %v1679, %v1683
        %v1692 = vmul.f32 %v1680, %v1687
        %v1693 = vmul.f32 %v1681, %v1685
        %1697 = vrot.lane.b32.xlu0 %v1691, 63
        %v1698 = vpop.permute.xlu0 %1697
        %1699 = vrot.lane.b32.xlu0 %v1692, 63
        %v1700 = vpop.permute.xlu0 %1699
        %1701 = vrot.lane.b32.xlu0 %v1693, 63
        %v1702 = vpop.permute.xlu0 %1701
        %vm1703 = vcmask 515072
        %v1704 = vsel %vm1703, %v1698, %v1700
        %v1705 = vsel %vm1703, %v1700, %v1702
        %v1709 = vadd.f32 %v1672, %v1704
        %v1710 = vadd.f32 %v1673, %v1705
        %v1711 = vadd.f32 %v1674, %v1702
        %1712 = vset.pattern.permute.xlu0 30
        %1713 = vperm.xlu0 %1712, %v534
        %v1714 = vpop.permute.xlu0 %1713
        %v1716 = vmul.f32 %v531, %v1714
        %v1717 = vmul.f32 %v532, %v1714
        %v1718 = vmul.f32 %v533, %v1714
        %1719 = vrot.lane.b32.xlu0 %v631, 71
        %v1720 = vpop.permute.xlu0 %1719
        %1721 = vrot.lane.b32.xlu0 %v635, 71
        %v1722 = vpop.permute.xlu0 %1721
        %vm1723 = vcmask 580608
        %v1724 = vsel %vm1723, %v1720, %v1722
        %v1728 = vmul.f32 %v1716, %v1720
        %v1729 = vmul.f32 %v1717, %v1724
        %v1730 = vmul.f32 %v1718, %v1722
        %1734 = vrot.lane.b32.xlu0 %v1728, 62
        %v1735 = vpop.permute.xlu0 %1734
        %1736 = vrot.lane.b32.xlu0 %v1729, 62
        %v1737 = vpop.permute.xlu0 %1736
        %1738 = vrot.lane.b32.xlu0 %v1730, 62
        %v1739 = vpop.permute.xlu0 %1738
        %vm1740 = vcmask 506880
        %v1741 = vsel %vm1740, %v1735, %v1737
        %v1742 = vsel %vm1740, %v1737, %v1739
        %v1746 = vadd.f32 %v1709, %v1741
        %v1747 = vadd.f32 %v1710, %v1742
        %v1748 = vadd.f32 %v1711, %v1739
        %1749 = vset.pattern.permute.xlu0 31
        %1750 = vperm.xlu0 %1749, %v534
        %v1751 = vpop.permute.xlu0 %1750
        %v1753 = vmul.f32 %v531, %v1751
        %v1754 = vmul.f32 %v532, %v1751
        %v1755 = vmul.f32 %v533, %v1751
        %1756 = vrot.lane.b32.xlu0 %v678, 72
        %v1757 = vpop.permute.xlu0 %1756
        %1758 = vrot.lane.b32.xlu0 %v682, 72
        %v1759 = vpop.permute.xlu0 %1758
        %vm1760 = vcmask 588800
        %v1761 = vsel %vm1760, %v1757, %v1759
        %v1765 = vmul.f32 %v1753, %v1757
        %v1766 = vmul.f32 %v1754, %v1761
        %v1767 = vmul.f32 %v1755, %v1759
        %1771 = vrot.lane.b32.xlu0 %v1765, 61
        %v1772 = vpop.permute.xlu0 %1771
        %1773 = vrot.lane.b32.xlu0 %v1766, 61
        %v1774 = vpop.permute.xlu0 %1773
        %1775 = vrot.lane.b32.xlu0 %v1767, 61
        %v1776 = vpop.permute.xlu0 %1775
        %vm1777 = vcmask 498688
        %v1778 = vsel %vm1777, %v1772, %v1774
        %v1779 = vsel %vm1777, %v1774, %v1776
        %v1783 = vadd.f32 %v1746, %v1778
        %v1784 = vadd.f32 %v1747, %v1779
        %v1785 = vadd.f32 %v1748, %v1776
        %1786 = vset.pattern.permute.xlu0 32
        %1787 = vperm.xlu0 %1786, %v534
        %v1788 = vpop.permute.xlu0 %1787
        %v1790 = vmul.f32 %v531, %v1788
        %v1791 = vmul.f32 %v532, %v1788
        %v1792 = vmul.f32 %v533, %v1788
        %1793 = vrot.lane.b32.xlu0 %v728, 73
        %v1794 = vpop.permute.xlu0 %1793
        %1795 = vrot.lane.b32.xlu0 %v732, 73
        %v1796 = vpop.permute.xlu0 %1795
        %vm1797 = vcmask 596992
        %v1798 = vsel %vm1797, %v1794, %v1796
        %v1802 = vmul.f32 %v1790, %v1794
        %v1803 = vmul.f32 %v1791, %v1798
        %v1804 = vmul.f32 %v1792, %v1796
        %1808 = vrot.lane.b32.xlu0 %v1802, 60
        %v1809 = vpop.permute.xlu0 %1808
        %1810 = vrot.lane.b32.xlu0 %v1803, 60
        %v1811 = vpop.permute.xlu0 %1810
        %1812 = vrot.lane.b32.xlu0 %v1804, 60
        %v1813 = vpop.permute.xlu0 %1812
        %vm1814 = vcmask 490496
        %v1815 = vsel %vm1814, %v1809, %v1811
        %v1816 = vsel %vm1814, %v1811, %v1813
        %v1820 = vadd.f32 %v1783, %v1815
        %v1821 = vadd.f32 %v1784, %v1816
        %v1822 = vadd.f32 %v1785, %v1813
        %1823 = vset.pattern.permute.xlu0 33
        %1824 = vperm.xlu0 %1823, %v534
        %v1825 = vpop.permute.xlu0 %1824
        %v1827 = vmul.f32 %v531, %v1825
        %v1828 = vmul.f32 %v532, %v1825
        %v1829 = vmul.f32 %v533, %v1825
        %1830 = vrot.lane.b32.xlu0 %v775, 74
        %v1831 = vpop.permute.xlu0 %1830
        %1832 = vrot.lane.b32.xlu0 %v779, 74
        %v1833 = vpop.permute.xlu0 %1832
        %v1834 = vsel %vm1629, %v1831, %v1833
        %v1838 = vmul.f32 %v1827, %v1831
        %v1839 = vmul.f32 %v1828, %v1834
        %v1840 = vmul.f32 %v1829, %v1833
        %1844 = vrot.lane.b32.xlu0 %v1838, 59
        %v1845 = vpop.permute.xlu0 %1844
        %1846 = vrot.lane.b32.xlu0 %v1839, 59
        %v1847 = vpop.permute.xlu0 %1846
        %1848 = vrot.lane.b32.xlu0 %v1840, 59
        %v1849 = vpop.permute.xlu0 %1848
        %v1850 = vsel %vm1612, %v1845, %v1847
        %v1851 = vsel %vm1612, %v1847, %v1849
        %v1855 = vadd.f32 %v1820, %v1850
        %v1856 = vadd.f32 %v1821, %v1851
        %v1857 = vadd.f32 %v1822, %v1849
        %1858 = vset.pattern.permute.xlu0 34
        %1859 = vperm.xlu0 %1858, %v534
        %v1860 = vpop.permute.xlu0 %1859
        %v1862 = vmul.f32 %v531, %v1860
        %v1863 = vmul.f32 %v532, %v1860
        %v1864 = vmul.f32 %v533, %v1860
        %1865 = vrot.lane.b32.xlu0 %v825, 75
        %v1866 = vpop.permute.xlu0 %1865
        %1867 = vrot.lane.b32.xlu0 %v829, 75
        %v1868 = vpop.permute.xlu0 %1867
        %v1869 = vsel %vm1592, %v1866, %v1868
        %v1873 = vmul.f32 %v1862, %v1866
        %v1874 = vmul.f32 %v1863, %v1869
        %v1875 = vmul.f32 %v1864, %v1868
        %1879 = vrot.lane.b32.xlu0 %v1873, 58
        %v1880 = vpop.permute.xlu0 %1879
        %1881 = vrot.lane.b32.xlu0 %v1874, 58
        %v1882 = vpop.permute.xlu0 %1881
        %1883 = vrot.lane.b32.xlu0 %v1875, 58
        %v1884 = vpop.permute.xlu0 %1883
        %v1885 = vsel %vm1575, %v1880, %v1882
        %v1886 = vsel %vm1575, %v1882, %v1884
        %v1890 = vadd.f32 %v1855, %v1885
        %v1891 = vadd.f32 %v1856, %v1886
        %v1892 = vadd.f32 %v1857, %v1884
        %1893 = vset.pattern.permute.xlu0 35
        %1894 = vperm.xlu0 %1893, %v534
        %v1895 = vpop.permute.xlu0 %1894
        %v1897 = vmul.f32 %v531, %v1895
        %v1898 = vmul.f32 %v532, %v1895
        %v1899 = vmul.f32 %v533, %v1895
        %1900 = vrot.lane.b32.xlu0 %v549, 85
        %v1901 = vpop.permute.xlu0 %1900
        %1902 = vrot.lane.b32.xlu0 %v553, 85
        %v1903 = vpop.permute.xlu0 %1902
        %vm1904 = vcmask 695296
        %v1905 = vsel %vm1904, %v1901, %v1903
        %v1909 = vmul.f32 %v1897, %v1901
        %v1910 = vmul.f32 %v1898, %v1905
        %v1911 = vmul.f32 %v1899, %v1903
        %1915 = vrot.lane.b32.xlu0 %v1909, 48
        %v1916 = vpop.permute.xlu0 %1915
        %1917 = vrot.lane.b32.xlu0 %v1910, 48
        %v1918 = vpop.permute.xlu0 %1917
        %1919 = vrot.lane.b32.xlu0 %v1911, 48
        %v1920 = vpop.permute.xlu0 %1919
        %vm1921 = vcmask 392192
        %v1922 = vsel %vm1921, %v1916, %v1918
        %v1923 = vsel %vm1921, %v1918, %v1920
        %v1927 = vadd.f32 %v1890, %v1922
        %v1928 = vadd.f32 %v1891, %v1923
        %v1929 = vadd.f32 %v1892, %v1920
        %1930 = vset.pattern.permute.xlu0 36
        %1931 = vperm.xlu0 %1930, %v534
        %v1932 = vpop.permute.xlu0 %1931
        %v1934 = vmul.f32 %v531, %v1932
        %v1935 = vmul.f32 %v532, %v1932
        %v1936 = vmul.f32 %v533, %v1932
        %1937 = vrot.lane.b32.xlu0 %v581, 86
        %v1938 = vpop.permute.xlu0 %1937
        %1939 = vrot.lane.b32.xlu0 %v585, 86
        %v1940 = vpop.permute.xlu0 %1939
        %vm1941 = vcmask 703488
        %v1942 = vsel %vm1941, %v1938, %v1940
        %v1946 = vmul.f32 %v1934, %v1938
        %v1947 = vmul.f32 %v1935, %v1942
        %v1948 = vmul.f32 %v1936, %v1940
        %1952 = vrot.lane.b32.xlu0 %v1946, 47
        %v1953 = vpop.permute.xlu0 %1952
        %1954 = vrot.lane.b32.xlu0 %v1947, 47
        %v1955 = vpop.permute.xlu0 %1954
        %1956 = vrot.lane.b32.xlu0 %v1948, 47
        %v1957 = vpop.permute.xlu0 %1956
        %vm1958 = vcmask 384000
        %v1959 = vsel %vm1958, %v1953, %v1955
        %v1960 = vsel %vm1958, %v1955, %v1957
        %v1964 = vadd.f32 %v1927, %v1959
        %v1965 = vadd.f32 %v1928, %v1960
        %v1966 = vadd.f32 %v1929, %v1957
        %1967 = vset.pattern.permute.xlu0 37
        %1968 = vperm.xlu0 %1967, %v534
        %v1969 = vpop.permute.xlu0 %1968
        %v1971 = vmul.f32 %v531, %v1969
        %v1972 = vmul.f32 %v532, %v1969
        %v1973 = vmul.f32 %v533, %v1969
        %1974 = vrot.lane.b32.xlu0 %v631, 87
        %v1975 = vpop.permute.xlu0 %1974
        %1976 = vrot.lane.b32.xlu0 %v635, 87
        %v1977 = vpop.permute.xlu0 %1976
        %vm1978 = vcmask 711680
        %v1979 = vsel %vm1978, %v1975, %v1977
        %v1983 = vmul.f32 %v1971, %v1975
        %v1984 = vmul.f32 %v1972, %v1979
        %v1985 = vmul.f32 %v1973, %v1977
        %1989 = vrot.lane.b32.xlu0 %v1983, 46
        %v1990 = vpop.permute.xlu0 %1989
        %1991 = vrot.lane.b32.xlu0 %v1984, 46
        %v1992 = vpop.permute.xlu0 %1991
        %1993 = vrot.lane.b32.xlu0 %v1985, 46
        %v1994 = vpop.permute.xlu0 %1993
        %vm1995 = vcmask 375808
        %v1996 = vsel %vm1995, %v1990, %v1992
        %v1997 = vsel %vm1995, %v1992, %v1994
        %v2001 = vadd.f32 %v1964, %v1996
        %v2002 = vadd.f32 %v1965, %v1997
        %v2003 = vadd.f32 %v1966, %v1994
        %2004 = vset.pattern.permute.xlu0 38
        %2005 = vperm.xlu0 %2004, %v534
        %v2006 = vpop.permute.xlu0 %2005
        %v2008 = vmul.f32 %v531, %v2006
        %v2009 = vmul.f32 %v532, %v2006
        %v2010 = vmul.f32 %v533, %v2006
        %2011 = vrot.lane.b32.xlu0 %v678, 88
        %v2012 = vpop.permute.xlu0 %2011
        %2013 = vrot.lane.b32.xlu0 %v682, 88
        %v2014 = vpop.permute.xlu0 %2013
        %vm2015 = vcmask 719872
        %v2016 = vsel %vm2015, %v2012, %v2014
        %v2020 = vmul.f32 %v2008, %v2012
        %v2021 = vmul.f32 %v2009, %v2016
        %v2022 = vmul.f32 %v2010, %v2014
        %2026 = vrot.lane.b32.xlu0 %v2020, 45
        %v2027 = vpop.permute.xlu0 %2026
        %2028 = vrot.lane.b32.xlu0 %v2021, 45
        %v2029 = vpop.permute.xlu0 %2028
        %2030 = vrot.lane.b32.xlu0 %v2022, 45
        %v2031 = vpop.permute.xlu0 %2030
        %vm2032 = vcmask 367616
        %v2033 = vsel %vm2032, %v2027, %v2029
        %v2034 = vsel %vm2032, %v2029, %v2031
        %v2038 = vadd.f32 %v2001, %v2033
        %v2039 = vadd.f32 %v2002, %v2034
        %v2040 = vadd.f32 %v2003, %v2031
        %2041 = vset.pattern.permute.xlu0 39
        %2042 = vperm.xlu0 %2041, %v534
        %v2043 = vpop.permute.xlu0 %2042
        %v2045 = vmul.f32 %v531, %v2043
        %v2046 = vmul.f32 %v532, %v2043
        %v2047 = vmul.f32 %v533, %v2043
        %2048 = vrot.lane.b32.xlu0 %v728, 89
        %v2049 = vpop.permute.xlu0 %2048
        %2050 = vrot.lane.b32.xlu0 %v732, 89
        %v2051 = vpop.permute.xlu0 %2050
        %vm2052 = vcmask 728064
        %v2053 = vsel %vm2052, %v2049, %v2051
        %v2057 = vmul.f32 %v2045, %v2049
        %v2058 = vmul.f32 %v2046, %v2053
        %v2059 = vmul.f32 %v2047, %v2051
        %2063 = vrot.lane.b32.xlu0 %v2057, 44
        %v2064 = vpop.permute.xlu0 %2063
        %2065 = vrot.lane.b32.xlu0 %v2058, 44
        %v2066 = vpop.permute.xlu0 %2065
        %2067 = vrot.lane.b32.xlu0 %v2059, 44
        %v2068 = vpop.permute.xlu0 %2067
        %vm2069 = vcmask 359424
        %v2070 = vsel %vm2069, %v2064, %v2066
        %v2071 = vsel %vm2069, %v2066, %v2068
        %v2075 = vadd.f32 %v2038, %v2070
        %v2076 = vadd.f32 %v2039, %v2071
        %v2077 = vadd.f32 %v2040, %v2068
        %2078 = vset.pattern.permute.xlu0 40
        %2079 = vperm.xlu0 %2078, %v534
        %v2080 = vpop.permute.xlu0 %2079
        %v2082 = vmul.f32 %v531, %v2080
        %v2083 = vmul.f32 %v532, %v2080
        %v2084 = vmul.f32 %v533, %v2080
        %2085 = vrot.lane.b32.xlu0 %v775, 90
        %v2086 = vpop.permute.xlu0 %2085
        %2087 = vrot.lane.b32.xlu0 %v779, 90
        %v2088 = vpop.permute.xlu0 %2087
        %v2089 = vsel %vm1371, %v2086, %v2088
        %v2093 = vmul.f32 %v2082, %v2086
        %v2094 = vmul.f32 %v2083, %v2089
        %v2095 = vmul.f32 %v2084, %v2088
        %2099 = vrot.lane.b32.xlu0 %v2093, 43
        %v2100 = vpop.permute.xlu0 %2099
        %2101 = vrot.lane.b32.xlu0 %v2094, 43
        %v2102 = vpop.permute.xlu0 %2101
        %2103 = vrot.lane.b32.xlu0 %v2095, 43
        %v2104 = vpop.permute.xlu0 %2103
        %v2105 = vsel %vm1354, %v2100, %v2102
        %v2106 = vsel %vm1354, %v2102, %v2104
        %v2110 = vadd.f32 %v2075, %v2105
        %v2111 = vadd.f32 %v2076, %v2106
        %v2112 = vadd.f32 %v2077, %v2104
        %2113 = vset.pattern.permute.xlu0 41
        %2114 = vperm.xlu0 %2113, %v534
        %v2115 = vpop.permute.xlu0 %2114
        %v2117 = vmul.f32 %v531, %v2115
        %v2118 = vmul.f32 %v532, %v2115
        %v2119 = vmul.f32 %v533, %v2115
        %2120 = vrot.lane.b32.xlu0 %v825, 91
        %v2121 = vpop.permute.xlu0 %2120
        %2122 = vrot.lane.b32.xlu0 %v829, 91
        %v2123 = vpop.permute.xlu0 %2122
        %v2124 = vsel %vm1334, %v2121, %v2123
        %v2128 = vmul.f32 %v2117, %v2121
        %v2129 = vmul.f32 %v2118, %v2124
        %v2130 = vmul.f32 %v2119, %v2123
        %2134 = vrot.lane.b32.xlu0 %v2128, 42
        %v2135 = vpop.permute.xlu0 %2134
        %2136 = vrot.lane.b32.xlu0 %v2129, 42
        %v2137 = vpop.permute.xlu0 %2136
        %2138 = vrot.lane.b32.xlu0 %v2130, 42
        %v2139 = vpop.permute.xlu0 %2138
        %v2140 = vsel %vm1317, %v2135, %v2137
        %v2141 = vsel %vm1317, %v2137, %v2139
        %v2145 = vadd.f32 %v2110, %v2140
        %v2146 = vadd.f32 %v2111, %v2141
        %v2147 = vadd.f32 %v2112, %v2139
        %2148 = vset.pattern.permute.xlu0 42
        %2149 = vperm.xlu0 %2148, %v534
        %v2150 = vpop.permute.xlu0 %2149
        %v2152 = vmul.f32 %v531, %v2150
        %v2153 = vmul.f32 %v532, %v2150
        %v2154 = vmul.f32 %v533, %v2150
        %2155 = vrot.lane.b32.xlu0 %v549, 101
        %v2156 = vpop.permute.xlu0 %2155
        %2157 = vrot.lane.b32.xlu0 %v553, 101
        %v2158 = vpop.permute.xlu0 %2157
        %vm2159 = vcmask 826368
        %v2160 = vsel %vm2159, %v2156, %v2158
        %v2164 = vmul.f32 %v2152, %v2156
        %v2165 = vmul.f32 %v2153, %v2160
        %v2166 = vmul.f32 %v2154, %v2158
        %2170 = vrot.lane.b32.xlu0 %v2164, 32
        %v2171 = vpop.permute.xlu0 %2170
        %2172 = vrot.lane.b32.xlu0 %v2165, 32
        %v2173 = vpop.permute.xlu0 %2172
        %2174 = vrot.lane.b32.xlu0 %v2166, 32
        %v2175 = vpop.permute.xlu0 %2174
        %vm2176 = vcmask 261120
        %v2177 = vsel %vm2176, %v2171, %v2173
        %v2178 = vsel %vm2176, %v2173, %v2175
        %v2182 = vadd.f32 %v2145, %v2177
        %v2183 = vadd.f32 %v2146, %v2178
        %v2184 = vadd.f32 %v2147, %v2175
        %2185 = vset.pattern.permute.xlu0 43
        %2186 = vperm.xlu0 %2185, %v534
        %v2187 = vpop.permute.xlu0 %2186
        %v2189 = vmul.f32 %v531, %v2187
        %v2190 = vmul.f32 %v532, %v2187
        %v2191 = vmul.f32 %v533, %v2187
        %2192 = vrot.lane.b32.xlu0 %v581, 102
        %v2193 = vpop.permute.xlu0 %2192
        %2194 = vrot.lane.b32.xlu0 %v585, 102
        %v2195 = vpop.permute.xlu0 %2194
        %vm2196 = vcmask 834560
        %v2197 = vsel %vm2196, %v2193, %v2195
        %v2201 = vmul.f32 %v2189, %v2193
        %v2202 = vmul.f32 %v2190, %v2197
        %v2203 = vmul.f32 %v2191, %v2195
        %2207 = vrot.lane.b32.xlu0 %v2201, 31
        %v2208 = vpop.permute.xlu0 %2207
        %2209 = vrot.lane.b32.xlu0 %v2202, 31
        %v2210 = vpop.permute.xlu0 %2209
        %2211 = vrot.lane.b32.xlu0 %v2203, 31
        %v2212 = vpop.permute.xlu0 %2211
        %vm2213 = vcmask 252928
        %v2214 = vsel %vm2213, %v2208, %v2210
        %v2215 = vsel %vm2213, %v2210, %v2212
        %v2219 = vadd.f32 %v2182, %v2214
        %v2220 = vadd.f32 %v2183, %v2215
        %v2221 = vadd.f32 %v2184, %v2212
        %2222 = vset.pattern.permute.xlu0 44
        %2223 = vperm.xlu0 %2222, %v534
        %v2224 = vpop.permute.xlu0 %2223
        %v2226 = vmul.f32 %v531, %v2224
        %v2227 = vmul.f32 %v532, %v2224
        %v2228 = vmul.f32 %v533, %v2224
        %2229 = vrot.lane.b32.xlu0 %v631, 103
        %v2230 = vpop.permute.xlu0 %2229
        %2231 = vrot.lane.b32.xlu0 %v635, 103
        %v2232 = vpop.permute.xlu0 %2231
        %vm2233 = vcmask 842752
        %v2234 = vsel %vm2233, %v2230, %v2232
        %v2238 = vmul.f32 %v2226, %v2230
        %v2239 = vmul.f32 %v2227, %v2234
        %v2240 = vmul.f32 %v2228, %v2232
        %2244 = vrot.lane.b32.xlu0 %v2238, 30
        %v2245 = vpop.permute.xlu0 %2244
        %2246 = vrot.lane.b32.xlu0 %v2239, 30
        %v2247 = vpop.permute.xlu0 %2246
        %2248 = vrot.lane.b32.xlu0 %v2240, 30
        %v2249 = vpop.permute.xlu0 %2248
        %vm2250 = vcmask 244736
        %v2251 = vsel %vm2250, %v2245, %v2247
        %v2252 = vsel %vm2250, %v2247, %v2249
        %v2256 = vadd.f32 %v2219, %v2251
        %v2257 = vadd.f32 %v2220, %v2252
        %v2258 = vadd.f32 %v2221, %v2249
        %2259 = vset.pattern.permute.xlu0 45
        %2260 = vperm.xlu0 %2259, %v534
        %v2261 = vpop.permute.xlu0 %2260
        %v2263 = vmul.f32 %v531, %v2261
        %v2264 = vmul.f32 %v532, %v2261
        %v2265 = vmul.f32 %v533, %v2261
        %2266 = vrot.lane.b32.xlu0 %v678, 104
        %v2267 = vpop.permute.xlu0 %2266
        %2268 = vrot.lane.b32.xlu0 %v682, 104
        %v2269 = vpop.permute.xlu0 %2268
        %vm2270 = vcmask 850944
        %v2271 = vsel %vm2270, %v2267, %v2269
        %v2275 = vmul.f32 %v2263, %v2267
        %v2276 = vmul.f32 %v2264, %v2271
        %v2277 = vmul.f32 %v2265, %v2269
        %2281 = vrot.lane.b32.xlu0 %v2275, 29
        %v2282 = vpop.permute.xlu0 %2281
        %2283 = vrot.lane.b32.xlu0 %v2276, 29
        %v2284 = vpop.permute.xlu0 %2283
        %2285 = vrot.lane.b32.xlu0 %v2277, 29
        %v2286 = vpop.permute.xlu0 %2285
        %vm2287 = vcmask 236544
        %v2288 = vsel %vm2287, %v2282, %v2284
        %v2289 = vsel %vm2287, %v2284, %v2286
        %v2293 = vadd.f32 %v2256, %v2288
        %v2294 = vadd.f32 %v2257, %v2289
        %v2295 = vadd.f32 %v2258, %v2286
        %2296 = vset.pattern.permute.xlu0 46
        %2297 = vperm.xlu0 %2296, %v534
        %v2298 = vpop.permute.xlu0 %2297
        %v2300 = vmul.f32 %v531, %v2298
        %v2301 = vmul.f32 %v532, %v2298
        %v2302 = vmul.f32 %v533, %v2298
        %2303 = vrot.lane.b32.xlu0 %v728, 105
        %v2304 = vpop.permute.xlu0 %2303
        %2305 = vrot.lane.b32.xlu0 %v732, 105
        %v2306 = vpop.permute.xlu0 %2305
        %vm2307 = vcmask 859136
        %v2308 = vsel %vm2307, %v2304, %v2306
        %v2312 = vmul.f32 %v2300, %v2304
        %v2313 = vmul.f32 %v2301, %v2308
        %v2314 = vmul.f32 %v2302, %v2306
        %2318 = vrot.lane.b32.xlu0 %v2312, 28
        %v2319 = vpop.permute.xlu0 %2318
        %2320 = vrot.lane.b32.xlu0 %v2313, 28
        %v2321 = vpop.permute.xlu0 %2320
        %2322 = vrot.lane.b32.xlu0 %v2314, 28
        %v2323 = vpop.permute.xlu0 %2322
        %vm2324 = vcmask 228352
        %v2325 = vsel %vm2324, %v2319, %v2321
        %v2326 = vsel %vm2324, %v2321, %v2323
        %v2330 = vadd.f32 %v2293, %v2325
        %v2331 = vadd.f32 %v2294, %v2326
        %v2332 = vadd.f32 %v2295, %v2323
        %2333 = vset.pattern.permute.xlu0 47
        %2334 = vperm.xlu0 %2333, %v534
        %v2335 = vpop.permute.xlu0 %2334
        %v2337 = vmul.f32 %v531, %v2335
        %v2338 = vmul.f32 %v532, %v2335
        %v2339 = vmul.f32 %v533, %v2335
        %2340 = vrot.lane.b32.xlu0 %v775, 106
        %v2341 = vpop.permute.xlu0 %2340
        %2342 = vrot.lane.b32.xlu0 %v779, 106
        %v2343 = vpop.permute.xlu0 %2342
        %v2344 = vsel %vm1112, %v2341, %v2343
        %v2348 = vmul.f32 %v2337, %v2341
        %v2349 = vmul.f32 %v2338, %v2344
        %v2350 = vmul.f32 %v2339, %v2343
        %2354 = vrot.lane.b32.xlu0 %v2348, 27
        %v2355 = vpop.permute.xlu0 %2354
        %2356 = vrot.lane.b32.xlu0 %v2349, 27
        %v2357 = vpop.permute.xlu0 %2356
        %2358 = vrot.lane.b32.xlu0 %v2350, 27
        %v2359 = vpop.permute.xlu0 %2358
        %v2360 = vsel %vm1095, %v2355, %v2357
        %v2361 = vsel %vm1095, %v2357, %v2359
        %v2365 = vadd.f32 %v2330, %v2360
        %v2366 = vadd.f32 %v2331, %v2361
        %v2367 = vadd.f32 %v2332, %v2359
        %2368 = vset.pattern.permute.xlu0 48
        %2369 = vperm.xlu0 %2368, %v534
        %v2370 = vpop.permute.xlu0 %2369
        %v2372 = vmul.f32 %v531, %v2370
        %v2373 = vmul.f32 %v532, %v2370
        %v2374 = vmul.f32 %v533, %v2370
        %2375 = vrot.lane.b32.xlu0 %v825, 107
        %v2376 = vpop.permute.xlu0 %2375
        %2377 = vrot.lane.b32.xlu0 %v829, 107
        %v2378 = vpop.permute.xlu0 %2377
        %v2379 = vsel %vm1075, %v2376, %v2378
        %v2383 = vmul.f32 %v2372, %v2376
        %v2384 = vmul.f32 %v2373, %v2379
        %v2385 = vmul.f32 %v2374, %v2378
        %2389 = vrot.lane.b32.xlu0 %v2383, 26
        %v2390 = vpop.permute.xlu0 %2389
        %2391 = vrot.lane.b32.xlu0 %v2384, 26
        %v2392 = vpop.permute.xlu0 %2391
        %2393 = vrot.lane.b32.xlu0 %v2385, 26
        %v2394 = vpop.permute.xlu0 %2393
        %v2395 = vsel %vm1058, %v2390, %v2392
        %v2396 = vsel %vm1058, %v2392, %v2394
        %v2400 = vadd.f32 %v2365, %v2395
        %v2401 = vadd.f32 %v2366, %v2396
        %v2402 = vadd.f32 %v2367, %v2394
        %v2403 = vld [vmem:[%s3] sm:$0xff]
        %2405 = vset.pattern.permute.xlu0 0
        %2406 = vperm.xlu0 %2405, %v2403
        %v2407 = vpop.permute.xlu0 %2406
        %v2409 = vadd.f32 %v2400, %v2407
        %v2410 = vadd.f32 %v2401, %v2407
        %v2411 = vadd.f32 %v2402, %v2407
        %v2412 = vld [vmem:[%s509] sm:$0xff]
        %2414 = vset.pattern.permute.xlu0 0
        %2415 = vperm.xlu0 %2414, %v2412
        %v2416 = vpop.permute.xlu0 %2415
        %v2418 = vadd.f32 %v2409, %v2416
        %v2419 = vadd.f32 %v2410, %v2416
        %v2420 = vadd.f32 %v2411, %v2416
        %v2421 = vld [vmem:[%s5] sm:$0xff]
        %v2422 = vld [vmem:[%s6] sm:$0xff]
        %2426 = vrot.lane.b32.xlu0 %v2418, 123
        %v2427 = vpop.permute.xlu0 %2426
        %2428 = vrot.lane.b32.xlu0 %v2419, 123
        %v2429 = vpop.permute.xlu0 %2428
        %2430 = vrot.lane.b32.xlu0 %v2420, 123
        %v2431 = vpop.permute.xlu0 %2430
        %v2432 = vsel %vm803, %v2427, %v2429
        %v2433 = vsel %vm803, %v2429, %v2431
        %v2436 = vadd.f32 %v2432, %v2433
        %2437 = vadd.xlane.f32.xlu0 %v2436
        %v2438 = vpop.xlane.xlu0 %2437
        %v2439 = vrot.slane %v2438, 4
        %v2440 = vadd.f32 %v2438, %v2439
        %v2441 = vrot.slane %v2440, 2
        %v2442 = vadd.f32 %v2440, %v2441
        %v2443 = vrot.slane %v2442, 1
        %v2444 = vadd.f32 %v2442, %v2443
        %v2445 = vrcp.pop 2048.0
        %v2446 = vmul.f32 %v2444, %v2445
        %v2447 = vsub.f32 %v2418, %v2446
        %v2448 = vsub.f32 %v2419, %v2446
        %v2449 = vsub.f32 %v2420, %v2446
        %v2450 = vmul.f32 %v2447, %v2447
        %v2451 = vmul.f32 %v2448, %v2448
        %v2452 = vmul.f32 %v2449, %v2449
        %2456 = vrot.lane.b32.xlu0 %v2450, 123
        %v2457 = vpop.permute.xlu0 %2456
        %2458 = vrot.lane.b32.xlu0 %v2451, 123
        %v2459 = vpop.permute.xlu0 %2458
        %2460 = vrot.lane.b32.xlu0 %v2452, 123
        %v2461 = vpop.permute.xlu0 %2460
        %v2462 = vsel %vm803, %v2457, %v2459
        %v2463 = vsel %vm803, %v2459, %v2461
        %v2466 = vadd.f32 %v2462, %v2463
        %2467 = vadd.xlane.f32.xlu0 %v2466
        %v2468 = vpop.xlane.xlu0 %2467
        %v2469 = vrot.slane %v2468, 4
        %v2470 = vadd.f32 %v2468, %v2469
        %v2471 = vrot.slane %v2470, 2
        %v2472 = vadd.f32 %v2470, %v2471
        %v2473 = vrot.slane %v2472, 1
        %v2474 = vadd.f32 %v2472, %v2473
        %v2475 = vmul.f32 %v2474, %v2445
        %v2476 = vadd.f32 %v2475, 1e-05
        %v2477 = vrsqrt.pop %v2476
        %v2478 = vmul.f32 %v2477, %v2421
        %2480 = vset.pattern.permute.xlu0 0
        %2481 = vperm.xlu0 %2480, %v2478
        %v2482 = vpop.permute.xlu0 %2481
        %v2484 = vmul.f32 %v2447, %v2482
        %v2485 = vmul.f32 %v2448, %v2482
        %v2486 = vmul.f32 %v2449, %v2482
        %2488 = vset.pattern.permute.xlu0 0
        %2489 = vperm.xlu0 %2488, %v2422
        %v2490 = vpop.permute.xlu0 %2489
        %v2492 = vadd.f32 %v2484, %v2490
        %v2493 = vadd.f32 %v2485, %v2490
        %v2494 = vadd.f32 %v2486, %v2490
        %v2495 = vpack.c.bf16 %v2492, %v2492
        %v2496 = vpack.c.bf16 %v2493, %v2493
        %v2497 = vpack.c.bf16 %v2494, %v2494
        %vm2498 = vcmask 191488
        %2499 = vst.msk [vmem:[#allocation3] sm:$0xf] %vm2498, 0
        %vm2500 = vcmask 388288
        %2501 = vst.msk [vmem:[#allocation3 + $0x8] sm:$0xf] %vm2500, 0
        %v2505 = vunpack.c.l.b16 %v2495
        %v2506 = vunpack.c.l.b16 %v2496
        %v2507 = vunpack.c.l.b16 %v2497
        %v2508 = vpack.c.b16 %v2506, %v2505
        %v2509 = vpack.c.b16 %v2507, %v2507
        %2510 = vrot.lane.b32.xlu0 %v2508, 19
        %v2511 = vpop.permute.xlu0 %2510
        %2512 = vrot.lane.b32.xlu0 %v2509, 19
        %v2513 = vpop.permute.xlu0 %2512
        %v2514 = vrot.slane %v2511, 4
        %vm2515 = vcmask 154624
        %v2516 = vsel %vm2515, %v2514, %v2511
        %v2517 = vsel %vm2515, %v2514, %v2513
        %vm2520 = vcmask 1043648
        %vm2521 = vcmask 1047556
        %vm2522 = vmor %vm2521, %vm2520
        %2523 = vst.msk [vmem:[#allocation3] sm:$0xff] %vm2522, %v2516
        %2524 = vst.msk [vmem:[#allocation3 + $0x8] sm:$0xf] %vm2498, %v2517
        %v2525 = vld [vmem:[%s7] sm:$0xf]
        %v2526 = vld [vmem:[%s7 + $0x4] sm:$0xf]
        %v2527 = vld [vmem:[%s7 + $0x8] sm:$0xf]
        %v2528 = vld [vmem:[%s7 + $0xc] sm:$0xf]
        %v2529 = vld [vmem:[#allocation3] sm:$0xff]
        %v2530 = vld [vmem:[#allocation3 + $0x8] sm:$0xf]
        %v2531 = vld [vmem:[%s4] sm:$0x22]
        %v2533 = vunpack.c.l.b16 %v2531
        %v2534 = vunpack.c.h.b16 %v2531
        %v2535 = vpack.c.b16 %v2533, %v2533
        %v2536 = vpack.c.b16 %v2534, %v2534
        %v2538 = vpack.i.b16 %v2535, %v2535
        %v2540 = vlaneseq
        %v2541 = vshrl.u32 %v2540, 7
        %v2542 = vsub.s32 1, %v2541
        %v2543 = vrot.slane %v2538, %v2542
        %v2545 = vpack.i.b16 %v2536, %v2536
        %v2547 = vlaneseq
        %v2548 = vshrl.u32 %v2547, 7
        %v2549 = vsub.s32 1, %v2548
        %v2550 = vrot.slane %v2545, %v2549
        %v2553 = vunpack.c.l.b16 %v2543
        %v2554 = vunpack.c.l.b16 %v2550
        %v2555 = vpack.c.b16 %v2554, %v2553
        %2556 = vrot.lane.b32.xlu0 %v2555, 7
        %v2557 = vpop.permute.xlu0 %2556
        %v2558 = vrot.slane %v2557, 4
        %vm2559 = vcmask 56320
        %v2560 = vsel %vm2559, %v2558, %v2557
        %v2563 = vmul.bf16 %v2529, %v2560
        %v2564 = vmul.bf16 %v2530, %v2558
        %v2565 = vshrl.u32 %v2535, 16
        %v2566 = vpack.i.b16 %v2565, %v2565
        %v2568 = vlaneseq
        %v2569 = vshrl.u32 %v2568, 7
        %v2570 = vsub.s32 1, %v2569
        %v2571 = vrot.slane %v2566, %v2570
        %v2572 = vshrl.u32 %v2536, 16
        %v2573 = vpack.i.b16 %v2572, %v2572
        %v2575 = vlaneseq
        %v2576 = vshrl.u32 %v2575, 7
        %v2577 = vsub.s32 1, %v2576
        %v2578 = vrot.slane %v2573, %v2577
        %v2581 = vunpack.c.l.b16 %v2571
        %v2582 = vunpack.c.l.b16 %v2578
        %v2583 = vpack.c.b16 %v2582, %v2581
        %2584 = vrot.lane.b32.xlu0 %v2583, 8
        %v2585 = vpop.permute.xlu0 %2584
        %v2586 = vrot.slane %v2585, 4
        %vm2587 = vcmask 64512
        %v2588 = vsel %vm2587, %v2586, %v2585
        %v2591 = vmul.bf16 %v2529, %v2588
        %v2592 = vmul.bf16 %v2530, %v2586
        %v2593 = vld [vmem:[%s4] sm:$0x44]
        %v2595 = vunpack.c.l.b16 %v2593
        %v2596 = vunpack.c.h.b16 %v2593
        %v2597 = vpack.c.b16 %v2595, %v2595
        %v2598 = vpack.c.b16 %v2596, %v2596
        %v2600 = vpack.i.b16 %v2597, %v2597
        %v2602 = vlaneseq
        %v2603 = vshrl.u32 %v2602, 7
        %v2604 = vsub.s32 2, %v2603
        %v2605 = vrot.slane %v2600, %v2604
        %v2607 = vpack.i.b16 %v2598, %v2598
        %v2609 = vlaneseq
        %v2610 = vshrl.u32 %v2609, 7
        %v2611 = vsub.s32 2, %v2610
        %v2612 = vrot.slane %v2607, %v2611
        %v2615 = vunpack.c.l.b16 %v2605
        %v2616 = vunpack.c.l.b16 %v2612
        %v2617 = vpack.c.b16 %v2616, %v2615
        %2618 = vrot.lane.b32.xlu0 %v2617, 9
        %v2619 = vpop.permute.xlu0 %2618
        %v2620 = vrot.slane %v2619, 4
        %vm2621 = vcmask 72704
        %v2622 = vsel %vm2621, %v2620, %v2619
        %v2625 = vmul.bf16 %v2529, %v2622
        %v2626 = vmul.bf16 %v2530, %v2620
        %2627 = vrot.lane.b32.xlu0 %v2555, 23
        %v2628 = vpop.permute.xlu0 %2627
        %v2629 = vrot.slane %v2628, 4
        %vm2630 = vcmask 187392
        %v2631 = vsel %vm2630, %v2629, %v2628
        %v2634 = vmul.bf16 %v2529, %v2631
        %v2635 = vmul.bf16 %v2530, %v2629
        %2636 = vrot.lane.b32.xlu0 %v2583, 24
        %v2637 = vpop.permute.xlu0 %2636
        %v2638 = vrot.slane %v2637, 4
        %vm2639 = vcmask 195584
        %v2640 = vsel %vm2639, %v2638, %v2637
        %v2643 = vmul.bf16 %v2529, %v2640
        %v2644 = vmul.bf16 %v2530, %v2638
        %2645 = vrot.lane.b32.xlu0 %v2617, 25
        %v2646 = vpop.permute.xlu0 %2645
        %v2647 = vrot.slane %v2646, 4
        %vm2648 = vcmask 203776
        %v2649 = vsel %vm2648, %v2647, %v2646
        %v2652 = vmul.bf16 %v2529, %v2649
        %v2653 = vmul.bf16 %v2530, %v2647
        %2654 = vrot.lane.b32.xlu0 %v2555, 39
        %v2655 = vpop.permute.xlu0 %2654
        %v2656 = vrot.slane %v2655, 4
        %vm2657 = vcmask 318464
        %v2658 = vsel %vm2657, %v2656, %v2655
        %v2661 = vmul.bf16 %v2529, %v2658
        %v2662 = vmul.bf16 %v2530, %v2656
        %2663 = vrot.lane.b32.xlu0 %v2583, 40
        %v2664 = vpop.permute.xlu0 %2663
        %v2665 = vrot.slane %v2664, 4
        %vm2666 = vcmask 326656
        %v2667 = vsel %vm2666, %v2665, %v2664
        %v2670 = vmul.bf16 %v2529, %v2667
        %v2671 = vmul.bf16 %v2530, %v2665
        %2672 = vrot.lane.b32.xlu0 %v2617, 41
        %v2673 = vpop.permute.xlu0 %2672
        %v2674 = vrot.slane %v2673, 4
        %vm2675 = vcmask 334848
        %v2676 = vsel %vm2675, %v2674, %v2673
        %v2679 = vmul.bf16 %v2529, %v2676
        %v2680 = vmul.bf16 %v2530, %v2674
        %v2683 = vunpack.c.l.b16 %v2563
        %v2684 = vunpack.c.h.b16 %v2563
        %v2685 = vunpack.c.l.b16 %v2564
        %v2686 = vpack.c.b16 %v2683, %v2683
        %v2687 = vpack.c.b16 %v2684, %v2684
        %v2688 = vpack.c.b16 %v2685, %v2685
        %v2691 = vunpack.c.l.b16 %v2591
        %v2692 = vunpack.c.h.b16 %v2591
        %v2693 = vunpack.c.l.b16 %v2592
        %v2694 = vpack.c.b16 %v2691, %v2691
        %v2695 = vpack.c.b16 %v2692, %v2692
        %v2696 = vpack.c.b16 %v2693, %v2693
        %2697 = vrot.lane.b32.xlu0 %v2694, 127
        %v2698 = vpop.permute.xlu0 %2697
        %2699 = vrot.lane.b32.xlu0 %v2695, 127
        %v2700 = vpop.permute.xlu0 %2699
        %2701 = vrot.lane.b32.xlu0 %v2696, 127
        %v2702 = vpop.permute.xlu0 %2701
        %vm2703 = vcmask 1039360
        %v2704 = vsel %vm2703, %v2698, %v2700
        %v2705 = vsel %vm2703, %v2700, %v2702
        %v2708 = vunpack.c.l.b16 %v2625
        %v2709 = vunpack.c.h.b16 %v2625
        %v2710 = vunpack.c.l.b16 %v2626
        %v2711 = vpack.c.b16 %v2708, %v2708
        %v2712 = vpack.c.b16 %v2709, %v2709
        %v2713 = vpack.c.b16 %v2710, %v2710
        %2714 = vrot.lane.b32.xlu0 %v2711, 126
        %v2715 = vpop.permute.xlu0 %2714
        %2716 = vrot.lane.b32.xlu0 %v2712, 126
        %v2717 = vpop.permute.xlu0 %2716
        %2718 = vrot.lane.b32.xlu0 %v2713, 126
        %v2719 = vpop.permute.xlu0 %2718
        %vm2720 = vcmask 1031168
        %v2721 = vsel %vm2720, %v2715, %v2717
        %v2722 = vsel %vm2720, %v2717, %v2719
        %v2725 = vunpack.c.l.b16 %v2634
        %v2726 = vunpack.c.h.b16 %v2634
        %v2727 = vunpack.c.l.b16 %v2635
        %v2728 = vpack.c.b16 %v2725, %v2725
        %v2729 = vpack.c.b16 %v2726, %v2726
        %v2730 = vpack.c.b16 %v2727, %v2727
        %2731 = vrot.lane.b32.xlu0 %v2728, 112
        %v2732 = vpop.permute.xlu0 %2731
        %2733 = vrot.lane.b32.xlu0 %v2729, 112
        %v2734 = vpop.permute.xlu0 %2733
        %2735 = vrot.lane.b32.xlu0 %v2730, 112
        %v2736 = vpop.permute.xlu0 %2735
        %vm2737 = vcmask 916480
        %v2738 = vsel %vm2737, %v2732, %v2734
        %v2739 = vsel %vm2737, %v2734, %v2736
        %v2742 = vunpack.c.l.b16 %v2643
        %v2743 = vunpack.c.h.b16 %v2643
        %v2744 = vunpack.c.l.b16 %v2644
        %v2745 = vpack.c.b16 %v2742, %v2742
        %v2746 = vpack.c.b16 %v2743, %v2743
        %v2747 = vpack.c.b16 %v2744, %v2744
        %2748 = vrot.lane.b32.xlu0 %v2745, 111
        %v2749 = vpop.permute.xlu0 %2748
        %2750 = vrot.lane.b32.xlu0 %v2746, 111
        %v2751 = vpop.permute.xlu0 %2750
        %2752 = vrot.lane.b32.xlu0 %v2747, 111
        %v2753 = vpop.permute.xlu0 %2752
        %vm2754 = vcmask 908288
        %v2755 = vsel %vm2754, %v2749, %v2751
        %v2756 = vsel %vm2754, %v2751, %v2753
        %v2759 = vunpack.c.l.b16 %v2652
        %v2760 = vunpack.c.h.b16 %v2652
        %v2761 = vunpack.c.l.b16 %v2653
        %v2762 = vpack.c.b16 %v2759, %v2759
        %v2763 = vpack.c.b16 %v2760, %v2760
        %v2764 = vpack.c.b16 %v2761, %v2761
        %2765 = vrot.lane.b32.xlu0 %v2762, 110
        %v2766 = vpop.permute.xlu0 %2765
        %2767 = vrot.lane.b32.xlu0 %v2763, 110
        %v2768 = vpop.permute.xlu0 %2767
        %2769 = vrot.lane.b32.xlu0 %v2764, 110
        %v2770 = vpop.permute.xlu0 %2769
        %vm2771 = vcmask 900096
        %v2772 = vsel %vm2771, %v2766, %v2768
        %v2773 = vsel %vm2771, %v2768, %v2770
        %v2776 = vunpack.c.l.b16 %v2661
        %v2777 = vunpack.c.h.b16 %v2661
        %v2778 = vunpack.c.l.b16 %v2662
        %v2779 = vpack.c.b16 %v2776, %v2776
        %v2780 = vpack.c.b16 %v2777, %v2777
        %v2781 = vpack.c.b16 %v2778, %v2778
        %2782 = vrot.lane.b32.xlu0 %v2779, 96
        %v2783 = vpop.permute.xlu0 %2782
        %2784 = vrot.lane.b32.xlu0 %v2780, 96
        %v2785 = vpop.permute.xlu0 %2784
        %2786 = vrot.lane.b32.xlu0 %v2781, 96
        %v2787 = vpop.permute.xlu0 %2786
        %vm2788 = vcmask 785408
        %v2789 = vsel %vm2788, %v2783, %v2785
        %v2790 = vsel %vm2788, %v2785, %v2787
        %v2793 = vunpack.c.l.b16 %v2670
        %v2794 = vunpack.c.h.b16 %v2670
        %v2795 = vunpack.c.l.b16 %v2671
        %v2796 = vpack.c.b16 %v2793, %v2793
        %v2797 = vpack.c.b16 %v2794, %v2794
        %v2798 = vpack.c.b16 %v2795, %v2795
        %2799 = vrot.lane.b32.xlu0 %v2796, 95
        %v2800 = vpop.permute.xlu0 %2799
        %2801 = vrot.lane.b32.xlu0 %v2797, 95
        %v2802 = vpop.permute.xlu0 %2801
        %2803 = vrot.lane.b32.xlu0 %v2798, 95
        %v2804 = vpop.permute.xlu0 %2803
        %vm2805 = vcmask 777216
        %v2806 = vsel %vm2805, %v2800, %v2802
        %v2807 = vsel %vm2805, %v2802, %v2804
        %v2810 = vunpack.c.l.b16 %v2679
        %v2811 = vunpack.c.h.b16 %v2679
        %v2812 = vunpack.c.l.b16 %v2680
        %v2813 = vpack.c.b16 %v2810, %v2810
        %v2814 = vpack.c.b16 %v2811, %v2811
        %v2815 = vpack.c.b16 %v2812, %v2812
        %2816 = vrot.lane.b32.xlu0 %v2813, 94
        %v2817 = vpop.permute.xlu0 %2816
        %2818 = vrot.lane.b32.xlu0 %v2814, 94
        %v2819 = vpop.permute.xlu0 %2818
        %2820 = vrot.lane.b32.xlu0 %v2815, 94
        %v2821 = vpop.permute.xlu0 %2820
        %vm2822 = vcmask 769024
        %v2823 = vsel %vm2822, %v2817, %v2819
        %v2824 = vsel %vm2822, %v2819, %v2821
        %vm2825 = vcmask 1043456
        %v2828 = vsel %vm2825, %v2686, %v2704
        %v2831 = vsel %vm2825, %v2687, %v2705
        %v2834 = vsel %vm2825, %v2688, %v2702
        %v2837 = vsel %vm2825, %v2721, %v2738
        %v2840 = vsel %vm2825, %v2722, %v2739
        %v2843 = vsel %vm2825, %v2719, %v2736
        %v2846 = vsel %vm2825, %v2755, %v2772
        %v2849 = vsel %vm2825, %v2756, %v2773
        %v2852 = vsel %vm2825, %v2753, %v2770
        %v2855 = vsel %vm2825, %v2789, %v2806
        %v2858 = vsel %vm2825, %v2790, %v2807
        %v2861 = vsel %vm2825, %v2787, %v2804
        %v2862 = vld [vmem:[%s8] sm:$0xff]
        %v2863 = vld [vmem:[%s8 + $0x8] sm:$0xff]
        %v2864 = vld [vmem:[%s8 + $0x10] sm:$0xff]
        %v2865 = vld [vmem:[%s8 + $0x18] sm:$0xff]
        %2867 = vset.pattern.permute.xlu0 0
        %2868 = vperm.xlu0 %2867, %v2862
        %v2869 = vpop.permute.xlu0 %2868
        %2872 = vset.pattern.permute.xlu0 0
        %2873 = vperm.xlu0 %2872, %v2863
        %v2874 = vpop.permute.xlu0 %2873
        %2877 = vset.pattern.permute.xlu0 0
        %2878 = vperm.xlu0 %2877, %v2864
        %v2879 = vpop.permute.xlu0 %2878
        %2882 = vset.pattern.permute.xlu0 0
        %2883 = vperm.xlu0 %2882, %v2865
        %v2884 = vpop.permute.xlu0 %2883
        %v2890 = vunpack.c.l.b16 %v2525
        %v2891 = vunpack.c.l.b16 %v2526
        %v2892 = vunpack.c.l.b16 %v2527
        %v2893 = vunpack.c.l.b16 %v2528
        %v2894 = vpack.c.b16 %v2891, %v2890
        %v2895 = vpack.c.b16 %v2893, %v2892
        %2908 = vrot.lane.b32.xlu0 %v2828, 121
        %v2909 = vpop.permute.xlu0 %2908
        %2910 = vrot.lane.b32.xlu0 %v2831, 121
        %v2911 = vpop.permute.xlu0 %2910
        %2912 = vrot.lane.b32.xlu0 %v2834, 121
        %v2913 = vpop.permute.xlu0 %2912
        %2914 = vrot.lane.b32.xlu0 %v2837, 121
        %v2915 = vpop.permute.xlu0 %2914
        %2916 = vrot.lane.b32.xlu0 %v2840, 121
        %v2917 = vpop.permute.xlu0 %2916
        %2918 = vrot.lane.b32.xlu0 %v2843, 121
        %v2919 = vpop.permute.xlu0 %2918
        %2920 = vrot.lane.b32.xlu0 %v2846, 121
        %v2921 = vpop.permute.xlu0 %2920
        %2922 = vrot.lane.b32.xlu0 %v2849, 121
        %v2923 = vpop.permute.xlu0 %2922
        %2924 = vrot.lane.b32.xlu0 %v2852, 121
        %v2925 = vpop.permute.xlu0 %2924
        %2926 = vrot.lane.b32.xlu0 %v2855, 121
        %v2927 = vpop.permute.xlu0 %2926
        %2928 = vrot.lane.b32.xlu0 %v2858, 121
        %v2929 = vpop.permute.xlu0 %2928
        %2930 = vrot.lane.b32.xlu0 %v2861, 121
        %v2931 = vpop.permute.xlu0 %2930
        %2932 = vrot.lane.b32.xlu0 %v2823, 121
        %v2933 = vpop.permute.xlu0 %2932
        %2934 = vrot.lane.b32.xlu0 %v2824, 121
        %v2935 = vpop.permute.xlu0 %2934
        %2936 = vrot.lane.b32.xlu0 %v2821, 121
        %v2937 = vpop.permute.xlu0 %2936
        %vm2938 = vcmask 990208
        %v2939 = vsel %vm2938, %v2909, %v2911
        %v2940 = vsel %vm2938, %v2911, %v2913
        %v2941 = vsel %vm2938, %v2915, %v2917
        %v2942 = vsel %vm2938, %v2917, %v2919
        %v2943 = vsel %vm2938, %v2921, %v2923
        %v2944 = vsel %vm2938, %v2923, %v2925
        %v2945 = vsel %vm2938, %v2927, %v2929
        %v2946 = vsel %vm2938, %v2929, %v2931
        %v2947 = vsel %vm2938, %v2933, %v2935
        %v2948 = vsel %vm2938, %v2935, %v2937
        %v2958 = vsel %vm1760, %v2894, 0
        %v2961 = vsel %vm1760, %v2895, 0
        %v2964 = vsel %vm2825, %v2947, 0
        %v2967 = vsel %vm2825, %v2948, 0
        %2969 = vmatprep.subr.bf16.mxu0 %v2940
        %2970 = vmatpush1.bf16.msra.mxu0 %v2939
        %2971 = vmatprep.subr.bf16.mxu0 %v2942
        %2972 = vmatpush1.bf16.msra.mxu0 %v2941
        %2973 = vmatprep.subr.bf16.mxu0 %v2944
        %2974 = vmatpush1.bf16.msra.mxu0 %v2943
        %2975 = vmatprep.subr.bf16.mxu0 %v2946
        %2976 = vmatpush1.bf16.msra.mxu0 %v2945
        %2977 = vmatprep.subr.bf16.mxu0 %v2967
        %2978 = vmatpush1.bf16.msra.mxu0 %v2964
        %2979 = vmatprep.subr.bf16.mxu0 0
        %2980 = vmatpush1.bf16.msra.mxu0 0
        %2981 = vmatprep.subr.bf16.mxu0 0
        %2982 = vmatpush1.bf16.msra.mxu0 0
        %2983 = vmatprep.subr.bf16.mxu0 0
        %2984 = vmatpush1.bf16.msra.mxu0 0
        %2985 = vmatprep.subr.bf16.mxu0 0
        %2986 = vmatpush1.bf16.msra.mxu0 0
        %2987 = vmatprep.subr.bf16.mxu0 0
        %2988 = vmatpush1.bf16.msra.mxu0 0
        %2989 = vmatprep.subr.bf16.mxu0 0
        %2990 = vmatpush1.bf16.msra.mxu0 0
        %2991 = vmatprep.subr.bf16.mxu0 0
        %2992 = vmatpush1.bf16.msra.mxu0 0
        %2993 = vmatprep.subr.bf16.mxu0 0
        %2994 = vmatpush1.bf16.msra.mxu0 0
        %2995 = vmatprep.subr.bf16.mxu0 0
        %2996 = vmatpush1.bf16.msra.mxu0 0
        %2997 = vmatprep.subr.bf16.mxu0 0
        %2998 = vmatpush1.bf16.msra.mxu0 0
        %2999 = vmatprep.subr.bf16.mxu0 0
        %3000 = vmatpush1.bf16.msra.mxu0 0
        %3001 = vmatprep.mubr.bf16.mxu0 0
        %3002 = vmatmul.mubr.bf16.gmra.mrb[0].mxu0 %v2958
        %v3003 = vpop.f32.mrb[0].mxu0
        %v3004 = vadd.f32 %v2869, %v3003
        %v3005 = vpop.f32.mrb[0].mxu0
        %v3006 = vadd.f32 %v2869, %v3005
        %v3007 = vpop.f32.mrb[0].mxu0
        %v3008 = vadd.f32 %v2874, %v3007
        %v3009 = vpop.f32.mrb[0].mxu0
        %v3010 = vadd.f32 %v2874, %v3009
        %3011 = vmatprep.mubr.bf16.mxu0 0
        %3012 = vmatmul.mubr.bf16.gmra.mrb[0].mxu0 %v2961
        %v3013 = vpop.f32.mrb[0].mxu0
        %v3014 = vadd.f32 %v2879, %v3013
        %v3015 = vpop.f32.mrb[0].mxu0
        %v3016 = vadd.f32 %v2879, %v3015
        %v3017 = vpop.f32.mrb[0].mxu0
        %v3018 = vadd.f32 %v2884, %v3017
        %v3019 = vpop.f32.mrb[0].mxu0
        %v3020 = vadd.f32 %v2884, %v3019
        %3021 = vdwg.mxu0
        %v3022 = vmul.f32 %v3004, 0.5
        %v3023 = vmul.f32 %v3006, 0.5
        %v3024 = vmul.f32 %v3008, 0.5
        %v3025 = vmul.f32 %v3010, 0.5
        %v3026 = vmul.f32 %v3014, 0.5
        %v3027 = vmul.f32 %v3016, 0.5
        %v3028 = vmul.f32 %v3018, 0.5
        %v3029 = vmul.f32 %v3020, 0.5
        %v3030 = vmul.f32 %v3004, 0.044715
        %v3031 = vmul.f32 %v3006, 0.044715
        %v3032 = vmul.f32 %v3008, 0.044715
        %v3033 = vmul.f32 %v3010, 0.044715
        %v3034 = vmul.f32 %v3014, 0.044715
        %v3035 = vmul.f32 %v3016, 0.044715
        %v3036 = vmul.f32 %v3018, 0.044715
        %v3037 = vmul.f32 %v3020, 0.044715
        %v3038 = vmul.f32 %v3030, %v3004
        %v3039 = vmul.f32 %v3031, %v3006
        %v3040 = vmul.f32 %v3032, %v3008
        %v3041 = vmul.f32 %v3033, %v3010
        %v3042 = vmul.f32 %v3034, %v3014
        %v3043 = vmul.f32 %v3035, %v3016
        %v3044 = vmul.f32 %v3036, %v3018
        %v3045 = vmul.f32 %v3037, %v3020
        %v3046 = vmul.f32 %v3038, %v3004
        %v3047 = vmul.f32 %v3039, %v3006
        %v3048 = vmul.f32 %v3040, %v3008
        %v3049 = vmul.f32 %v3041, %v3010
        %v3050 = vmul.f32 %v3042, %v3014
        %v3051 = vmul.f32 %v3043, %v3016
        %v3052 = vmul.f32 %v3044, %v3018
        %v3053 = vmul.f32 %v3045, %v3020
        %v3054 = vadd.f32 %v3004, %v3046
        %v3055 = vadd.f32 %v3006, %v3047
        %v3056 = vadd.f32 %v3008, %v3048
        %v3057 = vadd.f32 %v3010, %v3049
        %v3058 = vadd.f32 %v3014, %v3050
        %v3059 = vadd.f32 %v3016, %v3051
        %v3060 = vadd.f32 %v3018, %v3052
        %v3061 = vadd.f32 %v3020, %v3053
        %v3062 = vmul.f32 %v3054, 0.7978846
        %v3063 = vmul.f32 %v3055, 0.7978846
        %v3064 = vmul.f32 %v3056, 0.7978846
        %v3065 = vmul.f32 %v3057, 0.7978846
        %v3066 = vmul.f32 %v3058, 0.7978846
        %v3067 = vmul.f32 %v3059, 0.7978846
        %v3068 = vmul.f32 %v3060, 0.7978846
        %v3069 = vmul.f32 %v3061, 0.7978846
        %v3070 = vtanh.pop %v3062
        %v3071 = vtanh.pop %v3063
        %v3072 = vtanh.pop %v3064
        %v3073 = vtanh.pop %v3065
        %v3074 = vtanh.pop %v3066
        %v3075 = vtanh.pop %v3067
        %v3076 = vtanh.pop %v3068
        %v3077 = vtanh.pop %v3069
        %v3078 = vadd.f32 %v3070, 1.0
        %v3079 = vadd.f32 %v3071, 1.0
        %v3080 = vadd.f32 %v3072, 1.0
        %v3081 = vadd.f32 %v3073, 1.0
        %v3082 = vadd.f32 %v3074, 1.0
        %v3083 = vadd.f32 %v3075, 1.0
        %v3084 = vadd.f32 %v3076, 1.0
        %v3085 = vadd.f32 %v3077, 1.0
        %v3086 = vmul.f32 %v3022, %v3078
        %v3087 = vmul.f32 %v3023, %v3079
        %v3088 = vmul.f32 %v3024, %v3080
        %v3089 = vmul.f32 %v3025, %v3081
        %v3090 = vmul.f32 %v3026, %v3082
        %v3091 = vmul.f32 %v3027, %v3083
        %v3092 = vmul.f32 %v3028, %v3084
        %v3093 = vmul.f32 %v3029, %v3085
        %v3094 = vld [vmem:[%s9] sm:$0xff]
        %v3095 = vld [vmem:[%s9 + $0x8] sm:$0xff]
        %v3096 = vld [vmem:[%s9 + $0x10] sm:$0xff]
        %v3097 = vld [vmem:[%s9 + $0x18] sm:$0xff]
        %v3098 = vld [vmem:[%s10] sm:$0xff]
        %v3099 = vld [vmem:[%s10 + $0x8] sm:$0xff]
        %v3100 = vld [vmem:[%s10 + $0x10] sm:$0xff]
        %v3101 = vld [vmem:[%s10 + $0x18] sm:$0xff]
        %v3102 = vadd.f32 %v3086, %v3087
        %3103 = vadd.xlane.f32.xlu0 %v3102
        %v3104 = vpop.xlane.xlu0 %3103
        %v3105 = vadd.f32 %v3088, %v3089
        %3106 = vadd.xlane.f32.xlu0 %v3105
        %v3107 = vpop.xlane.xlu0 %3106
        %v3108 = vadd.f32 %v3090, %v3091
        %3109 = vadd.xlane.f32.xlu0 %v3108
        %v3110 = vpop.xlane.xlu0 %3109
        %v3111 = vadd.f32 %v3092, %v3093
        %3112 = vadd.xlane.f32.xlu0 %v3111
        %v3113 = vpop.xlane.xlu0 %3112
        %v3114 = vadd.f32 %v3104, %v3107
        %v3115 = vadd.f32 %v3114, %v3110
        %v3116 = vadd.f32 %v3115, %v3113
        %v3117 = vrot.slane %v3116, 4
        %v3118 = vadd.f32 %v3116, %v3117
        %v3119 = vrot.slane %v3118, 2
        %v3120 = vadd.f32 %v3118, %v3119
        %v3121 = vrot.slane %v3120, 1
        %v3122 = vadd.f32 %v3120, %v3121
        %v3123 = vrcp.pop 8192.0
        %v3124 = vmul.f32 %v3122, %v3123
        %v3125 = vsub.f32 %v3086, %v3124
        %v3126 = vsub.f32 %v3087, %v3124
        %v3127 = vsub.f32 %v3088, %v3124
        %v3128 = vsub.f32 %v3089, %v3124
        %v3129 = vsub.f32 %v3090, %v3124
        %v3130 = vsub.f32 %v3091, %v3124
        %v3131 = vsub.f32 %v3092, %v3124
        %v3132 = vsub.f32 %v3093, %v3124
        %v3133 = vmul.f32 %v3125, %v3125
        %v3134 = vmul.f32 %v3126, %v3126
        %v3135 = vmul.f32 %v3127, %v3127
        %v3136 = vmul.f32 %v3128, %v3128
        %v3137 = vmul.f32 %v3129, %v3129
        %v3138 = vmul.f32 %v3130, %v3130
        %v3139 = vmul.f32 %v3131, %v3131
        %v3140 = vmul.f32 %v3132, %v3132
        %v3141 = vadd.f32 %v3133, %v3134
        %3142 = vadd.xlane.f32.xlu0 %v3141
        %v3143 = vpop.xlane.xlu0 %3142
        %v3144 = vadd.f32 %v3135, %v3136
        %3145 = vadd.xlane.f32.xlu0 %v3144
        %v3146 = vpop.xlane.xlu0 %3145
        %v3147 = vadd.f32 %v3137, %v3138
        %3148 = vadd.xlane.f32.xlu0 %v3147
        %v3149 = vpop.xlane.xlu0 %3148
        %v3150 = vadd.f32 %v3139, %v3140
        %3151 = vadd.xlane.f32.xlu0 %v3150
        %v3152 = vpop.xlane.xlu0 %3151
        %v3153 = vadd.f32 %v3143, %v3146
        %v3154 = vadd.f32 %v3153, %v3149
        %v3155 = vadd.f32 %v3154, %v3152
        %v3156 = vrot.slane %v3155, 4
        %v3157 = vadd.f32 %v3155, %v3156
        %v3158 = vrot.slane %v3157, 2
        %v3159 = vadd.f32 %v3157, %v3158
        %v3160 = vrot.slane %v3159, 1
        %v3161 = vadd.f32 %v3159, %v3160
        %v3162 = vmul.f32 %v3161, %v3123
        %v3163 = vadd.f32 %v3162, 1e-05
        %v3164 = vrsqrt.pop %v3163
        %v3165 = vmul.f32 %v3164, %v3094
        %v3166 = vmul.f32 %v3164, %v3095
        %v3167 = vmul.f32 %v3164, %v3096
        %v3168 = vmul.f32 %v3164, %v3097
        %3170 = vset.pattern.permute.xlu0 0
        %3171 = vperm.xlu0 %3170, %v3165
        %v3172 = vpop.permute.xlu0 %3171
        %3175 = vset.pattern.permute.xlu0 0
        %3176 = vperm.xlu0 %3175, %v3166
        %v3177 = vpop.permute.xlu0 %3176
        %3180 = vset.pattern.permute.xlu0 0
        %3181 = vperm.xlu0 %3180, %v3167
        %v3182 = vpop.permute.xlu0 %3181
        %3185 = vset.pattern.permute.xlu0 0
        %3186 = vperm.xlu0 %3185, %v3168
        %v3187 = vpop.permute.xlu0 %3186
        %v3189 = vmul.f32 %v3125, %v3172
        %v3190 = vmul.f32 %v3126, %v3172
        %v3191 = vmul.f32 %v3127, %v3177
        %v3192 = vmul.f32 %v3128, %v3177
        %v3193 = vmul.f32 %v3129, %v3182
        %v3194 = vmul.f32 %v3130, %v3182
        %v3195 = vmul.f32 %v3131, %v3187
        %v3196 = vmul.f32 %v3132, %v3187
        %3198 = vset.pattern.permute.xlu0 0
        %3199 = vperm.xlu0 %3198, %v3098
        %v3200 = vpop.permute.xlu0 %3199
        %3203 = vset.pattern.permute.xlu0 0
        %3204 = vperm.xlu0 %3203, %v3099
        %v3205 = vpop.permute.xlu0 %3204
        %3208 = vset.pattern.permute.xlu0 0
        %3209 = vperm.xlu0 %3208, %v3100
        %v3210 = vpop.permute.xlu0 %3209
        %3213 = vset.pattern.permute.xlu0 0
        %3214 = vperm.xlu0 %3213, %v3101
        %v3215 = vpop.permute.xlu0 %3214
        %v3217 = vadd.f32 %v3189, %v3200
        %v3218 = vadd.f32 %v3190, %v3200
        %v3219 = vadd.f32 %v3191, %v3205
        %v3220 = vadd.f32 %v3192, %v3205
        %v3221 = vadd.f32 %v3193, %v3210
        %v3222 = vadd.f32 %v3194, %v3210
        %v3223 = vadd.f32 %v3195, %v3215
        %v3224 = vadd.f32 %v3196, %v3215
        %v3225 = vpack.c.bf16 %v3219, %v3217
        %v3226 = vpack.c.bf16 %v3220, %v3218
        %v3227 = vpack.c.bf16 %v3223, %v3221
        %v3228 = vpack.c.bf16 %v3224, %v3222
        %3229 = vst.msk [vmem:[#allocation4] sm:$0xff] %vm984, 0
        %3230 = vst.msk [vmem:[#allocation4 + $0x18] sm:$0xff] %vm984, 0
        %vm3231 = vcmask 392384
        %3232 = vst.msk [vmem:[#allocation4 + $0x10] sm:$0xff] %vm3231, 0
        %3233 = vst.msk [vmem:[#allocation4 + $0x28] sm:$0xff] %vm3231, 0
        %3238 = vrot.lane.b32.xlu0 %v3225, 24
        %v3239 = vpop.permute.xlu0 %3238
        %3240 = vrot.lane.b32.xlu0 %v3226, 24
        %v3241 = vpop.permute.xlu0 %3240
        %3242 = vrot.lane.b32.xlu0 %v3227, 24
        %v3243 = vpop.permute.xlu0 %3242
        %3244 = vrot.lane.b32.xlu0 %v3228, 24
        %v3245 = vpop.permute.xlu0 %3244
        %v3246 = vsel %vm2639, %v3239, %v3241
        %v3247 = vsel %vm2639, %v3243, %v3245
        %vm3254 = vcmask 1047744
        %3255 = vst.msk [vmem:[#allocation4] sm:$0xff] %vm3254, %v3239
        %3256 = vst [vmem:[#allocation4 + $0x8] sm:$0xff] %v3246
        %3257 = vst.msk [vmem:[#allocation4 + $0x10] sm:$0xff] %vm984, %v3241
        %3258 = vst.msk [vmem:[#allocation4 + $0x18] sm:$0xff] %vm3254, %v3243
        %3259 = vst [vmem:[#allocation4 + $0x20] sm:$0xff] %v3247
        %3260 = vst.msk [vmem:[#allocation4 + $0x28] sm:$0xff] %vm984, %v3245
        %v3261 = vld [vmem:[%s11] sm:$0xff]
        %v3262 = vld [vmem:[%s11 + $0x8] sm:$0xf]
        %v3263 = vld [vmem:[%s11 + $0xc] sm:$0xff]
        %v3264 = vld [vmem:[%s11 + $0x14] sm:$0xf]
        %v3265 = vld [vmem:[#allocation4] sm:$0xff]
        %v3266 = vld [vmem:[#allocation4 + $0x8] sm:$0xff]
        %v3267 = vld [vmem:[#allocation4 + $0x10] sm:$0xff]
        %v3268 = vld [vmem:[#allocation4 + $0x18] sm:$0xff]
        %v3269 = vld [vmem:[#allocation4 + $0x20] sm:$0xff]
        %v3270 = vld [vmem:[#allocation4 + $0x28] sm:$0xff]
        %v3271 = vld [vmem:[%s4] sm:$0x22]
        %v3273 = vunpack.c.l.b16 %v3271
        %v3274 = vunpack.c.h.b16 %v3271
        %v3275 = vpack.c.b16 %v3273, %v3273
        %v3276 = vpack.c.b16 %v3274, %v3274
        %v3278 = vpack.i.b16 %v3275, %v3275
        %v3280 = vlaneseq
        %v3281 = vshrl.u32 %v3280, 7
        %v3282 = vsub.s32 1, %v3281
        %v3283 = vrot.slane %v3278, %v3282
        %v3285 = vpack.i.b16 %v3276, %v3276
        %v3287 = vlaneseq
        %v3288 = vshrl.u32 %v3287, 7
        %v3289 = vsub.s32 1, %v3288
        %v3290 = vrot.slane %v3285, %v3289
        %3293 = vrot.lane.b32.xlu0 %v3283, 7
        %v3294 = vpop.permute.xlu0 %3293
        %3295 = vrot.lane.b32.xlu0 %v3290, 7
        %v3296 = vpop.permute.xlu0 %3295
        %v3297 = vsel %vm2559, %v3294, %v3296
        %v3301 = vmul.bf16 %v3265, %v3294
        %v3302 = vmul.bf16 %v3266, %v3297
        %v3303 = vmul.bf16 %v3267, %v3296
        %v3304 = vmul.bf16 %v3268, %v3294
        %v3305 = vmul.bf16 %v3269, %v3297
        %v3306 = vmul.bf16 %v3270, %v3296
        %v3307 = vshrl.u32 %v3275, 16
        %v3308 = vpack.i.b16 %v3307, %v3307
        %v3310 = vlaneseq
        %v3311 = vshrl.u32 %v3310, 7
        %v3312 = vsub.s32 1, %v3311
        %v3313 = vrot.slane %v3308, %v3312
        %v3314 = vshrl.u32 %v3276, 16
        %v3315 = vpack.i.b16 %v3314, %v3314
        %v3317 = vlaneseq
        %v3318 = vshrl.u32 %v3317, 7
        %v3319 = vsub.s32 1, %v3318
        %v3320 = vrot.slane %v3315, %v3319
        %3323 = vrot.lane.b32.xlu0 %v3313, 8
        %v3324 = vpop.permute.xlu0 %3323
        %3325 = vrot.lane.b32.xlu0 %v3320, 8
        %v3326 = vpop.permute.xlu0 %3325
        %v3327 = vsel %vm2587, %v3324, %v3326
        %v3331 = vmul.bf16 %v3265, %v3324
        %v3332 = vmul.bf16 %v3266, %v3327
        %v3333 = vmul.bf16 %v3267, %v3326
        %v3334 = vmul.bf16 %v3268, %v3324
        %v3335 = vmul.bf16 %v3269, %v3327
        %v3336 = vmul.bf16 %v3270, %v3326
        %v3337 = vld [vmem:[%s4] sm:$0x44]
        %v3339 = vunpack.c.l.b16 %v3337
        %v3340 = vunpack.c.h.b16 %v3337
        %v3341 = vpack.c.b16 %v3339, %v3339
        %v3342 = vpack.c.b16 %v3340, %v3340
        %v3344 = vpack.i.b16 %v3341, %v3341
        %v3346 = vlaneseq
        %v3347 = vshrl.u32 %v3346, 7
        %v3348 = vsub.s32 2, %v3347
        %v3349 = vrot.slane %v3344, %v3348
        %v3351 = vpack.i.b16 %v3342, %v3342
        %v3353 = vlaneseq
        %v3354 = vshrl.u32 %v3353, 7
        %v3355 = vsub.s32 2, %v3354
        %v3356 = vrot.slane %v3351, %v3355
        %3359 = vrot.lane.b32.xlu0 %v3349, 9
        %v3360 = vpop.permute.xlu0 %3359
        %3361 = vrot.lane.b32.xlu0 %v3356, 9
        %v3362 = vpop.permute.xlu0 %3361
        %v3363 = vsel %vm2621, %v3360, %v3362
        %v3367 = vmul.bf16 %v3265, %v3360
        %v3368 = vmul.bf16 %v3266, %v3363
        %v3369 = vmul.bf16 %v3267, %v3362
        %v3370 = vmul.bf16 %v3268, %v3360
        %v3371 = vmul.bf16 %v3269, %v3363
        %v3372 = vmul.bf16 %v3270, %v3362
        %3373 = vrot.lane.b32.xlu0 %v3283, 23
        %v3374 = vpop.permute.xlu0 %3373
        %3375 = vrot.lane.b32.xlu0 %v3290, 23
        %v3376 = vpop.permute.xlu0 %3375
        %v3377 = vsel %vm2630, %v3374, %v3376
        %v3381 = vmul.bf16 %v3265, %v3374
        %v3382 = vmul.bf16 %v3266, %v3377
        %v3383 = vmul.bf16 %v3267, %v3376
        %v3384 = vmul.bf16 %v3268, %v3374
        %v3385 = vmul.bf16 %v3269, %v3377
        %v3386 = vmul.bf16 %v3270, %v3376
        %3387 = vrot.lane.b32.xlu0 %v3313, 24
        %v3388 = vpop.permute.xlu0 %3387
        %3389 = vrot.lane.b32.xlu0 %v3320, 24
        %v3390 = vpop.permute.xlu0 %3389
        %v3391 = vsel %vm2639, %v3388, %v3390
        %v3395 = vmul.bf16 %v3265, %v3388
        %v3396 = vmul.bf16 %v3266, %v3391
        %v3397 = vmul.bf16 %v3267, %v3390
        %v3398 = vmul.bf16 %v3268, %v3388
        %v3399 = vmul.bf16 %v3269, %v3391
        %v3400 = vmul.bf16 %v3270, %v3390
        %3401 = vrot.lane.b32.xlu0 %v3349, 25
        %v3402 = vpop.permute.xlu0 %3401
        %3403 = vrot.lane.b32.xlu0 %v3356, 25
        %v3404 = vpop.permute.xlu0 %3403
        %v3405 = vsel %vm2648, %v3402, %v3404
        %v3409 = vmul.bf16 %v3265, %v3402
        %v3410 = vmul.bf16 %v3266, %v3405
        %v3411 = vmul.bf16 %v3267, %v3404
        %v3412 = vmul.bf16 %v3268, %v3402
        %v3413 = vmul.bf16 %v3269, %v3405
        %v3414 = vmul.bf16 %v3270, %v3404
        %3415 = vrot.lane.b32.xlu0 %v3283, 39
        %v3416 = vpop.permute.xlu0 %3415
        %3417 = vrot.lane.b32.xlu0 %v3290, 39
        %v3418 = vpop.permute.xlu0 %3417
        %v3419 = vsel %vm2657, %v3416, %v3418
        %v3423 = vmul.bf16 %v3265, %v3416
        %v3424 = vmul.bf16 %v3266, %v3419
        %v3425 = vmul.bf16 %v3267, %v3418
        %v3426 = vmul.bf16 %v3268, %v3416
        %v3427 = vmul.bf16 %v3269, %v3419
        %v3428 = vmul.bf16 %v3270, %v3418
        %3429 = vrot.lane.b32.xlu0 %v3313, 40
        %v3430 = vpop.permute.xlu0 %3429
        %3431 = vrot.lane.b32.xlu0 %v3320, 40
        %v3432 = vpop.permute.xlu0 %3431
        %v3433 = vsel %vm2666, %v3430, %v3432
        %v3437 = vmul.bf16 %v3265, %v3430
        %v3438 = vmul.bf16 %v3266, %v3433
        %v3439 = vmul.bf16 %v3267, %v3432
        %v3440 = vmul.bf16 %v3268, %v3430
        %v3441 = vmul.bf16 %v3269, %v3433
        %v3442 = vmul.bf16 %v3270, %v3432
        %3443 = vrot.lane.b32.xlu0 %v3349, 41
        %v3444 = vpop.permute.xlu0 %3443
        %3445 = vrot.lane.b32.xlu0 %v3356, 41
        %v3446 = vpop.permute.xlu0 %3445
        %v3447 = vsel %vm2675, %v3444, %v3446
        %v3451 = vmul.bf16 %v3265, %v3444
        %v3452 = vmul.bf16 %v3266, %v3447
        %v3453 = vmul.bf16 %v3267, %v3446
        %v3454 = vmul.bf16 %v3268, %v3444
        %v3455 = vmul.bf16 %v3269, %v3447
        %v3456 = vmul.bf16 %v3270, %v3446
        %3463 = vrot.lane.b32.xlu0 %v3331, 127
        %v3464 = vpop.permute.xlu0 %3463
        %3465 = vrot.lane.b32.xlu0 %v3332, 127
        %v3466 = vpop.permute.xlu0 %3465
        %3467 = vrot.lane.b32.xlu0 %v3333, 127
        %v3468 = vpop.permute.xlu0 %3467
        %3469 = vrot.lane.b32.xlu0 %v3334, 127
        %v3470 = vpop.permute.xlu0 %3469
        %3471 = vrot.lane.b32.xlu0 %v3335, 127
        %v3472 = vpop.permute.xlu0 %3471
        %3473 = vrot.lane.b32.xlu0 %v3336, 127
        %v3474 = vpop.permute.xlu0 %3473
        %v3475 = vsel %vm2703, %v3464, %v3466
        %v3476 = vsel %vm2703, %v3466, %v3468
        %v3477 = vsel %vm2703, %v3470, %v3472
        %v3478 = vsel %vm2703, %v3472, %v3474
        %3485 = vrot.lane.b32.xlu0 %v3367, 126
        %v3486 = vpop.permute.xlu0 %3485
        %3487 = vrot.lane.b32.xlu0 %v3368, 126
        %v3488 = vpop.permute.xlu0 %3487
        %3489 = vrot.lane.b32.xlu0 %v3369, 126
        %v3490 = vpop.permute.xlu0 %3489
        %3491 = vrot.lane.b32.xlu0 %v3370, 126
        %v3492 = vpop.permute.xlu0 %3491
        %3493 = vrot.lane.b32.xlu0 %v3371, 126
        %v3494 = vpop.permute.xlu0 %3493
        %3495 = vrot.lane.b32.xlu0 %v3372, 126
        %v3496 = vpop.permute.xlu0 %3495
        %v3497 = vsel %vm2720, %v3486, %v3488
        %v3498 = vsel %vm2720, %v3488, %v3490
        %v3499 = vsel %vm2720, %v3492, %v3494
        %v3500 = vsel %vm2720, %v3494, %v3496
        %3507 = vrot.lane.b32.xlu0 %v3381, 112
        %v3508 = vpop.permute.xlu0 %3507
        %3509 = vrot.lane.b32.xlu0 %v3382, 112
        %v3510 = vpop.permute.xlu0 %3509
        %3511 = vrot.lane.b32.xlu0 %v3383, 112
        %v3512 = vpop.permute.xlu0 %3511
        %3513 = vrot.lane.b32.xlu0 %v3384, 112
        %v3514 = vpop.permute.xlu0 %3513
        %3515 = vrot.lane.b32.xlu0 %v3385, 112
        %v3516 = vpop.permute.xlu0 %3515
        %3517 = vrot.lane.b32.xlu0 %v3386, 112
        %v3518 = vpop.permute.xlu0 %3517
        %v3519 = vsel %vm2737, %v3508, %v3510
        %v3520 = vsel %vm2737, %v3510, %v3512
        %v3521 = vsel %vm2737, %v3514, %v3516
        %v3522 = vsel %vm2737, %v3516, %v3518
        %3529 = vrot.lane.b32.xlu0 %v3395, 111
        %v3530 = vpop.permute.xlu0 %3529
        %3531 = vrot.lane.b32.xlu0 %v3396, 111
        %v3532 = vpop.permute.xlu0 %3531
        %3533 = vrot.lane.b32.xlu0 %v3397, 111
        %v3534 = vpop.permute.xlu0 %3533
        %3535 = vrot.lane.b32.xlu0 %v3398, 111
        %v3536 = vpop.permute.xlu0 %3535
        %3537 = vrot.lane.b32.xlu0 %v3399, 111
        %v3538 = vpop.permute.xlu0 %3537
        %3539 = vrot.lane.b32.xlu0 %v3400, 111
        %v3540 = vpop.permute.xlu0 %3539
        %v3541 = vsel %vm2754, %v3530, %v3532
        %v3542 = vsel %vm2754, %v3532, %v3534
        %v3543 = vsel %vm2754, %v3536, %v3538
        %v3544 = vsel %vm2754, %v3538, %v3540
        %3551 = vrot.lane.b32.xlu0 %v3409, 110
        %v3552 = vpop.permute.xlu0 %3551
        %3553 = vrot.lane.b32.xlu0 %v3410, 110
        %v3554 = vpop.permute.xlu0 %3553
        %3555 = vrot.lane.b32.xlu0 %v3411, 110
        %v3556 = vpop.permute.xlu0 %3555
        %3557 = vrot.lane.b32.xlu0 %v3412, 110
        %v3558 = vpop.permute.xlu0 %3557
        %3559 = vrot.lane.b32.xlu0 %v3413, 110
        %v3560 = vpop.permute.xlu0 %3559
        %3561 = vrot.lane.b32.xlu0 %v3414, 110
        %v3562 = vpop.permute.xlu0 %3561
        %v3563 = vsel %vm2771, %v3552, %v3554
        %v3564 = vsel %vm2771, %v3554, %v3556
        %v3565 = vsel %vm2771, %v3558, %v3560
        %v3566 = vsel %vm2771, %v3560, %v3562
        %3573 = vrot.lane.b32.xlu0 %v3423, 96
        %v3574 = vpop.permute.xlu0 %3573
        %3575 = vrot.lane.b32.xlu0 %v3424, 96
        %v3576 = vpop.permute.xlu0 %3575
        %3577 = vrot.lane.b32.xlu0 %v3425, 96
        %v3578 = vpop.permute.xlu0 %3577
        %3579 = vrot.lane.b32.xlu0 %v3426, 96
        %v3580 = vpop.permute.xlu0 %3579
        %3581 = vrot.lane.b32.xlu0 %v3427, 96
        %v3582 = vpop.permute.xlu0 %3581
        %3583 = vrot.lane.b32.xlu0 %v3428, 96
        %v3584 = vpop.permute.xlu0 %3583
        %v3585 = vsel %vm2788, %v3574, %v3576
        %v3586 = vsel %vm2788, %v3576, %v3578
        %v3587 = vsel %vm2788, %v3580, %v3582
        %v3588 = vsel %vm2788, %v3582, %v3584
        %3595 = vrot.lane.b32.xlu0 %v3437, 95
        %v3596 = vpop.permute.xlu0 %3595
        %3597 = vrot.lane.b32.xlu0 %v3438, 95
        %v3598 = vpop.permute.xlu0 %3597
        %3599 = vrot.lane.b32.xlu0 %v3439, 95
        %v3600 = vpop.permute.xlu0 %3599
        %3601 = vrot.lane.b32.xlu0 %v3440, 95
        %v3602 = vpop.permute.xlu0 %3601
        %3603 = vrot.lane.b32.xlu0 %v3441, 95
        %v3604 = vpop.permute.xlu0 %3603
        %3605 = vrot.lane.b32.xlu0 %v3442, 95
        %v3606 = vpop.permute.xlu0 %3605
        %v3607 = vsel %vm2805, %v3596, %v3598
        %v3608 = vsel %vm2805, %v3598, %v3600
        %v3609 = vsel %vm2805, %v3602, %v3604
        %v3610 = vsel %vm2805, %v3604, %v3606
        %3617 = vrot.lane.b32.xlu0 %v3451, 94
        %v3618 = vpop.permute.xlu0 %3617
        %3619 = vrot.lane.b32.xlu0 %v3452, 94
        %v3620 = vpop.permute.xlu0 %3619
        %3621 = vrot.lane.b32.xlu0 %v3453, 94
        %v3622 = vpop.permute.xlu0 %3621
        %3623 = vrot.lane.b32.xlu0 %v3454, 94
        %v3624 = vpop.permute.xlu0 %3623
        %3625 = vrot.lane.b32.xlu0 %v3455, 94
        %v3626 = vpop.permute.xlu0 %3625
        %3627 = vrot.lane.b32.xlu0 %v3456, 94
        %v3628 = vpop.permute.xlu0 %3627
        %v3629 = vsel %vm2822, %v3618, %v3620
        %v3630 = vsel %vm2822, %v3620, %v3622
        %v3631 = vsel %vm2822, %v3624, %v3626
        %v3632 = vsel %vm2822, %v3626, %v3628
        %v3633 = vld [vmem:[%s12] sm:$0xff]
        %v3634 = vld [vmem:[%s12 + $0x8] sm:$0xff]
        %3636 = vset.pattern.permute.xlu0 0
        %3637 = vperm.xlu0 %3636, %v3633
        %v3638 = vpop.permute.xlu0 %3637
        %3641 = vset.pattern.permute.xlu0 0
        %3642 = vperm.xlu0 %3641, %v3634
        %v3643 = vpop.permute.xlu0 %3642
        %v3649 = vunpack.c.l.b16 %v3261
        %v3650 = vunpack.c.h.b16 %v3261
        %v3651 = vunpack.c.l.b16 %v3262
        %v3652 = vunpack.c.l.b16 %v3263
        %v3653 = vunpack.c.h.b16 %v3263
        %v3654 = vunpack.c.l.b16 %v3264
        %v3655 = vpack.c.b16 %v3652, %v3649
        %v3656 = vpack.c.b16 %v3653, %v3650
        %v3657 = vpack.c.b16 %v3654, %v3651
        %3666 = vrot.lane.b32.xlu0 %v3301, 121
        %v3667 = vpop.permute.xlu0 %3666
        %3668 = vrot.lane.b32.xlu0 %v3302, 121
        %v3669 = vpop.permute.xlu0 %3668
        %3670 = vrot.lane.b32.xlu0 %v3303, 121
        %v3671 = vpop.permute.xlu0 %3670
        %3672 = vrot.lane.b32.xlu0 %v3304, 121
        %v3673 = vpop.permute.xlu0 %3672
        %3674 = vrot.lane.b32.xlu0 %v3305, 121
        %v3675 = vpop.permute.xlu0 %3674
        %3676 = vrot.lane.b32.xlu0 %v3306, 121
        %v3677 = vpop.permute.xlu0 %3676
        %3678 = vrot.lane.b32.xlu0 %v3475, 121
        %v3679 = vpop.permute.xlu0 %3678
        %3680 = vrot.lane.b32.xlu0 %v3476, 121
        %v3681 = vpop.permute.xlu0 %3680
        %3682 = vrot.lane.b32.xlu0 %v3468, 121
        %v3683 = vpop.permute.xlu0 %3682
        %3684 = vrot.lane.b32.xlu0 %v3477, 121
        %v3685 = vpop.permute.xlu0 %3684
        %3686 = vrot.lane.b32.xlu0 %v3478, 121
        %v3687 = vpop.permute.xlu0 %3686
        %3688 = vrot.lane.b32.xlu0 %v3474, 121
        %v3689 = vpop.permute.xlu0 %3688
        %3690 = vrot.lane.b32.xlu0 %v3497, 121
        %v3691 = vpop.permute.xlu0 %3690
        %3692 = vrot.lane.b32.xlu0 %v3498, 121
        %v3693 = vpop.permute.xlu0 %3692
        %3694 = vrot.lane.b32.xlu0 %v3490, 121
        %v3695 = vpop.permute.xlu0 %3694
        %3696 = vrot.lane.b32.xlu0 %v3499, 121
        %v3697 = vpop.permute.xlu0 %3696
        %3698 = vrot.lane.b32.xlu0 %v3500, 121
        %v3699 = vpop.permute.xlu0 %3698
        %3700 = vrot.lane.b32.xlu0 %v3496, 121
        %v3701 = vpop.permute.xlu0 %3700
        %3702 = vrot.lane.b32.xlu0 %v3519, 121
        %v3703 = vpop.permute.xlu0 %3702
        %3704 = vrot.lane.b32.xlu0 %v3520, 121
        %v3705 = vpop.permute.xlu0 %3704
        %3706 = vrot.lane.b32.xlu0 %v3512, 121
        %v3707 = vpop.permute.xlu0 %3706
        %3708 = vrot.lane.b32.xlu0 %v3521, 121
        %v3709 = vpop.permute.xlu0 %3708
        %3710 = vrot.lane.b32.xlu0 %v3522, 121
        %v3711 = vpop.permute.xlu0 %3710
        %3712 = vrot.lane.b32.xlu0 %v3518, 121
        %v3713 = vpop.permute.xlu0 %3712
        %3714 = vrot.lane.b32.xlu0 %v3541, 121
        %v3715 = vpop.permute.xlu0 %3714
        %3716 = vrot.lane.b32.xlu0 %v3542, 121
        %v3717 = vpop.permute.xlu0 %3716
        %3718 = vrot.lane.b32.xlu0 %v3534, 121
        %v3719 = vpop.permute.xlu0 %3718
        %3720 = vrot.lane.b32.xlu0 %v3543, 121
        %v3721 = vpop.permute.xlu0 %3720
        %3722 = vrot.lane.b32.xlu0 %v3544, 121
        %v3723 = vpop.permute.xlu0 %3722
        %3724 = vrot.lane.b32.xlu0 %v3540, 121
        %v3725 = vpop.permute.xlu0 %3724
        %3726 = vrot.lane.b32.xlu0 %v3563, 121
        %v3727 = vpop.permute.xlu0 %3726
        %3728 = vrot.lane.b32.xlu0 %v3564, 121
        %v3729 = vpop.permute.xlu0 %3728
        %3730 = vrot.lane.b32.xlu0 %v3556, 121
        %v3731 = vpop.permute.xlu0 %3730
        %3732 = vrot.lane.b32.xlu0 %v3565, 121
        %v3733 = vpop.permute.xlu0 %3732
        %3734 = vrot.lane.b32.xlu0 %v3566, 121
        %v3735 = vpop.permute.xlu0 %3734
        %3736 = vrot.lane.b32.xlu0 %v3562, 121
        %v3737 = vpop.permute.xlu0 %3736
        %3738 = vrot.lane.b32.xlu0 %v3585, 121
        %v3739 = vpop.permute.xlu0 %3738
        %3740 = vrot.lane.b32.xlu0 %v3586, 121
        %v3741 = vpop.permute.xlu0 %3740
        %3742 = vrot.lane.b32.xlu0 %v3578, 121
        %v3743 = vpop.permute.xlu0 %3742
        %3744 = vrot.lane.b32.xlu0 %v3587, 121
        %v3745 = vpop.permute.xlu0 %3744
        %3746 = vrot.lane.b32.xlu0 %v3588, 121
        %v3747 = vpop.permute.xlu0 %3746
        %3748 = vrot.lane.b32.xlu0 %v3584, 121
        %v3749 = vpop.permute.xlu0 %3748
        %3750 = vrot.lane.b32.xlu0 %v3607, 121
        %v3751 = vpop.permute.xlu0 %3750
        %3752 = vrot.lane.b32.xlu0 %v3608, 121
        %v3753 = vpop.permute.xlu0 %3752
        %3754 = vrot.lane.b32.xlu0 %v3600, 121
        %v3755 = vpop.permute.xlu0 %3754
        %3756 = vrot.lane.b32.xlu0 %v3609, 121
        %v3757 = vpop.permute.xlu0 %3756
        %3758 = vrot.lane.b32.xlu0 %v3610, 121
        %v3759 = vpop.permute.xlu0 %3758
        %3760 = vrot.lane.b32.xlu0 %v3606, 121
        %v3761 = vpop.permute.xlu0 %3760
        %3762 = vrot.lane.b32.xlu0 %v3629, 121
        %v3763 = vpop.permute.xlu0 %3762
        %3764 = vrot.lane.b32.xlu0 %v3630, 121
        %v3765 = vpop.permute.xlu0 %3764
        %3766 = vrot.lane.b32.xlu0 %v3622, 121
        %v3767 = vpop.permute.xlu0 %3766
        %3768 = vrot.lane.b32.xlu0 %v3631, 121
        %v3769 = vpop.permute.xlu0 %3768
        %3770 = vrot.lane.b32.xlu0 %v3632, 121
        %v3771 = vpop.permute.xlu0 %3770
        %3772 = vrot.lane.b32.xlu0 %v3628, 121
        %v3773 = vpop.permute.xlu0 %3772
        %v3774 = vsel %vm2938, %v3667, %v3669
        %v3775 = vsel %vm2938, %v3669, %v3671
        %v3776 = vsel %vm2938, %v3673, %v3675
        %v3777 = vsel %vm2938, %v3675, %v3677
        %v3778 = vsel %vm2938, %v3679, %v3681
        %v3779 = vsel %vm2938, %v3681, %v3683
        %v3780 = vsel %vm2938, %v3685, %v3687
        %v3781 = vsel %vm2938, %v3687, %v3689
        %v3782 = vsel %vm2938, %v3691, %v3693
        %v3783 = vsel %vm2938, %v3693, %v3695
        %v3784 = vsel %vm2938, %v3697, %v3699
        %v3785 = vsel %vm2938, %v3699, %v3701
        %v3786 = vsel %vm2938, %v3703, %v3705
        %v3787 = vsel %vm2938, %v3705, %v3707
        %v3788 = vsel %vm2938, %v3709, %v3711
        %v3789 = vsel %vm2938, %v3711, %v3713
        %v3790 = vsel %vm2938, %v3715, %v3717
        %v3791 = vsel %vm2938, %v3717, %v3719
        %v3792 = vsel %vm2938, %v3721, %v3723
        %v3793 = vsel %vm2938, %v3723, %v3725
        %v3794 = vsel %vm2938, %v3727, %v3729
        %v3795 = vsel %vm2938, %v3729, %v3731
        %v3796 = vsel %vm2938, %v3733, %v3735
        %v3797 = vsel %vm2938, %v3735, %v3737
        %v3798 = vsel %vm2938, %v3739, %v3741
        %v3799 = vsel %vm2938, %v3741, %v3743
        %v3800 = vsel %vm2938, %v3745, %v3747
        %v3801 = vsel %vm2938, %v3747, %v3749
        %v3802 = vsel %vm2938, %v3751, %v3753
        %v3803 = vsel %vm2938, %v3753, %v3755
        %v3804 = vsel %vm2938, %v3757, %v3759
        %v3805 = vsel %vm2938, %v3759, %v3761
        %v3806 = vsel %vm2938, %v3763, %v3765
        %v3807 = vsel %vm2938, %v3765, %v3767
        %v3808 = vsel %vm2938, %v3769, %v3771
        %v3809 = vsel %vm2938, %v3771, %v3773
        %v3847 = vsel %vm2176, %v3657, 0
        %3849 = vmatprep.subr.bf16.mxu0 %v3775
        %3850 = vmatpush1.bf16.msra.mxu0 %v3774
        %3851 = vmatprep.subr.bf16.mxu0 %v3777
        %3852 = vmatpush1.bf16.msra.mxu0 %v3776
        %3853 = vmatprep.subr.bf16.mxu0 %v3779
        %3854 = vmatpush1.bf16.msra.mxu0 %v3778
        %3855 = vmatprep.subr.bf16.mxu0 %v3781
        %3856 = vmatpush1.bf16.msra.mxu0 %v3780
        %3857 = vmatprep.subr.bf16.mxu0 %v3783
        %3858 = vmatpush1.bf16.msra.mxu0 %v3782
        %3859 = vmatprep.subr.bf16.mxu0 %v3785
        %3860 = vmatpush1.bf16.msra.mxu0 %v3784
        %3861 = vmatprep.subr.bf16.mxu0 %v3787
        %3862 = vmatpush1.bf16.msra.mxu0 %v3786
        %3863 = vmatprep.subr.bf16.mxu0 %v3789
        %3864 = vmatpush1.bf16.msra.mxu0 %v3788
        %3865 = vmatprep.subr.bf16.mxu0 %v3791
        %3866 = vmatpush1.bf16.msra.mxu0 %v3790
        %3867 = vmatprep.subr.bf16.mxu0 %v3793
        %3868 = vmatpush1.bf16.msra.mxu0 %v3792
        %3869 = vmatprep.subr.bf16.mxu0 %v3795
        %3870 = vmatpush1.bf16.msra.mxu0 %v3794
        %3871 = vmatprep.subr.bf16.mxu0 %v3797
        %3872 = vmatpush1.bf16.msra.mxu0 %v3796
        %3873 = vmatprep.subr.bf16.mxu0 %v3799
        %3874 = vmatpush1.bf16.msra.mxu0 %v3798
        %3875 = vmatprep.subr.bf16.mxu0 %v3801
        %3876 = vmatpush1.bf16.msra.mxu0 %v3800
        %3877 = vmatprep.subr.bf16.mxu0 %v3803
        %3878 = vmatpush1.bf16.msra.mxu0 %v3802
        %3879 = vmatprep.subr.bf16.mxu0 %v3805
        %3880 = vmatpush1.bf16.msra.mxu0 %v3804
        %3881 = vmatprep.mubr.bf16.mxu0 %v3656
        %3882 = vmatmul.mubr.bf16.gmra.mrb[0].mxu0 %v3655
        %v3883 = vpop.f32.mrb[0].mxu0
        %v3884 = vadd.f32 %v3638, %v3883
        %v3885 = vpop.f32.mrb[0].mxu0
        %v3886 = vadd.f32 %v3638, %v3885
        %v3887 = vpop.f32.mrb[0].mxu0
        %v3888 = vadd.f32 %v3643, %v3887
        %v3889 = vpop.f32.mrb[0].mxu0
        %v3890 = vadd.f32 %v3643, %v3889
        %3891 = vdwg.mxu0
        %3892 = vmatprep.subr.bf16.mxu0 %v3807
        %3893 = vmatpush1.bf16.msra.mxu0 %v3806
        %3894 = vmatprep.subr.bf16.mxu0 %v3809
        %3895 = vmatpush1.bf16.msra.mxu0 %v3808
        %3896 = vmatprep.subr.bf16.mxu0 0
        %3897 = vmatpush1.bf16.msra.mxu0 0
        %3898 = vmatprep.subr.bf16.mxu0 0
        %3899 = vmatpush1.bf16.msra.mxu0 0
        %3900 = vmatprep.subr.bf16.mxu0 0
        %3901 = vmatpush1.bf16.msra.mxu0 0
        %3902 = vmatprep.subr.bf16.mxu0 0
        %3903 = vmatpush1.bf16.msra.mxu0 0
        %3904 = vmatprep.subr.bf16.mxu0 0
        %3905 = vmatpush1.bf16.msra.mxu0 0
        %3906 = vmatprep.subr.bf16.mxu0 0
        %3907 = vmatpush1.bf16.msra.mxu0 0
        %3908 = vmatprep.subr.bf16.mxu0 0
        %3909 = vmatpush1.bf16.msra.mxu0 0
        %3910 = vmatprep.subr.bf16.mxu0 0
        %3911 = vmatpush1.bf16.msra.mxu0 0
        %3912 = vmatprep.subr.bf16.mxu0 0
        %3913 = vmatpush1.bf16.msra.mxu0 0
        %3914 = vmatprep.subr.bf16.mxu0 0
        %3915 = vmatpush1.bf16.msra.mxu0 0
        %3916 = vmatprep.subr.bf16.mxu0 0
        %3917 = vmatpush1.bf16.msra.mxu0 0
        %3918 = vmatprep.subr.bf16.mxu0 0
        %3919 = vmatpush1.bf16.msra.mxu0 0
        %3920 = vmatprep.subr.bf16.mxu0 0
        %3921 = vmatpush1.bf16.msra.mxu0 0
        %3922 = vmatprep.subr.bf16.mxu0 0
        %3923 = vmatpush1.bf16.msra.mxu0 0
        %3924 = vmatprep.mubr.bf16.mxu0 0
        %3925 = vmatmul.mubr.bf16.gmra.mrb[0].mxu0 %v3847
        %v3926 = vpop.f32.mrb[0].mxu0
        %v3927 = vadd.f32 %v3884, %v3926
        %v3928 = vpop.f32.mrb[0].mxu0
        %v3929 = vadd.f32 %v3886, %v3928
        %v3930 = vpop.f32.mrb[0].mxu0
        %v3931 = vadd.f32 %v3888, %v3930
        %v3932 = vpop.f32.mrb[0].mxu0
        %v3933 = vadd.f32 %v3890, %v3932
        %3934 = vdwg.mxu0
        %v3935 = vld [vmem:[%s13] sm:$0xf]
        %v3936 = vld [vmem:[%s13 + $0x4] sm:$0xf]
        %v3937 = vpack.c.bf16 %v511, %v511
        %v3938 = vpack.c.bf16 %v512, %v512
        %v3941 = vunpack.c.l.b16 %v3935
        %v3942 = vunpack.c.l.b16 %v3936
        %v3943 = vpack.c.b16 %v3942, %v3941
        %v3945 = vsel %vm689, %v3943, 0
        %v3948 = vsel %vm2825, %v3937, 0
        %v3951 = vsel %vm2825, %v3938, 0
        %3953 = vmatprep.subr.bf16.mxu0 %v3951
        %3954 = vmatpush1.bf16.msra.mxu0 %v3948
        %3955 = vmatprep.subr.bf16.mxu0 0
        %3956 = vmatpush1.bf16.msra.mxu0 0
        %3957 = vmatprep.subr.bf16.mxu0 0
        %3958 = vmatpush1.bf16.msra.mxu0 0
        %3959 = vmatprep.subr.bf16.mxu0 0
        %3960 = vmatpush1.bf16.msra.mxu0 0
        %3961 = vmatprep.subr.bf16.mxu0 0
        %3962 = vmatpush1.bf16.msra.mxu0 0
        %3963 = vmatprep.subr.bf16.mxu0 0
        %3964 = vmatpush1.bf16.msra.mxu0 0
        %3965 = vmatprep.subr.bf16.mxu0 0
        %3966 = vmatpush1.bf16.msra.mxu0 0
        %3967 = vmatprep.subr.bf16.mxu0 0
        %3968 = vmatpush1.bf16.msra.mxu0 0
        %3969 = vmatprep.subr.bf16.mxu0 0
        %3970 = vmatpush1.bf16.msra.mxu0 0
        %3971 = vmatprep.subr.bf16.mxu0 0
        %3972 = vmatpush1.bf16.msra.mxu0 0
        %3973 = vmatprep.subr.bf16.mxu0 0
        %3974 = vmatpush1.bf16.msra.mxu0 0
        %3975 = vmatprep.subr.bf16.mxu0 0
        %3976 = vmatpush1.bf16.msra.mxu0 0
        %3977 = vmatprep.subr.bf16.mxu0 0
        %3978 = vmatpush1.bf16.msra.mxu0 0
        %3979 = vmatprep.subr.bf16.mxu0 0
        %3980 = vmatpush1.bf16.msra.mxu0 0
        %3981 = vmatprep.subr.bf16.mxu0 0
        %3982 = vmatpush1.bf16.msra.mxu0 0
        %3983 = vmatprep.subr.bf16.mxu0 0
        %3984 = vmatpush1.bf16.msra.mxu0 0
        %3985 = vmatprep.mubr.bf16.mxu0 0
        %3986 = vmatmul.mubr.bf16.gmra.mrb[0].mxu0 %v3945
        %v3987 = vpop.f32.mrb[0].mxu0
        %v3988 = vadd.f32 0.0, %v3987
        %v3989 = vpop.f32.mrb[0].mxu0
        %v3990 = vadd.f32 0.0, %v3989
        %v3991 = vpop.f32.mrb[0].mxu0
        %v3992 = vadd.f32 0.0, %v3991
        %v3993 = vpop.f32.mrb[0].mxu0
        %v3994 = vadd.f32 0.0, %v3993
        %3995 = vdwg.mxu0
        %v3996 = vadd.f32 %v3927, %v3988
        %v3997 = vadd.f32 %v3929, %v3990
        %v3998 = vadd.f32 %v3931, %v3992
        %v3999 = vadd.f32 %v3933, %v3994
        %v4000 = vld [vmem:[%s14] sm:$0xff]
        %v4001 = vld [vmem:[%s14 + $0x8] sm:$0xff]
        %4003 = vset.pattern.permute.xlu0 0
        %4004 = vperm.xlu0 %4003, %v4000
        %v4005 = vpop.permute.xlu0 %4004
        %4008 = vset.pattern.permute.xlu0 0
        %4009 = vperm.xlu0 %4008, %v4001
        %v4010 = vpop.permute.xlu0 %4009
        %v4012 = vadd.f32 %v3996, %v4005
        %v4013 = vadd.f32 %v3997, %v4005
        %v4014 = vadd.f32 %v3998, %v4010
        %v4015 = vadd.f32 %v3999, %v4010
        %4016 = vst [vmem:[%s500] sm:$0xff] %v4012
        %4017 = vst [vmem:[%s500 + $0x8] sm:$0xff] %v4013
        %4018 = vst [vmem:[%s500 + $0x10] sm:$0xff] %v4014
        %4019 = vst [vmem:[%s500 + $0x18] sm:$0xff] %v4015
        %s4020 = sand.u32 %s362, 1
        %s4021 = scalar_lea.sflag [#allocation6], %s4020
        %s4022 = sand.u32 %s362, 1
        %s4023 = smul.addr %s4022, 32
        %s4024 = scalar_lea.vmem [#allocation5], %s4023
        // Predicated region
        $region81: #{tpu_custom_call.1} parent=79 // pred_check
          %p4025 = pneg %p372
        $region82: #{tpu_custom_call.1} parent=79 // pred_check_branch
          %4027 = sbr.rel (%p4025) target = $region84
        $region83: #{tpu_custom_call.1} parent=79 // pred_region
          %s4029 = ssub.s32 512, 512
          %4030 = vsyncadd %s4021, %s4029
          %s4031 = smul.addr %s29, 4
          %s4032 = smul.addr %s4031, 128
          %s4033 = scalar_lea.hbm %s15, %s4032
          %s4034 = sshll.u32 %s4024, 4
          %s4035 = int_to_ptr.vmem [resolvable:$true] %s4034
          %4040 = dma.vmem_to_hbm [thread:$0]  %s4035, 512, %s4033, %s4021, 256, 256, 16
        $region84: #{tpu_custom_call.1} parent=79 // pred_fallthru
          _
      $region80: #{tpu_custom_call.1} parent=5 // pred_fallthru
        _
      %p4041 = scmp.le.s32.totalorder 2, %s24
      // Predicated region
      $region85: #{tpu_custom_call.1} parent=5 // pred_check
        %p4042 = pneg %p4041
      $region86: #{tpu_custom_call.1} parent=5 // pred_check_branch
        %4044 = sbr.rel (%p4042) target = $region88
      $region87: #{tpu_custom_call.1} parent=5 // pred_region
        %s4045 = ssub.s32 %s24, 2
        // Predicated region
        $region89: #{tpu_custom_call.1} parent=87 // pred_check
          %p4046 = pneg %p378
        $region90: #{tpu_custom_call.1} parent=87 // pred_check_branch
          %4048 = sbr.rel (%p4046) target = $region92
        $region91: #{tpu_custom_call.1} parent=87 // pred_region
          %s4049 = sand.u32 %s363, 1
          %s4050 = scalar_lea.sflag [#allocation6], %s4049
          %s4051 = sand.u32 %s363, 1
          %s4052 = smul.addr %s4051, 32
          %s4053 = scalar_lea.vmem [#allocation5], %s4052
          %4054 = dma.done %s4050, 512
        $region92: #{tpu_custom_call.1} parent=87 // pred_fallthru
          _
      $region88: #{tpu_custom_call.1} parent=5 // pred_fallthru
        _
    $region6: #{tpu_custom_call.1} parent=1 // loop_footer
      %s28 = sadd.s32 1, %s24
    $region7: #{tpu_custom_call.1} parent=1 // loop_footer_branch
      %23 = sbr.rel target = $region3
    $region8: #{tpu_custom_call.1} parent=1 // loop_exit
      _
    %4055 = vsyncpa [#allocation6], 1
    %s4056 = scalar_lea.sflag [#allocation6], 1
    %4057 = vsyncpa %s4056, 1

// kernel: tpu_custom_call.1
$region0: #{tpu_custom_call.1}
  #allocation0 [shape = 'u32[]', space=smem, size = 0x4, offset = 0x4, fixed_abs, tag = 'smem constant byte address 0x4 - core index']
  #allocation1 [shape = 'u32[144,128]{1,0:T(1,128)}', space=vmem, size = 0x12000, scoped, tag = 'internal scratch']
  #allocation2 [shape = 'f32[8,368]{1,0:T(8,128)}', space=vmem, size = 0x3000, scoped, tag = 'scratch operand']
  #allocation3 [shape = 'bf16[8,304]{1,0:T(8,128)(2,1)}', space=vmem, size = 0x1800, scoped, tag = 'scratch operand']
  #allocation4 [shape = 'bf16[32,304]{1,0:T(16,128)(2,1)}', space=vmem, size = 0x6000, scoped, tag = 'scratch operand']
  %s0 = inlined_call_operand.vmem [shape: f32[2,8,256], index: 0, kind: input, shape index: {}]
  %s1 = inlined_call_operand.vmem [shape: f32[2,8,1], index: 1, kind: input, shape index: {}]
  %s2 = inlined_call_operand.vmem [shape: f32[8,49], index: 2, kind: input, shape index: {}]
  %s3 = inlined_call_operand.vmem [shape: f32[8,1], index: 3, kind: input, shape index: {}]
  %s4 = inlined_call_operand.vmem [shape: bf16[7,256], index: 4, kind: input, shape index: {}]
  %s5 = inlined_call_operand.vmem [shape: f32[8,1], index: 5, kind: input, shape index: {}]
  %s6 = inlined_call_operand.vmem [shape: f32[8,1], index: 6, kind: input, shape index: {}]
  %s7 = inlined_call_operand.vmem [shape: bf16[32,72], index: 7, kind: input, shape index: {}]
  %s8 = inlined_call_operand.vmem [shape: f32[32,1], index: 8, kind: input, shape index: {}]
  %s9 = inlined_call_operand.vmem [shape: f32[32,1], index: 9, kind: input, shape index: {}]
  %s10 = inlined_call_operand.vmem [shape: f32[32,1], index: 10, kind: input, shape index: {}]
  %s11 = inlined_call_operand.vmem [shape: bf16[16,288], index: 11, kind: input, shape index: {}]
  %s12 = inlined_call_operand.vmem [shape: f32[16,1], index: 12, kind: input, shape index: {}]
  %s13 = inlined_call_operand.vmem [shape: bf16[16,8], index: 13, kind: input, shape index: {}]
  %s14 = inlined_call_operand.vmem [shape: f32[16,1], index: 14, kind: input, shape index: {}]
  %s15 = inlined_call_operand.hbm [shape: f32[2,16,256], index: 15, kind: output, shape index: {}]
  %s16 = sld [smem:[#allocation0]]
  $region93: #{tpu_custom_call.1} parent=0
    _
  %s18 = ssub.s32 1, %s16
  %s19 = scalar_select 0, %s18, %s16
  $region1: #{tpu_custom_call.1} parent=0
    #allocation5 [shape = 'u8[32768]{0}', space=vmem, size = 0x8000, scoped, tag = 'output window, operand 0']
    #allocation6 [shape = 's32[2]{0}', space=sflag, size = 0x8, scoped, tag = 'scoped memory for tpu_custom_call.1']
    %20 = vsyncpa [#allocation6], 0
    %s21 = scalar_lea.sflag [#allocation6], 1
    %22 = vsyncpa %s21, 0
    loop: start=0, step=1, limit=4
    $region2: #{tpu_custom_call.1} parent=1 // loop_pre_header
      _
    $region3: #{tpu_custom_call.1} parent=1 // loop_header
      %s24 = sphi 0, %s28
      %p25 = scmp.ge.s32.totalorder %s24, 4
      %s34 = sphi 0, %s36
      %s37 = sphi 0, %s34
      %s38 = sphi 0, %s37
      %s54 = sphi 0, %s38
      %s60 = sphi 0, %s62
      %s63 = sphi 0, %s60
      %s64 = sphi 0, %s63
      %s80 = sphi 0, %s64
      %s84 = sphi 0, %s84
      %s86 = sphi 0, %s84
      %s87 = sphi 0, %s86
      %s101 = sphi 0, %s87
      %s105 = sphi 0, %s105
      %s107 = sphi 0, %s105
      %s108 = sphi 0, %s107
      %s122 = sphi 0, %s108
      %s126 = sphi 0, %s126
      %s128 = sphi 0, %s126
      %s129 = sphi 0, %s128
      %s143 = sphi 0, %s129
      %s147 = sphi 0, %s147
      %s149 = sphi 0, %s147
      %s150 = sphi 0, %s149
      %s164 = sphi 0, %s150
      %s168 = sphi 0, %s168
      %s170 = sphi 0, %s168
      %s171 = sphi 0, %s170
      %s185 = sphi 0, %s171
      %s189 = sphi 0, %s189
      %s191 = sphi 0, %s189
      %s192 = sphi 0, %s191
      %s206 = sphi 0, %s192
      %s210 = sphi 0, %s210
      %s212 = sphi 0, %s210
      %s213 = sphi 0, %s212
      %s227 = sphi 0, %s213
      %s231 = sphi 0, %s231
      %s233 = sphi 0, %s231
      %s234 = sphi 0, %s233
      %s248 = sphi 0, %s234
      %s252 = sphi 0, %s252
      %s254 = sphi 0, %s252
      %s255 = sphi 0, %s254
      %s269 = sphi 0, %s255
      %s273 = sphi 0, %s273
      %s275 = sphi 0, %s273
      %s276 = sphi 0, %s275
      %s290 = sphi 0, %s276
      %s294 = sphi 0, %s294
      %s296 = sphi 0, %s294
      %s297 = sphi 0, %s296
      %s311 = sphi 0, %s297
      %s315 = sphi 0, %s315
      %s317 = sphi 0, %s315
      %s318 = sphi 0, %s317
      %s332 = sphi 0, %s318
      %s336 = sphi 0, %s336
      %s338 = sphi 0, %s336
      %s339 = sphi 0, %s338
      %s353 = sphi 0, %s339
      %s359 = sphi 0, %s361
      %s362 = sphi 0, %s359
      %s363 = sphi 0, %s362
      %s379 = sphi 0, %s363
    $region4: #{tpu_custom_call.1} parent=1 // loop_header_branch
      %27 = sbr.rel (%p25) target = $region8
    $region5: #{tpu_custom_call.1} parent=1 // loop_body
      %s29 = ssub.s32 %s24, 1
      %s30 = ssub.s32 %s24, 2
      %s31 = sadd.s32 %s24, 1
      %s32 = ssub.s32 %s24, %s31
      %p33 = scmp.eq.s32.totalorder %s32, 0
      %s35 = sadd.s32 %s34, 1
      %s36 = scalar_select %p33, %s34, %s35
      %p39 = pneg %p33
      %p40 = scmp.eq.s32.totalorder %s24, 1
      %p41 = por %p39, %p40
      %p42 = scmp.ne.s32.totalorder %s34, %s37
      %p43 = scmp.eq.s32.totalorder %s24, 0
      %p44 = por %p42, %p43
      %p45 = scmp.ne.s32.totalorder %s34, %s37
      %p46 = scmp.eq.s32.totalorder %s29, 1
      %p47 = por %p45, %p46
      %p48 = scmp.ne.s32.totalorder %s37, %s38
      %p49 = scmp.eq.s32.totalorder %s29, 0
      %p50 = por %p48, %p49
      %p51 = scmp.ne.s32.totalorder %s37, %s38
      %p52 = scmp.eq.s32.totalorder %s30, 1
      %p53 = por %p51, %p52
      %p55 = scmp.ne.s32.totalorder %s38, %s54
      %p56 = scmp.eq.s32.totalorder %s30, 0
      %p57 = por %p55, %p56
      %s58 = ssub.s32 %s24, %s31
      %p59 = scmp.eq.s32.totalorder %s58, 0
      %s61 = sadd.s32 %s60, 1
      %s62 = scalar_select %p59, %s60, %s61
      %p65 = pneg %p59
      %p66 = scmp.eq.s32.totalorder %s24, 1
      %p67 = por %p65, %p66
      %p68 = scmp.ne.s32.totalorder %s60, %s63
      %p69 = scmp.eq.s32.totalorder %s24, 0
      %p70 = por %p68, %p69
      %p71 = scmp.ne.s32.totalorder %s60, %s63
      %p72 = scmp.eq.s32.totalorder %s29, 1
      %p73 = por %p71, %p72
      %p74 = scmp.ne.s32.totalorder %s63, %s64
      %p75 = scmp.eq.s32.totalorder %s29, 0
      %p76 = por %p74, %p75
      %p77 = scmp.ne.s32.totalorder %s63, %s64
      %p78 = scmp.eq.s32.totalorder %s30, 1
      %p79 = por %p77, %p78
      %p81 = scmp.ne.s32.totalorder %s64, %s80
      %p82 = scmp.eq.s32.totalorder %s30, 0
      %p83 = por %p81, %p82
      %s85 = sadd.s32 %s84, 1
      %p88 = scmp.eq.s32.totalorder %s24, 1
      %p89 = scmp.ne.s32.totalorder %s84, %s86
      %p90 = scmp.eq.s32.totalorder %s24, 0
      %p91 = por %p89, %p90
      %p92 = scmp.ne.s32.totalorder %s84, %s86
      %p93 = scmp.eq.s32.totalorder %s29, 1
      %p94 = por %p92, %p93
      %p95 = scmp.ne.s32.totalorder %s86, %s87
      %p96 = scmp.eq.s32.totalorder %s29, 0
      %p97 = por %p95, %p96
      %p98 = scmp.ne.s32.totalorder %s86, %s87
      %p99 = scmp.eq.s32.totalorder %s30, 1
      %p100 = por %p98, %p99
      %p102 = scmp.ne.s32.totalorder %s87, %s101
      %p103 = scmp.eq.s32.totalorder %s30, 0
      %p104 = por %p102, %p103
      %s106 = sadd.s32 %s105, 1
      %p109 = scmp.eq.s32.totalorder %s24, 1
      %p110 = scmp.ne.s32.totalorder %s105, %s107
      %p111 = scmp.eq.s32.totalorder %s24, 0
      %p112 = por %p110, %p111
      %p113 = scmp.ne.s32.totalorder %s105, %s107
      %p114 = scmp.eq.s32.totalorder %s29, 1
      %p115 = por %p113, %p114
      %p116 = scmp.ne.s32.totalorder %s107, %s108
      %p117 = scmp.eq.s32.totalorder %s29, 0
      %p118 = por %p116, %p117
      %p119 = scmp.ne.s32.totalorder %s107, %s108
      %p120 = scmp.eq.s32.totalorder %s30, 1
      %p121 = por %p119, %p120
      %p123 = scmp.ne.s32.totalorder %s108, %s122
      %p124 = scmp.eq.s32.totalorder %s30, 0
      %p125 = por %p123, %p124
      %s127 = sadd.s32 %s126, 1
      %p130 = scmp.eq.s32.totalorder %s24, 1
      %p131 = scmp.ne.s32.totalorder %s126, %s128
      %p132 = scmp.eq.s32.totalorder %s24, 0
      %p133 = por %p131, %p132
      %p134 = scmp.ne.s32.totalorder %s126, %s128
      %p135 = scmp.eq.s32.totalorder %s29, 1
      %p136 = por %p134, %p135
      %p137 = scmp.ne.s32.totalorder %s128, %s129
      %p138 = scmp.eq.s32.totalorder %s29, 0
      %p139 = por %p137, %p138
      %p140 = scmp.ne.s32.totalorder %s128, %s129
      %p141 = scmp.eq.s32.totalorder %s30, 1
      %p142 = por %p140, %p141
      %p144 = scmp.ne.s32.totalorder %s129, %s143
      %p145 = scmp.eq.s32.totalorder %s30, 0
      %p146 = por %p144, %p145
      %s148 = sadd.s32 %s147, 1
      %p151 = scmp.eq.s32.totalorder %s24, 1
      %p152 = scmp.ne.s32.totalorder %s147, %s149
      %p153 = scmp.eq.s32.totalorder %s24, 0
      %p154 = por %p152, %p153
      %p155 = scmp.ne.s32.totalorder %s147, %s149
      %p156 = scmp.eq.s32.totalorder %s29, 1
      %p157 = por %p155, %p156
      %p158 = scmp.ne.s32.totalorder %s149, %s150
      %p159 = scmp.eq.s32.totalorder %s29, 0
      %p160 = por %p158, %p159
      %p161 = scmp.ne.s32.totalorder %s149, %s150
      %p162 = scmp.eq.s32.totalorder %s30, 1
      %p163 = por %p161, %p162
      %p165 = scmp.ne.s32.totalorder %s150, %s164
      %p166 = scmp.eq.s32.totalorder %s30, 0
      %p167 = por %p165, %p166
      %s169 = sadd.s32 %s168, 1
      %p172 = scmp.eq.s32.totalorder %s24, 1
      %p173 = scmp.ne.s32.totalorder %s168, %s170
      %p174 = scmp.eq.s32.totalorder %s24, 0
      %p175 = por %p173, %p174
      %p176 = scmp.ne.s32.totalorder %s168, %s170
      %p177 = scmp.eq.s32.totalorder %s29, 1
      %p178 = por %p176, %p177
      %p179 = scmp.ne.s32.totalorder %s170, %s171
      %p180 = scmp.eq.s32.totalorder %s29, 0
      %p181 = por %p179, %p180
      %p182 = scmp.ne.s32.totalorder %s170, %s171
      %p183 = scmp.eq.s32.totalorder %s30, 1
      %p184 = por %p182, %p183
      %p186 = scmp.ne.s32.totalorder %s171, %s185
      %p187 = scmp.eq.s32.totalorder %s30, 0
      %p188 = por %p186, %p187
      %s190 = sadd.s32 %s189, 1
      %p193 = scmp.eq.s32.totalorder %s24, 1
      %p194 = scmp.ne.s32.totalorder %s189, %s191
      %p195 = scmp.eq.s32.totalorder %s24, 0
      %p196 = por %p194, %p195
      %p197 = scmp.ne.s32.totalorder %s189, %s191
      %p198 = scmp.eq.s32.totalorder %s29, 1
      %p199 = por %p197, %p198
      %p200 = scmp.ne.s32.totalorder %s191, %s192
      %p201 = scmp.eq.s32.totalorder %s29, 0
      %p202 = por %p200, %p201
      %p203 = scmp.ne.s32.totalorder %s191, %s192
      %p204 = scmp.eq.s32.totalorder %s30, 1
      %p205 = por %p203, %p204
      %p207 = scmp.ne.s32.totalorder %s192, %s206
      %p208 = scmp.eq.s32.totalorder %s30, 0
      %p209 = por %p207, %p208
      %s211 = sadd.s32 %s210, 1
      %p214 = scmp.eq.s32.totalorder %s24, 1
      %p215 = scmp.ne.s32.totalorder %s210, %s212
      %p216 = scmp.eq.s32.totalorder %s24, 0
      %p217 = por %p215, %p216
      %p218 = scmp.ne.s32.totalorder %s210, %s212
      %p219 = scmp.eq.s32.totalorder %s29, 1
      %p220 = por %p218, %p219
      %p221 = scmp.ne.s32.totalorder %s212, %s213
      %p222 = scmp.eq.s32.totalorder %s29, 0
      %p223 = por %p221, %p222
      %p224 = scmp.ne.s32.totalorder %s212, %s213
      %p225 = scmp.eq.s32.totalorder %s30, 1
      %p226 = por %p224, %p225
      %p228 = scmp.ne.s32.totalorder %s213, %s227
      %p229 = scmp.eq.s32.totalorder %s30, 0
      %p230 = por %p228, %p229
      %s232 = sadd.s32 %s231, 1
      %p235 = scmp.eq.s32.totalorder %s24, 1
      %p236 = scmp.ne.s32.totalorder %s231, %s233
      %p237 = scmp.eq.s32.totalorder %s24, 0
      %p238 = por %p236, %p237
      %p239 = scmp.ne.s32.totalorder %s231, %s233
      %p240 = scmp.eq.s32.totalorder %s29, 1
      %p241 = por %p239, %p240
      %p242 = scmp.ne.s32.totalorder %s233, %s234
      %p243 = scmp.eq.s32.totalorder %s29, 0
      %p244 = por %p242, %p243
      %p245 = scmp.ne.s32.totalorder %s233, %s234
      %p246 = scmp.eq.s32.totalorder %s30, 1
      %p247 = por %p245, %p246
      %p249 = scmp.ne.s32.totalorder %s234, %s248
      %p250 = scmp.eq.s32.totalorder %s30, 0
      %p251 = por %p249, %p250
      %s253 = sadd.s32 %s252, 1
      %p256 = scmp.eq.s32.totalorder %s24, 1
      %p257 = scmp.ne.s32.totalorder %s252, %s254
      %p258 = scmp.eq.s32.totalorder %s24, 0
      %p259 = por %p257, %p258
      %p260 = scmp.ne.s32.totalorder %s252, %s254
      %p261 = scmp.eq.s32.totalorder %s29, 1
      %p262 = por %p260, %p261
      %p263 = scmp.ne.s32.totalorder %s254, %s255
      %p264 = scmp.eq.s32.totalorder %s29, 0
      %p265 = por %p263, %p264
      %p266 = scmp.ne.s32.totalorder %s254, %s255
      %p267 = scmp.eq.s32.totalorder %s30, 1
      %p268 = por %p266, %p267
      %p270 = scmp.ne.s32.totalorder %s255, %s269
      %p271 = scmp.eq.s32.totalorder %s30, 0
      %p272 = por %p270, %p271
      %s274 = sadd.s32 %s273, 1
      %p277 = scmp.eq.s32.totalorder %s24, 1
      %p278 = scmp.ne.s32.totalorder %s273, %s275
      %p279 = scmp.eq.s32.totalorder %s24, 0
      %p280 = por %p278, %p279
      %p281 = scmp.ne.s32.totalorder %s273, %s275
      %p282 = scmp.eq.s32.totalorder %s29, 1
      %p283 = por %p281, %p282
      %p284 = scmp.ne.s32.totalorder %s275, %s276
      %p285 = scmp.eq.s32.totalorder %s29, 0
      %p286 = por %p284, %p285
      %p287 = scmp.ne.s32.totalorder %s275, %s276
      %p288 = scmp.eq.s32.totalorder %s30, 1
      %p289 = por %p287, %p288
      %p291 = scmp.ne.s32.totalorder %s276, %s290
      %p292 = scmp.eq.s32.totalorder %s30, 0
      %p293 = por %p291, %p292
      %s295 = sadd.s32 %s294, 1
      %p298 = scmp.eq.s32.totalorder %s24, 1
      %p299 = scmp.ne.s32.totalorder %s294, %s296
      %p300 = scmp.eq.s32.totalorder %s24, 0
      %p301 = por %p299, %p300
      %p302 = scmp.ne.s32.totalorder %s294, %s296
      %p303 = scmp.eq.s32.totalorder %s29, 1
      %p304 = por %p302, %p303
      %p305 = scmp.ne.s32.totalorder %s296, %s297
      %p306 = scmp.eq.s32.totalorder %s29, 0
      %p307 = por %p305, %p306
      %p308 = scmp.ne.s32.totalorder %s296, %s297
      %p309 = scmp.eq.s32.totalorder %s30, 1
      %p310 = por %p308, %p309
      %p312 = scmp.ne.s32.totalorder %s297, %s311
      %p313 = scmp.eq.s32.totalorder %s30, 0
      %p314 = por %p312, %p313
      %s316 = sadd.s32 %s315, 1
      %p319 = scmp.eq.s32.totalorder %s24, 1
      %p320 = scmp.ne.s32.totalorder %s315, %s317
      %p321 = scmp.eq.s32.totalorder %s24, 0
      %p322 = por %p320, %p321
      %p323 = scmp.ne.s32.totalorder %s315, %s317
      %p324 = scmp.eq.s32.totalorder %s29, 1
      %p325 = por %p323, %p324
      %p326 = scmp.ne.s32.totalorder %s317, %s318
      %p327 = scmp.eq.s32.totalorder %s29, 0
      %p328 = por %p326, %p327
      %p329 = scmp.ne.s32.totalorder %s317, %s318
      %p330 = scmp.eq.s32.totalorder %s30, 1
      %p331 = por %p329, %p330
      %p333 = scmp.ne.s32.totalorder %s318, %s332
      %p334 = scmp.eq.s32.totalorder %s30, 0
      %p335 = por %p333, %p334
      %s337 = sadd.s32 %s336, 1
      %p340 = scmp.eq.s32.totalorder %s24, 1
      %p341 = scmp.ne.s32.totalorder %s336, %s338
      %p342 = scmp.eq.s32.totalorder %s24, 0
      %p343 = por %p341, %p342
      %p344 = scmp.ne.s32.totalorder %s336, %s338
      %p345 = scmp.eq.s32.totalorder %s29, 1
      %p346 = por %p344, %p345
      %p347 = scmp.ne.s32.totalorder %s338, %s339
      %p348 = scmp.eq.s32.totalorder %s29, 0
      %p349 = por %p347, %p348
      %p350 = scmp.ne.s32.totalorder %s338, %s339
      %p351 = scmp.eq.s32.totalorder %s30, 1
      %p352 = por %p350, %p351
      %p354 = scmp.ne.s32.totalorder %s339, %s353
      %p355 = scmp.eq.s32.totalorder %s30, 0
      %p356 = por %p354, %p355
      %s357 = ssub.s32 %s24, %s31
      %p358 = scmp.eq.s32.totalorder %s357, 0
      %s360 = sadd.s32 %s359, 1
      %s361 = scalar_select %p358, %s359, %s360
      %p364 = pneg %p358
      %p365 = scmp.eq.s32.totalorder %s24, 1
      %p366 = por %p364, %p365
      %p367 = scmp.ne.s32.totalorder %s359, %s362
      %p368 = scmp.eq.s32.totalorder %s24, 0
      %p369 = por %p367, %p368
      %p370 = scmp.ne.s32.totalorder %s359, %s362
      %p371 = scmp.eq.s32.totalorder %s29, 1
      %p372 = por %p370, %p371
      %p373 = scmp.ne.s32.totalorder %s362, %s363
      %p374 = scmp.eq.s32.totalorder %s29, 0
      %p375 = por %p373, %p374
      %p376 = scmp.ne.s32.totalorder %s362, %s363
      %p377 = scmp.eq.s32.totalorder %s30, 1
      %p378 = por %p376, %p377
      %p380 = scmp.ne.s32.totalorder %s363, %s379
      %p381 = scmp.eq.s32.totalorder %s30, 0
      %p382 = por %p380, %p381
      %p383 = scmp.le.s32.totalorder 1, %s24
      %p384 = scmp.lt.s32.totalorder %s24, 3
      %p385 = pnand %p383, %p384
      %p386 = pneg %p385
      // Predicated region
      $region9: #{tpu_custom_call.1} parent=5 // pred_check
        _
      $region10: #{tpu_custom_call.1} parent=5 // pred_check_branch
        %388 = sbr.rel (%p385) target = $region12
      $region11: #{tpu_custom_call.1} parent=5 // pred_region
        %s389 = ssub.s32 %s24, 1
        // Predicated region
        $region13: #{tpu_custom_call.1} parent=11 // pred_check
          %p390 = pneg %p97
        $region14: #{tpu_custom_call.1} parent=11 // pred_check_branch
          %392 = sbr.rel (%p390) target = $region16
        $region15: #{tpu_custom_call.1} parent=11 // pred_region
          _
        $region16: #{tpu_custom_call.1} parent=11 // pred_fallthru
          _
        // Predicated region
        $region17: #{tpu_custom_call.1} parent=11 // pred_check
          %p393 = pneg %p118
        $region18: #{tpu_custom_call.1} parent=11 // pred_check_branch
          %395 = sbr.rel (%p393) target = $region20
        $region19: #{tpu_custom_call.1} parent=11 // pred_region
          _
        $region20: #{tpu_custom_call.1} parent=11 // pred_fallthru
          _
        // Predicated region
        $region21: #{tpu_custom_call.1} parent=11 // pred_check
          %p396 = pneg %p139
        $region22: #{tpu_custom_call.1} parent=11 // pred_check_branch
          %398 = sbr.rel (%p396) target = $region24
        $region23: #{tpu_custom_call.1} parent=11 // pred_region
          _
        $region24: #{tpu_custom_call.1} parent=11 // pred_fallthru
          _
        // Predicated region
        $region25: #{tpu_custom_call.1} parent=11 // pred_check
          %p399 = pneg %p160
        $region26: #{tpu_custom_call.1} parent=11 // pred_check_branch
          %401 = sbr.rel (%p399) target = $region28
        $region27: #{tpu_custom_call.1} parent=11 // pred_region
          _
        $region28: #{tpu_custom_call.1} parent=11 // pred_fallthru
          _
        // Predicated region
        $region29: #{tpu_custom_call.1} parent=11 // pred_check
          %p402 = pneg %p181
        $region30: #{tpu_custom_call.1} parent=11 // pred_check_branch
          %404 = sbr.rel (%p402) target = $region32
        $region31: #{tpu_custom_call.1} parent=11 // pred_region
          _
        $region32: #{tpu_custom_call.1} parent=11 // pred_fallthru
          _
        // Predicated region
        $region33: #{tpu_custom_call.1} parent=11 // pred_check
          %p405 = pneg %p202
        $region34: #{tpu_custom_call.1} parent=11 // pred_check_branch
          %407 = sbr.rel (%p405) target = $region36
        $region35: #{tpu_custom_call.1} parent=11 // pred_region
          _
        $region36: #{tpu_custom_call.1} parent=11 // pred_fallthru
          _
        // Predicated region
        $region37: #{tpu_custom_call.1} parent=11 // pred_check
          %p408 = pneg %p223
        $region38: #{tpu_custom_call.1} parent=11 // pred_check_branch
          %410 = sbr.rel (%p408) target = $region40
        $region39: #{tpu_custom_call.1} parent=11 // pred_region
          _
        $region40: #{tpu_custom_call.1} parent=11 // pred_fallthru
          _
        // Predicated region
        $region41: #{tpu_custom_call.1} parent=11 // pred_check
          %p411 = pneg %p244
        $region42: #{tpu_custom_call.1} parent=11 // pred_check_branch
          %413 = sbr.rel (%p411) target = $region44
        $region43: #{tpu_custom_call.1} parent=11 // pred_region
          _
        $region44: #{tpu_custom_call.1} parent=11 // pred_fallthru
          _
        // Predicated region
        $region45: #{tpu_custom_call.1} parent=11 // pred_check
          %p414 = pneg %p265
        $region46: #{tpu_custom_call.1} parent=11 // pred_check_branch
          %416 = sbr.rel (%p414) target = $region48
        $region47: #{tpu_custom_call.1} parent=11 // pred_region
          _
        $region48: #{tpu_custom_call.1} parent=11 // pred_fallthru
          _
        // Predicated region
        $region49: #{tpu_custom_call.1} parent=11 // pred_check
          %p417 = pneg %p286
        $region50: #{tpu_custom_call.1} parent=11 // pred_check_branch
          %419 = sbr.rel (%p417) target = $region52
        $region51: #{tpu_custom_call.1} parent=11 // pred_region
          _
        $region52: #{tpu_custom_call.1} parent=11 // pred_fallthru
          _
        // Predicated region
        $region53: #{tpu_custom_call.1} parent=11 // pred_check
          %p420 = pneg %p307
        $region54: #{tpu_custom_call.1} parent=11 // pred_check_branch
          %422 = sbr.rel (%p420) target = $region56
        $region55: #{tpu_custom_call.1} parent=11 // pred_region
          _
        $region56: #{tpu_custom_call.1} parent=11 // pred_fallthru
          _
        // Predicated region
        $region57: #{tpu_custom_call.1} parent=11 // pred_check
          %p423 = pneg %p328
        $region58: #{tpu_custom_call.1} parent=11 // pred_check_branch
          %425 = sbr.rel (%p423) target = $region60
        $region59: #{tpu_custom_call.1} parent=11 // pred_region
          _
        $region60: #{tpu_custom_call.1} parent=11 // pred_fallthru
          _
        // Predicated region
        $region61: #{tpu_custom_call.1} parent=11 // pred_check
          %p426 = pneg %p349
        $region62: #{tpu_custom_call.1} parent=11 // pred_check_branch
          %428 = sbr.rel (%p426) target = $region64
        $region63: #{tpu_custom_call.1} parent=11 // pred_region
          _
        $region64: #{tpu_custom_call.1} parent=11 // pred_fallthru
          _
      $region12: #{tpu_custom_call.1} parent=5 // pred_fallthru
        _
      %p429 = scmp.lt.s32.totalorder %s24, 2
      // Predicated region
      $region65: #{tpu_custom_call.1} parent=5 // pred_check
        %p430 = pneg %p429
      $region66: #{tpu_custom_call.1} parent=5 // pred_check_branch
        %432 = sbr.rel (%p430) target = $region68
      $region67: #{tpu_custom_call.1} parent=5 // pred_region
        // Predicated region
        $region69: #{tpu_custom_call.1} parent=67 // pred_check
          %p433 = pneg %p44
        $region70: #{tpu_custom_call.1} parent=67 // pred_check_branch
          %435 = sbr.rel (%p433) target = $region72
        $region71: #{tpu_custom_call.1} parent=67 // pred_region
          %p436 = scmp.lt.s32.totalorder %s24, 1
          %s437 = scalar_select %p436, %s24, 1
          %s438 = smul.addr %s437, 2
          %s439 = smul.addr %s438, 8
          %s440 = scalar_lea.vmem %s0, %s439
        $region72: #{tpu_custom_call.1} parent=67 // pred_fallthru
          _
        // Predicated region
        $region73: #{tpu_custom_call.1} parent=67 // pred_check
          %p441 = pneg %p70
        $region74: #{tpu_custom_call.1} parent=67 // pred_check_branch
          %443 = sbr.rel (%p441) target = $region76
        $region75: #{tpu_custom_call.1} parent=67 // pred_region
          %p444 = scmp.lt.s32.totalorder %s24, 1
          %s445 = scalar_select %p444, %s24, 1
          %s446 = smul.addr %s445, 8
          %s447 = scalar_lea.vmem %s1, %s446
        $region76: #{tpu_custom_call.1} parent=67 // pred_fallthru
          _
      $region68: #{tpu_custom_call.1} parent=5 // pred_fallthru
        _
      %p448 = scmp.le.s32.totalorder 1, %s24
      %p449 = scmp.lt.s32.totalorder %s24, 3
      %p450 = pnand %p448, %p449
      %p451 = pneg %p450
      // Predicated region
      $region77: #{tpu_custom_call.1} parent=5 // pred_check
        _
      $region78: #{tpu_custom_call.1} parent=5 // pred_check_branch
        %453 = sbr.rel (%p450) target = $region80
      $region79: #{tpu_custom_call.1} parent=5 // pred_region
        %s454 = ssub.s32 %s24, 1
        %p455 = scmp.lt.s32.totalorder %s29, 1
        %s456 = scalar_select %p455, %s29, 1
        %s457 = smul.addr %s456, 2
        %s458 = smul.addr %s457, 8
        %s459 = scalar_lea.vmem %s0, %s458
        %p460 = pneg %p50
        %p461 = pneg %p47
        %p462 = scmp.lt.s32.totalorder %s29, 1
        %s463 = scalar_select %p462, %s29, 1
        %s464 = smul.addr %s463, 8
        %s465 = scalar_lea.vmem %s1, %s464
        %p466 = pneg %p76
        %p467 = pneg %p73
        %p468 = pneg %p97
        %p469 = pneg %p94
        %p470 = pneg %p118
        %p471 = pneg %p115
        %p472 = pneg %p139
        %p473 = pneg %p136
        %p474 = pneg %p160
        %p475 = pneg %p157
        %p476 = pneg %p181
        %p477 = pneg %p178
        %p478 = pneg %p202
        %p479 = pneg %p199
        %p480 = pneg %p223
        %p481 = pneg %p220
        %p482 = pneg %p244
        %p483 = pneg %p241
        %p484 = pneg %p265
        %p485 = pneg %p262
        %p486 = pneg %p286
        %p487 = pneg %p283
        %p488 = pneg %p307
        %p489 = pneg %p304
        %p490 = pneg %p328
        %p491 = pneg %p325
        %p492 = pneg %p349
        %p493 = pneg %p346
        %p494 = pneg %p375
        %p495 = pneg %p372
        %s496 = sand.u32 %s362, 1
        %s497 = scalar_lea.sflag [#allocation6], %s496
        %s498 = sand.u32 %s362, 1
        %s499 = smul.addr %s498, 32
        %s500 = scalar_lea.vmem [#allocation5], %s499
        %p501 = scmp.lt.s32.totalorder %s29, 1
        %s502 = scalar_select %p501, %s29, 1
        %s503 = smul.addr %s502, 2
        %s504 = smul.addr %s503, 8
        %s505 = scalar_lea.vmem %s0, %s504
        %p506 = scmp.lt.s32.totalorder %s29, 1
        %s507 = scalar_select %p506, %s29, 1
        %s508 = smul.addr %s507, 8
        %s509 = scalar_lea.vmem %s1, %s508
        %v511 = vld [vmem:[%s505] sm:$0xff]
        %v512 = vld [vmem:[%s505 + $0x8] sm:$0xff]
        %vm513 = vcmask 457728
        %514 = vst.msk [vmem:[#allocation2] sm:$0xff] %vm513, 0.0
        %vm515 = vcmask 916928
        %516 = vst.msk [vmem:[#allocation2 + $0x10] sm:$0xff] %vm515, 0.0
        %519 = vrot.lane.b32.xlu0 %v511, 56
        %v520 = vpop.permute.xlu0 %519
        %521 = vrot.lane.b32.xlu0 %v512, 56
        %v522 = vpop.permute.xlu0 %521
        %v523 = vsel %vm513, %v520, %v522
        %vm527 = vcmask 1048000
        %528 = vst.msk [vmem:[#allocation2] sm:$0xff] %vm527, %v520
        %529 = vst [vmem:[#allocation2 + $0x8] sm:$0xff] %v523
        %530 = vst.msk [vmem:[#allocation2 + $0x10] sm:$0xff] %vm513, %v522
        %v531 = vld [vmem:[#allocation2] sm:$0xff]
        %v532 = vld [vmem:[#allocation2 + $0x8] sm:$0xff]
        %v533 = vld [vmem:[#allocation2 + $0x10] sm:$0xff]
        %v534 = vld [vmem:[%s2] sm:$0xff]
        %536 = vset.pattern.permute.xlu0 0
        %537 = vperm.xlu0 %536, %v534
        %v538 = vpop.permute.xlu0 %537
        %v540 = vmul.f32 %v531, %v538
        %v541 = vmul.f32 %v532, %v538
        %v542 = vmul.f32 %v533, %v538
        %v543 = vld [vmem:[%s4] sm:$0x11]
        %v544 = vunpack.c.l.bf16 %v543
        %v545 = vunpack.c.h.bf16 %v543
        %v546 = vlaneseq
        %v547 = vshrl.u32 %v546, 7
        %v548 = vsub.s32 0, %v547
        %v549 = vrot.slane %v544, %v548
        %v550 = vlaneseq
        %v551 = vshrl.u32 %v550, 7
        %v552 = vsub.s32 0, %v551
        %v553 = vrot.slane %v545, %v552
        %556 = vrot.lane.b32.xlu0 %v549, 5
        %v557 = vpop.permute.xlu0 %556
        %558 = vrot.lane.b32.xlu0 %v553, 5
        %v559 = vpop.permute.xlu0 %558
        %vm560 = vcmask 39936
        %v561 = vsel %vm560, %v557, %v559
        %v565 = vmul.f32 %v540, %v557
        %v566 = vmul.f32 %v541, %v561
        %v567 = vmul.f32 %v542, %v559
        %v568 = vadd.f32 %v565, 0.0
        %v569 = vadd.f32 %v566, 0.0
        %v570 = vadd.f32 %v567, 0.0
        %571 = vset.pattern.permute.xlu0 1
        %572 = vperm.xlu0 %571, %v534
        %v573 = vpop.permute.xlu0 %572
        %v575 = vmul.f32 %v531, %v573
        %v576 = vmul.f32 %v532, %v573
        %v577 = vmul.f32 %v533, %v573
        %v578 = vlaneseq
        %v579 = vshrl.u32 %v578, 7
        %v580 = vsub.s32 1, %v579
        %v581 = vrot.slane %v544, %v580
        %v582 = vlaneseq
        %v583 = vshrl.u32 %v582, 7
        %v584 = vsub.s32 1, %v583
        %v585 = vrot.slane %v545, %v584
        %588 = vrot.lane.b32.xlu0 %v581, 6
        %v589 = vpop.permute.xlu0 %588
        %590 = vrot.lane.b32.xlu0 %v585, 6
        %v591 = vpop.permute.xlu0 %590
        %vm592 = vcmask 48128
        %v593 = vsel %vm592, %v589, %v591
        %v597 = vmul.f32 %v575, %v589
        %v598 = vmul.f32 %v576, %v593
        %v599 = vmul.f32 %v577, %v591
        %603 = vrot.lane.b32.xlu0 %v597, 127
        %v604 = vpop.permute.xlu0 %603
        %605 = vrot.lane.b32.xlu0 %v598, 127
        %v606 = vpop.permute.xlu0 %605
        %607 = vrot.lane.b32.xlu0 %v599, 127
        %v608 = vpop.permute.xlu0 %607
        %vm609 = vcmask 1039360
        %v610 = vsel %vm609, %v604, %v606
        %v611 = vsel %vm609, %v606, %v608
        %v615 = vadd.f32 %v568, %v610
        %v616 = vadd.f32 %v569, %v611
        %v617 = vadd.f32 %v570, %v608
        %618 = vset.pattern.permute.xlu0 2
        %619 = vperm.xlu0 %618, %v534
        %v620 = vpop.permute.xlu0 %619
        %v622 = vmul.f32 %v531, %v620
        %v623 = vmul.f32 %v532, %v620
        %v624 = vmul.f32 %v533, %v620
        %v625 = vld [vmem:[%s4] sm:$0x22]
        %v626 = vunpack.c.l.bf16 %v625
        %v627 = vunpack.c.h.bf16 %v625
        %v628 = vlaneseq
        %v629 = vshrl.u32 %v628, 7
        %v630 = vsub.s32 2, %v629
        %v631 = vrot.slane %v626, %v630
        %v632 = vlaneseq
        %v633 = vshrl.u32 %v632, 7
        %v634 = vsub.s32 2, %v633
        %v635 = vrot.slane %v627, %v634
        %638 = vrot.lane.b32.xlu0 %v631, 7
        %v639 = vpop.permute.xlu0 %638
        %640 = vrot.lane.b32.xlu0 %v635, 7
        %v641 = vpop.permute.xlu0 %640
        %vm642 = vcmask 56320
        %v643 = vsel %vm642, %v639, %v641
        %v647 = vmul.f32 %v622, %v639
        %v648 = vmul.f32 %v623, %v643
        %v649 = vmul.f32 %v624, %v641
        %653 = vrot.lane.b32.xlu0 %v647, 126
        %v654 = vpop.permute.xlu0 %653
        %655 = vrot.lane.b32.xlu0 %v648, 126
        %v656 = vpop.permute.xlu0 %655
        %657 = vrot.lane.b32.xlu0 %v649, 126
        %v658 = vpop.permute.xlu0 %657
        %vm659 = vcmask 1031168
        %v660 = vsel %vm659, %v654, %v656
        %v661 = vsel %vm659, %v656, %v658
        %v665 = vadd.f32 %v615, %v660
        %v666 = vadd.f32 %v616, %v661
        %v667 = vadd.f32 %v617, %v658
        %668 = vset.pattern.permute.xlu0 3
        %669 = vperm.xlu0 %668, %v534
        %v670 = vpop.permute.xlu0 %669
        %v672 = vmul.f32 %v531, %v670
        %v673 = vmul.f32 %v532, %v670
        %v674 = vmul.f32 %v533, %v670
        %v675 = vlaneseq
        %v676 = vshrl.u32 %v675, 7
        %v677 = vsub.s32 3, %v676
        %v678 = vrot.slane %v626, %v677
        %v679 = vlaneseq
        %v680 = vshrl.u32 %v679, 7
        %v681 = vsub.s32 3, %v680
        %v682 = vrot.slane %v627, %v681
        %685 = vrot.lane.b32.xlu0 %v678, 8
        %v686 = vpop.permute.xlu0 %685
        %687 = vrot.lane.b32.xlu0 %v682, 8
        %v688 = vpop.permute.xlu0 %687
        %vm689 = vcmask 64512
        %v690 = vsel %vm689, %v686, %v688
        %v694 = vmul.f32 %v672, %v686
        %v695 = vmul.f32 %v673, %v690
        %v696 = vmul.f32 %v674, %v688
        %700 = vrot.lane.b32.xlu0 %v694, 125
        %v701 = vpop.permute.xlu0 %700
        %702 = vrot.lane.b32.xlu0 %v695, 125
        %v703 = vpop.permute.xlu0 %702
        %704 = vrot.lane.b32.xlu0 %v696, 125
        %v705 = vpop.permute.xlu0 %704
        %vm706 = vcmask 1022976
        %v707 = vsel %vm706, %v701, %v703
        %v708 = vsel %vm706, %v703, %v705
        %v712 = vadd.f32 %v665, %v707
        %v713 = vadd.f32 %v666, %v708
        %v714 = vadd.f32 %v667, %v705
        %715 = vset.pattern.permute.xlu0 4
        %716 = vperm.xlu0 %715, %v534
        %v717 = vpop.permute.xlu0 %716
        %v719 = vmul.f32 %v531, %v717
        %v720 = vmul.f32 %v532, %v717
        %v721 = vmul.f32 %v533, %v717
        %v722 = vld [vmem:[%s4] sm:$0x44]
        %v723 = vunpack.c.l.bf16 %v722
        %v724 = vunpack.c.h.bf16 %v722
        %v725 = vlaneseq
        %v726 = vshrl.u32 %v725, 7
        %v727 = vsub.s32 4, %v726
        %v728 = vrot.slane %v723, %v727
        %v729 = vlaneseq
        %v730 = vshrl.u32 %v729, 7
        %v731 = vsub.s32 4, %v730
        %v732 = vrot.slane %v724, %v731
        %735 = vrot.lane.b32.xlu0 %v728, 9
        %v736 = vpop.permute.xlu0 %735
        %737 = vrot.lane.b32.xlu0 %v732, 9
        %v738 = vpop.permute.xlu0 %737
        %vm739 = vcmask 72704
        %v740 = vsel %vm739, %v736, %v738
        %v744 = vmul.f32 %v719, %v736
        %v745 = vmul.f32 %v720, %v740
        %v746 = vmul.f32 %v721, %v738
        %750 = vrot.lane.b32.xlu0 %v744, 124
        %v751 = vpop.permute.xlu0 %750
        %752 = vrot.lane.b32.xlu0 %v745, 124
        %v753 = vpop.permute.xlu0 %752
        %754 = vrot.lane.b32.xlu0 %v746, 124
        %v755 = vpop.permute.xlu0 %754
        %vm756 = vcmask 1014784
        %v757 = vsel %vm756, %v751, %v753
        %v758 = vsel %vm756, %v753, %v755
        %v762 = vadd.f32 %v712, %v757
        %v763 = vadd.f32 %v713, %v758
        %v764 = vadd.f32 %v714, %v755
        %765 = vset.pattern.permute.xlu0 5
        %766 = vperm.xlu0 %765, %v534
        %v767 = vpop.permute.xlu0 %766
        %v769 = vmul.f32 %v531, %v767
        %v770 = vmul.f32 %v532, %v767
        %v771 = vmul.f32 %v533, %v767
        %v772 = vlaneseq
        %v773 = vshrl.u32 %v772, 7
        %v774 = vsub.s32 5, %v773
        %v775 = vrot.slane %v723, %v774
        %v776 = vlaneseq
        %v777 = vshrl.u32 %v776, 7
        %v778 = vsub.s32 5, %v777
        %v779 = vrot.slane %v724, %v778
        %782 = vrot.lane.b32.xlu0 %v775, 10
        %v783 = vpop.permute.xlu0 %782
        %784 = vrot.lane.b32.xlu0 %v779, 10
        %v785 = vpop.permute.xlu0 %784
        %vm786 = vcmask 80896
        %v787 = vsel %vm786, %v783, %v785
        %v791 = vmul.f32 %v769, %v783
        %v792 = vmul.f32 %v770, %v787
        %v793 = vmul.f32 %v771, %v785
        %797 = vrot.lane.b32.xlu0 %v791, 123
        %v798 = vpop.permute.xlu0 %797
        %799 = vrot.lane.b32.xlu0 %v792, 123
        %v800 = vpop.permute.xlu0 %799
        %801 = vrot.lane.b32.xlu0 %v793, 123
        %v802 = vpop.permute.xlu0 %801
        %vm803 = vcmask 1006592
        %v804 = vsel %vm803, %v798, %v800
        %v805 = vsel %vm803, %v800, %v802
        %v809 = vadd.f32 %v762, %v804
        %v810 = vadd.f32 %v763, %v805
        %v811 = vadd.f32 %v764, %v802
        %812 = vset.pattern.permute.xlu0 6
        %813 = vperm.xlu0 %812, %v534
        %v814 = vpop.permute.xlu0 %813
        %v816 = vmul.f32 %v531, %v814
        %v817 = vmul.f32 %v532, %v814
        %v818 = vmul.f32 %v533, %v814
        %v819 = vld [vmem:[%s4] sm:$0x88]
        %v820 = vunpack.c.l.bf16 %v819
        %v821 = vunpack.c.h.bf16 %v819
        %v822 = vlaneseq
        %v823 = vshrl.u32 %v822, 7
        %v824 = vsub.s32 6, %v823
        %v825 = vrot.slane %v820, %v824
        %v826 = vlaneseq
        %v827 = vshrl.u32 %v826, 7
        %v828 = vsub.s32 6, %v827
        %v829 = vrot.slane %v821, %v828
        %832 = vrot.lane.b32.xlu0 %v825, 11
        %v833 = vpop.permute.xlu0 %832
        %834 = vrot.lane.b32.xlu0 %v829, 11
        %v835 = vpop.permute.xlu0 %834
        %vm836 = vcmask 89088
        %v837 = vsel %vm836, %v833, %v835
        %v841 = vmul.f32 %v816, %v833
        %v842 = vmul.f32 %v817, %v837
        %v843 = vmul.f32 %v818, %v835
        %847 = vrot.lane.b32.xlu0 %v841, 122
        %v848 = vpop.permute.xlu0 %847
        %849 = vrot.lane.b32.xlu0 %v842, 122
        %v850 = vpop.permute.xlu0 %849
        %851 = vrot.lane.b32.xlu0 %v843, 122
        %v852 = vpop.permute.xlu0 %851
        %vm853 = vcmask 998400
        %v854 = vsel %vm853, %v848, %v850
        %v855 = vsel %vm853, %v850, %v852
        %v859 = vadd.f32 %v809, %v854
        %v860 = vadd.f32 %v810, %v855
        %v861 = vadd.f32 %v811, %v852
        %862 = vset.pattern.permute.xlu0 7
        %863 = vperm.xlu0 %862, %v534
        %v864 = vpop.permute.xlu0 %863
        %v866 = vmul.f32 %v531, %v864
        %v867 = vmul.f32 %v532, %v864
        %v868 = vmul.f32 %v533, %v864
        %869 = vrot.lane.b32.xlu0 %v549, 21
        %v870 = vpop.permute.xlu0 %869
        %871 = vrot.lane.b32.xlu0 %v553, 21
        %v872 = vpop.permute.xlu0 %871
        %vm873 = vcmask 171008
        %v874 = vsel %vm873, %v870, %v872
        %v878 = vmul.f32 %v866, %v870
        %v879 = vmul.f32 %v867, %v874
        %v880 = vmul.f32 %v868, %v872
        %884 = vrot.lane.b32.xlu0 %v878, 112
        %v885 = vpop.permute.xlu0 %884
        %886 = vrot.lane.b32.xlu0 %v879, 112
        %v887 = vpop.permute.xlu0 %886
        %888 = vrot.lane.b32.xlu0 %v880, 112
        %v889 = vpop.permute.xlu0 %888
        %vm890 = vcmask 916480
        %v891 = vsel %vm890, %v885, %v887
        %v892 = vsel %vm890, %v887, %v889
        %v896 = vadd.f32 %v859, %v891
        %v897 = vadd.f32 %v860, %v892
        %v898 = vadd.f32 %v861, %v889
        %899 = vset.pattern.permute.xlu0 8
        %900 = vperm.xlu0 %899, %v534
        %v901 = vpop.permute.xlu0 %900
        %v903 = vmul.f32 %v531, %v901
        %v904 = vmul.f32 %v532, %v901
        %v905 = vmul.f32 %v533, %v901
        %906 = vrot.lane.b32.xlu0 %v581, 22
        %v907 = vpop.permute.xlu0 %906
        %908 = vrot.lane.b32.xlu0 %v585, 22
        %v909 = vpop.permute.xlu0 %908
        %vm910 = vcmask 179200
        %v911 = vsel %vm910, %v907, %v909
        %v915 = vmul.f32 %v903, %v907
        %v916 = vmul.f32 %v904, %v911
        %v917 = vmul.f32 %v905, %v909
        %921 = vrot.lane.b32.xlu0 %v915, 111
        %v922 = vpop.permute.xlu0 %921
        %923 = vrot.lane.b32.xlu0 %v916, 111
        %v924 = vpop.permute.xlu0 %923
        %925 = vrot.lane.b32.xlu0 %v917, 111
        %v926 = vpop.permute.xlu0 %925
        %vm927 = vcmask 908288
        %v928 = vsel %vm927, %v922, %v924
        %v929 = vsel %vm927, %v924, %v926
        %v933 = vadd.f32 %v896, %v928
        %v934 = vadd.f32 %v897, %v929
        %v935 = vadd.f32 %v898, %v926
        %936 = vset.pattern.permute.xlu0 9
        %937 = vperm.xlu0 %936, %v534
        %v938 = vpop.permute.xlu0 %937
        %v940 = vmul.f32 %v531, %v938
        %v941 = vmul.f32 %v532, %v938
        %v942 = vmul.f32 %v533, %v938
        %943 = vrot.lane.b32.xlu0 %v631, 23
        %v944 = vpop.permute.xlu0 %943
        %945 = vrot.lane.b32.xlu0 %v635, 23
        %v946 = vpop.permute.xlu0 %945
        %vm947 = vcmask 187392
        %v948 = vsel %vm947, %v944, %v946
        %v952 = vmul.f32 %v940, %v944
        %v953 = vmul.f32 %v941, %v948
        %v954 = vmul.f32 %v942, %v946
        %958 = vrot.lane.b32.xlu0 %v952, 110
        %v959 = vpop.permute.xlu0 %958
        %960 = vrot.lane.b32.xlu0 %v953, 110
        %v961 = vpop.permute.xlu0 %960
        %962 = vrot.lane.b32.xlu0 %v954, 110
        %v963 = vpop.permute.xlu0 %962
        %vm964 = vcmask 900096
        %v965 = vsel %vm964, %v959, %v961
        %v966 = vsel %vm964, %v961, %v963
        %v970 = vadd.f32 %v933, %v965
        %v971 = vadd.f32 %v934, %v966
        %v972 = vadd.f32 %v935, %v963
        %973 = vset.pattern.permute.xlu0 10
        %974 = vperm.xlu0 %973, %v534
        %v975 = vpop.permute.xlu0 %974
        %v977 = vmul.f32 %v531, %v975
        %v978 = vmul.f32 %v532, %v975
        %v979 = vmul.f32 %v533, %v975
        %980 = vrot.lane.b32.xlu0 %v678, 24
        %v981 = vpop.permute.xlu0 %980
        %982 = vrot.lane.b32.xlu0 %v682, 24
        %v983 = vpop.permute.xlu0 %982
        %vm984 = vcmask 195584
        %v985 = vsel %vm984, %v981, %v983
        %v989 = vmul.f32 %v977, %v981
        %v990 = vmul.f32 %v978, %v985
        %v991 = vmul.f32 %v979, %v983
        %995 = vrot.lane.b32.xlu0 %v989, 109
        %v996 = vpop.permute.xlu0 %995
        %997 = vrot.lane.b32.xlu0 %v990, 109
        %v998 = vpop.permute.xlu0 %997
        %999 = vrot.lane.b32.xlu0 %v991, 109
        %v1000 = vpop.permute.xlu0 %999
        %vm1001 = vcmask 891904
        %v1002 = vsel %vm1001, %v996, %v998
        %v1003 = vsel %vm1001, %v998, %v1000
        %v1007 = vadd.f32 %v970, %v1002
        %v1008 = vadd.f32 %v971, %v1003
        %v1009 = vadd.f32 %v972, %v1000
        %1010 = vset.pattern.permute.xlu0 11
        %1011 = vperm.xlu0 %1010, %v534
        %v1012 = vpop.permute.xlu0 %1011
        %v1014 = vmul.f32 %v531, %v1012
        %v1015 = vmul.f32 %v532, %v1012
        %v1016 = vmul.f32 %v533, %v1012
        %1017 = vrot.lane.b32.xlu0 %v728, 25
        %v1018 = vpop.permute.xlu0 %1017
        %1019 = vrot.lane.b32.xlu0 %v732, 25
        %v1020 = vpop.permute.xlu0 %1019
        %vm1021 = vcmask 203776
        %v1022 = vsel %vm1021, %v1018, %v1020
        %v1026 = vmul.f32 %v1014, %v1018
        %v1027 = vmul.f32 %v1015, %v1022
        %v1028 = vmul.f32 %v1016, %v1020
        %1032 = vrot.lane.b32.xlu0 %v1026, 108
        %v1033 = vpop.permute.xlu0 %1032
        %1034 = vrot.lane.b32.xlu0 %v1027, 108
        %v1035 = vpop.permute.xlu0 %1034
        %1036 = vrot.lane.b32.xlu0 %v1028, 108
        %v1037 = vpop.permute.xlu0 %1036
        %vm1038 = vcmask 883712
        %v1039 = vsel %vm1038, %v1033, %v1035
        %v1040 = vsel %vm1038, %v1035, %v1037
        %v1044 = vadd.f32 %v1007, %v1039
        %v1045 = vadd.f32 %v1008, %v1040
        %v1046 = vadd.f32 %v1009, %v1037
        %1047 = vset.pattern.permute.xlu0 12
        %1048 = vperm.xlu0 %1047, %v534
        %v1049 = vpop.permute.xlu0 %1048
        %v1051 = vmul.f32 %v531, %v1049
        %v1052 = vmul.f32 %v532, %v1049
        %v1053 = vmul.f32 %v533, %v1049
        %1054 = vrot.lane.b32.xlu0 %v775, 26
        %v1055 = vpop.permute.xlu0 %1054
        %1056 = vrot.lane.b32.xlu0 %v779, 26
        %v1057 = vpop.permute.xlu0 %1056
        %vm1058 = vcmask 211968
        %v1059 = vsel %vm1058, %v1055, %v1057
        %v1063 = vmul.f32 %v1051, %v1055
        %v1064 = vmul.f32 %v1052, %v1059
        %v1065 = vmul.f32 %v1053, %v1057
        %1069 = vrot.lane.b32.xlu0 %v1063, 107
        %v1070 = vpop.permute.xlu0 %1069
        %1071 = vrot.lane.b32.xlu0 %v1064, 107
        %v1072 = vpop.permute.xlu0 %1071
        %1073 = vrot.lane.b32.xlu0 %v1065, 107
        %v1074 = vpop.permute.xlu0 %1073
        %vm1075 = vcmask 875520
        %v1076 = vsel %vm1075, %v1070, %v1072
        %v1077 = vsel %vm1075, %v1072, %v1074
        %v1081 = vadd.f32 %v1044, %v1076
        %v1082 = vadd.f32 %v1045, %v1077
        %v1083 = vadd.f32 %v1046, %v1074
        %1084 = vset.pattern.permute.xlu0 13
        %1085 = vperm.xlu0 %1084, %v534
        %v1086 = vpop.permute.xlu0 %1085
        %v1088 = vmul.f32 %v531, %v1086
        %v1089 = vmul.f32 %v532, %v1086
        %v1090 = vmul.f32 %v533, %v1086
        %1091 = vrot.lane.b32.xlu0 %v825, 27
        %v1092 = vpop.permute.xlu0 %1091
        %1093 = vrot.lane.b32.xlu0 %v829, 27
        %v1094 = vpop.permute.xlu0 %1093
        %vm1095 = vcmask 220160
        %v1096 = vsel %vm1095, %v1092, %v1094
        %v1100 = vmul.f32 %v1088, %v1092
        %v1101 = vmul.f32 %v1089, %v1096
        %v1102 = vmul.f32 %v1090, %v1094
        %1106 = vrot.lane.b32.xlu0 %v1100, 106
        %v1107 = vpop.permute.xlu0 %1106
        %1108 = vrot.lane.b32.xlu0 %v1101, 106
        %v1109 = vpop.permute.xlu0 %1108
        %1110 = vrot.lane.b32.xlu0 %v1102, 106
        %v1111 = vpop.permute.xlu0 %1110
        %vm1112 = vcmask 867328
        %v1113 = vsel %vm1112, %v1107, %v1109
        %v1114 = vsel %vm1112, %v1109, %v1111
        %v1118 = vadd.f32 %v1081, %v1113
        %v1119 = vadd.f32 %v1082, %v1114
        %v1120 = vadd.f32 %v1083, %v1111
        %1121 = vset.pattern.permute.xlu0 14
        %1122 = vperm.xlu0 %1121, %v534
        %v1123 = vpop.permute.xlu0 %1122
        %v1125 = vmul.f32 %v531, %v1123
        %v1126 = vmul.f32 %v532, %v1123
        %v1127 = vmul.f32 %v533, %v1123
        %1128 = vrot.lane.b32.xlu0 %v549, 37
        %v1129 = vpop.permute.xlu0 %1128
        %1130 = vrot.lane.b32.xlu0 %v553, 37
        %v1131 = vpop.permute.xlu0 %1130
        %vm1132 = vcmask 302080
        %v1133 = vsel %vm1132, %v1129, %v1131
        %v1137 = vmul.f32 %v1125, %v1129
        %v1138 = vmul.f32 %v1126, %v1133
        %v1139 = vmul.f32 %v1127, %v1131
        %1143 = vrot.lane.b32.xlu0 %v1137, 96
        %v1144 = vpop.permute.xlu0 %1143
        %1145 = vrot.lane.b32.xlu0 %v1138, 96
        %v1146 = vpop.permute.xlu0 %1145
        %1147 = vrot.lane.b32.xlu0 %v1139, 96
        %v1148 = vpop.permute.xlu0 %1147
        %vm1149 = vcmask 785408
        %v1150 = vsel %vm1149, %v1144, %v1146
        %v1151 = vsel %vm1149, %v1146, %v1148
        %v1155 = vadd.f32 %v1118, %v1150
        %v1156 = vadd.f32 %v1119, %v1151
        %v1157 = vadd.f32 %v1120, %v1148
        %1158 = vset.pattern.permute.xlu0 15
        %1159 = vperm.xlu0 %1158, %v534
        %v1160 = vpop.permute.xlu0 %1159
        %v1162 = vmul.f32 %v531, %v1160
        %v1163 = vmul.f32 %v532, %v1160
        %v1164 = vmul.f32 %v533, %v1160
        %1165 = vrot.lane.b32.xlu0 %v581, 38
        %v1166 = vpop.permute.xlu0 %1165
        %1167 = vrot.lane.b32.xlu0 %v585, 38
        %v1168 = vpop.permute.xlu0 %1167
        %vm1169 = vcmask 310272
        %v1170 = vsel %vm1169, %v1166, %v1168
        %v1174 = vmul.f32 %v1162, %v1166
        %v1175 = vmul.f32 %v1163, %v1170
        %v1176 = vmul.f32 %v1164, %v1168
        %1180 = vrot.lane.b32.xlu0 %v1174, 95
        %v1181 = vpop.permute.xlu0 %1180
        %1182 = vrot.lane.b32.xlu0 %v1175, 95
        %v1183 = vpop.permute.xlu0 %1182
        %1184 = vrot.lane.b32.xlu0 %v1176, 95
        %v1185 = vpop.permute.xlu0 %1184
        %vm1186 = vcmask 777216
        %v1187 = vsel %vm1186, %v1181, %v1183
        %v1188 = vsel %vm1186, %v1183, %v1185
        %v1192 = vadd.f32 %v1155, %v1187
        %v1193 = vadd.f32 %v1156, %v1188
        %v1194 = vadd.f32 %v1157, %v1185
        %1195 = vset.pattern.permute.xlu0 16
        %1196 = vperm.xlu0 %1195, %v534
        %v1197 = vpop.permute.xlu0 %1196
        %v1199 = vmul.f32 %v531, %v1197
        %v1200 = vmul.f32 %v532, %v1197
        %v1201 = vmul.f32 %v533, %v1197
        %1202 = vrot.lane.b32.xlu0 %v631, 39
        %v1203 = vpop.permute.xlu0 %1202
        %1204 = vrot.lane.b32.xlu0 %v635, 39
        %v1205 = vpop.permute.xlu0 %1204
        %vm1206 = vcmask 318464
        %v1207 = vsel %vm1206, %v1203, %v1205
        %v1211 = vmul.f32 %v1199, %v1203
        %v1212 = vmul.f32 %v1200, %v1207
        %v1213 = vmul.f32 %v1201, %v1205
        %1217 = vrot.lane.b32.xlu0 %v1211, 94
        %v1218 = vpop.permute.xlu0 %1217
        %1219 = vrot.lane.b32.xlu0 %v1212, 94
        %v1220 = vpop.permute.xlu0 %1219
        %1221 = vrot.lane.b32.xlu0 %v1213, 94
        %v1222 = vpop.permute.xlu0 %1221
        %vm1223 = vcmask 769024
        %v1224 = vsel %vm1223, %v1218, %v1220
        %v1225 = vsel %vm1223, %v1220, %v1222
        %v1229 = vadd.f32 %v1192, %v1224
        %v1230 = vadd.f32 %v1193, %v1225
        %v1231 = vadd.f32 %v1194, %v1222
        %1232 = vset.pattern.permute.xlu0 17
        %1233 = vperm.xlu0 %1232, %v534
        %v1234 = vpop.permute.xlu0 %1233
        %v1236 = vmul.f32 %v531, %v1234
        %v1237 = vmul.f32 %v532, %v1234
        %v1238 = vmul.f32 %v533, %v1234
        %1239 = vrot.lane.b32.xlu0 %v678, 40
        %v1240 = vpop.permute.xlu0 %1239
        %1241 = vrot.lane.b32.xlu0 %v682, 40
        %v1242 = vpop.permute.xlu0 %1241
        %vm1243 = vcmask 326656
        %v1244 = vsel %vm1243, %v1240, %v1242
        %v1248 = vmul.f32 %v1236, %v1240
        %v1249 = vmul.f32 %v1237, %v1244
        %v1250 = vmul.f32 %v1238, %v1242
        %1254 = vrot.lane.b32.xlu0 %v1248, 93
        %v1255 = vpop.permute.xlu0 %1254
        %1256 = vrot.lane.b32.xlu0 %v1249, 93
        %v1257 = vpop.permute.xlu0 %1256
        %1258 = vrot.lane.b32.xlu0 %v1250, 93
        %v1259 = vpop.permute.xlu0 %1258
        %vm1260 = vcmask 760832
        %v1261 = vsel %vm1260, %v1255, %v1257
        %v1262 = vsel %vm1260, %v1257, %v1259
        %v1266 = vadd.f32 %v1229, %v1261
        %v1267 = vadd.f32 %v1230, %v1262
        %v1268 = vadd.f32 %v1231, %v1259
        %1269 = vset.pattern.permute.xlu0 18
        %1270 = vperm.xlu0 %1269, %v534
        %v1271 = vpop.permute.xlu0 %1270
        %v1273 = vmul.f32 %v531, %v1271
        %v1274 = vmul.f32 %v532, %v1271
        %v1275 = vmul.f32 %v533, %v1271
        %1276 = vrot.lane.b32.xlu0 %v728, 41
        %v1277 = vpop.permute.xlu0 %1276
        %1278 = vrot.lane.b32.xlu0 %v732, 41
        %v1279 = vpop.permute.xlu0 %1278
        %vm1280 = vcmask 334848
        %v1281 = vsel %vm1280, %v1277, %v1279
        %v1285 = vmul.f32 %v1273, %v1277
        %v1286 = vmul.f32 %v1274, %v1281
        %v1287 = vmul.f32 %v1275, %v1279
        %1291 = vrot.lane.b32.xlu0 %v1285, 92
        %v1292 = vpop.permute.xlu0 %1291
        %1293 = vrot.lane.b32.xlu0 %v1286, 92
        %v1294 = vpop.permute.xlu0 %1293
        %1295 = vrot.lane.b32.xlu0 %v1287, 92
        %v1296 = vpop.permute.xlu0 %1295
        %vm1297 = vcmask 752640
        %v1298 = vsel %vm1297, %v1292, %v1294
        %v1299 = vsel %vm1297, %v1294, %v1296
        %v1303 = vadd.f32 %v1266, %v1298
        %v1304 = vadd.f32 %v1267, %v1299
        %v1305 = vadd.f32 %v1268, %v1296
        %1306 = vset.pattern.permute.xlu0 19
        %1307 = vperm.xlu0 %1306, %v534
        %v1308 = vpop.permute.xlu0 %1307
        %v1310 = vmul.f32 %v531, %v1308
        %v1311 = vmul.f32 %v532, %v1308
        %v1312 = vmul.f32 %v533, %v1308
        %1313 = vrot.lane.b32.xlu0 %v775, 42
        %v1314 = vpop.permute.xlu0 %1313
        %1315 = vrot.lane.b32.xlu0 %v779, 42
        %v1316 = vpop.permute.xlu0 %1315
        %vm1317 = vcmask 343040
        %v1318 = vsel %vm1317, %v1314, %v1316
        %v1322 = vmul.f32 %v1310, %v1314
        %v1323 = vmul.f32 %v1311, %v1318
        %v1324 = vmul.f32 %v1312, %v1316
        %1328 = vrot.lane.b32.xlu0 %v1322, 91
        %v1329 = vpop.permute.xlu0 %1328
        %1330 = vrot.lane.b32.xlu0 %v1323, 91
        %v1331 = vpop.permute.xlu0 %1330
        %1332 = vrot.lane.b32.xlu0 %v1324, 91
        %v1333 = vpop.permute.xlu0 %1332
        %vm1334 = vcmask 744448
        %v1335 = vsel %vm1334, %v1329, %v1331
        %v1336 = vsel %vm1334, %v1331, %v1333
        %v1340 = vadd.f32 %v1303, %v1335
        %v1341 = vadd.f32 %v1304, %v1336
        %v1342 = vadd.f32 %v1305, %v1333
        %1343 = vset.pattern.permute.xlu0 20
        %1344 = vperm.xlu0 %1343, %v534
        %v1345 = vpop.permute.xlu0 %1344
        %v1347 = vmul.f32 %v531, %v1345
        %v1348 = vmul.f32 %v532, %v1345
        %v1349 = vmul.f32 %v533, %v1345
        %1350 = vrot.lane.b32.xlu0 %v825, 43
        %v1351 = vpop.permute.xlu0 %1350
        %1352 = vrot.lane.b32.xlu0 %v829, 43
        %v1353 = vpop.permute.xlu0 %1352
        %vm1354 = vcmask 351232
        %v1355 = vsel %vm1354, %v1351, %v1353
        %v1359 = vmul.f32 %v1347, %v1351
        %v1360 = vmul.f32 %v1348, %v1355
        %v1361 = vmul.f32 %v1349, %v1353
        %1365 = vrot.lane.b32.xlu0 %v1359, 90
        %v1366 = vpop.permute.xlu0 %1365
        %1367 = vrot.lane.b32.xlu0 %v1360, 90
        %v1368 = vpop.permute.xlu0 %1367
        %1369 = vrot.lane.b32.xlu0 %v1361, 90
        %v1370 = vpop.permute.xlu0 %1369
        %vm1371 = vcmask 736256
        %v1372 = vsel %vm1371, %v1366, %v1368
        %v1373 = vsel %vm1371, %v1368, %v1370
        %v1377 = vadd.f32 %v1340, %v1372
        %v1378 = vadd.f32 %v1341, %v1373
        %v1379 = vadd.f32 %v1342, %v1370
        %1380 = vset.pattern.permute.xlu0 21
        %1381 = vperm.xlu0 %1380, %v534
        %v1382 = vpop.permute.xlu0 %1381
        %v1384 = vmul.f32 %v531, %v1382
        %v1385 = vmul.f32 %v532, %v1382
        %v1386 = vmul.f32 %v533, %v1382
        %1387 = vrot.lane.b32.xlu0 %v549, 53
        %v1388 = vpop.permute.xlu0 %1387
        %1389 = vrot.lane.b32.xlu0 %v553, 53
        %v1390 = vpop.permute.xlu0 %1389
        %vm1391 = vcmask 433152
        %v1392 = vsel %vm1391, %v1388, %v1390
        %v1396 = vmul.f32 %v1384, %v1388
        %v1397 = vmul.f32 %v1385, %v1392
        %v1398 = vmul.f32 %v1386, %v1390
        %1402 = vrot.lane.b32.xlu0 %v1396, 80
        %v1403 = vpop.permute.xlu0 %1402
        %1404 = vrot.lane.b32.xlu0 %v1397, 80
        %v1405 = vpop.permute.xlu0 %1404
        %1406 = vrot.lane.b32.xlu0 %v1398, 80
        %v1407 = vpop.permute.xlu0 %1406
        %vm1408 = vcmask 654336
        %v1409 = vsel %vm1408, %v1403, %v1405
        %v1410 = vsel %vm1408, %v1405, %v1407
        %v1414 = vadd.f32 %v1377, %v1409
        %v1415 = vadd.f32 %v1378, %v1410
        %v1416 = vadd.f32 %v1379, %v1407
        %1417 = vset.pattern.permute.xlu0 22
        %1418 = vperm.xlu0 %1417, %v534
        %v1419 = vpop.permute.xlu0 %1418
        %v1421 = vmul.f32 %v531, %v1419
        %v1422 = vmul.f32 %v532, %v1419
        %v1423 = vmul.f32 %v533, %v1419
        %1424 = vrot.lane.b32.xlu0 %v581, 54
        %v1425 = vpop.permute.xlu0 %1424
        %1426 = vrot.lane.b32.xlu0 %v585, 54
        %v1427 = vpop.permute.xlu0 %1426
        %vm1428 = vcmask 441344
        %v1429 = vsel %vm1428, %v1425, %v1427
        %v1433 = vmul.f32 %v1421, %v1425
        %v1434 = vmul.f32 %v1422, %v1429
        %v1435 = vmul.f32 %v1423, %v1427
        %1439 = vrot.lane.b32.xlu0 %v1433, 79
        %v1440 = vpop.permute.xlu0 %1439
        %1441 = vrot.lane.b32.xlu0 %v1434, 79
        %v1442 = vpop.permute.xlu0 %1441
        %1443 = vrot.lane.b32.xlu0 %v1435, 79
        %v1444 = vpop.permute.xlu0 %1443
        %vm1445 = vcmask 646144
        %v1446 = vsel %vm1445, %v1440, %v1442
        %v1447 = vsel %vm1445, %v1442, %v1444
        %v1451 = vadd.f32 %v1414, %v1446
        %v1452 = vadd.f32 %v1415, %v1447
        %v1453 = vadd.f32 %v1416, %v1444
        %1454 = vset.pattern.permute.xlu0 23
        %1455 = vperm.xlu0 %1454, %v534
        %v1456 = vpop.permute.xlu0 %1455
        %v1458 = vmul.f32 %v531, %v1456
        %v1459 = vmul.f32 %v532, %v1456
        %v1460 = vmul.f32 %v533, %v1456
        %1461 = vrot.lane.b32.xlu0 %v631, 55
        %v1462 = vpop.permute.xlu0 %1461
        %1463 = vrot.lane.b32.xlu0 %v635, 55
        %v1464 = vpop.permute.xlu0 %1463
        %vm1465 = vcmask 449536
        %v1466 = vsel %vm1465, %v1462, %v1464
        %v1470 = vmul.f32 %v1458, %v1462
        %v1471 = vmul.f32 %v1459, %v1466
        %v1472 = vmul.f32 %v1460, %v1464
        %1476 = vrot.lane.b32.xlu0 %v1470, 78
        %v1477 = vpop.permute.xlu0 %1476
        %1478 = vrot.lane.b32.xlu0 %v1471, 78
        %v1479 = vpop.permute.xlu0 %1478
        %1480 = vrot.lane.b32.xlu0 %v1472, 78
        %v1481 = vpop.permute.xlu0 %1480
        %vm1482 = vcmask 637952
        %v1483 = vsel %vm1482, %v1477, %v1479
        %v1484 = vsel %vm1482, %v1479, %v1481
        %v1488 = vadd.f32 %v1451, %v1483
        %v1489 = vadd.f32 %v1452, %v1484
        %v1490 = vadd.f32 %v1453, %v1481
        %1491 = vset.pattern.permute.xlu0 24
        %1492 = vperm.xlu0 %1491, %v534
        %v1493 = vpop.permute.xlu0 %1492
        %v1495 = vmul.f32 %v531, %v1493
        %v1496 = vmul.f32 %v532, %v1493
        %v1497 = vmul.f32 %v533, %v1493
        %1498 = vrot.lane.b32.xlu0 %v678, 56
        %v1499 = vpop.permute.xlu0 %1498
        %1500 = vrot.lane.b32.xlu0 %v682, 56
        %v1501 = vpop.permute.xlu0 %1500
        %v1502 = vsel %vm513, %v1499, %v1501
        %v1506 = vmul.f32 %v1495, %v1499
        %v1507 = vmul.f32 %v1496, %v1502
        %v1508 = vmul.f32 %v1497, %v1501
        %1512 = vrot.lane.b32.xlu0 %v1506, 77
        %v1513 = vpop.permute.xlu0 %1512
        %1514 = vrot.lane.b32.xlu0 %v1507, 77
        %v1515 = vpop.permute.xlu0 %1514
        %1516 = vrot.lane.b32.xlu0 %v1508, 77
        %v1517 = vpop.permute.xlu0 %1516
        %vm1518 = vcmask 629760
        %v1519 = vsel %vm1518, %v1513, %v1515
        %v1520 = vsel %vm1518, %v1515, %v1517
        %v1524 = vadd.f32 %v1488, %v1519
        %v1525 = vadd.f32 %v1489, %v1520
        %v1526 = vadd.f32 %v1490, %v1517
        %1527 = vset.pattern.permute.xlu0 25
        %1528 = vperm.xlu0 %1527, %v534
        %v1529 = vpop.permute.xlu0 %1528
        %v1531 = vmul.f32 %v531, %v1529
        %v1532 = vmul.f32 %v532, %v1529
        %v1533 = vmul.f32 %v533, %v1529
        %1534 = vrot.lane.b32.xlu0 %v728, 57
        %v1535 = vpop.permute.xlu0 %1534
        %1536 = vrot.lane.b32.xlu0 %v732, 57
        %v1537 = vpop.permute.xlu0 %1536
        %vm1538 = vcmask 465920
        %v1539 = vsel %vm1538, %v1535, %v1537
        %v1543 = vmul.f32 %v1531, %v1535
        %v1544 = vmul.f32 %v1532, %v1539
        %v1545 = vmul.f32 %v1533, %v1537
        %1549 = vrot.lane.b32.xlu0 %v1543, 76
        %v1550 = vpop.permute.xlu0 %1549
        %1551 = vrot.lane.b32.xlu0 %v1544, 76
        %v1552 = vpop.permute.xlu0 %1551
        %1553 = vrot.lane.b32.xlu0 %v1545, 76
        %v1554 = vpop.permute.xlu0 %1553
        %vm1555 = vcmask 621568
        %v1556 = vsel %vm1555, %v1550, %v1552
        %v1557 = vsel %vm1555, %v1552, %v1554
        %v1561 = vadd.f32 %v1524, %v1556
        %v1562 = vadd.f32 %v1525, %v1557
        %v1563 = vadd.f32 %v1526, %v1554
        %1564 = vset.pattern.permute.xlu0 26
        %1565 = vperm.xlu0 %1564, %v534
        %v1566 = vpop.permute.xlu0 %1565
        %v1568 = vmul.f32 %v531, %v1566
        %v1569 = vmul.f32 %v532, %v1566
        %v1570 = vmul.f32 %v533, %v1566
        %1571 = vrot.lane.b32.xlu0 %v775, 58
        %v1572 = vpop.permute.xlu0 %1571
        %1573 = vrot.lane.b32.xlu0 %v779, 58
        %v1574 = vpop.permute.xlu0 %1573
        %vm1575 = vcmask 474112
        %v1576 = vsel %vm1575, %v1572, %v1574
        %v1580 = vmul.f32 %v1568, %v1572
        %v1581 = vmul.f32 %v1569, %v1576
        %v1582 = vmul.f32 %v1570, %v1574
        %1586 = vrot.lane.b32.xlu0 %v1580, 75
        %v1587 = vpop.permute.xlu0 %1586
        %1588 = vrot.lane.b32.xlu0 %v1581, 75
        %v1589 = vpop.permute.xlu0 %1588
        %1590 = vrot.lane.b32.xlu0 %v1582, 75
        %v1591 = vpop.permute.xlu0 %1590
        %vm1592 = vcmask 613376
        %v1593 = vsel %vm1592, %v1587, %v1589
        %v1594 = vsel %vm1592, %v1589, %v1591
        %v1598 = vadd.f32 %v1561, %v1593
        %v1599 = vadd.f32 %v1562, %v1594
        %v1600 = vadd.f32 %v1563, %v1591
        %1601 = vset.pattern.permute.xlu0 27
        %1602 = vperm.xlu0 %1601, %v534
        %v1603 = vpop.permute.xlu0 %1602
        %v1605 = vmul.f32 %v531, %v1603
        %v1606 = vmul.f32 %v532, %v1603
        %v1607 = vmul.f32 %v533, %v1603
        %1608 = vrot.lane.b32.xlu0 %v825, 59
        %v1609 = vpop.permute.xlu0 %1608
        %1610 = vrot.lane.b32.xlu0 %v829, 59
        %v1611 = vpop.permute.xlu0 %1610
        %vm1612 = vcmask 482304
        %v1613 = vsel %vm1612, %v1609, %v1611
        %v1617 = vmul.f32 %v1605, %v1609
        %v1618 = vmul.f32 %v1606, %v1613
        %v1619 = vmul.f32 %v1607, %v1611
        %1623 = vrot.lane.b32.xlu0 %v1617, 74
        %v1624 = vpop.permute.xlu0 %1623
        %1625 = vrot.lane.b32.xlu0 %v1618, 74
        %v1626 = vpop.permute.xlu0 %1625
        %1627 = vrot.lane.b32.xlu0 %v1619, 74
        %v1628 = vpop.permute.xlu0 %1627
        %vm1629 = vcmask 605184
        %v1630 = vsel %vm1629, %v1624, %v1626
        %v1631 = vsel %vm1629, %v1626, %v1628
        %v1635 = vadd.f32 %v1598, %v1630
        %v1636 = vadd.f32 %v1599, %v1631
        %v1637 = vadd.f32 %v1600, %v1628
        %1638 = vset.pattern.permute.xlu0 28
        %1639 = vperm.xlu0 %1638, %v534
        %v1640 = vpop.permute.xlu0 %1639
        %v1642 = vmul.f32 %v531, %v1640
        %v1643 = vmul.f32 %v532, %v1640
        %v1644 = vmul.f32 %v533, %v1640
        %1645 = vrot.lane.b32.xlu0 %v549, 69
        %v1646 = vpop.permute.xlu0 %1645
        %1647 = vrot.lane.b32.xlu0 %v553, 69
        %v1648 = vpop.permute.xlu0 %1647
        %vm1649 = vcmask 564224
        %v1650 = vsel %vm1649, %v1646, %v1648
        %v1654 = vmul.f32 %v1642, %v1646
        %v1655 = vmul.f32 %v1643, %v1650
        %v1656 = vmul.f32 %v1644, %v1648
        %1660 = vrot.lane.b32.xlu0 %v1654, 64
        %v1661 = vpop.permute.xlu0 %1660
        %1662 = vrot.lane.b32.xlu0 %v1655, 64
        %v1663 = vpop.permute.xlu0 %1662
        %1664 = vrot.lane.b32.xlu0 %v1656, 64
        %v1665 = vpop.permute.xlu0 %1664
        %vm1666 = vcmask 523264
        %v1667 = vsel %vm1666, %v1661, %v1663
        %v1668 = vsel %vm1666, %v1663, %v1665
        %v1672 = vadd.f32 %v1635, %v1667
        %v1673 = vadd.f32 %v1636, %v1668
        %v1674 = vadd.f32 %v1637, %v1665
        %1675 = vset.pattern.permute.xlu0 29
        %1676 = vperm.xlu0 %1675, %v534
        %v1677 = vpop.permute.xlu0 %1676
        %v1679 = vmul.f32 %v531, %v1677
        %v1680 = vmul.f32 %v532, %v1677
        %v1681 = vmul.f32 %v533, %v1677
        %1682 = vrot.lane.b32.xlu0 %v581, 70
        %v1683 = vpop.permute.xlu0 %1682
        %1684 = vrot.lane.b32.xlu0 %v585, 70
        %v1685 = vpop.permute.xlu0 %1684
        %vm1686 = vcmask 572416
        %v1687 = vsel %vm1686, %v1683, %v1685
        %v1691 = vmul.f32 %v1679, %v1683
        %v1692 = vmul.f32 %v1680, %v1687
        %v1693 = vmul.f32 %v1681, %v1685
        %1697 = vrot.lane.b32.xlu0 %v1691, 63
        %v1698 = vpop.permute.xlu0 %1697
        %1699 = vrot.lane.b32.xlu0 %v1692, 63
        %v1700 = vpop.permute.xlu0 %1699
        %1701 = vrot.lane.b32.xlu0 %v1693, 63
        %v1702 = vpop.permute.xlu0 %1701
        %vm1703 = vcmask 515072
        %v1704 = vsel %vm1703, %v1698, %v1700
        %v1705 = vsel %vm1703, %v1700, %v1702
        %v1709 = vadd.f32 %v1672, %v1704
        %v1710 = vadd.f32 %v1673, %v1705
        %v1711 = vadd.f32 %v1674, %v1702
        %1712 = vset.pattern.permute.xlu0 30
        %1713 = vperm.xlu0 %1712, %v534
        %v1714 = vpop.permute.xlu0 %1713
        %v1716 = vmul.f32 %v531, %v1714
        %v1717 = vmul.f32 %v532, %v1714
        %v1718 = vmul.f32 %v533, %v1714
        %1719 = vrot.lane.b32.xlu0 %v631, 71
        %v1720 = vpop.permute.xlu0 %1719
        %1721 = vrot.lane.b32.xlu0 %v635, 71
        %v1722 = vpop.permute.xlu0 %1721
        %vm1723 = vcmask 580608
        %v1724 = vsel %vm1723, %v1720, %v1722
        %v1728 = vmul.f32 %v1716, %v1720
        %v1729 = vmul.f32 %v1717, %v1724
        %v1730 = vmul.f32 %v1718, %v1722
        %1734 = vrot.lane.b32.xlu0 %v1728, 62
        %v1735 = vpop.permute.xlu0 %1734
        %1736 = vrot.lane.b32.xlu0 %v1729, 62
        %v1737 = vpop.permute.xlu0 %1736
        %1738 = vrot.lane.b32.xlu0 %v1730, 62
        %v1739 = vpop.permute.xlu0 %1738
        %vm1740 = vcmask 506880
        %v1741 = vsel %vm1740, %v1735, %v1737
        %v1742 = vsel %vm1740, %v1737, %v1739
        %v1746 = vadd.f32 %v1709, %v1741
        %v1747 = vadd.f32 %v1710, %v1742
        %v1748 = vadd.f32 %v1711, %v1739
        %1749 = vset.pattern.permute.xlu0 31
        %1750 = vperm.xlu0 %1749, %v534
        %v1751 = vpop.permute.xlu0 %1750
        %v1753 = vmul.f32 %v531, %v1751
        %v1754 = vmul.f32 %v532, %v1751
        %v1755 = vmul.f32 %v533, %v1751
        %1756 = vrot.lane.b32.xlu0 %v678, 72
        %v1757 = vpop.permute.xlu0 %1756
        %1758 = vrot.lane.b32.xlu0 %v682, 72
        %v1759 = vpop.permute.xlu0 %1758
        %vm1760 = vcmask 588800
        %v1761 = vsel %vm1760, %v1757, %v1759
        %v1765 = vmul.f32 %v1753, %v1757
        %v1766 = vmul.f32 %v1754, %v1761
        %v1767 = vmul.f32 %v1755, %v1759
        %1771 = vrot.lane.b32.xlu0 %v1765, 61
        %v1772 = vpop.permute.xlu0 %1771
        %1773 = vrot.lane.b32.xlu0 %v1766, 61
        %v1774 = vpop.permute.xlu0 %1773
        %1775 = vrot.lane.b32.xlu0 %v1767, 61
        %v1776 = vpop.permute.xlu0 %1775
        %vm1777 = vcmask 498688
        %v1778 = vsel %vm1777, %v1772, %v1774
        %v1779 = vsel %vm1777, %v1774, %v1776
        %v1783 = vadd.f32 %v1746, %v1778
        %v1784 = vadd.f32 %v1747, %v1779
        %v1785 = vadd.f32 %v1748, %v1776
        %1786 = vset.pattern.permute.xlu0 32
        %1787 = vperm.xlu0 %1786, %v534
        %v1788 = vpop.permute.xlu0 %1787
        %v1790 = vmul.f32 %v531, %v1788
        %v1791 = vmul.f32 %v532, %v1788
        %v1792 = vmul.f32 %v533, %v1788
        %1793 = vrot.lane.b32.xlu0 %v728, 73
        %v1794 = vpop.permute.xlu0 %1793
        %1795 = vrot.lane.b32.xlu0 %v732, 73
        %v1796 = vpop.permute.xlu0 %1795
        %vm1797 = vcmask 596992
        %v1798 = vsel %vm1797, %v1794, %v1796
        %v1802 = vmul.f32 %v1790, %v1794
        %v1803 = vmul.f32 %v1791, %v1798
        %v1804 = vmul.f32 %v1792, %v1796
        %1808 = vrot.lane.b32.xlu0 %v1802, 60
        %v1809 = vpop.permute.xlu0 %1808
        %1810 = vrot.lane.b32.xlu0 %v1803, 60
        %v1811 = vpop.permute.xlu0 %1810
        %1812 = vrot.lane.b32.xlu0 %v1804, 60
        %v1813 = vpop.permute.xlu0 %1812
        %vm1814 = vcmask 490496
        %v1815 = vsel %vm1814, %v1809, %v1811
        %v1816 = vsel %vm1814, %v1811, %v1813
        %v1820 = vadd.f32 %v1783, %v1815
        %v1821 = vadd.f32 %v1784, %v1816
        %v1822 = vadd.f32 %v1785, %v1813
        %1823 = vset.pattern.permute.xlu0 33
        %1824 = vperm.xlu0 %1823, %v534
        %v1825 = vpop.permute.xlu0 %1824
        %v1827 = vmul.f32 %v531, %v1825
        %v1828 = vmul.f32 %v532, %v1825
        %v1829 = vmul.f32 %v533, %v1825
        %1830 = vrot.lane.b32.xlu0 %v775, 74
        %v1831 = vpop.permute.xlu0 %1830
        %1832 = vrot.lane.b32.xlu0 %v779, 74
        %v1833 = vpop.permute.xlu0 %1832
        %v1834 = vsel %vm1629, %v1831, %v1833
        %v1838 = vmul.f32 %v1827, %v1831
        %v1839 = vmul.f32 %v1828, %v1834
        %v1840 = vmul.f32 %v1829, %v1833
        %1844 = vrot.lane.b32.xlu0 %v1838, 59
        %v1845 = vpop.permute.xlu0 %1844
        %1846 = vrot.lane.b32.xlu0 %v1839, 59
        %v1847 = vpop.permute.xlu0 %1846
        %1848 = vrot.lane.b32.xlu0 %v1840, 59
        %v1849 = vpop.permute.xlu0 %1848
        %v1850 = vsel %vm1612, %v1845, %v1847
        %v1851 = vsel %vm1612, %v1847, %v1849
        %v1855 = vadd.f32 %v1820, %v1850
        %v1856 = vadd.f32 %v1821, %v1851
        %v1857 = vadd.f32 %v1822, %v1849
        %1858 = vset.pattern.permute.xlu0 34
        %1859 = vperm.xlu0 %1858, %v534
        %v1860 = vpop.permute.xlu0 %1859
        %v1862 = vmul.f32 %v531, %v1860
        %v1863 = vmul.f32 %v532, %v1860
        %v1864 = vmul.f32 %v533, %v1860
        %1865 = vrot.lane.b32.xlu0 %v825, 75
        %v1866 = vpop.permute.xlu0 %1865
        %1867 = vrot.lane.b32.xlu0 %v829, 75
        %v1868 = vpop.permute.xlu0 %1867
        %v1869 = vsel %vm1592, %v1866, %v1868
        %v1873 = vmul.f32 %v1862, %v1866
        %v1874 = vmul.f32 %v1863, %v1869
        %v1875 = vmul.f32 %v1864, %v1868
        %1879 = vrot.lane.b32.xlu0 %v1873, 58
        %v1880 = vpop.permute.xlu0 %1879
        %1881 = vrot.lane.b32.xlu0 %v1874, 58
        %v1882 = vpop.permute.xlu0 %1881
        %1883 = vrot.lane.b32.xlu0 %v1875, 58
        %v1884 = vpop.permute.xlu0 %1883
        %v1885 = vsel %vm1575, %v1880, %v1882
        %v1886 = vsel %vm1575, %v1882, %v1884
        %v1890 = vadd.f32 %v1855, %v1885
        %v1891 = vadd.f32 %v1856, %v1886
        %v1892 = vadd.f32 %v1857, %v1884
        %1893 = vset.pattern.permute.xlu0 35
        %1894 = vperm.xlu0 %1893, %v534
        %v1895 = vpop.permute.xlu0 %1894
        %v1897 = vmul.f32 %v531, %v1895
        %v1898 = vmul.f32 %v532, %v1895
        %v1899 = vmul.f32 %v533, %v1895
        %1900 = vrot.lane.b32.xlu0 %v549, 85
        %v1901 = vpop.permute.xlu0 %1900
        %1902 = vrot.lane.b32.xlu0 %v553, 85
        %v1903 = vpop.permute.xlu0 %1902
        %vm1904 = vcmask 695296
        %v1905 = vsel %vm1904, %v1901, %v1903
        %v1909 = vmul.f32 %v1897, %v1901
        %v1910 = vmul.f32 %v1898, %v1905
        %v1911 = vmul.f32 %v1899, %v1903
        %1915 = vrot.lane.b32.xlu0 %v1909, 48
        %v1916 = vpop.permute.xlu0 %1915
        %1917 = vrot.lane.b32.xlu0 %v1910, 48
        %v1918 = vpop.permute.xlu0 %1917
        %1919 = vrot.lane.b32.xlu0 %v1911, 48
        %v1920 = vpop.permute.xlu0 %1919
        %vm1921 = vcmask 392192
        %v1922 = vsel %vm1921, %v1916, %v1918
        %v1923 = vsel %vm1921, %v1918, %v1920
        %v1927 = vadd.f32 %v1890, %v1922
        %v1928 = vadd.f32 %v1891, %v1923
        %v1929 = vadd.f32 %v1892, %v1920
        %1930 = vset.pattern.permute.xlu0 36
        %1931 = vperm.xlu0 %1930, %v534
        %v1932 = vpop.permute.xlu0 %1931
        %v1934 = vmul.f32 %v531, %v1932
        %v1935 = vmul.f32 %v532, %v1932
        %v1936 = vmul.f32 %v533, %v1932
        %1937 = vrot.lane.b32.xlu0 %v581, 86
        %v1938 = vpop.permute.xlu0 %1937
        %1939 = vrot.lane.b32.xlu0 %v585, 86
        %v1940 = vpop.permute.xlu0 %1939
        %vm1941 = vcmask 703488
        %v1942 = vsel %vm1941, %v1938, %v1940
        %v1946 = vmul.f32 %v1934, %v1938
        %v1947 = vmul.f32 %v1935, %v1942
        %v1948 = vmul.f32 %v1936, %v1940
        %1952 = vrot.lane.b32.xlu0 %v1946, 47
        %v1953 = vpop.permute.xlu0 %1952
        %1954 = vrot.lane.b32.xlu0 %v1947, 47
        %v1955 = vpop.permute.xlu0 %1954
        %1956 = vrot.lane.b32.xlu0 %v1948, 47
        %v1957 = vpop.permute.xlu0 %1956
        %vm1958 = vcmask 384000
        %v1959 = vsel %vm1958, %v1953, %v1955
        %v1960 = vsel %vm1958, %v1955, %v1957
        %v1964 = vadd.f32 %v1927, %v1959
        %v1965 = vadd.f32 %v1928, %v1960
        %v1966 = vadd.f32 %v1929, %v1957
        %1967 = vset.pattern.permute.xlu0 37
        %1968 = vperm.xlu0 %1967, %v534
        %v1969 = vpop.permute.xlu0 %1968
        %v1971 = vmul.f32 %v531, %v1969
        %v1972 = vmul.f32 %v532, %v1969
        %v1973 = vmul.f32 %v533, %v1969
        %1974 = vrot.lane.b32.xlu0 %v631, 87
        %v1975 = vpop.permute.xlu0 %1974
        %1976 = vrot.lane.b32.xlu0 %v635, 87
        %v1977 = vpop.permute.xlu0 %1976
        %vm1978 = vcmask 711680
        %v1979 = vsel %vm1978, %v1975, %v1977
        %v1983 = vmul.f32 %v1971, %v1975
        %v1984 = vmul.f32 %v1972, %v1979
        %v1985 = vmul.f32 %v1973, %v1977
        %1989 = vrot.lane.b32.xlu0 %v1983, 46
        %v1990 = vpop.permute.xlu0 %1989
        %1991 = vrot.lane.b32.xlu0 %v1984, 46
        %v1992 = vpop.permute.xlu0 %1991
        %1993 = vrot.lane.b32.xlu0 %v1985, 46
        %v1994 = vpop.permute.xlu0 %1993
        %vm1995 = vcmask 375808
        %v1996 = vsel %vm1995, %v1990, %v1992
        %v1997 = vsel %vm1995, %v1992, %v1994
        %v2001 = vadd.f32 %v1964, %v1996
        %v2002 = vadd.f32 %v1965, %v1997
        %v2003 = vadd.f32 %v1966, %v1994
        %2004 = vset.pattern.permute.xlu0 38
        %2005 = vperm.xlu0 %2004, %v534
        %v2006 = vpop.permute.xlu0 %2005
        %v2008 = vmul.f32 %v531, %v2006
        %v2009 = vmul.f32 %v532, %v2006
        %v2010 = vmul.f32 %v533, %v2006
        %2011 = vrot.lane.b32.xlu0 %v678, 88
        %v2012 = vpop.permute.xlu0 %2011
        %2013 = vrot.lane.b32.xlu0 %v682, 88
        %v2014 = vpop.permute.xlu0 %2013
        %vm2015 = vcmask 719872
        %v2016 = vsel %vm2015, %v2012, %v2014
        %v2020 = vmul.f32 %v2008, %v2012
        %v2021 = vmul.f32 %v2009, %v2016
        %v2022 = vmul.f32 %v2010, %v2014
        %2026 = vrot.lane.b32.xlu0 %v2020, 45
        %v2027 = vpop.permute.xlu0 %2026
        %2028 = vrot.lane.b32.xlu0 %v2021, 45
        %v2029 = vpop.permute.xlu0 %2028
        %2030 = vrot.lane.b32.xlu0 %v2022, 45
        %v2031 = vpop.permute.xlu0 %2030
        %vm2032 = vcmask 367616
        %v2033 = vsel %vm2032, %v2027, %v2029
        %v2034 = vsel %vm2032, %v2029, %v2031
        %v2038 = vadd.f32 %v2001, %v2033
        %v2039 = vadd.f32 %v2002, %v2034
        %v2040 = vadd.f32 %v2003, %v2031
        %2041 = vset.pattern.permute.xlu0 39
        %2042 = vperm.xlu0 %2041, %v534
        %v2043 = vpop.permute.xlu0 %2042
        %v2045 = vmul.f32 %v531, %v2043
        %v2046 = vmul.f32 %v532, %v2043
        %v2047 = vmul.f32 %v533, %v2043
        %2048 = vrot.lane.b32.xlu0 %v728, 89
        %v2049 = vpop.permute.xlu0 %2048
        %2050 = vrot.lane.b32.xlu0 %v732, 89
        %v2051 = vpop.permute.xlu0 %2050
        %vm2052 = vcmask 728064
        %v2053 = vsel %vm2052, %v2049, %v2051
        %v2057 = vmul.f32 %v2045, %v2049
        %v2058 = vmul.f32 %v2046, %v2053
        %v2059 = vmul.f32 %v2047, %v2051
        %2063 = vrot.lane.b32.xlu0 %v2057, 44
        %v2064 = vpop.permute.xlu0 %2063
        %2065 = vrot.lane.b32.xlu0 %v2058, 44
        %v2066 = vpop.permute.xlu0 %2065
        %2067 = vrot.lane.b32.xlu0 %v2059, 44
        %v2068 = vpop.permute.xlu0 %2067
        %vm2069 = vcmask 359424
        %v2070 = vsel %vm2069, %v2064, %v2066
        %v2071 = vsel %vm2069, %v2066, %v2068
        %v2075 = vadd.f32 %v2038, %v2070
        %v2076 = vadd.f32 %v2039, %v2071
        %v2077 = vadd.f32 %v2040, %v2068
        %2078 = vset.pattern.permute.xlu0 40
        %2079 = vperm.xlu0 %2078, %v534
        %v2080 = vpop.permute.xlu0 %2079
        %v2082 = vmul.f32 %v531, %v2080
        %v2083 = vmul.f32 %v532, %v2080
        %v2084 = vmul.f32 %v533, %v2080
        %2085 = vrot.lane.b32.xlu0 %v775, 90
        %v2086 = vpop.permute.xlu0 %2085
        %2087 = vrot.lane.b32.xlu0 %v779, 90
        %v2088 = vpop.permute.xlu0 %2087
        %v2089 = vsel %vm1371, %v2086, %v2088
        %v2093 = vmul.f32 %v2082, %v2086
        %v2094 = vmul.f32 %v2083, %v2089
        %v2095 = vmul.f32 %v2084, %v2088
        %2099 = vrot.lane.b32.xlu0 %v2093, 43
        %v2100 = vpop.permute.xlu0 %2099
        %2101 = vrot.lane.b32.xlu0 %v2094, 43
        %v2102 = vpop.permute.xlu0 %2101
        %2103 = vrot.lane.b32.xlu0 %v2095, 43
        %v2104 = vpop.permute.xlu0 %2103
        %v2105 = vsel %vm1354, %v2100, %v2102
        %v2106 = vsel %vm1354, %v2102, %v2104
        %v2110 = vadd.f32 %v2075, %v2105
        %v2111 = vadd.f32 %v2076, %v2106
        %v2112 = vadd.f32 %v2077, %v2104
        %2113 = vset.pattern.permute.xlu0 41
        %2114 = vperm.xlu0 %2113, %v534
        %v2115 = vpop.permute.xlu0 %2114
        %v2117 = vmul.f32 %v531, %v2115
        %v2118 = vmul.f32 %v532, %v2115
        %v2119 = vmul.f32 %v533, %v2115
        %2120 = vrot.lane.b32.xlu0 %v825, 91
        %v2121 = vpop.permute.xlu0 %2120
        %2122 = vrot.lane.b32.xlu0 %v829, 91
        %v2123 = vpop.permute.xlu0 %2122
        %v2124 = vsel %vm1334, %v2121, %v2123
        %v2128 = vmul.f32 %v2117, %v2121
        %v2129 = vmul.f32 %v2118, %v2124
        %v2130 = vmul.f32 %v2119, %v2123
        %2134 = vrot.lane.b32.xlu0 %v2128, 42
        %v2135 = vpop.permute.xlu0 %2134
        %2136 = vrot.lane.b32.xlu0 %v2129, 42
        %v2137 = vpop.permute.xlu0 %2136
        %2138 = vrot.lane.b32.xlu0 %v2130, 42
        %v2139 = vpop.permute.xlu0 %2138
        %v2140 = vsel %vm1317, %v2135, %v2137
        %v2141 = vsel %vm1317, %v2137, %v2139
        %v2145 = vadd.f32 %v2110, %v2140
        %v2146 = vadd.f32 %v2111, %v2141
        %v2147 = vadd.f32 %v2112, %v2139
        %2148 = vset.pattern.permute.xlu0 42
        %2149 = vperm.xlu0 %2148, %v534
        %v2150 = vpop.permute.xlu0 %2149
        %v2152 = vmul.f32 %v531, %v2150
        %v2153 = vmul.f32 %v532, %v2150
        %v2154 = vmul.f32 %v533, %v2150
        %2155 = vrot.lane.b32.xlu0 %v549, 101
        %v2156 = vpop.permute.xlu0 %2155
        %2157 = vrot.lane.b32.xlu0 %v553, 101
        %v2158 = vpop.permute.xlu0 %2157
        %vm2159 = vcmask 826368
        %v2160 = vsel %vm2159, %v2156, %v2158
        %v2164 = vmul.f32 %v2152, %v2156
        %v2165 = vmul.f32 %v2153, %v2160
        %v2166 = vmul.f32 %v2154, %v2158
        %2170 = vrot.lane.b32.xlu0 %v2164, 32
        %v2171 = vpop.permute.xlu0 %2170
        %2172 = vrot.lane.b32.xlu0 %v2165, 32
        %v2173 = vpop.permute.xlu0 %2172
        %2174 = vrot.lane.b32.xlu0 %v2166, 32
        %v2175 = vpop.permute.xlu0 %2174
        %vm2176 = vcmask 261120
        %v2177 = vsel %vm2176, %v2171, %v2173
        %v2178 = vsel %vm2176, %v2173, %v2175
        %v2182 = vadd.f32 %v2145, %v2177
        %v2183 = vadd.f32 %v2146, %v2178
        %v2184 = vadd.f32 %v2147, %v2175
        %2185 = vset.pattern.permute.xlu0 43
        %2186 = vperm.xlu0 %2185, %v534
        %v2187 = vpop.permute.xlu0 %2186
        %v2189 = vmul.f32 %v531, %v2187
        %v2190 = vmul.f32 %v532, %v2187
        %v2191 = vmul.f32 %v533, %v2187
        %2192 = vrot.lane.b32.xlu0 %v581, 102
        %v2193 = vpop.permute.xlu0 %2192
        %2194 = vrot.lane.b32.xlu0 %v585, 102
        %v2195 = vpop.permute.xlu0 %2194
        %vm2196 = vcmask 834560
        %v2197 = vsel %vm2196, %v2193, %v2195
        %v2201 = vmul.f32 %v2189, %v2193
        %v2202 = vmul.f32 %v2190, %v2197
        %v2203 = vmul.f32 %v2191, %v2195
        %2207 = vrot.lane.b32.xlu0 %v2201, 31
        %v2208 = vpop.permute.xlu0 %2207
        %2209 = vrot.lane.b32.xlu0 %v2202, 31
        %v2210 = vpop.permute.xlu0 %2209
        %2211 = vrot.lane.b32.xlu0 %v2203, 31
        %v2212 = vpop.permute.xlu0 %2211
        %vm2213 = vcmask 252928
        %v2214 = vsel %vm2213, %v2208, %v2210
        %v2215 = vsel %vm2213, %v2210, %v2212
        %v2219 = vadd.f32 %v2182, %v2214
        %v2220 = vadd.f32 %v2183, %v2215
        %v2221 = vadd.f32 %v2184, %v2212
        %2222 = vset.pattern.permute.xlu0 44
        %2223 = vperm.xlu0 %2222, %v534
        %v2224 = vpop.permute.xlu0 %2223
        %v2226 = vmul.f32 %v531, %v2224
        %v2227 = vmul.f32 %v532, %v2224
        %v2228 = vmul.f32 %v533, %v2224
        %2229 = vrot.lane.b32.xlu0 %v631, 103
        %v2230 = vpop.permute.xlu0 %2229
        %2231 = vrot.lane.b32.xlu0 %v635, 103
        %v2232 = vpop.permute.xlu0 %2231
        %vm2233 = vcmask 842752
        %v2234 = vsel %vm2233, %v2230, %v2232
        %v2238 = vmul.f32 %v2226, %v2230
        %v2239 = vmul.f32 %v2227, %v2234
        %v2240 = vmul.f32 %v2228, %v2232
        %2244 = vrot.lane.b32.xlu0 %v2238, 30
        %v2245 = vpop.permute.xlu0 %2244
        %2246 = vrot.lane.b32.xlu0 %v2239, 30
        %v2247 = vpop.permute.xlu0 %2246
        %2248 = vrot.lane.b32.xlu0 %v2240, 30
        %v2249 = vpop.permute.xlu0 %2248
        %vm2250 = vcmask 244736
        %v2251 = vsel %vm2250, %v2245, %v2247
        %v2252 = vsel %vm2250, %v2247, %v2249
        %v2256 = vadd.f32 %v2219, %v2251
        %v2257 = vadd.f32 %v2220, %v2252
        %v2258 = vadd.f32 %v2221, %v2249
        %2259 = vset.pattern.permute.xlu0 45
        %2260 = vperm.xlu0 %2259, %v534
        %v2261 = vpop.permute.xlu0 %2260
        %v2263 = vmul.f32 %v531, %v2261
        %v2264 = vmul.f32 %v532, %v2261
        %v2265 = vmul.f32 %v533, %v2261
        %2266 = vrot.lane.b32.xlu0 %v678, 104
        %v2267 = vpop.permute.xlu0 %2266
        %2268 = vrot.lane.b32.xlu0 %v682, 104
        %v2269 = vpop.permute.xlu0 %2268
        %vm2270 = vcmask 850944
        %v2271 = vsel %vm2270, %v2267, %v2269
        %v2275 = vmul.f32 %v2263, %v2267
        %v2276 = vmul.f32 %v2264, %v2271
        %v2277 = vmul.f32 %v2265, %v2269
        %2281 = vrot.lane.b32.xlu0 %v2275, 29
        %v2282 = vpop.permute.xlu0 %2281
        %2283 = vrot.lane.b32.xlu0 %v2276, 29
        %v2284 = vpop.permute.xlu0 %2283
        %2285 = vrot.lane.b32.xlu0 %v2277, 29
        %v2286 = vpop.permute.xlu0 %2285
        %vm2287 = vcmask 236544
        %v2288 = vsel %vm2287, %v2282, %v2284
        %v2289 = vsel %vm2287, %v2284, %v2286
        %v2293 = vadd.f32 %v2256, %v2288
        %v2294 = vadd.f32 %v2257, %v2289
        %v2295 = vadd.f32 %v2258, %v2286
        %2296 = vset.pattern.permute.xlu0 46
        %2297 = vperm.xlu0 %2296, %v534
        %v2298 = vpop.permute.xlu0 %2297
        %v2300 = vmul.f32 %v531, %v2298
        %v2301 = vmul.f32 %v532, %v2298
        %v2302 = vmul.f32 %v533, %v2298
        %2303 = vrot.lane.b32.xlu0 %v728, 105
        %v2304 = vpop.permute.xlu0 %2303
        %2305 = vrot.lane.b32.xlu0 %v732, 105
        %v2306 = vpop.permute.xlu0 %2305
        %vm2307 = vcmask 859136
        %v2308 = vsel %vm2307, %v2304, %v2306
        %v2312 = vmul.f32 %v2300, %v2304
        %v2313 = vmul.f32 %v2301, %v2308
        %v2314 = vmul.f32 %v2302, %v2306
        %2318 = vrot.lane.b32.xlu0 %v2312, 28
        %v2319 = vpop.permute.xlu0 %2318
        %2320 = vrot.lane.b32.xlu0 %v2313, 28
        %v2321 = vpop.permute.xlu0 %2320
        %2322 = vrot.lane.b32.xlu0 %v2314, 28
        %v2323 = vpop.permute.xlu0 %2322
        %vm2324 = vcmask 228352
        %v2325 = vsel %vm2324, %v2319, %v2321
        %v2326 = vsel %vm2324, %v2321, %v2323
        %v2330 = vadd.f32 %v2293, %v2325
        %v2331 = vadd.f32 %v2294, %v2326
        %v2332 = vadd.f32 %v2295, %v2323
        %2333 = vset.pattern.permute.xlu0 47
        %2334 = vperm.xlu0 %2333, %v534
        %v2335 = vpop.permute.xlu0 %2334
        %v2337 = vmul.f32 %v531, %v2335
        %v2338 = vmul.f32 %v532, %v2335
        %v2339 = vmul.f32 %v533, %v2335
        %2340 = vrot.lane.b32.xlu0 %v775, 106
        %v2341 = vpop.permute.xlu0 %2340
        %2342 = vrot.lane.b32.xlu0 %v779, 106
        %v2343 = vpop.permute.xlu0 %2342
        %v2344 = vsel %vm1112, %v2341, %v2343
        %v2348 = vmul.f32 %v2337, %v2341
        %v2349 = vmul.f32 %v2338, %v2344
        %v2350 = vmul.f32 %v2339, %v2343
        %2354 = vrot.lane.b32.xlu0 %v2348, 27
        %v2355 = vpop.permute.xlu0 %2354
        %2356 = vrot.lane.b32.xlu0 %v2349, 27
        %v2357 = vpop.permute.xlu0 %2356
        %2358 = vrot.lane.b32.xlu0 %v2350, 27
        %v2359 = vpop.permute.xlu0 %2358
        %v2360 = vsel %vm1095, %v2355, %v2357
        %v2361 = vsel %vm1095, %v2357, %v2359
        %v2365 = vadd.f32 %v2330, %v2360
        %v2366 = vadd.f32 %v2331, %v2361
        %v2367 = vadd.f32 %v2332, %v2359
        %2368 = vset.pattern.permute.xlu0 48
        %2369 = vperm.xlu0 %2368, %v534
        %v2370 = vpop.permute.xlu0 %2369
        %v2372 = vmul.f32 %v531, %v2370
        %v2373 = vmul.f32 %v532, %v2370
        %v2374 = vmul.f32 %v533, %v2370
        %2375 = vrot.lane.b32.xlu0 %v825, 107
        %v2376 = vpop.permute.xlu0 %2375
        %2377 = vrot.lane.b32.xlu0 %v829, 107
        %v2378 = vpop.permute.xlu0 %2377
        %v2379 = vsel %vm1075, %v2376, %v2378
        %v2383 = vmul.f32 %v2372, %v2376
        %v2384 = vmul.f32 %v2373, %v2379
        %v2385 = vmul.f32 %v2374, %v2378
        %2389 = vrot.lane.b32.xlu0 %v2383, 26
        %v2390 = vpop.permute.xlu0 %2389
        %2391 = vrot.lane.b32.xlu0 %v2384, 26
        %v2392 = vpop.permute.xlu0 %2391
        %2393 = vrot.lane.b32.xlu0 %v2385, 26
        %v2394 = vpop.permute.xlu0 %2393
        %v2395 = vsel %vm1058, %v2390, %v2392
        %v2396 = vsel %vm1058, %v2392, %v2394
        %v2400 = vadd.f32 %v2365, %v2395
        %v2401 = vadd.f32 %v2366, %v2396
        %v2402 = vadd.f32 %v2367, %v2394
        %v2403 = vld [vmem:[%s3] sm:$0xff]
        %2405 = vset.pattern.permute.xlu0 0
        %2406 = vperm.xlu0 %2405, %v2403
        %v2407 = vpop.permute.xlu0 %2406
        %v2409 = vadd.f32 %v2400, %v2407
        %v2410 = vadd.f32 %v2401, %v2407
        %v2411 = vadd.f32 %v2402, %v2407
        %v2412 = vld [vmem:[%s509] sm:$0xff]
        %2414 = vset.pattern.permute.xlu0 0
        %2415 = vperm.xlu0 %2414, %v2412
        %v2416 = vpop.permute.xlu0 %2415
        %v2418 = vadd.f32 %v2409, %v2416
        %v2419 = vadd.f32 %v2410, %v2416
        %v2420 = vadd.f32 %v2411, %v2416
        %v2421 = vld [vmem:[%s5] sm:$0xff]
        %v2422 = vld [vmem:[%s6] sm:$0xff]
        %2426 = vrot.lane.b32.xlu0 %v2418, 123
        %v2427 = vpop.permute.xlu0 %2426
        %2428 = vrot.lane.b32.xlu0 %v2419, 123
        %v2429 = vpop.permute.xlu0 %2428
        %2430 = vrot.lane.b32.xlu0 %v2420, 123
        %v2431 = vpop.permute.xlu0 %2430
        %v2432 = vsel %vm803, %v2427, %v2429
        %v2433 = vsel %vm803, %v2429, %v2431
        %v2436 = vadd.f32 %v2432, %v2433
        %2437 = vadd.xlane.f32.xlu0 %v2436
        %v2438 = vpop.xlane.xlu0 %2437
        %v2439 = vrot.slane %v2438, 4
        %v2440 = vadd.f32 %v2438, %v2439
        %v2441 = vrot.slane %v2440, 2
        %v2442 = vadd.f32 %v2440, %v2441
        %v2443 = vrot.slane %v2442, 1
        %v2444 = vadd.f32 %v2442, %v2443
        %v2445 = vrcp.pop 2048.0
        %v2446 = vmul.f32 %v2444, %v2445
        %v2447 = vsub.f32 %v2418, %v2446
        %v2448 = vsub.f32 %v2419, %v2446
        %v2449 = vsub.f32 %v2420, %v2446
        %v2450 = vmul.f32 %v2447, %v2447
        %v2451 = vmul.f32 %v2448, %v2448
        %v2452 = vmul.f32 %v2449, %v2449
        %2456 = vrot.lane.b32.xlu0 %v2450, 123
        %v2457 = vpop.permute.xlu0 %2456
        %2458 = vrot.lane.b32.xlu0 %v2451, 123
        %v2459 = vpop.permute.xlu0 %2458
        %2460 = vrot.lane.b32.xlu0 %v2452, 123
        %v2461 = vpop.permute.xlu0 %2460
        %v2462 = vsel %vm803, %v2457, %v2459
        %v2463 = vsel %vm803, %v2459, %v2461
        %v2466 = vadd.f32 %v2462, %v2463
        %2467 = vadd.xlane.f32.xlu0 %v2466
        %v2468 = vpop.xlane.xlu0 %2467
        %v2469 = vrot.slane %v2468, 4
        %v2470 = vadd.f32 %v2468, %v2469
        %v2471 = vrot.slane %v2470, 2
        %v2472 = vadd.f32 %v2470, %v2471
        %v2473 = vrot.slane %v2472, 1
        %v2474 = vadd.f32 %v2472, %v2473
        %v2475 = vmul.f32 %v2474, %v2445
        %v2476 = vadd.f32 %v2475, 1e-05
        %v2477 = vrsqrt.pop %v2476
        %v2478 = vmul.f32 %v2477, %v2421
        %2480 = vset.pattern.permute.xlu0 0
        %2481 = vperm.xlu0 %2480, %v2478
        %v2482 = vpop.permute.xlu0 %2481
        %v2484 = vmul.f32 %v2447, %v2482
        %v2485 = vmul.f32 %v2448, %v2482
        %v2486 = vmul.f32 %v2449, %v2482
        %2488 = vset.pattern.permute.xlu0 0
        %2489 = vperm.xlu0 %2488, %v2422
        %v2490 = vpop.permute.xlu0 %2489
        %v2492 = vadd.f32 %v2484, %v2490
        %v2493 = vadd.f32 %v2485, %v2490
        %v2494 = vadd.f32 %v2486, %v2490
        %v2495 = vpack.c.bf16 %v2492, %v2492
        %v2496 = vpack.c.bf16 %v2493, %v2493
        %v2497 = vpack.c.bf16 %v2494, %v2494
        %vm2498 = vcmask 191488
        %2499 = vst.msk [vmem:[#allocation3] sm:$0xf] %vm2498, 0
        %vm2500 = vcmask 388288
        %2501 = vst.msk [vmem:[#allocation3 + $0x8] sm:$0xf] %vm2500, 0
        %v2505 = vunpack.c.l.b16 %v2495
        %v2506 = vunpack.c.l.b16 %v2496
        %v2507 = vunpack.c.l.b16 %v2497
        %v2508 = vpack.c.b16 %v2506, %v2505
        %v2509 = vpack.c.b16 %v2507, %v2507
        %2510 = vrot.lane.b32.xlu0 %v2508, 19
        %v2511 = vpop.permute.xlu0 %2510
        %2512 = vrot.lane.b32.xlu0 %v2509, 19
        %v2513 = vpop.permute.xlu0 %2512
        %v2514 = vrot.slane %v2511, 4
        %vm2515 = vcmask 154624
        %v2516 = vsel %vm2515, %v2514, %v2511
        %v2517 = vsel %vm2515, %v2514, %v2513
        %vm2520 = vcmask 1043648
        %vm2521 = vcmask 1047556
        %vm2522 = vmor %vm2521, %vm2520
        %2523 = vst.msk [vmem:[#allocation3] sm:$0xff] %vm2522, %v2516
        %2524 = vst.msk [vmem:[#allocation3 + $0x8] sm:$0xf] %vm2498, %v2517
        %v2525 = vld [vmem:[%s7] sm:$0xf]
        %v2526 = vld [vmem:[%s7 + $0x4] sm:$0xf]
        %v2527 = vld [vmem:[%s7 + $0x8] sm:$0xf]
        %v2528 = vld [vmem:[%s7 + $0xc] sm:$0xf]
        %v2529 = vld [vmem:[#allocation3] sm:$0xff]
        %v2530 = vld [vmem:[#allocation3 + $0x8] sm:$0xf]
        %v2531 = vld [vmem:[%s4] sm:$0x22]
        %v2533 = vunpack.c.l.b16 %v2531
        %v2534 = vunpack.c.h.b16 %v2531
        %v2535 = vpack.c.b16 %v2533, %v2533
        %v2536 = vpack.c.b16 %v2534, %v2534
        %v2538 = vpack.i.b16 %v2535, %v2535
        %v2540 = vlaneseq
        %v2541 = vshrl.u32 %v2540, 7
        %v2542 = vsub.s32 1, %v2541
        %v2543 = vrot.slane %v2538, %v2542
        %v2545 = vpack.i.b16 %v2536, %v2536
        %v2547 = vlaneseq
        %v2548 = vshrl.u32 %v2547, 7
        %v2549 = vsub.s32 1, %v2548
        %v2550 = vrot.slane %v2545, %v2549
        %v2553 = vunpack.c.l.b16 %v2543
        %v2554 = vunpack.c.l.b16 %v2550
        %v2555 = vpack.c.b16 %v2554, %v2553
        %2556 = vrot.lane.b32.xlu0 %v2555, 7
        %v2557 = vpop.permute.xlu0 %2556
        %v2558 = vrot.slane %v2557, 4
        %vm2559 = vcmask 56320
        %v2560 = vsel %vm2559, %v2558, %v2557
        %v2563 = vmul.bf16 %v2529, %v2560
        %v2564 = vmul.bf16 %v2530, %v2558
        %v2565 = vshrl.u32 %v2535, 16
        %v2566 = vpack.i.b16 %v2565, %v2565
        %v2568 = vlaneseq
        %v2569 = vshrl.u32 %v2568, 7
        %v2570 = vsub.s32 1, %v2569
        %v2571 = vrot.slane %v2566, %v2570
        %v2572 = vshrl.u32 %v2536, 16
        %v2573 = vpack.i.b16 %v2572, %v2572
        %v2575 = vlaneseq
        %v2576 = vshrl.u32 %v2575, 7
        %v2577 = vsub.s32 1, %v2576
        %v2578 = vrot.slane %v2573, %v2577
        %v2581 = vunpack.c.l.b16 %v2571
        %v2582 = vunpack.c.l.b16 %v2578
        %v2583 = vpack.c.b16 %v2582, %v2581
        %2584 = vrot.lane.b32.xlu0 %v2583, 8
        %v2585 = vpop.permute.xlu0 %2584
        %v2586 = vrot.slane %v2585, 4
        %vm2587 = vcmask 64512
        %v2588 = vsel %vm2587, %v2586, %v2585
        %v2591 = vmul.bf16 %v2529, %v2588
        %v2592 = vmul.bf16 %v2530, %v2586
        %v2593 = vld [vmem:[%s4] sm:$0x44]
        %v2595 = vunpack.c.l.b16 %v2593
        %v2596 = vunpack.c.h.b16 %v2593
        %v2597 = vpack.c.b16 %v2595, %v2595
        %v2598 = vpack.c.b16 %v2596, %v2596
        %v2600 = vpack.i.b16 %v2597, %v2597
        %v2602 = vlaneseq
        %v2603 = vshrl.u32 %v2602, 7
        %v2604 = vsub.s32 2, %v2603
        %v2605 = vrot.slane %v2600, %v2604
        %v2607 = vpack.i.b16 %v2598, %v2598
        %v2609 = vlaneseq
        %v2610 = vshrl.u32 %v2609, 7
        %v2611 = vsub.s32 2, %v2610
        %v2612 = vrot.slane %v2607, %v2611
        %v2615 = vunpack.c.l.b16 %v2605
        %v2616 = vunpack.c.l.b16 %v2612
        %v2617 = vpack.c.b16 %v2616, %v2615
        %2618 = vrot.lane.b32.xlu0 %v2617, 9
        %v2619 = vpop.permute.xlu0 %2618
        %v2620 = vrot.slane %v2619, 4
        %vm2621 = vcmask 72704
        %v2622 = vsel %vm2621, %v2620, %v2619
        %v2625 = vmul.bf16 %v2529, %v2622
        %v2626 = vmul.bf16 %v2530, %v2620
        %2627 = vrot.lane.b32.xlu0 %v2555, 23
        %v2628 = vpop.permute.xlu0 %2627
        %v2629 = vrot.slane %v2628, 4
        %vm2630 = vcmask 187392
        %v2631 = vsel %vm2630, %v2629, %v2628
        %v2634 = vmul.bf16 %v2529, %v2631
        %v2635 = vmul.bf16 %v2530, %v2629
        %2636 = vrot.lane.b32.xlu0 %v2583, 24
        %v2637 = vpop.permute.xlu0 %2636
        %v2638 = vrot.slane %v2637, 4
        %vm2639 = vcmask 195584
        %v2640 = vsel %vm2639, %v2638, %v2637
        %v2643 = vmul.bf16 %v2529, %v2640
        %v2644 = vmul.bf16 %v2530, %v2638
        %2645 = vrot.lane.b32.xlu0 %v2617, 25
        %v2646 = vpop.permute.xlu0 %2645
        %v2647 = vrot.slane %v2646, 4
        %vm2648 = vcmask 203776
        %v2649 = vsel %vm2648, %v2647, %v2646
        %v2652 = vmul.bf16 %v2529, %v2649
        %v2653 = vmul.bf16 %v2530, %v2647
        %2654 = vrot.lane.b32.xlu0 %v2555, 39
        %v2655 = vpop.permute.xlu0 %2654
        %v2656 = vrot.slane %v2655, 4
        %vm2657 = vcmask 318464
        %v2658 = vsel %vm2657, %v2656, %v2655
        %v2661 = vmul.bf16 %v2529, %v2658
        %v2662 = vmul.bf16 %v2530, %v2656
        %2663 = vrot.lane.b32.xlu0 %v2583, 40
        %v2664 = vpop.permute.xlu0 %2663
        %v2665 = vrot.slane %v2664, 4
        %vm2666 = vcmask 326656
        %v2667 = vsel %vm2666, %v2665, %v2664
        %v2670 = vmul.bf16 %v2529, %v2667
        %v2671 = vmul.bf16 %v2530, %v2665
        %2672 = vrot.lane.b32.xlu0 %v2617, 41
        %v2673 = vpop.permute.xlu0 %2672
        %v2674 = vrot.slane %v2673, 4
        %vm2675 = vcmask 334848
        %v2676 = vsel %vm2675, %v2674, %v2673
        %v2679 = vmul.bf16 %v2529, %v2676
        %v2680 = vmul.bf16 %v2530, %v2674
        %v2683 = vunpack.c.l.b16 %v2563
        %v2684 = vunpack.c.h.b16 %v2563
        %v2685 = vunpack.c.l.b16 %v2564
        %v2686 = vpack.c.b16 %v2683, %v2683
        %v2687 = vpack.c.b16 %v2684, %v2684
        %v2688 = vpack.c.b16 %v2685, %v2685
        %v2691 = vunpack.c.l.b16 %v2591
        %v2692 = vunpack.c.h.b16 %v2591
        %v2693 = vunpack.c.l.b16 %v2592
        %v2694 = vpack.c.b16 %v2691, %v2691
        %v2695 = vpack.c.b16 %v2692, %v2692
        %v2696 = vpack.c.b16 %v2693, %v2693
        %2697 = vrot.lane.b32.xlu0 %v2694, 127
        %v2698 = vpop.permute.xlu0 %2697
        %2699 = vrot.lane.b32.xlu0 %v2695, 127
        %v2700 = vpop.permute.xlu0 %2699
        %2701 = vrot.lane.b32.xlu0 %v2696, 127
        %v2702 = vpop.permute.xlu0 %2701
        %vm2703 = vcmask 1039360
        %v2704 = vsel %vm2703, %v2698, %v2700
        %v2705 = vsel %vm2703, %v2700, %v2702
        %v2708 = vunpack.c.l.b16 %v2625
        %v2709 = vunpack.c.h.b16 %v2625
        %v2710 = vunpack.c.l.b16 %v2626
        %v2711 = vpack.c.b16 %v2708, %v2708
        %v2712 = vpack.c.b16 %v2709, %v2709
        %v2713 = vpack.c.b16 %v2710, %v2710
        %2714 = vrot.lane.b32.xlu0 %v2711, 126
        %v2715 = vpop.permute.xlu0 %2714
        %2716 = vrot.lane.b32.xlu0 %v2712, 126
        %v2717 = vpop.permute.xlu0 %2716
        %2718 = vrot.lane.b32.xlu0 %v2713, 126
        %v2719 = vpop.permute.xlu0 %2718
        %vm2720 = vcmask 1031168
        %v2721 = vsel %vm2720, %v2715, %v2717
        %v2722 = vsel %vm2720, %v2717, %v2719
        %v2725 = vunpack.c.l.b16 %v2634
        %v2726 = vunpack.c.h.b16 %v2634
        %v2727 = vunpack.c.l.b16 %v2635
        %v2728 = vpack.c.b16 %v2725, %v2725
        %v2729 = vpack.c.b16 %v2726, %v2726
        %v2730 = vpack.c.b16 %v2727, %v2727
        %2731 = vrot.lane.b32.xlu0 %v2728, 112
        %v2732 = vpop.permute.xlu0 %2731
        %2733 = vrot.lane.b32.xlu0 %v2729, 112
        %v2734 = vpop.permute.xlu0 %2733
        %2735 = vrot.lane.b32.xlu0 %v2730, 112
        %v2736 = vpop.permute.xlu0 %2735
        %vm2737 = vcmask 916480
        %v2738 = vsel %vm2737, %v2732, %v2734
        %v2739 = vsel %vm2737, %v2734, %v2736
        %v2742 = vunpack.c.l.b16 %v2643
        %v2743 = vunpack.c.h.b16 %v2643
        %v2744 = vunpack.c.l.b16 %v2644
        %v2745 = vpack.c.b16 %v2742, %v2742
        %v2746 = vpack.c.b16 %v2743, %v2743
        %v2747 = vpack.c.b16 %v2744, %v2744
        %2748 = vrot.lane.b32.xlu0 %v2745, 111
        %v2749 = vpop.permute.xlu0 %2748
        %2750 = vrot.lane.b32.xlu0 %v2746, 111
        %v2751 = vpop.permute.xlu0 %2750
        %2752 = vrot.lane.b32.xlu0 %v2747, 111
        %v2753 = vpop.permute.xlu0 %2752
        %vm2754 = vcmask 908288
        %v2755 = vsel %vm2754, %v2749, %v2751
        %v2756 = vsel %vm2754, %v2751, %v2753
        %v2759 = vunpack.c.l.b16 %v2652
        %v2760 = vunpack.c.h.b16 %v2652
        %v2761 = vunpack.c.l.b16 %v2653
        %v2762 = vpack.c.b16 %v2759, %v2759
        %v2763 = vpack.c.b16 %v2760, %v2760
        %v2764 = vpack.c.b16 %v2761, %v2761
        %2765 = vrot.lane.b32.xlu0 %v2762, 110
        %v2766 = vpop.permute.xlu0 %2765
        %2767 = vrot.lane.b32.xlu0 %v2763, 110
        %v2768 = vpop.permute.xlu0 %2767
        %2769 = vrot.lane.b32.xlu0 %v2764, 110
        %v2770 = vpop.permute.xlu0 %2769
        %vm2771 = vcmask 900096
        %v2772 = vsel %vm2771, %v2766, %v2768
        %v2773 = vsel %vm2771, %v2768, %v2770
        %v2776 = vunpack.c.l.b16 %v2661
        %v2777 = vunpack.c.h.b16 %v2661
        %v2778 = vunpack.c.l.b16 %v2662
        %v2779 = vpack.c.b16 %v2776, %v2776
        %v2780 = vpack.c.b16 %v2777, %v2777
        %v2781 = vpack.c.b16 %v2778, %v2778
        %2782 = vrot.lane.b32.xlu0 %v2779, 96
        %v2783 = vpop.permute.xlu0 %2782
        %2784 = vrot.lane.b32.xlu0 %v2780, 96
        %v2785 = vpop.permute.xlu0 %2784
        %2786 = vrot.lane.b32.xlu0 %v2781, 96
        %v2787 = vpop.permute.xlu0 %2786
        %vm2788 = vcmask 785408
        %v2789 = vsel %vm2788, %v2783, %v2785
        %v2790 = vsel %vm2788, %v2785, %v2787
        %v2793 = vunpack.c.l.b16 %v2670
        %v2794 = vunpack.c.h.b16 %v2670
        %v2795 = vunpack.c.l.b16 %v2671
        %v2796 = vpack.c.b16 %v2793, %v2793
        %v2797 = vpack.c.b16 %v2794, %v2794
        %v2798 = vpack.c.b16 %v2795, %v2795
        %2799 = vrot.lane.b32.xlu0 %v2796, 95
        %v2800 = vpop.permute.xlu0 %2799
        %2801 = vrot.lane.b32.xlu0 %v2797, 95
        %v2802 = vpop.permute.xlu0 %2801
        %2803 = vrot.lane.b32.xlu0 %v2798, 95
        %v2804 = vpop.permute.xlu0 %2803
        %vm2805 = vcmask 777216
        %v2806 = vsel %vm2805, %v2800, %v2802
        %v2807 = vsel %vm2805, %v2802, %v2804
        %v2810 = vunpack.c.l.b16 %v2679
        %v2811 = vunpack.c.h.b16 %v2679
        %v2812 = vunpack.c.l.b16 %v2680
        %v2813 = vpack.c.b16 %v2810, %v2810
        %v2814 = vpack.c.b16 %v2811, %v2811
        %v2815 = vpack.c.b16 %v2812, %v2812
        %2816 = vrot.lane.b32.xlu0 %v2813, 94
        %v2817 = vpop.permute.xlu0 %2816
        %2818 = vrot.lane.b32.xlu0 %v2814, 94
        %v2819 = vpop.permute.xlu0 %2818
        %2820 = vrot.lane.b32.xlu0 %v2815, 94
        %v2821 = vpop.permute.xlu0 %2820
        %vm2822 = vcmask 769024
        %v2823 = vsel %vm2822, %v2817, %v2819
        %v2824 = vsel %vm2822, %v2819, %v2821
        %vm2825 = vcmask 1043456
        %v2828 = vsel %vm2825, %v2686, %v2704
        %v2831 = vsel %vm2825, %v2687, %v2705
        %v2834 = vsel %vm2825, %v2688, %v2702
        %v2837 = vsel %vm2825, %v2721, %v2738
        %v2840 = vsel %vm2825, %v2722, %v2739
        %v2843 = vsel %vm2825, %v2719, %v2736
        %v2846 = vsel %vm2825, %v2755, %v2772
        %v2849 = vsel %vm2825, %v2756, %v2773
        %v2852 = vsel %vm2825, %v2753, %v2770
        %v2855 = vsel %vm2825, %v2789, %v2806
        %v2858 = vsel %vm2825, %v2790, %v2807
        %v2861 = vsel %vm2825, %v2787, %v2804
        %v2862 = vld [vmem:[%s8] sm:$0xff]
        %v2863 = vld [vmem:[%s8 + $0x8] sm:$0xff]
        %v2864 = vld [vmem:[%s8 + $0x10] sm:$0xff]
        %v2865 = vld [vmem:[%s8 + $0x18] sm:$0xff]
        %2867 = vset.pattern.permute.xlu0 0
        %2868 = vperm.xlu0 %2867, %v2862
        %v2869 = vpop.permute.xlu0 %2868
        %2872 = vset.pattern.permute.xlu0 0
        %2873 = vperm.xlu0 %2872, %v2863
        %v2874 = vpop.permute.xlu0 %2873
        %2877 = vset.pattern.permute.xlu0 0
        %2878 = vperm.xlu0 %2877, %v2864
        %v2879 = vpop.permute.xlu0 %2878
        %2882 = vset.pattern.permute.xlu0 0
        %2883 = vperm.xlu0 %2882, %v2865
        %v2884 = vpop.permute.xlu0 %2883
        %v2890 = vunpack.c.l.b16 %v2525
        %v2891 = vunpack.c.l.b16 %v2526
        %v2892 = vunpack.c.l.b16 %v2527
        %v2893 = vunpack.c.l.b16 %v2528
        %v2894 = vpack.c.b16 %v2891, %v2890
        %v2895 = vpack.c.b16 %v2893, %v2892
        %2908 = vrot.lane.b32.xlu0 %v2828, 121
        %v2909 = vpop.permute.xlu0 %2908
        %2910 = vrot.lane.b32.xlu0 %v2831, 121
        %v2911 = vpop.permute.xlu0 %2910
        %2912 = vrot.lane.b32.xlu0 %v2834, 121
        %v2913 = vpop.permute.xlu0 %2912
        %2914 = vrot.lane.b32.xlu0 %v2837, 121
        %v2915 = vpop.permute.xlu0 %2914
        %2916 = vrot.lane.b32.xlu0 %v2840, 121
        %v2917 = vpop.permute.xlu0 %2916
        %2918 = vrot.lane.b32.xlu0 %v2843, 121
        %v2919 = vpop.permute.xlu0 %2918
        %2920 = vrot.lane.b32.xlu0 %v2846, 121
        %v2921 = vpop.permute.xlu0 %2920
        %2922 = vrot.lane.b32.xlu0 %v2849, 121
        %v2923 = vpop.permute.xlu0 %2922
        %2924 = vrot.lane.b32.xlu0 %v2852, 121
        %v2925 = vpop.permute.xlu0 %2924
        %2926 = vrot.lane.b32.xlu0 %v2855, 121
        %v2927 = vpop.permute.xlu0 %2926
        %2928 = vrot.lane.b32.xlu0 %v2858, 121
        %v2929 = vpop.permute.xlu0 %2928
        %2930 = vrot.lane.b32.xlu0 %v2861, 121
        %v2931 = vpop.permute.xlu0 %2930
        %2932 = vrot.lane.b32.xlu0 %v2823, 121
        %v2933 = vpop.permute.xlu0 %2932
        %2934 = vrot.lane.b32.xlu0 %v2824, 121
        %v2935 = vpop.permute.xlu0 %2934
        %2936 = vrot.lane.b32.xlu0 %v2821, 121
        %v2937 = vpop.permute.xlu0 %2936
        %vm2938 = vcmask 990208
        %v2939 = vsel %vm2938, %v2909, %v2911
        %v2940 = vsel %vm2938, %v2911, %v2913
        %v2941 = vsel %vm2938, %v2915, %v2917
        %v2942 = vsel %vm2938, %v2917, %v2919
        %v2943 = vsel %vm2938, %v2921, %v2923
        %v2944 = vsel %vm2938, %v2923, %v2925
        %v2945 = vsel %vm2938, %v2927, %v2929
        %v2946 = vsel %vm2938, %v2929, %v2931
        %v2947 = vsel %vm2938, %v2933, %v2935
        %v2948 = vsel %vm2938, %v2935, %v2937
        %v2958 = vsel %vm1760, %v2894, 0
        %v2961 = vsel %vm1760, %v2895, 0
        %v2964 = vsel %vm2825, %v2947, 0
        %v2967 = vsel %vm2825, %v2948, 0
        %2969 = vmatprep.subr.bf16.mxu0 %v2940
        %2970 = vmatpush1.bf16.msra.mxu0 %v2939
        %2971 = vmatprep.subr.bf16.mxu0 %v2942
        %2972 = vmatpush1.bf16.msra.mxu0 %v2941
        %2973 = vmatprep.subr.bf16.mxu0 %v2944
        %2974 = vmatpush1.bf16.msra.mxu0 %v2943
        %2975 = vmatprep.subr.bf16.mxu0 %v2946
        %2976 = vmatpush1.bf16.msra.mxu0 %v2945
        %2977 = vmatprep.subr.bf16.mxu0 %v2967
        %2978 = vmatpush1.bf16.msra.mxu0 %v2964
        %2979 = vmatprep.subr.bf16.mxu0 0
        %2980 = vmatpush1.bf16.msra.mxu0 0
        %2981 = vmatprep.subr.bf16.mxu0 0
        %2982 = vmatpush1.bf16.msra.mxu0 0
        %2983 = vmatprep.subr.bf16.mxu0 0
        %2984 = vmatpush1.bf16.msra.mxu0 0
        %2985 = vmatprep.subr.bf16.mxu0 0
        %2986 = vmatpush1.bf16.msra.mxu0 0
        %2987 = vmatprep.subr.bf16.mxu0 0
        %2988 = vmatpush1.bf16.msra.mxu0 0
        %2989 = vmatprep.subr.bf16.mxu0 0
        %2990 = vmatpush1.bf16.msra.mxu0 0
        %2991 = vmatprep.subr.bf16.mxu0 0
        %2992 = vmatpush1.bf16.msra.mxu0 0
        %2993 = vmatprep.subr.bf16.mxu0 0
        %2994 = vmatpush1.bf16.msra.mxu0 0
        %2995 = vmatprep.subr.bf16.mxu0 0
        %2996 = vmatpush1.bf16.msra.mxu0 0
        %2997 = vmatprep.subr.bf16.mxu0 0
        %2998 = vmatpush1.bf16.msra.mxu0 0
        %2999 = vmatprep.subr.bf16.mxu0 0
        %3000 = vmatpush1.bf16.msra.mxu0 0
        %3001 = vmatprep.mubr.bf16.mxu0 0
        %3002 = vmatmul.mubr.bf16.gmra.mrb[0].mxu0 %v2958
        %v3003 = vpop.f32.mrb[0].mxu0
        %v3004 = vadd.f32 %v2869, %v3003
        %v3005 = vpop.f32.mrb[0].mxu0
        %v3006 = vadd.f32 %v2869, %v3005
        %v3007 = vpop.f32.mrb[0].mxu0
        %v3008 = vadd.f32 %v2874, %v3007
        %v3009 = vpop.f32.mrb[0].mxu0
        %v3010 = vadd.f32 %v2874, %v3009
        %3011 = vmatprep.mubr.bf16.mxu0 0
        %3012 = vmatmul.mubr.bf16.gmra.mrb[0].mxu0 %v2961
        %v3013 = vpop.f32.mrb[0].mxu0
        %v3014 = vadd.f32 %v2879, %v3013
        %v3015 = vpop.f32.mrb[0].mxu0
        %v3016 = vadd.f32 %v2879, %v3015
        %v3017 = vpop.f32.mrb[0].mxu0
        %v3018 = vadd.f32 %v2884, %v3017
        %v3019 = vpop.f32.mrb[0].mxu0
        %v3020 = vadd.f32 %v2884, %v3019
        %3021 = vdwg.mxu0
        %v3022 = vmul.f32 %v3004, 0.5
        %v3023 = vmul.f32 %v3006, 0.5
        %v3024 = vmul.f32 %v3008, 0.5
        %v3025 = vmul.f32 %v3010, 0.5
        %v3026 = vmul.f32 %v3014, 0.5
        %v3027 = vmul.f32 %v3016, 0.5
        %v3028 = vmul.f32 %v3018, 0.5
        %v3029 = vmul.f32 %v3020, 0.5
        %v3030 = vmul.f32 %v3004, 0.044715
        %v3031 = vmul.f32 %v3006, 0.044715
        %v3032 = vmul.f32 %v3008, 0.044715
        %v3033 = vmul.f32 %v3010, 0.044715
        %v3034 = vmul.f32 %v3014, 0.044715
        %v3035 = vmul.f32 %v3016, 0.044715
        %v3036 = vmul.f32 %v3018, 0.044715
        %v3037 = vmul.f32 %v3020, 0.044715
        %v3038 = vmul.f32 %v3030, %v3004
        %v3039 = vmul.f32 %v3031, %v3006
        %v3040 = vmul.f32 %v3032, %v3008
        %v3041 = vmul.f32 %v3033, %v3010
        %v3042 = vmul.f32 %v3034, %v3014
        %v3043 = vmul.f32 %v3035, %v3016
        %v3044 = vmul.f32 %v3036, %v3018
        %v3045 = vmul.f32 %v3037, %v3020
        %v3046 = vmul.f32 %v3038, %v3004
        %v3047 = vmul.f32 %v3039, %v3006
        %v3048 = vmul.f32 %v3040, %v3008
        %v3049 = vmul.f32 %v3041, %v3010
        %v3050 = vmul.f32 %v3042, %v3014
        %v3051 = vmul.f32 %v3043, %v3016
        %v3052 = vmul.f32 %v3044, %v3018
        %v3053 = vmul.f32 %v3045, %v3020
        %v3054 = vadd.f32 %v3004, %v3046
        %v3055 = vadd.f32 %v3006, %v3047
        %v3056 = vadd.f32 %v3008, %v3048
        %v3057 = vadd.f32 %v3010, %v3049
        %v3058 = vadd.f32 %v3014, %v3050
        %v3059 = vadd.f32 %v3016, %v3051
        %v3060 = vadd.f32 %v3018, %v3052
        %v3061 = vadd.f32 %v3020, %v3053
        %v3062 = vmul.f32 %v3054, 0.7978846
        %v3063 = vmul.f32 %v3055, 0.7978846
        %v3064 = vmul.f32 %v3056, 0.7978846
        %v3065 = vmul.f32 %v3057, 0.7978846
        %v3066 = vmul.f32 %v3058, 0.7978846
        %v3067 = vmul.f32 %v3059, 0.7978846
        %v3068 = vmul.f32 %v3060, 0.7978846
        %v3069 = vmul.f32 %v3061, 0.7978846
        %v3070 = vtanh.pop %v3062
        %v3071 = vtanh.pop %v3063
        %v3072 = vtanh.pop %v3064
        %v3073 = vtanh.pop %v3065
        %v3074 = vtanh.pop %v3066
        %v3075 = vtanh.pop %v3067
        %v3076 = vtanh.pop %v3068
        %v3077 = vtanh.pop %v3069
        %v3078 = vadd.f32 %v3070, 1.0
        %v3079 = vadd.f32 %v3071, 1.0
        %v3080 = vadd.f32 %v3072, 1.0
        %v3081 = vadd.f32 %v3073, 1.0
        %v3082 = vadd.f32 %v3074, 1.0
        %v3083 = vadd.f32 %v3075, 1.0
        %v3084 = vadd.f32 %v3076, 1.0
        %v3085 = vadd.f32 %v3077, 1.0
        %v3086 = vmul.f32 %v3022, %v3078
        %v3087 = vmul.f32 %v3023, %v3079
        %v3088 = vmul.f32 %v3024, %v3080
        %v3089 = vmul.f32 %v3025, %v3081
        %v3090 = vmul.f32 %v3026, %v3082
        %v3091 = vmul.f32 %v3027, %v3083
        %v3092 = vmul.f32 %v3028, %v3084
        %v3093 = vmul.f32 %v3029, %v3085
        %v3094 = vld [vmem:[%s9] sm:$0xff]
        %v3095 = vld [vmem:[%s9 + $0x8] sm:$0xff]
        %v3096 = vld [vmem:[%s9 + $0x10] sm:$0xff]
        %v3097 = vld [vmem:[%s9 + $0x18] sm:$0xff]
        %v3098 = vld [vmem:[%s10] sm:$0xff]
        %v3099 = vld [vmem:[%s10 + $0x8] sm:$0xff]
        %v3100 = vld [vmem:[%s10 + $0x10] sm:$0xff]
        %v3101 = vld [vmem:[%s10 + $0x18] sm:$0xff]
        %v3102 = vadd.f32 %v3086, %v3087
        %3103 = vadd.xlane.f32.xlu0 %v3102
        %v3104 = vpop.xlane.xlu0 %3103
        %v3105 = vadd.f32 %v3088, %v3089
        %3106 = vadd.xlane.f32.xlu0 %v3105
        %v3107 = vpop.xlane.xlu0 %3106
        %v3108 = vadd.f32 %v3090, %v3091
        %3109 = vadd.xlane.f32.xlu0 %v3108
        %v3110 = vpop.xlane.xlu0 %3109
        %v3111 = vadd.f32 %v3092, %v3093
        %3112 = vadd.xlane.f32.xlu0 %v3111
        %v3113 = vpop.xlane.xlu0 %3112
        %v3114 = vadd.f32 %v3104, %v3107
        %v3115 = vadd.f32 %v3114, %v3110
        %v3116 = vadd.f32 %v3115, %v3113
        %v3117 = vrot.slane %v3116, 4
        %v3118 = vadd.f32 %v3116, %v3117
        %v3119 = vrot.slane %v3118, 2
        %v3120 = vadd.f32 %v3118, %v3119
        %v3121 = vrot.slane %v3120, 1
        %v3122 = vadd.f32 %v3120, %v3121
        %v3123 = vrcp.pop 8192.0
        %v3124 = vmul.f32 %v3122, %v3123
        %v3125 = vsub.f32 %v3086, %v3124
        %v3126 = vsub.f32 %v3087, %v3124
        %v3127 = vsub.f32 %v3088, %v3124
        %v3128 = vsub.f32 %v3089, %v3124
        %v3129 = vsub.f32 %v3090, %v3124
        %v3130 = vsub.f32 %v3091, %v3124
        %v3131 = vsub.f32 %v3092, %v3124
        %v3132 = vsub.f32 %v3093, %v3124
        %v3133 = vmul.f32 %v3125, %v3125
        %v3134 = vmul.f32 %v3126, %v3126
        %v3135 = vmul.f32 %v3127, %v3127
        %v3136 = vmul.f32 %v3128, %v3128
        %v3137 = vmul.f32 %v3129, %v3129
        %v3138 = vmul.f32 %v3130, %v3130
        %v3139 = vmul.f32 %v3131, %v3131
        %v3140 = vmul.f32 %v3132, %v3132
        %v3141 = vadd.f32 %v3133, %v3134
        %3142 = vadd.xlane.f32.xlu0 %v3141
        %v3143 = vpop.xlane.xlu0 %3142
        %v3144 = vadd.f32 %v3135, %v3136
        %3145 = vadd.xlane.f32.xlu0 %v3144
        %v3146 = vpop.xlane.xlu0 %3145
        %v3147 = vadd.f32 %v3137, %v3138
        %3148 = vadd.xlane.f32.xlu0 %v3147
        %v3149 = vpop.xlane.xlu0 %3148
        %v3150 = vadd.f32 %v3139, %v3140
        %3151 = vadd.xlane.f32.xlu0 %v3150
        %v3152 = vpop.xlane.xlu0 %3151
        %v3153 = vadd.f32 %v3143, %v3146
        %v3154 = vadd.f32 %v3153, %v3149
        %v3155 = vadd.f32 %v3154, %v3152
        %v3156 = vrot.slane %v3155, 4
        %v3157 = vadd.f32 %v3155, %v3156
        %v3158 = vrot.slane %v3157, 2
        %v3159 = vadd.f32 %v3157, %v3158
        %v3160 = vrot.slane %v3159, 1
        %v3161 = vadd.f32 %v3159, %v3160
        %v3162 = vmul.f32 %v3161, %v3123
        %v3163 = vadd.f32 %v3162, 1e-05
        %v3164 = vrsqrt.pop %v3163
        %v3165 = vmul.f32 %v3164, %v3094
        %v3166 = vmul.f32 %v3164, %v3095
        %v3167 = vmul.f32 %v3164, %v3096
        %v3168 = vmul.f32 %v3164, %v3097
        %3170 = vset.pattern.permute.xlu0 0
        %3171 = vperm.xlu0 %3170, %v3165
        %v3172 = vpop.permute.xlu0 %3171
        %3175 = vset.pattern.permute.xlu0 0
        %3176 = vperm.xlu0 %3175, %v3166
        %v3177 = vpop.permute.xlu0 %3176
        %3180 = vset.pattern.permute.xlu0 0
        %3181 = vperm.xlu0 %3180, %v3167
        %v3182 = vpop.permute.xlu0 %3181
        %3185 = vset.pattern.permute.xlu0 0
        %3186 = vperm.xlu0 %3185, %v3168
        %v3187 = vpop.permute.xlu0 %3186
        %v3189 = vmul.f32 %v3125, %v3172
        %v3190 = vmul.f32 %v3126, %v3172
        %v3191 = vmul.f32 %v3127, %v3177
        %v3192 = vmul.f32 %v3128, %v3177
        %v3193 = vmul.f32 %v3129, %v3182
        %v3194 = vmul.f32 %v3130, %v3182
        %v3195 = vmul.f32 %v3131, %v3187
        %v3196 = vmul.f32 %v3132, %v3187
        %3198 = vset.pattern.permute.xlu0 0
        %3199 = vperm.xlu0 %3198, %v3098
        %v3200 = vpop.permute.xlu0 %3199
        %3203 = vset.pattern.permute.xlu0 0
        %3204 = vperm.xlu0 %3203, %v3099
        %v3205 = vpop.permute.xlu0 %3204
        %3208 = vset.pattern.permute.xlu0 0
        %3209 = vperm.xlu0 %3208, %v3100
        %v3210 = vpop.permute.xlu0 %3209
        %3213 = vset.pattern.permute.xlu0 0
        %3214 = vperm.xlu0 %3213, %v3101
        %v3215 = vpop.permute.xlu0 %3214
        %v3217 = vadd.f32 %v3189, %v3200
        %v3218 = vadd.f32 %v3190, %v3200
        %v3219 = vadd.f32 %v3191, %v3205
        %v3220 = vadd.f32 %v3192, %v3205
        %v3221 = vadd.f32 %v3193, %v3210
        %v3222 = vadd.f32 %v3194, %v3210
        %v3223 = vadd.f32 %v3195, %v3215
        %v3224 = vadd.f32 %v3196, %v3215
        %v3225 = vpack.c.bf16 %v3219, %v3217
        %v3226 = vpack.c.bf16 %v3220, %v3218
        %v3227 = vpack.c.bf16 %v3223, %v3221
        %v3228 = vpack.c.bf16 %v3224, %v3222
        %3229 = vst.msk [vmem:[#allocation4] sm:$0xff] %vm984, 0
        %3230 = vst.msk [vmem:[#allocation4 + $0x18] sm:$0xff] %vm984, 0
        %vm3231 = vcmask 392384
        %3232 = vst.msk [vmem:[#allocation4 + $0x10] sm:$0xff] %vm3231, 0
        %3233 = vst.msk [vmem:[#allocation4 + $0x28] sm:$0xff] %vm3231, 0
        %3238 = vrot.lane.b32.xlu0 %v3225, 24
        %v3239 = vpop.permute.xlu0 %3238
        %3240 = vrot.lane.b32.xlu0 %v3226, 24
        %v3241 = vpop.permute.xlu0 %3240
        %3242 = vrot.lane.b32.xlu0 %v3227, 24
        %v3243 = vpop.permute.xlu0 %3242
        %3244 = vrot.lane.b32.xlu0 %v3228, 24
        %v3245 = vpop.permute.xlu0 %3244
        %v3246 = vsel %vm2639, %v3239, %v3241
        %v3247 = vsel %vm2639, %v3243, %v3245
        %vm3254 = vcmask 1047744
        %3255 = vst.msk [vmem:[#allocation4] sm:$0xff] %vm3254, %v3239
        %3256 = vst [vmem:[#allocation4 + $0x8] sm:$0xff] %v3246
        %3257 = vst.msk [vmem:[#allocation4 + $0x10] sm:$0xff] %vm984, %v3241
        %3258 = vst.msk [vmem:[#allocation4 + $0x18] sm:$0xff] %vm3254, %v3243
        %3259 = vst [vmem:[#allocation4 + $0x20] sm:$0xff] %v3247
        %3260 = vst.msk [vmem:[#allocation4 + $0x28] sm:$0xff] %vm984, %v3245
        %v3261 = vld [vmem:[%s11] sm:$0xff]
        %v3262 = vld [vmem:[%s11 + $0x8] sm:$0xf]
        %v3263 = vld [vmem:[%s11 + $0xc] sm:$0xff]
        %v3264 = vld [vmem:[%s11 + $0x14] sm:$0xf]
        %v3265 = vld [vmem:[#allocation4] sm:$0xff]
        %v3266 = vld [vmem:[#allocation4 + $0x8] sm:$0xff]
        %v3267 = vld [vmem:[#allocation4 + $0x10] sm:$0xff]
        %v3268 = vld [vmem:[#allocation4 + $0x18] sm:$0xff]
        %v3269 = vld [vmem:[#allocation4 + $0x20] sm:$0xff]
        %v3270 = vld [vmem:[#allocation4 + $0x28] sm:$0xff]
        %v3271 = vld [vmem:[%s4] sm:$0x22]
        %v3273 = vunpack.c.l.b16 %v3271
        %v3274 = vunpack.c.h.b16 %v3271
        %v3275 = vpack.c.b16 %v3273, %v3273
        %v3276 = vpack.c.b16 %v3274, %v3274
        %v3278 = vpack.i.b16 %v3275, %v3275
        %v3280 = vlaneseq
        %v3281 = vshrl.u32 %v3280, 7
        %v3282 = vsub.s32 1, %v3281
        %v3283 = vrot.slane %v3278, %v3282
        %v3285 = vpack.i.b16 %v3276, %v3276
        %v3287 = vlaneseq
        %v3288 = vshrl.u32 %v3287, 7
        %v3289 = vsub.s32 1, %v3288
        %v3290 = vrot.slane %v3285, %v3289
        %3293 = vrot.lane.b32.xlu0 %v3283, 7
        %v3294 = vpop.permute.xlu0 %3293
        %3295 = vrot.lane.b32.xlu0 %v3290, 7
        %v3296 = vpop.permute.xlu0 %3295
        %v3297 = vsel %vm2559, %v3294, %v3296
        %v3301 = vmul.bf16 %v3265, %v3294
        %v3302 = vmul.bf16 %v3266, %v3297
        %v3303 = vmul.bf16 %v3267, %v3296
        %v3304 = vmul.bf16 %v3268, %v3294
        %v3305 = vmul.bf16 %v3269, %v3297
        %v3306 = vmul.bf16 %v3270, %v3296
        %v3307 = vshrl.u32 %v3275, 16
        %v3308 = vpack.i.b16 %v3307, %v3307
        %v3310 = vlaneseq
        %v3311 = vshrl.u32 %v3310, 7
        %v3312 = vsub.s32 1, %v3311
        %v3313 = vrot.slane %v3308, %v3312
        %v3314 = vshrl.u32 %v3276, 16
        %v3315 = vpack.i.b16 %v3314, %v3314
        %v3317 = vlaneseq
        %v3318 = vshrl.u32 %v3317, 7
        %v3319 = vsub.s32 1, %v3318
        %v3320 = vrot.slane %v3315, %v3319
        %3323 = vrot.lane.b32.xlu0 %v3313, 8
        %v3324 = vpop.permute.xlu0 %3323
        %3325 = vrot.lane.b32.xlu0 %v3320, 8
        %v3326 = vpop.permute.xlu0 %3325
        %v3327 = vsel %vm2587, %v3324, %v3326
        %v3331 = vmul.bf16 %v3265, %v3324
        %v3332 = vmul.bf16 %v3266, %v3327
        %v3333 = vmul.bf16 %v3267, %v3326
        %v3334 = vmul.bf16 %v3268, %v3324
        %v3335 = vmul.bf16 %v3269, %v3327
        %v3336 = vmul.bf16 %v3270, %v3326
        %v3337 = vld [vmem:[%s4] sm:$0x44]
        %v3339 = vunpack.c.l.b16 %v3337
        %v3340 = vunpack.c.h.b16 %v3337
        %v3341 = vpack.c.b16 %v3339, %v3339
        %v3342 = vpack.c.b16 %v3340, %v3340
        %v3344 = vpack.i.b16 %v3341, %v3341
        %v3346 = vlaneseq
        %v3347 = vshrl.u32 %v3346, 7
        %v3348 = vsub.s32 2, %v3347
        %v3349 = vrot.slane %v3344, %v3348
        %v3351 = vpack.i.b16 %v3342, %v3342
        %v3353 = vlaneseq
        %v3354 = vshrl.u32 %v3353, 7
        %v3355 = vsub.s32 2, %v3354
        %v3356 = vrot.slane %v3351, %v3355
        %3359 = vrot.lane.b32.xlu0 %v3349, 9
        %v3360 = vpop.permute.xlu0 %3359
        %3361 = vrot.lane.b32.xlu0 %v3356, 9
        %v3362 = vpop.permute.xlu0 %3361
        %v3363 = vsel %vm2621, %v3360, %v3362
        %v3367 = vmul.bf16 %v3265, %v3360
        %v3368 = vmul.bf16 %v3266, %v3363
        %v3369 = vmul.bf16 %v3267, %v3362
        %v3370 = vmul.bf16 %v3268, %v3360
        %v3371 = vmul.bf16 %v3269, %v3363
        %v3372 = vmul.bf16 %v3270, %v3362
        %3373 = vrot.lane.b32.xlu0 %v3283, 23
        %v3374 = vpop.permute.xlu0 %3373
        %3375 = vrot.lane.b32.xlu0 %v3290, 23
        %v3376 = vpop.permute.xlu0 %3375
        %v3377 = vsel %vm2630, %v3374, %v3376
        %v3381 = vmul.bf16 %v3265, %v3374
        %v3382 = vmul.bf16 %v3266, %v3377
        %v3383 = vmul.bf16 %v3267, %v3376
        %v3384 = vmul.bf16 %v3268, %v3374
        %v3385 = vmul.bf16 %v3269, %v3377
        %v3386 = vmul.bf16 %v3270, %v3376
        %3387 = vrot.lane.b32.xlu0 %v3313, 24
        %v3388 = vpop.permute.xlu0 %3387
        %3389 = vrot.lane.b32.xlu0 %v3320, 24
        %v3390 = vpop.permute.xlu0 %3389
        %v3391 = vsel %vm2639, %v3388, %v3390
        %v3395 = vmul.bf16 %v3265, %v3388
        %v3396 = vmul.bf16 %v3266, %v3391
        %v3397 = vmul.bf16 %v3267, %v3390
        %v3398 = vmul.bf16 %v3268, %v3388
        %v3399 = vmul.bf16 %v3269, %v3391
        %v3400 = vmul.bf16 %v3270, %v3390
        %3401 = vrot.lane.b32.xlu0 %v3349, 25
        %v3402 = vpop.permute.xlu0 %3401
        %3403 = vrot.lane.b32.xlu0 %v3356, 25
        %v3404 = vpop.permute.xlu0 %3403
        %v3405 = vsel %vm2648, %v3402, %v3404
        %v3409 = vmul.bf16 %v3265, %v3402
        %v3410 = vmul.bf16 %v3266, %v3405
        %v3411 = vmul.bf16 %v3267, %v3404
        %v3412 = vmul.bf16 %v3268, %v3402
        %v3413 = vmul.bf16 %v3269, %v3405
        %v3414 = vmul.bf16 %v3270, %v3404
        %3415 = vrot.lane.b32.xlu0 %v3283, 39
        %v3416 = vpop.permute.xlu0 %3415
        %3417 = vrot.lane.b32.xlu0 %v3290, 39
        %v3418 = vpop.permute.xlu0 %3417
        %v3419 = vsel %vm2657, %v3416, %v3418
        %v3423 = vmul.bf16 %v3265, %v3416
        %v3424 = vmul.bf16 %v3266, %v3419
        %v3425 = vmul.bf16 %v3267, %v3418
        %v3426 = vmul.bf16 %v3268, %v3416
        %v3427 = vmul.bf16 %v3269, %v3419
        %v3428 = vmul.bf16 %v3270, %v3418
        %3429 = vrot.lane.b32.xlu0 %v3313, 40
        %v3430 = vpop.permute.xlu0 %3429
        %3431 = vrot.lane.b32.xlu0 %v3320, 40
        %v3432 = vpop.permute.xlu0 %3431
        %v3433 = vsel %vm2666, %v3430, %v3432
        %v3437 = vmul.bf16 %v3265, %v3430
        %v3438 = vmul.bf16 %v3266, %v3433
        %v3439 = vmul.bf16 %v3267, %v3432
        %v3440 = vmul.bf16 %v3268, %v3430
        %v3441 = vmul.bf16 %v3269, %v3433
        %v3442 = vmul.bf16 %v3270, %v3432
        %3443 = vrot.lane.b32.xlu0 %v3349, 41
        %v3444 = vpop.permute.xlu0 %3443
        %3445 = vrot.lane.b32.xlu0 %v3356, 41
        %v3446 = vpop.permute.xlu0 %3445
        %v3447 = vsel %vm2675, %v3444, %v3446
        %v3451 = vmul.bf16 %v3265, %v3444
        %v3452 = vmul.bf16 %v3266, %v3447
        %v3453 = vmul.bf16 %v3267, %v3446
        %v3454 = vmul.bf16 %v3268, %v3444
        %v3455 = vmul.bf16 %v3269, %v3447
        %v3456 = vmul.bf16 %v3270, %v3446
        %3463 = vrot.lane.b32.xlu0 %v3331, 127
        %v3464 = vpop.permute.xlu0 %3463
        %3465 = vrot.lane.b32.xlu0 %v3332, 127
        %v3466 = vpop.permute.xlu0 %3465
        %3467 = vrot.lane.b32.xlu0 %v3333, 127
        %v3468 = vpop.permute.xlu0 %3467
        %3469 = vrot.lane.b32.xlu0 %v3334, 127
        %v3470 = vpop.permute.xlu0 %3469
        %3471 = vrot.lane.b32.xlu0 %v3335, 127
        %v3472 = vpop.permute.xlu0 %3471
        %3473 = vrot.lane.b32.xlu0 %v3336, 127
        %v3474 = vpop.permute.xlu0 %3473
        %v3475 = vsel %vm2703, %v3464, %v3466
        %v3476 = vsel %vm2703, %v3466, %v3468
        %v3477 = vsel %vm2703, %v3470, %v3472
        %v3478 = vsel %vm2703, %v3472, %v3474
        %3485 = vrot.lane.b32.xlu0 %v3367, 126
        %v3486 = vpop.permute.xlu0 %3485
        %3487 = vrot.lane.b32.xlu0 %v3368, 126
        %v3488 = vpop.permute.xlu0 %3487
        %3489 = vrot.lane.b32.xlu0 %v3369, 126
        %v3490 = vpop.permute.xlu0 %3489
        %3491 = vrot.lane.b32.xlu0 %v3370, 126
        %v3492 = vpop.permute.xlu0 %3491
        %3493 = vrot.lane.b32.xlu0 %v3371, 126
        %v3494 = vpop.permute.xlu0 %3493
        %3495 = vrot.lane.b32.xlu0 %v3372, 126
        %v3496 = vpop.permute.xlu0 %3495
        %v3497 = vsel %vm2720, %v3486, %v3488
        %v3498 = vsel %vm2720, %v3488, %v3490
        %v3499 = vsel %vm2720, %v3492, %v3494
        %v3500 = vsel %vm2720, %v3494, %v3496
        %3507 = vrot.lane.b32.xlu0 %v3381, 112
        %v3508 = vpop.permute.xlu0 %3507
        %3509 = vrot.lane.b32.xlu0 %v3382, 112
        %v3510 = vpop.permute.xlu0 %3509
        %3511 = vrot.lane.b32.xlu0 %v3383, 112
        %v3512 = vpop.permute.xlu0 %3511
        %3513 = vrot.lane.b32.xlu0 %v3384, 112
        %v3514 = vpop.permute.xlu0 %3513
        %3515 = vrot.lane.b32.xlu0 %v3385, 112
        %v3516 = vpop.permute.xlu0 %3515
        %3517 = vrot.lane.b32.xlu0 %v3386, 112
        %v3518 = vpop.permute.xlu0 %3517
        %v3519 = vsel %vm2737, %v3508, %v3510
        %v3520 = vsel %vm2737, %v3510, %v3512
        %v3521 = vsel %vm2737, %v3514, %v3516
        %v3522 = vsel %vm2737, %v3516, %v3518
        %3529 = vrot.lane.b32.xlu0 %v3395, 111
        %v3530 = vpop.permute.xlu0 %3529
        %3531 = vrot.lane.b32.xlu0 %v3396, 111
        %v3532 = vpop.permute.xlu0 %3531
        %3533 = vrot.lane.b32.xlu0 %v3397, 111
        %v3534 = vpop.permute.xlu0 %3533
        %3535 = vrot.lane.b32.xlu0 %v3398, 111
        %v3536 = vpop.permute.xlu0 %3535
        %3537 = vrot.lane.b32.xlu0 %v3399, 111
        %v3538 = vpop.permute.xlu0 %3537
        %3539 = vrot.lane.b32.xlu0 %v3400, 111
        %v3540 = vpop.permute.xlu0 %3539
        %v3541 = vsel %vm2754, %v3530, %v3532
        %v3542 = vsel %vm2754, %v3532, %v3534
        %v3543 = vsel %vm2754, %v3536, %v3538
        %v3544 = vsel %vm2754, %v3538, %v3540
        %3551 = vrot.lane.b32.xlu0 %v3409, 110
        %v3552 = vpop.permute.xlu0 %3551
        %3553 = vrot.lane.b32.xlu0 %v3410, 110
        %v3554 = vpop.permute.xlu0 %3553
        %3555 = vrot.lane.b32.xlu0 %v3411, 110
        %v3556 = vpop.permute.xlu0 %3555
        %3557 = vrot.lane.b32.xlu0 %v3412, 110
        %v3558 = vpop.permute.xlu0 %3557
        %3559 = vrot.lane.b32.xlu0 %v3413, 110
        %v3560 = vpop.permute.xlu0 %3559
        %3561 = vrot.lane.b32.xlu0 %v3414, 110
        %v3562 = vpop.permute.xlu0 %3561
        %v3563 = vsel %vm2771, %v3552, %v3554
        %v3564 = vsel %vm2771, %v3554, %v3556
        %v3565 = vsel %vm2771, %v3558, %v3560
        %v3566 = vsel %vm2771, %v3560, %v3562
        %3573 = vrot.lane.b32.xlu0 %v3423, 96
        %v3574 = vpop.permute.xlu0 %3573
        %3575 = vrot.lane.b32.xlu0 %v3424, 96
        %v3576 = vpop.permute.xlu0 %3575
        %3577 = vrot.lane.b32.xlu0 %v3425, 96
        %v3578 = vpop.permute.xlu0 %3577
        %3579 = vrot.lane.b32.xlu0 %v3426, 96
        %v3580 = vpop.permute.xlu0 %3579
        %3581 = vrot.lane.b32.xlu0 %v3427, 96
        %v3582 = vpop.permute.xlu0 %3581
        %3583 = vrot.lane.b32.xlu0 %v3428, 96
        %v3584 = vpop.permute.xlu0 %3583
        %v3585 = vsel %vm2788, %v3574, %v3576
        %v3586 = vsel %vm2788, %v3576, %v3578
        %v3587 = vsel %vm2788, %v3580, %v3582
        %v3588 = vsel %vm2788, %v3582, %v3584
        %3595 = vrot.lane.b32.xlu0 %v3437, 95
        %v3596 = vpop.permute.xlu0 %3595
        %3597 = vrot.lane.b32.xlu0 %v3438, 95
        %v3598 = vpop.permute.xlu0 %3597
        %3599 = vrot.lane.b32.xlu0 %v3439, 95
        %v3600 = vpop.permute.xlu0 %3599
        %3601 = vrot.lane.b32.xlu0 %v3440, 95
        %v3602 = vpop.permute.xlu0 %3601
        %3603 = vrot.lane.b32.xlu0 %v3441, 95
        %v3604 = vpop.permute.xlu0 %3603
        %3605 = vrot.lane.b32.xlu0 %v3442, 95
        %v3606 = vpop.permute.xlu0 %3605
        %v3607 = vsel %vm2805, %v3596, %v3598
        %v3608 = vsel %vm2805, %v3598, %v3600
        %v3609 = vsel %vm2805, %v3602, %v3604
        %v3610 = vsel %vm2805, %v3604, %v3606
        %3617 = vrot.lane.b32.xlu0 %v3451, 94
        %v3618 = vpop.permute.xlu0 %3617
        %3619 = vrot.lane.b32.xlu0 %v3452, 94
        %v3620 = vpop.permute.xlu0 %3619
        %3621 = vrot.lane.b32.xlu0 %v3453, 94
        %v3622 = vpop.permute.xlu0 %3621
        %3623 = vrot.lane.b32.xlu0 %v3454, 94
        %v3624 = vpop.permute.xlu0 %3623
        %3625 = vrot.lane.b32.xlu0 %v3455, 94
        %v3626 = vpop.permute.xlu0 %3625
        %3627 = vrot.lane.b32.xlu0 %v3456, 94
        %v3628 = vpop.permute.xlu0 %3627
        %v3629 = vsel %vm2822, %v3618, %v3620
        %v3630 = vsel %vm2822, %v3620, %v3622
        %v3631 = vsel %vm2822, %v3624, %v3626
        %v3632 = vsel %vm2822, %v3626, %v3628
        %v3633 = vld [vmem:[%s12] sm:$0xff]
        %v3634 = vld [vmem:[%s12 + $0x8] sm:$0xff]
        %3636 = vset.pattern.permute.xlu0 0
        %3637 = vperm.xlu0 %3636, %v3633
        %v3638 = vpop.permute.xlu0 %3637
        %3641 = vset.pattern.permute.xlu0 0
        %3642 = vperm.xlu0 %3641, %v3634
        %v3643 = vpop.permute.xlu0 %3642
        %v3649 = vunpack.c.l.b16 %v3261
        %v3650 = vunpack.c.h.b16 %v3261
        %v3651 = vunpack.c.l.b16 %v3262
        %v3652 = vunpack.c.l.b16 %v3263
        %v3653 = vunpack.c.h.b16 %v3263
        %v3654 = vunpack.c.l.b16 %v3264
        %v3655 = vpack.c.b16 %v3652, %v3649
        %v3656 = vpack.c.b16 %v3653, %v3650
        %v3657 = vpack.c.b16 %v3654, %v3651
        %3666 = vrot.lane.b32.xlu0 %v3301, 121
        %v3667 = vpop.permute.xlu0 %3666
        %3668 = vrot.lane.b32.xlu0 %v3302, 121
        %v3669 = vpop.permute.xlu0 %3668
        %3670 = vrot.lane.b32.xlu0 %v3303, 121
        %v3671 = vpop.permute.xlu0 %3670
        %3672 = vrot.lane.b32.xlu0 %v3304, 121
        %v3673 = vpop.permute.xlu0 %3672
        %3674 = vrot.lane.b32.xlu0 %v3305, 121
        %v3675 = vpop.permute.xlu0 %3674
        %3676 = vrot.lane.b32.xlu0 %v3306, 121
        %v3677 = vpop.permute.xlu0 %3676
        %3678 = vrot.lane.b32.xlu0 %v3475, 121
        %v3679 = vpop.permute.xlu0 %3678
        %3680 = vrot.lane.b32.xlu0 %v3476, 121
        %v3681 = vpop.permute.xlu0 %3680
        %3682 = vrot.lane.b32.xlu0 %v3468, 121
        %v3683 = vpop.permute.xlu0 %3682
        %3684 = vrot.lane.b32.xlu0 %v3477, 121
        %v3685 = vpop.permute.xlu0 %3684
        %3686 = vrot.lane.b32.xlu0 %v3478, 121
        %v3687 = vpop.permute.xlu0 %3686
        %3688 = vrot.lane.b32.xlu0 %v3474, 121
        %v3689 = vpop.permute.xlu0 %3688
        %3690 = vrot.lane.b32.xlu0 %v3497, 121
        %v3691 = vpop.permute.xlu0 %3690
        %3692 = vrot.lane.b32.xlu0 %v3498, 121
        %v3693 = vpop.permute.xlu0 %3692
        %3694 = vrot.lane.b32.xlu0 %v3490, 121
        %v3695 = vpop.permute.xlu0 %3694
        %3696 = vrot.lane.b32.xlu0 %v3499, 121
        %v3697 = vpop.permute.xlu0 %3696
        %3698 = vrot.lane.b32.xlu0 %v3500, 121
        %v3699 = vpop.permute.xlu0 %3698
        %3700 = vrot.lane.b32.xlu0 %v3496, 121
        %v3701 = vpop.permute.xlu0 %3700
        %3702 = vrot.lane.b32.xlu0 %v3519, 121
        %v3703 = vpop.permute.xlu0 %3702
        %3704 = vrot.lane.b32.xlu0 %v3520, 121
        %v3705 = vpop.permute.xlu0 %3704
        %3706 = vrot.lane.b32.xlu0 %v3512, 121
        %v3707 = vpop.permute.xlu0 %3706
        %3708 = vrot.lane.b32.xlu0 %v3521, 121
        %v3709 = vpop.permute.xlu0 %3708
        %3710 = vrot.lane.b32.xlu0 %v3522, 121
        %v3711 = vpop.permute.xlu0 %3710
        %3712 = vrot.lane.b32.xlu0 %v3518, 121
        %v3713 = vpop.permute.xlu0 %3712
        %3714 = vrot.lane.b32.xlu0 %v3541, 121
        %v3715 = vpop.permute.xlu0 %3714
        %3716 = vrot.lane.b32.xlu0 %v3542, 121
        %v3717 = vpop.permute.xlu0 %3716
        %3718 = vrot.lane.b32.xlu0 %v3534, 121
        %v3719 = vpop.permute.xlu0 %3718
        %3720 = vrot.lane.b32.xlu0 %v3543, 121
        %v3721 = vpop.permute.xlu0 %3720
        %3722 = vrot.lane.b32.xlu0 %v3544, 121
        %v3723 = vpop.permute.xlu0 %3722
        %3724 = vrot.lane.b32.xlu0 %v3540, 121
        %v3725 = vpop.permute.xlu0 %3724
        %3726 = vrot.lane.b32.xlu0 %v3563, 121
        %v3727 = vpop.permute.xlu0 %3726
        %3728 = vrot.lane.b32.xlu0 %v3564, 121
        %v3729 = vpop.permute.xlu0 %3728
        %3730 = vrot.lane.b32.xlu0 %v3556, 121
        %v3731 = vpop.permute.xlu0 %3730
        %3732 = vrot.lane.b32.xlu0 %v3565, 121
        %v3733 = vpop.permute.xlu0 %3732
        %3734 = vrot.lane.b32.xlu0 %v3566, 121
        %v3735 = vpop.permute.xlu0 %3734
        %3736 = vrot.lane.b32.xlu0 %v3562, 121
        %v3737 = vpop.permute.xlu0 %3736
        %3738 = vrot.lane.b32.xlu0 %v3585, 121
        %v3739 = vpop.permute.xlu0 %3738
        %3740 = vrot.lane.b32.xlu0 %v3586, 121
        %v3741 = vpop.permute.xlu0 %3740
        %3742 = vrot.lane.b32.xlu0 %v3578, 121
        %v3743 = vpop.permute.xlu0 %3742
        %3744 = vrot.lane.b32.xlu0 %v3587, 121
        %v3745 = vpop.permute.xlu0 %3744
        %3746 = vrot.lane.b32.xlu0 %v3588, 121
        %v3747 = vpop.permute.xlu0 %3746
        %3748 = vrot.lane.b32.xlu0 %v3584, 121
        %v3749 = vpop.permute.xlu0 %3748
        %3750 = vrot.lane.b32.xlu0 %v3607, 121
        %v3751 = vpop.permute.xlu0 %3750
        %3752 = vrot.lane.b32.xlu0 %v3608, 121
        %v3753 = vpop.permute.xlu0 %3752
        %3754 = vrot.lane.b32.xlu0 %v3600, 121
        %v3755 = vpop.permute.xlu0 %3754
        %3756 = vrot.lane.b32.xlu0 %v3609, 121
        %v3757 = vpop.permute.xlu0 %3756
        %3758 = vrot.lane.b32.xlu0 %v3610, 121
        %v3759 = vpop.permute.xlu0 %3758
        %3760 = vrot.lane.b32.xlu0 %v3606, 121
        %v3761 = vpop.permute.xlu0 %3760
        %3762 = vrot.lane.b32.xlu0 %v3629, 121
        %v3763 = vpop.permute.xlu0 %3762
        %3764 = vrot.lane.b32.xlu0 %v3630, 121
        %v3765 = vpop.permute.xlu0 %3764
        %3766 = vrot.lane.b32.xlu0 %v3622, 121
        %v3767 = vpop.permute.xlu0 %3766
        %3768 = vrot.lane.b32.xlu0 %v3631, 121
        %v3769 = vpop.permute.xlu0 %3768
        %3770 = vrot.lane.b32.xlu0 %v3632, 121
        %v3771 = vpop.permute.xlu0 %3770
        %3772 = vrot.lane.b32.xlu0 %v3628, 121
        %v3773 = vpop.permute.xlu0 %3772
        %v3774 = vsel %vm2938, %v3667, %v3669
        %v3775 = vsel %vm2938, %v3669, %v3671
        %v3776 = vsel %vm2938, %v3673, %v3675
        %v3777 = vsel %vm2938, %v3675, %v3677
        %v3778 = vsel %vm2938, %v3679, %v3681
        %v3779 = vsel %vm2938, %v3681, %v3683
        %v3780 = vsel %vm2938, %v3685, %v3687
        %v3781 = vsel %vm2938, %v3687, %v3689
        %v3782 = vsel %vm2938, %v3691, %v3693
        %v3783 = vsel %vm2938, %v3693, %v3695
        %v3784 = vsel %vm2938, %v3697, %v3699
        %v3785 = vsel %vm2938, %v3699, %v3701
        %v3786 = vsel %vm2938, %v3703, %v3705
        %v3787 = vsel %vm2938, %v3705, %v3707
        %v3788 = vsel %vm2938, %v3709, %v3711
        %v3789 = vsel %vm2938, %v3711, %v3713
        %v3790 = vsel %vm2938, %v3715, %v3717
        %v3791 = vsel %vm2938, %v3717, %v3719
        %v3792 = vsel %vm2938, %v3721, %v3723
        %v3793 = vsel %vm2938, %v3723, %v3725
        %v3794 = vsel %vm2938, %v3727, %v3729
        %v3795 = vsel %vm2938, %v3729, %v3731
        %v3796 = vsel %vm2938, %v3733, %v3735
        %v3797 = vsel %vm2938, %v3735, %v3737
        %v3798 = vsel %vm2938, %v3739, %v3741
        %v3799 = vsel %vm2938, %v3741, %v3743
        %v3800 = vsel %vm2938, %v3745, %v3747
        %v3801 = vsel %vm2938, %v3747, %v3749
        %v3802 = vsel %vm2938, %v3751, %v3753
        %v3803 = vsel %vm2938, %v3753, %v3755
        %v3804 = vsel %vm2938, %v3757, %v3759
        %v3805 = vsel %vm2938, %v3759, %v3761
        %v3806 = vsel %vm2938, %v3763, %v3765
        %v3807 = vsel %vm2938, %v3765, %v3767
        %v3808 = vsel %vm2938, %v3769, %v3771
        %v3809 = vsel %vm2938, %v3771, %v3773
        %v3847 = vsel %vm2176, %v3657, 0
        %3849 = vmatprep.subr.bf16.mxu0 %v3775
        %3850 = vmatpush1.bf16.msra.mxu0 %v3774
        %3851 = vmatprep.subr.bf16.mxu0 %v3777
        %3852 = vmatpush1.bf16.msra.mxu0 %v3776
        %3853 = vmatprep.subr.bf16.mxu0 %v3779
        %3854 = vmatpush1.bf16.msra.mxu0 %v3778
        %3855 = vmatprep.subr.bf16.mxu0 %v3781
        %3856 = vmatpush1.bf16.msra.mxu0 %v3780
        %3857 = vmatprep.subr.bf16.mxu0 %v3783
        %3858 = vmatpush1.bf16.msra.mxu0 %v3782
        %3859 = vmatprep.subr.bf16.mxu0 %v3785
        %3860 = vmatpush1.bf16.msra.mxu0 %v3784
        %3861 = vmatprep.subr.bf16.mxu0 %v3787
        %3862 = vmatpush1.bf16.msra.mxu0 %v3786
        %3863 = vmatprep.subr.bf16.mxu0 %v3789
        %3864 = vmatpush1.bf16.msra.mxu0 %v3788
        %3865 = vmatprep.subr.bf16.mxu0 %v3791
        %3866 = vmatpush1.bf16.msra.mxu0 %v3790
        %3867 = vmatprep.subr.bf16.mxu0 %v3793
        %3868 = vmatpush1.bf16.msra.mxu0 %v3792
        %3869 = vmatprep.subr.bf16.mxu0 %v3795
        %3870 = vmatpush1.bf16.msra.mxu0 %v3794
        %3871 = vmatprep.subr.bf16.mxu0 %v3797
        %3872 = vmatpush1.bf16.msra.mxu0 %v3796
        %3873 = vmatprep.subr.bf16.mxu0 %v3799
        %3874 = vmatpush1.bf16.msra.mxu0 %v3798
        %3875 = vmatprep.subr.bf16.mxu0 %v3801
        %3876 = vmatpush1.bf16.msra.mxu0 %v3800
        %3877 = vmatprep.subr.bf16.mxu0 %v3803
        %3878 = vmatpush1.bf16.msra.mxu0 %v3802
        %3879 = vmatprep.subr.bf16.mxu0 %v3805
        %3880 = vmatpush1.bf16.msra.mxu0 %v3804
        %3881 = vmatprep.mubr.bf16.mxu0 %v3656
        %3882 = vmatmul.mubr.bf16.gmra.mrb[0].mxu0 %v3655
        %v3883 = vpop.f32.mrb[0].mxu0
        %v3884 = vadd.f32 %v3638, %v3883
        %v3885 = vpop.f32.mrb[0].mxu0
        %v3886 = vadd.f32 %v3638, %v3885
        %v3887 = vpop.f32.mrb[0].mxu0
        %v3888 = vadd.f32 %v3643, %v3887
        %v3889 = vpop.f32.mrb[0].mxu0
        %v3890 = vadd.f32 %v3643, %v3889
        %3891 = vdwg.mxu0
        %3892 = vmatprep.subr.bf16.mxu0 %v3807
        %3893 = vmatpush1.bf16.msra.mxu0 %v3806
        %3894 = vmatprep.subr.bf16.mxu0 %v3809
        %3895 = vmatpush1.bf16.msra.mxu0 %v3808
        %3896 = vmatprep.subr.bf16.mxu0 0
        %3897 = vmatpush1.bf16.msra.mxu0 0
        %3898 = vmatprep.subr.bf16.mxu0 0
        %3899 = vmatpush1.bf16.msra.mxu0 0
        %3900 = vmatprep.subr.bf16.mxu0 0
        %3901 = vmatpush1.bf16.msra.mxu0 0
        %3902 = vmatprep.subr.bf16.mxu0 0
        %3903 = vmatpush1.bf16.msra.mxu0 0
        %3904 = vmatprep.subr.bf16.mxu0 0
        %3905 = vmatpush1.bf16.msra.mxu0 0
        %3906 = vmatprep.subr.bf16.mxu0 0
        %3907 = vmatpush1.bf16.msra.mxu0 0
        %3908 = vmatprep.subr.bf16.mxu0 0
        %3909 = vmatpush1.bf16.msra.mxu0 0
        %3910 = vmatprep.subr.bf16.mxu0 0
        %3911 = vmatpush1.bf16.msra.mxu0 0
        %3912 = vmatprep.subr.bf16.mxu0 0
        %3913 = vmatpush1.bf16.msra.mxu0 0
        %3914 = vmatprep.subr.bf16.mxu0 0
        %3915 = vmatpush1.bf16.msra.mxu0 0
        %3916 = vmatprep.subr.bf16.mxu0 0
        %3917 = vmatpush1.bf16.msra.mxu0 0
        %3918 = vmatprep.subr.bf16.mxu0 0
        %3919 = vmatpush1.bf16.msra.mxu0 0
        %3920 = vmatprep.subr.bf16.mxu0 0
        %3921 = vmatpush1.bf16.msra.mxu0 0
        %3922 = vmatprep.subr.bf16.mxu0 0
        %3923 = vmatpush1.bf16.msra.mxu0 0
        %3924 = vmatprep.mubr.bf16.mxu0 0
        %3925 = vmatmul.mubr.bf16.gmra.mrb[0].mxu0 %v3847
        %v3926 = vpop.f32.mrb[0].mxu0
        %v3927 = vadd.f32 %v3884, %v3926
        %v3928 = vpop.f32.mrb[0].mxu0
        %v3929 = vadd.f32 %v3886, %v3928
        %v3930 = vpop.f32.mrb[0].mxu0
        %v3931 = vadd.f32 %v3888, %v3930
        %v3932 = vpop.f32.mrb[0].mxu0
        %v3933 = vadd.f32 %v3890, %v3932
        %3934 = vdwg.mxu0
        %v3935 = vld [vmem:[%s13] sm:$0xf]
        %v3936 = vld [vmem:[%s13 + $0x4] sm:$0xf]
        %v3937 = vpack.c.bf16 %v511, %v511
        %v3938 = vpack.c.bf16 %v512, %v512
        %v3941 = vunpack.c.l.b16 %v3935
        %v3942 = vunpack.c.l.b16 %v3936
        %v3943 = vpack.c.b16 %v3942, %v3941
        %v3945 = vsel %vm689, %v3943, 0
        %v3948 = vsel %vm2825, %v3937, 0
        %v3951 = vsel %vm2825, %v3938, 0
        %3953 = vmatprep.subr.bf16.mxu0 %v3951
        %3954 = vmatpush1.bf16.msra.mxu0 %v3948
        %3955 = vmatprep.subr.bf16.mxu0 0
        %3956 = vmatpush1.bf16.msra.mxu0 0
        %3957 = vmatprep.subr.bf16.mxu0 0
        %3958 = vmatpush1.bf16.msra.mxu0 0
        %3959 = vmatprep.subr.bf16.mxu0 0
        %3960 = vmatpush1.bf16.msra.mxu0 0
        %3961 = vmatprep.subr.bf16.mxu0 0
        %3962 = vmatpush1.bf16.msra.mxu0 0
        %3963 = vmatprep.subr.bf16.mxu0 0
        %3964 = vmatpush1.bf16.msra.mxu0 0
        %3965 = vmatprep.subr.bf16.mxu0 0
        %3966 = vmatpush1.bf16.msra.mxu0 0
        %3967 = vmatprep.subr.bf16.mxu0 0
        %3968 = vmatpush1.bf16.msra.mxu0 0
        %3969 = vmatprep.subr.bf16.mxu0 0
        %3970 = vmatpush1.bf16.msra.mxu0 0
        %3971 = vmatprep.subr.bf16.mxu0 0
        %3972 = vmatpush1.bf16.msra.mxu0 0
        %3973 = vmatprep.subr.bf16.mxu0 0
        %3974 = vmatpush1.bf16.msra.mxu0 0
        %3975 = vmatprep.subr.bf16.mxu0 0
        %3976 = vmatpush1.bf16.msra.mxu0 0
        %3977 = vmatprep.subr.bf16.mxu0 0
        %3978 = vmatpush1.bf16.msra.mxu0 0
        %3979 = vmatprep.subr.bf16.mxu0 0
        %3980 = vmatpush1.bf16.msra.mxu0 0
        %3981 = vmatprep.subr.bf16.mxu0 0
        %3982 = vmatpush1.bf16.msra.mxu0 0
        %3983 = vmatprep.subr.bf16.mxu0 0
        %3984 = vmatpush1.bf16.msra.mxu0 0
        %3985 = vmatprep.mubr.bf16.mxu0 0
        %3986 = vmatmul.mubr.bf16.gmra.mrb[0].mxu0 %v3945
        %v3987 = vpop.f32.mrb[0].mxu0
        %v3988 = vadd.f32 0.0, %v3987
        %v3989 = vpop.f32.mrb[0].mxu0
        %v3990 = vadd.f32 0.0, %v3989
        %v3991 = vpop.f32.mrb[0].mxu0
        %v3992 = vadd.f32 0.0, %v3991
        %v3993 = vpop.f32.mrb[0].mxu0
        %v3994 = vadd.f32 0.0, %v3993
        %3995 = vdwg.mxu0
        %v3996 = vadd.f32 %v3927, %v3988
        %v3997 = vadd.f32 %v3929, %v3990
        %v3998 = vadd.f32 %v3931, %v3992
        %v3999 = vadd.f32 %v3933, %v3994
        %v4000 = vld [vmem:[%s14] sm:$0xff]
        %v4001 = vld [vmem:[%s14 + $0x8] sm:$0xff]
        %4003 = vset.pattern.permute.xlu0 0
        %4004 = vperm.xlu0 %4003, %v4000
        %v4005 = vpop.permute.xlu0 %4004
        %4008 = vset.pattern.permute.xlu0 0
        %4009 = vperm.xlu0 %4008, %v4001
        %v4010 = vpop.permute.xlu0 %4009
        %v4012 = vadd.f32 %v3996, %v4005
        %v4013 = vadd.f32 %v3997, %v4005
        %v4014 = vadd.f32 %v3998, %v4010
        %v4015 = vadd.f32 %v3999, %v4010
        %4016 = vst [vmem:[%s500] sm:$0xff] %v4012
        %4017 = vst [vmem:[%s500 + $0x8] sm:$0xff] %v4013
        %4018 = vst [vmem:[%s500 + $0x10] sm:$0xff] %v4014
        %4019 = vst [vmem:[%s500 + $0x18] sm:$0xff] %v4015
        %s4020 = sand.u32 %s362, 1
        %s4021 = scalar_lea.sflag [#allocation6], %s4020
        %s4022 = sand.u32 %s362, 1
        %s4023 = smul.addr %s4022, 32
        %s4024 = scalar_lea.vmem [#allocation5], %s4023
        // Predicated region
        $region81: #{tpu_custom_call.1} parent=79 // pred_check
          %p4025 = pneg %p372
        $region82: #{tpu_custom_call.1} parent=79 // pred_check_branch
          %4027 = sbr.rel (%p4025) target = $region84
        $region83: #{tpu_custom_call.1} parent=79 // pred_region
          %s4029 = ssub.s32 512, 512
          %4030 = vsyncadd %s4021, %s4029
          %s4031 = smul.addr %s29, 4
          %s4032 = smul.addr %s4031, 128
          %s4033 = scalar_lea.hbm %s15, %s4032
          %s4034 = sshll.u32 %s4024, 4
          %s4035 = int_to_ptr.vmem [resolvable:$true] %s4034
          %4040 = dma.vmem_to_hbm [thread:$0]  %s4035, 512, %s4033, %s4021, 256, 256, 16
        $region84: #{tpu_custom_call.1} parent=79 // pred_fallthru
          _
      $region80: #{tpu_custom_call.1} parent=5 // pred_fallthru
        _
      %p4041 = scmp.le.s32.totalorder 2, %s24
      // Predicated region
      $region85: #{tpu_custom_call.1} parent=5 // pred_check
        %p4042 = pneg %p4041
      $region86: #{tpu_custom_call.1} parent=5 // pred_check_branch
        %4044 = sbr.rel (%p4042) target = $region88
      $region87: #{tpu_custom_call.1} parent=5 // pred_region
        %s4045 = ssub.s32 %s24, 2
        // Predicated region
        $region89: #{tpu_custom_call.1} parent=87 // pred_check
          %p4046 = pneg %p378
        $region90: #{tpu_custom_call.1} parent=87 // pred_check_branch
          %4048 = sbr.rel (%p4046) target = $region92
        $region91: #{tpu_custom_call.1} parent=87 // pred_region
          %s4049 = sand.u32 %s363, 1
          %s4050 = scalar_lea.sflag [#allocation6], %s4049
          %s4051 = sand.u32 %s363, 1
          %s4052 = smul.addr %s4051, 32
          %s4053 = scalar_lea.vmem [#allocation5], %s4052
          %4054 = dma.done %s4050, 512
        $region92: #{tpu_custom_call.1} parent=87 // pred_fallthru
          _
      $region88: #{tpu_custom_call.1} parent=5 // pred_fallthru
        _
    $region6: #{tpu_custom_call.1} parent=1 // loop_footer
      %s28 = sadd.s32 1, %s24
    $region7: #{tpu_custom_call.1} parent=1 // loop_footer_branch
      %23 = sbr.rel target = $region3
    $region8: #{tpu_custom_call.1} parent=1 // loop_exit
      _
    %4055 = vsyncpa [#allocation6], 1
    %s4056 = scalar_lea.sflag [#allocation6], 1
    %4057 = vsyncpa %s4056, 1

</llo_original>
